<compile_context>
chip_gen: v7x
topology: tpu7x:2x2x1
jax: 0.10.0
libtpu: 0.0.40
codegen_flags: <defaults>
</compile_context>

<pallas_src>
import functools
import math

import jax
import jax.numpy as jnp
from jax.experimental import pallas as pl
from jax.experimental.pallas import tpu as pltpu


# ----------------------------- Pallas kernel --------------------------------
def _cheb_stack_kernel(lap_ref, x_ref, w_ref, b_ref, o_ref, slab_ref, *,
                       num_layers: int, k_order: int):
    """Fused forward of the full ChebConv stack.

    lap_ref:  (N, N)        bf16  dense scaled Laplacian (L_hat), zero-padded
    x_ref:    (N, F)        f32   node features (zero-padded)
    w_ref:    (L, K*F, F)   bf16  per-layer stacked order-weights
    b_ref:    (L, 1, F)     f32   per-layer bias
    o_ref:    (N, F)        f32   output (padded)
    slab_ref: (N, K*F)      bf16  VMEM scratch holding [Tx_0 | ... | Tx_{K-1}]
    """
    lap = lap_ref[...]                      # bf16 [N, N], stays resident
    x = x_ref[...]                          # f32  [N, F]
    _, f = x.shape

    for layer in range(num_layers):
        # --- Chebyshev recurrence; each Tx_k lands (bf16) in the slab -------
        tx0 = x
        slab_ref[:, 0:f] = tx0.astype(jnp.bfloat16)
        tx1 = jnp.dot(lap, tx0.astype(jnp.bfloat16),
                      preferred_element_type=jnp.float32)
        slab_ref[:, f:2 * f] = tx1.astype(jnp.bfloat16)
        for k in range(2, k_order):
            tx2 = 2.0 * jnp.dot(lap, tx1.astype(jnp.bfloat16),
                                preferred_element_type=jnp.float32) - tx0
            slab_ref[:, k * f:(k + 1) * f] = tx2.astype(jnp.bfloat16)
            tx0, tx1 = tx1, tx2

        # --- single fused projection: [N, K*F] @ [K*F, F] -------------------
        out = jnp.dot(slab_ref[...], w_ref[layer],
                      preferred_element_type=jnp.float32)
        out = out + b_ref[layer]
        if layer < num_layers - 1:
            out = jnp.maximum(out, 0.0)     # ReLU (dropout = identity in eval)
        x = out

    o_ref[...] = x.astype(o_ref.dtype)


def cheb_stack_pallas(lap_bf16, x_pad, w_stack, b_stack, *, k_order: int):
    num_layers = int(w_stack.shape[0])
    n, f = x_pad.shape
    kf = k_order * f

    flops = num_layers * (2 * n * n * f * (k_order - 1) + 2 * n * kf * f)
    bytes_accessed = (lap_bf16.size * 2 + x_pad.size * 4 + w_stack.size * 2
                      + b_stack.size * 4 + n * f * 4)

    kernel = functools.partial(_cheb_stack_kernel,
                               num_layers=num_layers, k_order=k_order)
    return pl.pallas_call(
        kernel,
        out_shape=jax.ShapeDtypeStruct((n, f), jnp.float32),
        in_specs=[pl.BlockSpec(memory_space=pltpu.MemorySpace.VMEM)] * 4,
        out_specs=pl.BlockSpec(memory_space=pltpu.MemorySpace.VMEM),
        scratch_shapes=[pltpu.VMEM((n, kf), jnp.bfloat16)],
        cost_estimate=pl.CostEstimate(flops=int(flops), transcendentals=0,
                                      bytes_accessed=int(bytes_accessed)),
    )(lap_bf16, x_pad, w_stack, b_stack)


# ------------------------------ JAX glue -------------------------------------
def scaled_laplacian_dense(edge_index, num_nodes):
    """Dense equivalent of PyG ChebConv.__norm__ (sym norm, lambda_max=2.0).

    Result M satisfies propagate(edge_index, x, norm) == M @ x:
    M[target, source] = -deg[source]^{-1/2} * deg[target]^{-1/2} per edge.
    """
    src = edge_index[0]
    dst = edge_index[1]
    a = jnp.zeros((num_nodes, num_nodes), jnp.float32).at[src, dst].add(1.0)
    deg = a.sum(axis=1)                      # scatter over source rows
    dinv = jnp.where(deg > 0.0, jax.lax.rsqrt(deg), 0.0)
    norm = -(dinv[:, None] * a * dinv[None, :])   # indexed [source, target]
    return norm.T                                 # [target, source]


def init_cheb_params(key, in_channels, hidden_channels, out_channels,
                     num_layers=8, k_order=8):
    """Glorot-style init matching ChebConv parameter shapes:
    K weight matrices (Fin, Fout) per layer + one bias (Fout,) per layer."""
    dims = ([(in_channels, hidden_channels)]
            + [(hidden_channels, hidden_channels)] * (num_layers - 2)
            + [(hidden_channels, out_channels)])
    params = []
    for (fi, fo) in dims:
        key, wk = jax.random.split(key)
        scale = jnp.sqrt(2.0 / (fi + fo))
        w = scale * jax.random.normal(wk, (k_order, fi, fo), jnp.float32)
        b = jnp.zeros((fo,), jnp.float32)
        params.append((w, b))
    return params


def _round_up(v, m):
    return m * math.ceil(v / m)


def _pad_to(a, shape):
    pads = [(0, s - d) for d, s in zip(a.shape, shape)]
    return jnp.pad(a, pads)


def prepare_fused_inputs(x, params, k_order):
    """Zero-pad nodes/features to lane-dense widths and stack per-layer params:
    weights -> [L, K*F, F] bf16 slabs, biases -> [L, 1, F] f32."""
    n = x.shape[0]
    n_pad = _round_up(n, 128)
    widths = [x.shape[1]] + [int(w.shape[2]) for (w, _) in params]
    f_pad = _round_up(max(widths), 128)
    x_pad = _pad_to(x.astype(jnp.float32), (n_pad, f_pad))
    w_list, b_list = [], []
    for (w, b) in params:
        w_p = _pad_to(w, (k_order, f_pad, f_pad)).reshape(k_order * f_pad, f_pad)
        w_list.append(w_p.astype(jnp.bfloat16))
        b_list.append(_pad_to(b, (f_pad,)).reshape(1, f_pad).astype(jnp.float32))
    return x_pad, jnp.stack(w_list), jnp.stack(b_list), n_pad, f_pad


def cheb_forward(x, edge_index, params, k_order=8):
    """Equivalent of Cheb.forward in eval mode (dropout = identity)."""
    x_pad, w_stack, b_stack, n_pad, _ = prepare_fused_inputs(x, params, k_order)
    lap = scaled_laplacian_dense(edge_index, x.shape[0])
    lap = _pad_to(lap, (n_pad, n_pad)).astype(jnp.bfloat16)
    out_pad = cheb_stack_pallas(lap, x_pad, w_stack, b_stack, k_order=k_order)
    out_channels = int(params[-1][0].shape[2])
    return out_pad[:x.shape[0], :out_channels]


def cheb_forward_ref(x, edge_index, params, k_order=8):
    """Pure-JAX reference mirroring the kernel's bf16-operand / f32-accum math."""
    x_pad, w_stack, b_stack, n_pad, _ = prepare_fused_inputs(x, params, k_order)
    lap = scaled_laplacian_dense(edge_index, x.shape[0])
    lap = _pad_to(lap, (n_pad, n_pad)).astype(jnp.bfloat16)
    h = x_pad
    num_layers = int(w_stack.shape[0])
    for layer in range(num_layers):
        txs = []
        tx0 = h
        txs.append(tx0.astype(jnp.bfloat16))
        tx1 = jnp.dot(lap, tx0.astype(jnp.bfloat16),
                      preferred_element_type=jnp.float32)
        txs.append(tx1.astype(jnp.bfloat16))
        for _ in range(2, k_order):
            tx2 = 2.0 * jnp.dot(lap, tx1.astype(jnp.bfloat16),
                                preferred_element_type=jnp.float32) - tx0
            txs.append(tx2.astype(jnp.bfloat16))
            tx0, tx1 = tx1, tx2
        slab = jnp.concatenate(txs, axis=1)
        h = jnp.dot(slab, w_stack[layer],
                    preferred_element_type=jnp.float32) + b_stack[layer]
        if layer < num_layers - 1:
            h = jnp.maximum(h, 0.0)
    out_channels = int(params[-1][0].shape[2])
    return h[:x.shape[0], :out_channels]


# ------------------------------ main -----------------------------------------
if __name__ == "__main__":
    key = jax.random.PRNGKey(0)

    num_nodes = 64
    in_channels = 8
    hidden_channels = 32
    out_channels = 16
    num_layers = 3          # small stack: (in->hid), (hid->hid), (hid->out)
    num_undirected_edges = 128

    k_feat, k_edge, k_param = jax.random.split(key, 3)

    # Node features [N, Fin]
    x = jax.random.normal(k_feat, (num_nodes, in_channels), jnp.float32)

    # Random symmetric edge_index [2, E] (both directions of each edge).
    e = jax.random.randint(k_edge, (2, num_undirected_edges), 0, num_nodes,
                           dtype=jnp.int32)
    edge_index = jnp.concatenate(
        [e, jnp.stack([e[1], e[0]], axis=0)], axis=1)  # [2, 2*E]

    params = init_cheb_params(k_param, in_channels, hidden_channels,
                              out_channels, num_layers=num_layers, k_order=8)

    out = cheb_forward(x, edge_index, params)
    out = jax.block_until_ready(out)
    ref = jax.block_until_ready(cheb_forward_ref(x, edge_index, params))

    assert out.shape == (num_nodes, out_channels)
    assert bool(jnp.all(jnp.isfinite(out)))
    assert bool(jnp.allclose(out, ref, rtol=5e-2, atol=5e-2))
    print("KERNEL_OK")
</pallas_src>

<mosaic_0001>
module attributes {stable_mosaic.version = 11 : i64} {
  func.func @_cheb_stack_kernel(%arg0: memref<128x128xbf16, #tpu.memory_space<vmem>>, %arg1: memref<128x128xf32, #tpu.memory_space<vmem>>, %arg2: memref<3x1024x128xbf16, #tpu.memory_space<vmem>>, %arg3: memref<3x1x128xf32, #tpu.memory_space<vmem>>, %arg4: memref<128x128xf32, #tpu.memory_space<vmem>>, %arg5: memref<128x1024xbf16, #tpu.memory_space<vmem>>) attributes {dimension_semantics = [], scalar_prefetch = 0 : i64, scratch_operands = 1 : i64, tpu.core_type = #tpu.core_type<tc>} {
    %c0 = arith.constant 0 : index
    %c0_0 = arith.constant 0 : index
    %0 = vector.load %arg0[%c0, %c0_0] : memref<128x128xbf16, #tpu.memory_space<vmem>>, vector<128x128xbf16>
    %c0_1 = arith.constant 0 : index
    %c0_2 = arith.constant 0 : index
    %1 = vector.load %arg1[%c0_1, %c0_2] : memref<128x128xf32, #tpu.memory_space<vmem>>, vector<128x128xf32>
    %2 = arith.truncf %1 : vector<128x128xf32> to vector<128x128xbf16>
    %c0_3 = arith.constant 0 : index
    %c0_4 = arith.constant 0 : index
    %3 = vector.load %arg5[%c0_3, %c0_4] : memref<128x1024xbf16, #tpu.memory_space<vmem>>, vector<128x128xbf16>
    tpu.vector_store %arg5[%c0_3, %c0_4], %2 {strides = array<i32>} : memref<128x1024xbf16, #tpu.memory_space<vmem>>, vector<128x128xbf16>,
    %4 = arith.truncf %1 : vector<128x128xf32> to vector<128x128xbf16>
    %cst = arith.constant dense<0.000000e+00> : vector<128x128xf32>
    %5 = tpu.matmul %0, %4, %cst {dimension_numbers = #tpu.dot_dimension_numbers<[1], [0], [0], [1], [0, 0, 1, 1], [], []>} : vector<128x128xbf16>, vector<128x128xbf16>, vector<128x128xf32> -> vector<128x128xf32>
    %6 = arith.truncf %5 : vector<128x128xf32> to vector<128x128xbf16>
    %c0_5 = arith.constant 0 : index
    %c128 = arith.constant 128 : index
    %7 = vector.load %arg5[%c0_5, %c128] : memref<128x1024xbf16, #tpu.memory_space<vmem>>, vector<128x128xbf16>
    tpu.vector_store %arg5[%c0_5, %c128], %6 {strides = array<i32>} : memref<128x1024xbf16, #tpu.memory_space<vmem>>, vector<128x128xbf16>,
    %8 = arith.truncf %5 : vector<128x128xf32> to vector<128x128xbf16>
    %cst_6 = arith.constant dense<0.000000e+00> : vector<128x128xf32>
    %9 = tpu.matmul %0, %8, %cst_6 {dimension_numbers = #tpu.dot_dimension_numbers<[1], [0], [0], [1], [0, 0, 1, 1], [], []>} : vector<128x128xbf16>, vector<128x128xbf16>, vector<128x128xf32> -> vector<128x128xf32>
    %cst_7 = arith.constant 2.000000e+00 : f32
    %10 = vector.broadcast %cst_7 : f32 to vector<128x128xf32>
    %11 = arith.mulf %10, %9 : vector<128x128xf32>
    %12 = arith.subf %11, %1 : vector<128x128xf32>
    %13 = arith.truncf %12 : vector<128x128xf32> to vector<128x128xbf16>
    %c0_8 = arith.constant 0 : index
    %c256 = arith.constant 256 : index
    %14 = vector.load %arg5[%c0_8, %c256] : memref<128x1024xbf16, #tpu.memory_space<vmem>>, vector<128x128xbf16>
    tpu.vector_store %arg5[%c0_8, %c256], %13 {strides = array<i32>} : memref<128x1024xbf16, #tpu.memory_space<vmem>>, vector<128x128xbf16>,
    %15 = arith.truncf %12 : vector<128x128xf32> to vector<128x128xbf16>
    %cst_9 = arith.constant dense<0.000000e+00> : vector<128x128xf32>
    %16 = tpu.matmul %0, %15, %cst_9 {dimension_numbers = #tpu.dot_dimension_numbers<[1], [0], [0], [1], [0, 0, 1, 1], [], []>} : vector<128x128xbf16>, vector<128x128xbf16>, vector<128x128xf32> -> vector<128x128xf32>
    %cst_10 = arith.constant 2.000000e+00 : f32
    %17 = vector.broadcast %cst_10 : f32 to vector<128x128xf32>
    %18 = arith.mulf %17, %16 : vector<128x128xf32>
    %19 = arith.subf %18, %5 : vector<128x128xf32>
    %20 = arith.truncf %19 : vector<128x128xf32> to vector<128x128xbf16>
    %c0_11 = arith.constant 0 : index
    %c384 = arith.constant 384 : index
    %21 = vector.load %arg5[%c0_11, %c384] : memref<128x1024xbf16, #tpu.memory_space<vmem>>, vector<128x128xbf16>
    tpu.vector_store %arg5[%c0_11, %c384], %20 {strides = array<i32>} : memref<128x1024xbf16, #tpu.memory_space<vmem>>, vector<128x128xbf16>,
    %22 = arith.truncf %19 : vector<128x128xf32> to vector<128x128xbf16>
    %cst_12 = arith.constant dense<0.000000e+00> : vector<128x128xf32>
    %23 = tpu.matmul %0, %22, %cst_12 {dimension_numbers = #tpu.dot_dimension_numbers<[1], [0], [0], [1], [0, 0, 1, 1], [], []>} : vector<128x128xbf16>, vector<128x128xbf16>, vector<128x128xf32> -> vector<128x128xf32>
    %cst_13 = arith.constant 2.000000e+00 : f32
    %24 = vector.broadcast %cst_13 : f32 to vector<128x128xf32>
    %25 = arith.mulf %24, %23 : vector<128x128xf32>
    %26 = arith.subf %25, %12 : vector<128x128xf32>
    %27 = arith.truncf %26 : vector<128x128xf32> to vector<128x128xbf16>
    %c0_14 = arith.constant 0 : index
    %c512 = arith.constant 512 : index
    %28 = vector.load %arg5[%c0_14, %c512] : memref<128x1024xbf16, #tpu.memory_space<vmem>>, vector<128x128xbf16>
    tpu.vector_store %arg5[%c0_14, %c512], %27 {strides = array<i32>} : memref<128x1024xbf16, #tpu.memory_space<vmem>>, vector<128x128xbf16>,
    %29 = arith.truncf %26 : vector<128x128xf32> to vector<128x128xbf16>
    %cst_15 = arith.constant dense<0.000000e+00> : vector<128x128xf32>
    %30 = tpu.matmul %0, %29, %cst_15 {dimension_numbers = #tpu.dot_dimension_numbers<[1], [0], [0], [1], [0, 0, 1, 1], [], []>} : vector<128x128xbf16>, vector<128x128xbf16>, vector<128x128xf32> -> vector<128x128xf32>
    %cst_16 = arith.constant 2.000000e+00 : f32
    %31 = vector.broadcast %cst_16 : f32 to vector<128x128xf32>
    %32 = arith.mulf %31, %30 : vector<128x128xf32>
    %33 = arith.subf %32, %19 : vector<128x128xf32>
    %34 = arith.truncf %33 : vector<128x128xf32> to vector<128x128xbf16>
    %c0_17 = arith.constant 0 : index
    %c640 = arith.constant 640 : index
    %35 = vector.load %arg5[%c0_17, %c640] : memref<128x1024xbf16, #tpu.memory_space<vmem>>, vector<128x128xbf16>
    tpu.vector_store %arg5[%c0_17, %c640], %34 {strides = array<i32>} : memref<128x1024xbf16, #tpu.memory_space<vmem>>, vector<128x128xbf16>,
    %36 = arith.truncf %33 : vector<128x128xf32> to vector<128x128xbf16>
    %cst_18 = arith.constant dense<0.000000e+00> : vector<128x128xf32>
    %37 = tpu.matmul %0, %36, %cst_18 {dimension_numbers = #tpu.dot_dimension_numbers<[1], [0], [0], [1], [0, 0, 1, 1], [], []>} : vector<128x128xbf16>, vector<128x128xbf16>, vector<128x128xf32> -> vector<128x128xf32>
    %cst_19 = arith.constant 2.000000e+00 : f32
    %38 = vector.broadcast %cst_19 : f32 to vector<128x128xf32>
    %39 = arith.mulf %38, %37 : vector<128x128xf32>
    %40 = arith.subf %39, %26 : vector<128x128xf32>
    %41 = arith.truncf %40 : vector<128x128xf32> to vector<128x128xbf16>
    %c0_20 = arith.constant 0 : index
    %c768 = arith.constant 768 : index
    %42 = vector.load %arg5[%c0_20, %c768] : memref<128x1024xbf16, #tpu.memory_space<vmem>>, vector<128x128xbf16>
    tpu.vector_store %arg5[%c0_20, %c768], %41 {strides = array<i32>} : memref<128x1024xbf16, #tpu.memory_space<vmem>>, vector<128x128xbf16>,
    %43 = arith.truncf %40 : vector<128x128xf32> to vector<128x128xbf16>
    %cst_21 = arith.constant dense<0.000000e+00> : vector<128x128xf32>
    %44 = tpu.matmul %0, %43, %cst_21 {dimension_numbers = #tpu.dot_dimension_numbers<[1], [0], [0], [1], [0, 0, 1, 1], [], []>} : vector<128x128xbf16>, vector<128x128xbf16>, vector<128x128xf32> -> vector<128x128xf32>
    %cst_22 = arith.constant 2.000000e+00 : f32
    %45 = vector.broadcast %cst_22 : f32 to vector<128x128xf32>
    %46 = arith.mulf %45, %44 : vector<128x128xf32>
    %47 = arith.subf %46, %33 : vector<128x128xf32>
    %48 = arith.truncf %47 : vector<128x128xf32> to vector<128x128xbf16>
    %c0_23 = arith.constant 0 : index
    %c896 = arith.constant 896 : index
    %49 = vector.load %arg5[%c0_23, %c896] : memref<128x1024xbf16, #tpu.memory_space<vmem>>, vector<128x128xbf16>
    tpu.vector_store %arg5[%c0_23, %c896], %48 {strides = array<i32>} : memref<128x1024xbf16, #tpu.memory_space<vmem>>, vector<128x128xbf16>,
    %c0_24 = arith.constant 0 : index
    %c0_25 = arith.constant 0 : index
    %50 = vector.load %arg5[%c0_24, %c0_25] : memref<128x1024xbf16, #tpu.memory_space<vmem>>, vector<128x1024xbf16>
    %c0_26 = arith.constant 0 : index
    %c0_27 = arith.constant 0 : index
    %c0_28 = arith.constant 0 : index
    %51 = vector.load %arg2[%c0_26, %c0_27, %c0_28] : memref<3x1024x128xbf16, #tpu.memory_space<vmem>>, vector<1x1024x128xbf16>
    %52 = vector.shape_cast %51 : vector<1x1024x128xbf16> to vector<1024x128xbf16>
    %cst_29 = arith.constant dense<0.000000e+00> : vector<128x128xf32>
    %53 = tpu.matmul %50, %52, %cst_29 {dimension_numbers = #tpu.dot_dimension_numbers<[1], [0], [0], [1], [0, 0, 1, 1], [], []>} : vector<128x1024xbf16>, vector<1024x128xbf16>, vector<128x128xf32> -> vector<128x128xf32>
    %c0_30 = arith.constant 0 : index
    %c0_31 = arith.constant 0 : index
    %c0_32 = arith.constant 0 : index
    %54 = vector.load %arg3[%c0_30, %c0_31, %c0_32] : memref<3x1x128xf32, #tpu.memory_space<vmem>>, vector<1x1x128xf32>
    %55 = vector.shape_cast %54 : vector<1x1x128xf32> to vector<1x128xf32>
    %56 = vector.broadcast %55 : vector<1x128xf32> to vector<128x128xf32>
    %57 = arith.addf %53, %56 : vector<128x128xf32>
    %cst_33 = arith.constant 0.000000e+00 : f32
    %58 = vector.broadcast %cst_33 : f32 to vector<128x128xf32>
    %59 = arith.maximumf %57, %58 : vector<128x128xf32>
    %60 = arith.truncf %59 : vector<128x128xf32> to vector<128x128xbf16>
    %c0_34 = arith.constant 0 : index
    %c0_35 = arith.constant 0 : index
    %61 = vector.load %arg5[%c0_34, %c0_35] : memref<128x1024xbf16, #tpu.memory_space<vmem>>, vector<128x128xbf16>
    tpu.vector_store %arg5[%c0_34, %c0_35], %60 {strides = array<i32>} : memref<128x1024xbf16, #tpu.memory_space<vmem>>, vector<128x128xbf16>,
    %62 = arith.truncf %59 : vector<128x128xf32> to vector<128x128xbf16>
    %cst_36 = arith.constant dense<0.000000e+00> : vector<128x128xf32>
    %63 = tpu.matmul %0, %62, %cst_36 {dimension_numbers = #tpu.dot_dimension_numbers<[1], [0], [0], [1], [0, 0, 1, 1], [], []>} : vector<128x128xbf16>, vector<128x128xbf16>, vector<128x128xf32> -> vector<128x128xf32>
    %64 = arith.truncf %63 : vector<128x128xf32> to vector<128x128xbf16>
    %c0_37 = arith.constant 0 : index
    %c128_38 = arith.constant 128 : index
    %65 = vector.load %arg5[%c0_37, %c128_38] : memref<128x1024xbf16, #tpu.memory_space<vmem>>, vector<128x128xbf16>
    tpu.vector_store %arg5[%c0_37, %c128_38], %64 {strides = array<i32>} : memref<128x1024xbf16, #tpu.memory_space<vmem>>, vector<128x128xbf16>,
    %66 = arith.truncf %63 : vector<128x128xf32> to vector<128x128xbf16>
    %cst_39 = arith.constant dense<0.000000e+00> : vector<128x128xf32>
    %67 = tpu.matmul %0, %66, %cst_39 {dimension_numbers = #tpu.dot_dimension_numbers<[1], [0], [0], [1], [0, 0, 1, 1], [], []>} : vector<128x128xbf16>, vector<128x128xbf16>, vector<128x128xf32> -> vector<128x128xf32>
    %cst_40 = arith.constant 2.000000e+00 : f32
    %68 = vector.broadcast %cst_40 : f32 to vector<128x128xf32>
    %69 = arith.mulf %68, %67 : vector<128x128xf32>
    %70 = arith.subf %69, %59 : vector<128x128xf32>
    %71 = arith.truncf %70 : vector<128x128xf32> to vector<128x128xbf16>
    %c0_41 = arith.constant 0 : index
    %c256_42 = arith.constant 256 : index
    %72 = vector.load %arg5[%c0_41, %c256_42] : memref<128x1024xbf16, #tpu.memory_space<vmem>>, vector<128x128xbf16>
    tpu.vector_store %arg5[%c0_41, %c256_42], %71 {strides = array<i32>} : memref<128x1024xbf16, #tpu.memory_space<vmem>>, vector<128x128xbf16>,
    %73 = arith.truncf %70 : vector<128x128xf32> to vector<128x128xbf16>
    %cst_43 = arith.constant dense<0.000000e+00> : vector<128x128xf32>
    %74 = tpu.matmul %0, %73, %cst_43 {dimension_numbers = #tpu.dot_dimension_numbers<[1], [0], [0], [1], [0, 0, 1, 1], [], []>} : vector<128x128xbf16>, vector<128x128xbf16>, vector<128x128xf32> -> vector<128x128xf32>
    %cst_44 = arith.constant 2.000000e+00 : f32
    %75 = vector.broadcast %cst_44 : f32 to vector<128x128xf32>
    %76 = arith.mulf %75, %74 : vector<128x128xf32>
    %77 = arith.subf %76, %63 : vector<128x128xf32>
    %78 = arith.truncf %77 : vector<128x128xf32> to vector<128x128xbf16>
    %c0_45 = arith.constant 0 : index
    %c384_46 = arith.constant 384 : index
    %79 = vector.load %arg5[%c0_45, %c384_46] : memref<128x1024xbf16, #tpu.memory_space<vmem>>, vector<128x128xbf16>
    tpu.vector_store %arg5[%c0_45, %c384_46], %78 {strides = array<i32>} : memref<128x1024xbf16, #tpu.memory_space<vmem>>, vector<128x128xbf16>,
    %80 = arith.truncf %77 : vector<128x128xf32> to vector<128x128xbf16>
    %cst_47 = arith.constant dense<0.000000e+00> : vector<128x128xf32>
    %81 = tpu.matmul %0, %80, %cst_47 {dimension_numbers = #tpu.dot_dimension_numbers<[1], [0], [0], [1], [0, 0, 1, 1], [], []>} : vector<128x128xbf16>, vector<128x128xbf16>, vector<128x128xf32> -> vector<128x128xf32>
    %cst_48 = arith.constant 2.000000e+00 : f32
    %82 = vector.broadcast %cst_48 : f32 to vector<128x128xf32>
    %83 = arith.mulf %82, %81 : vector<128x128xf32>
    %84 = arith.subf %83, %70 : vector<128x128xf32>
    %85 = arith.truncf %84 : vector<128x128xf32> to vector<128x128xbf16>
    %c0_49 = arith.constant 0 : index
    %c512_50 = arith.constant 512 : index
    %86 = vector.load %arg5[%c0_49, %c512_50] : memref<128x1024xbf16, #tpu.memory_space<vmem>>, vector<128x128xbf16>
    tpu.vector_store %arg5[%c0_49, %c512_50], %85 {strides = array<i32>} : memref<128x1024xbf16, #tpu.memory_space<vmem>>, vector<128x128xbf16>,
    %87 = arith.truncf %84 : vector<128x128xf32> to vector<128x128xbf16>
    %cst_51 = arith.constant dense<0.000000e+00> : vector<128x128xf32>
    %88 = tpu.matmul %0, %87, %cst_51 {dimension_numbers = #tpu.dot_dimension_numbers<[1], [0], [0], [1], [0, 0, 1, 1], [], []>} : vector<128x128xbf16>, vector<128x128xbf16>, vector<128x128xf32> -> vector<128x128xf32>
    %cst_52 = arith.constant 2.000000e+00 : f32
    %89 = vector.broadcast %cst_52 : f32 to vector<128x128xf32>
    %90 = arith.mulf %89, %88 : vector<128x128xf32>
    %91 = arith.subf %90, %77 : vector<128x128xf32>
    %92 = arith.truncf %91 : vector<128x128xf32> to vector<128x128xbf16>
    %c0_53 = arith.constant 0 : index
    %c640_54 = arith.constant 640 : index
    %93 = vector.load %arg5[%c0_53, %c640_54] : memref<128x1024xbf16, #tpu.memory_space<vmem>>, vector<128x128xbf16>
    tpu.vector_store %arg5[%c0_53, %c640_54], %92 {strides = array<i32>} : memref<128x1024xbf16, #tpu.memory_space<vmem>>, vector<128x128xbf16>,
    %94 = arith.truncf %91 : vector<128x128xf32> to vector<128x128xbf16>
    %cst_55 = arith.constant dense<0.000000e+00> : vector<128x128xf32>
    %95 = tpu.matmul %0, %94, %cst_55 {dimension_numbers = #tpu.dot_dimension_numbers<[1], [0], [0], [1], [0, 0, 1, 1], [], []>} : vector<128x128xbf16>, vector<128x128xbf16>, vector<128x128xf32> -> vector<128x128xf32>
    %cst_56 = arith.constant 2.000000e+00 : f32
    %96 = vector.broadcast %cst_56 : f32 to vector<128x128xf32>
    %97 = arith.mulf %96, %95 : vector<128x128xf32>
    %98 = arith.subf %97, %84 : vector<128x128xf32>
    %99 = arith.truncf %98 : vector<128x128xf32> to vector<128x128xbf16>
    %c0_57 = arith.constant 0 : index
    %c768_58 = arith.constant 768 : index
    %100 = vector.load %arg5[%c0_57, %c768_58] : memref<128x1024xbf16, #tpu.memory_space<vmem>>, vector<128x128xbf16>
    tpu.vector_store %arg5[%c0_57, %c768_58], %99 {strides = array<i32>} : memref<128x1024xbf16, #tpu.memory_space<vmem>>, vector<128x128xbf16>,
    %101 = arith.truncf %98 : vector<128x128xf32> to vector<128x128xbf16>
    %cst_59 = arith.constant dense<0.000000e+00> : vector<128x128xf32>
    %102 = tpu.matmul %0, %101, %cst_59 {dimension_numbers = #tpu.dot_dimension_numbers<[1], [0], [0], [1], [0, 0, 1, 1], [], []>} : vector<128x128xbf16>, vector<128x128xbf16>, vector<128x128xf32> -> vector<128x128xf32>
    %cst_60 = arith.constant 2.000000e+00 : f32
    %103 = vector.broadcast %cst_60 : f32 to vector<128x128xf32>
    %104 = arith.mulf %103, %102 : vector<128x128xf32>
    %105 = arith.subf %104, %91 : vector<128x128xf32>
    %106 = arith.truncf %105 : vector<128x128xf32> to vector<128x128xbf16>
    %c0_61 = arith.constant 0 : index
    %c896_62 = arith.constant 896 : index
    %107 = vector.load %arg5[%c0_61, %c896_62] : memref<128x1024xbf16, #tpu.memory_space<vmem>>, vector<128x128xbf16>
    tpu.vector_store %arg5[%c0_61, %c896_62], %106 {strides = array<i32>} : memref<128x1024xbf16, #tpu.memory_space<vmem>>, vector<128x128xbf16>,
    %c0_63 = arith.constant 0 : index
    %c0_64 = arith.constant 0 : index
    %108 = vector.load %arg5[%c0_63, %c0_64] : memref<128x1024xbf16, #tpu.memory_space<vmem>>, vector<128x1024xbf16>
    %c1 = arith.constant 1 : index
    %c0_65 = arith.constant 0 : index
    %c0_66 = arith.constant 0 : index
    %109 = vector.load %arg2[%c1, %c0_65, %c0_66] : memref<3x1024x128xbf16, #tpu.memory_space<vmem>>, vector<1x1024x128xbf16>
    %110 = vector.shape_cast %109 : vector<1x1024x128xbf16> to vector<1024x128xbf16>
    %cst_67 = arith.constant dense<0.000000e+00> : vector<128x128xf32>
    %111 = tpu.matmul %108, %110, %cst_67 {dimension_numbers = #tpu.dot_dimension_numbers<[1], [0], [0], [1], [0, 0, 1, 1], [], []>} : vector<128x1024xbf16>, vector<1024x128xbf16>, vector<128x128xf32> -> vector<128x128xf32>
    %c1_68 = arith.constant 1 : index
    %c0_69 = arith.constant 0 : index
    %c0_70 = arith.constant 0 : index
    %112 = vector.load %arg3[%c1_68, %c0_69, %c0_70] : memref<3x1x128xf32, #tpu.memory_space<vmem>>, vector<1x1x128xf32>
    %113 = vector.shape_cast %112 : vector<1x1x128xf32> to vector<1x128xf32>
    %114 = vector.broadcast %113 : vector<1x128xf32> to vector<128x128xf32>
    %115 = arith.addf %111, %114 : vector<128x128xf32>
    %cst_71 = arith.constant 0.000000e+00 : f32
    %116 = vector.broadcast %cst_71 : f32 to vector<128x128xf32>
    %117 = arith.maximumf %115, %116 : vector<128x128xf32>
    %118 = arith.truncf %117 : vector<128x128xf32> to vector<128x128xbf16>
    %c0_72 = arith.constant 0 : index
    %c0_73 = arith.constant 0 : index
    %119 = vector.load %arg5[%c0_72, %c0_73] : memref<128x1024xbf16, #tpu.memory_space<vmem>>, vector<128x128xbf16>
    tpu.vector_store %arg5[%c0_72, %c0_73], %118 {strides = array<i32>} : memref<128x1024xbf16, #tpu.memory_space<vmem>>, vector<128x128xbf16>,
    %120 = arith.truncf %117 : vector<128x128xf32> to vector<128x128xbf16>
    %cst_74 = arith.constant dense<0.000000e+00> : vector<128x128xf32>
    %121 = tpu.matmul %0, %120, %cst_74 {dimension_numbers = #tpu.dot_dimension_numbers<[1], [0], [0], [1], [0, 0, 1, 1], [], []>} : vector<128x128xbf16>, vector<128x128xbf16>, vector<128x128xf32> -> vector<128x128xf32>
    %122 = arith.truncf %121 : vector<128x128xf32> to vector<128x128xbf16>
    %c0_75 = arith.constant 0 : index
    %c128_76 = arith.constant 128 : index
    %123 = vector.load %arg5[%c0_75, %c128_76] : memref<128x1024xbf16, #tpu.memory_space<vmem>>, vector<128x128xbf16>
    tpu.vector_store %arg5[%c0_75, %c128_76], %122 {strides = array<i32>} : memref<128x1024xbf16, #tpu.memory_space<vmem>>, vector<128x128xbf16>,
    %124 = arith.truncf %121 : vector<128x128xf32> to vector<128x128xbf16>
    %cst_77 = arith.constant dense<0.000000e+00> : vector<128x128xf32>
    %125 = tpu.matmul %0, %124, %cst_77 {dimension_numbers = #tpu.dot_dimension_numbers<[1], [0], [0], [1], [0, 0, 1, 1], [], []>} : vector<128x128xbf16>, vector<128x128xbf16>, vector<128x128xf32> -> vector<128x128xf32>
    %cst_78 = arith.constant 2.000000e+00 : f32
    %126 = vector.broadcast %cst_78 : f32 to vector<128x128xf32>
    %127 = arith.mulf %126, %125 : vector<128x128xf32>
    %128 = arith.subf %127, %117 : vector<128x128xf32>
    %129 = arith.truncf %128 : vector<128x128xf32> to vector<128x128xbf16>
    %c0_79 = arith.constant 0 : index
    %c256_80 = arith.constant 256 : index
    %130 = vector.load %arg5[%c0_79, %c256_80] : memref<128x1024xbf16, #tpu.memory_space<vmem>>, vector<128x128xbf16>
    tpu.vector_store %arg5[%c0_79, %c256_80], %129 {strides = array<i32>} : memref<128x1024xbf16, #tpu.memory_space<vmem>>, vector<128x128xbf16>,
    %131 = arith.truncf %128 : vector<128x128xf32> to vector<128x128xbf16>
    %cst_81 = arith.constant dense<0.000000e+00> : vector<128x128xf32>
    %132 = tpu.matmul %0, %131, %cst_81 {dimension_numbers = #tpu.dot_dimension_numbers<[1], [0], [0], [1], [0, 0, 1, 1], [], []>} : vector<128x128xbf16>, vector<128x128xbf16>, vector<128x128xf32> -> vector<128x128xf32>
    %cst_82 = arith.constant 2.000000e+00 : f32
    %133 = vector.broadcast %cst_82 : f32 to vector<128x128xf32>
    %134 = arith.mulf %133, %132 : vector<128x128xf32>
    %135 = arith.subf %134, %121 : vector<128x128xf32>
    %136 = arith.truncf %135 : vector<128x128xf32> to vector<128x128xbf16>
    %c0_83 = arith.constant 0 : index
    %c384_84 = arith.constant 384 : index
    %137 = vector.load %arg5[%c0_83, %c384_84] : memref<128x1024xbf16, #tpu.memory_space<vmem>>, vector<128x128xbf16>
    tpu.vector_store %arg5[%c0_83, %c384_84], %136 {strides = array<i32>} : memref<128x1024xbf16, #tpu.memory_space<vmem>>, vector<128x128xbf16>,
    %138 = arith.truncf %135 : vector<128x128xf32> to vector<128x128xbf16>
    %cst_85 = arith.constant dense<0.000000e+00> : vector<128x128xf32>
    %139 = tpu.matmul %0, %138, %cst_85 {dimension_numbers = #tpu.dot_dimension_numbers<[1], [0], [0], [1], [0, 0, 1, 1], [], []>} : vector<128x128xbf16>, vector<128x128xbf16>, vector<128x128xf32> -> vector<128x128xf32>
    %cst_86 = arith.constant 2.000000e+00 : f32
    %140 = vector.broadcast %cst_86 : f32 to vector<128x128xf32>
    %141 = arith.mulf %140, %139 : vector<128x128xf32>
    %142 = arith.subf %141, %128 : vector<128x128xf32>
    %143 = arith.truncf %142 : vector<128x128xf32> to vector<128x128xbf16>
    %c0_87 = arith.constant 0 : index
    %c512_88 = arith.constant 512 : index
    %144 = vector.load %arg5[%c0_87, %c512_88] : memref<128x1024xbf16, #tpu.memory_space<vmem>>, vector<128x128xbf16>
    tpu.vector_store %arg5[%c0_87, %c512_88], %143 {strides = array<i32>} : memref<128x1024xbf16, #tpu.memory_space<vmem>>, vector<128x128xbf16>,
    %145 = arith.truncf %142 : vector<128x128xf32> to vector<128x128xbf16>
    %cst_89 = arith.constant dense<0.000000e+00> : vector<128x128xf32>
    %146 = tpu.matmul %0, %145, %cst_89 {dimension_numbers = #tpu.dot_dimension_numbers<[1], [0], [0], [1], [0, 0, 1, 1], [], []>} : vector<128x128xbf16>, vector<128x128xbf16>, vector<128x128xf32> -> vector<128x128xf32>
    %cst_90 = arith.constant 2.000000e+00 : f32
    %147 = vector.broadcast %cst_90 : f32 to vector<128x128xf32>
    %148 = arith.mulf %147, %146 : vector<128x128xf32>
    %149 = arith.subf %148, %135 : vector<128x128xf32>
    %150 = arith.truncf %149 : vector<128x128xf32> to vector<128x128xbf16>
    %c0_91 = arith.constant 0 : index
    %c640_92 = arith.constant 640 : index
    %151 = vector.load %arg5[%c0_91, %c640_92] : memref<128x1024xbf16, #tpu.memory_space<vmem>>, vector<128x128xbf16>
    tpu.vector_store %arg5[%c0_91, %c640_92], %150 {strides = array<i32>} : memref<128x1024xbf16, #tpu.memory_space<vmem>>, vector<128x128xbf16>,
    %152 = arith.truncf %149 : vector<128x128xf32> to vector<128x128xbf16>
    %cst_93 = arith.constant dense<0.000000e+00> : vector<128x128xf32>
    %153 = tpu.matmul %0, %152, %cst_93 {dimension_numbers = #tpu.dot_dimension_numbers<[1], [0], [0], [1], [0, 0, 1, 1], [], []>} : vector<128x128xbf16>, vector<128x128xbf16>, vector<128x128xf32> -> vector<128x128xf32>
    %cst_94 = arith.constant 2.000000e+00 : f32
    %154 = vector.broadcast %cst_94 : f32 to vector<128x128xf32>
    %155 = arith.mulf %154, %153 : vector<128x128xf32>
    %156 = arith.subf %155, %142 : vector<128x128xf32>
    %157 = arith.truncf %156 : vector<128x128xf32> to vector<128x128xbf16>
    %c0_95 = arith.constant 0 : index
    %c768_96 = arith.constant 768 : index
    %158 = vector.load %arg5[%c0_95, %c768_96] : memref<128x1024xbf16, #tpu.memory_space<vmem>>, vector<128x128xbf16>
    tpu.vector_store %arg5[%c0_95, %c768_96], %157 {strides = array<i32>} : memref<128x1024xbf16, #tpu.memory_space<vmem>>, vector<128x128xbf16>,
    %159 = arith.truncf %156 : vector<128x128xf32> to vector<128x128xbf16>
    %cst_97 = arith.constant dense<0.000000e+00> : vector<128x128xf32>
    %160 = tpu.matmul %0, %159, %cst_97 {dimension_numbers = #tpu.dot_dimension_numbers<[1], [0], [0], [1], [0, 0, 1, 1], [], []>} : vector<128x128xbf16>, vector<128x128xbf16>, vector<128x128xf32> -> vector<128x128xf32>
    %cst_98 = arith.constant 2.000000e+00 : f32
    %161 = vector.broadcast %cst_98 : f32 to vector<128x128xf32>
    %162 = arith.mulf %161, %160 : vector<128x128xf32>
    %163 = arith.subf %162, %149 : vector<128x128xf32>
    %164 = arith.truncf %163 : vector<128x128xf32> to vector<128x128xbf16>
    %c0_99 = arith.constant 0 : index
    %c896_100 = arith.constant 896 : index
    %165 = vector.load %arg5[%c0_99, %c896_100] : memref<128x1024xbf16, #tpu.memory_space<vmem>>, vector<128x128xbf16>
    tpu.vector_store %arg5[%c0_99, %c896_100], %164 {strides = array<i32>} : memref<128x1024xbf16, #tpu.memory_space<vmem>>, vector<128x128xbf16>,
    %c0_101 = arith.constant 0 : index
    %c0_102 = arith.constant 0 : index
    %166 = vector.load %arg5[%c0_101, %c0_102] : memref<128x1024xbf16, #tpu.memory_space<vmem>>, vector<128x1024xbf16>
    %c2 = arith.constant 2 : index
    %c0_103 = arith.constant 0 : index
    %c0_104 = arith.constant 0 : index
    %167 = vector.load %arg2[%c2, %c0_103, %c0_104] : memref<3x1024x128xbf16, #tpu.memory_space<vmem>>, vector<1x1024x128xbf16>
    %168 = vector.shape_cast %167 : vector<1x1024x128xbf16> to vector<1024x128xbf16>
    %cst_105 = arith.constant dense<0.000000e+00> : vector<128x128xf32>
    %169 = tpu.matmul %166, %168, %cst_105 {dimension_numbers = #tpu.dot_dimension_numbers<[1], [0], [0], [1], [0, 0, 1, 1], [], []>} : vector<128x1024xbf16>, vector<1024x128xbf16>, vector<128x128xf32> -> vector<128x128xf32>
    %c2_106 = arith.constant 2 : index
    %c0_107 = arith.constant 0 : index
    %c0_108 = arith.constant 0 : index
    %170 = vector.load %arg3[%c2_106, %c0_107, %c0_108] : memref<3x1x128xf32, #tpu.memory_space<vmem>>, vector<1x1x128xf32>
    %171 = vector.shape_cast %170 : vector<1x1x128xf32> to vector<1x128xf32>
    %172 = vector.broadcast %171 : vector<1x128xf32> to vector<128x128xf32>
    %173 = arith.addf %169, %172 : vector<128x128xf32>
    %c0_109 = arith.constant 0 : index
    %c0_110 = arith.constant 0 : index
    %174 = vector.load %arg4[%c0_109, %c0_110] : memref<128x128xf32, #tpu.memory_space<vmem>>, vector<128x128xf32>
    tpu.vector_store %arg4[%c0_109, %c0_110], %173 {strides = array<i32>} : memref<128x128xf32, #tpu.memory_space<vmem>>, vector<128x128xf32>,
    return
  }
}

</mosaic_0001>

<llo_original>
// kernel: tpu_custom_call.1
$region0: #{tpu_custom_call.1}
  #allocation0 [shape = 'u32[]', space=smem, size = 0x4, offset = 0x4, fixed_abs, tag = 'smem constant byte address 0x4 - core index']
  #allocation1 [shape = 'u32[144,128]{1,0:T(1,128)}', space=vmem, size = 0x12000, scoped, tag = 'internal scratch']
  #allocation2 [shape = 'bf16[128,1024]{1,0:T(16,128)(2,1)}', space=vmem, size = 0x40000, scoped, tag = 'scratch operand']
  %s0 = inlined_call_operand.hbm [shape: bf16[128,128], index: 0, kind: input, shape index: {}]
  %s1 = inlined_call_operand.hbm [shape: f32[128,128], index: 1, kind: input, shape index: {}]
  %s2 = inlined_call_operand.hbm [shape: bf16[3,1024,128], index: 2, kind: input, shape index: {}]
  %s3 = inlined_call_operand.vmem [shape: f32[3,1,128], index: 3, kind: input, shape index: {}]
  %s4 = inlined_call_operand.hbm [shape: f32[128,128], index: 4, kind: output, shape index: {}]
  %s5 = sld [smem:[#allocation0]]
  $region38: #{tpu_custom_call.1} parent=0
    _
  %s7 = ssub.s32 1, %s5
  %s8 = scalar_select 0, %s7, %s5
  $region1: #{tpu_custom_call.1} parent=0
    #allocation3 [shape = 'u8[32768]{0}', space=vmem, size = 0x8000, scoped, tag = 'input window, operand 0, single buffered']
    #allocation4 [shape = 's32[1]{0}', space=sflag, size = 0x4, scoped, tag = 'scoped memory for tpu_custom_call.1']
    #allocation5 [shape = 's32[1]{0}', space=sflag, size = 0x4, scoped, tag = 'scoped memory for tpu_custom_call.1']
    #allocation6 [shape = 'u8[65536]{0}', space=vmem, size = 0x10000, scoped, tag = 'input window, operand 1, single buffered']
    #allocation7 [shape = 's32[1]{0}', space=sflag, size = 0x4, scoped, tag = 'scoped memory for tpu_custom_call.1']
    #allocation8 [shape = 'u8[786432]{0}', space=vmem, size = 0xc0000, scoped, tag = 'input window, operand 2, single buffered']
    #allocation9 [shape = 'u8[65536]{0}', space=vmem, size = 0x10000, scoped, tag = 'output window, operand 0, single buffered']
    %9 = vsyncpa [#allocation4], 0
    %10 = vsyncpa [#allocation7], 0
    %11 = vsyncpa [#allocation5], 0
    // Predicated region
    $region2: #{tpu_custom_call.1} parent=1 // pred_check
      _
    $region3: #{tpu_custom_call.1} parent=1 // pred_check_branch
      %13 = sbr.rel (0) target = $region5
    $region4: #{tpu_custom_call.1} parent=1 // pred_region
      %s15 = ssub.s32 1024, 1024
      %16 = vsyncadd [#allocation4], %s15
      %s17 = sshll.u32 [#allocation3], 4
      %s18 = int_to_ptr.vmem [resolvable:$true] %s17
      %23 = dma.hbm_to_vmem [thread:$0]  %s0, 1024, %s18, [#allocation4], 64, 64, 4
    $region5: #{tpu_custom_call.1} parent=1 // pred_fallthru
      _
    // Predicated region
    $region6: #{tpu_custom_call.1} parent=1 // pred_check
      _
    $region7: #{tpu_custom_call.1} parent=1 // pred_check_branch
      %25 = sbr.rel (0) target = $region9
    $region8: #{tpu_custom_call.1} parent=1 // pred_region
      %s27 = ssub.s32 2048, 2048
      %28 = vsyncadd [#allocation7], %s27
      %s29 = sshll.u32 [#allocation6], 4
      %s30 = int_to_ptr.vmem [resolvable:$true] %s29
      %35 = dma.hbm_to_vmem [thread:$0]  %s1, 2048, %s30, [#allocation7], 128, 128, 8
    $region9: #{tpu_custom_call.1} parent=1 // pred_fallthru
      _
    // Predicated region
    $region10: #{tpu_custom_call.1} parent=1 // pred_check
      _
    $region11: #{tpu_custom_call.1} parent=1 // pred_check_branch
      %37 = sbr.rel (0) target = $region13
    $region12: #{tpu_custom_call.1} parent=1 // pred_region
      %s39 = ssub.s32 24576, 24576
      %40 = vsyncadd [#allocation7], %s39
      %s41 = sshll.u32 [#allocation8], 4
      %s42 = int_to_ptr.vmem [resolvable:$true] %s41
      %47 = dma.hbm_to_vmem [thread:$0]  %s2, 24576, %s42, [#allocation7], 64, 64, 4
    $region13: #{tpu_custom_call.1} parent=1 // pred_fallthru
      _
    // Predicated region
    $region14: #{tpu_custom_call.1} parent=1 // pred_check
      _
    $region15: #{tpu_custom_call.1} parent=1 // pred_check_branch
      %49 = sbr.rel (0) target = $region17
    $region16: #{tpu_custom_call.1} parent=1 // pred_region
      _
    $region17: #{tpu_custom_call.1} parent=1 // pred_fallthru
      _
    // Predicated region
    $region18: #{tpu_custom_call.1} parent=1 // pred_check
      _
    $region19: #{tpu_custom_call.1} parent=1 // pred_check_branch
      %51 = sbr.rel (0) target = $region21
    $region20: #{tpu_custom_call.1} parent=1 // pred_region
      %52 = dma.done [#allocation4], 1024
    $region21: #{tpu_custom_call.1} parent=1 // pred_fallthru
      _
    // Predicated region
    $region22: #{tpu_custom_call.1} parent=1 // pred_check
      _
    $region23: #{tpu_custom_call.1} parent=1 // pred_check_branch
      %54 = sbr.rel (0) target = $region25
    $region24: #{tpu_custom_call.1} parent=1 // pred_region
      %55 = dma.done [#allocation7], 2048
    $region25: #{tpu_custom_call.1} parent=1 // pred_fallthru
      _
    // Predicated region
    $region26: #{tpu_custom_call.1} parent=1 // pred_check
      _
    $region27: #{tpu_custom_call.1} parent=1 // pred_check_branch
      %57 = sbr.rel (0) target = $region29
    $region28: #{tpu_custom_call.1} parent=1 // pred_region
      %58 = dma.done [#allocation7], 24576
    $region29: #{tpu_custom_call.1} parent=1 // pred_fallthru
      _
    %v60 = vld [vmem:[#allocation3] sm:$0xf]
    %v61 = vld [vmem:[#allocation3 + $0x4] sm:$0xf]
    %v62 = vld [vmem:[#allocation3 + $0x8] sm:$0xf]
    %v63 = vld [vmem:[#allocation3 + $0xc] sm:$0xf]
    %v64 = vld [vmem:[#allocation3 + $0x10] sm:$0xf]
    %v65 = vld [vmem:[#allocation3 + $0x14] sm:$0xf]
    %v66 = vld [vmem:[#allocation3 + $0x18] sm:$0xf]
    %v67 = vld [vmem:[#allocation3 + $0x1c] sm:$0xf]
    %v68 = vld [vmem:[#allocation3 + $0x20] sm:$0xf]
    %v69 = vld [vmem:[#allocation3 + $0x24] sm:$0xf]
    %v70 = vld [vmem:[#allocation3 + $0x28] sm:$0xf]
    %v71 = vld [vmem:[#allocation3 + $0x2c] sm:$0xf]
    %v72 = vld [vmem:[#allocation3 + $0x30] sm:$0xf]
    %v73 = vld [vmem:[#allocation3 + $0x34] sm:$0xf]
    %v74 = vld [vmem:[#allocation3 + $0x38] sm:$0xf]
    %v75 = vld [vmem:[#allocation3 + $0x3c] sm:$0xf]
    %v76 = vld [vmem:[#allocation6] sm:$0xff]
    %v77 = vld [vmem:[#allocation6 + $0x8] sm:$0xff]
    %v78 = vld [vmem:[#allocation6 + $0x10] sm:$0xff]
    %v79 = vld [vmem:[#allocation6 + $0x18] sm:$0xff]
    %v80 = vld [vmem:[#allocation6 + $0x20] sm:$0xff]
    %v81 = vld [vmem:[#allocation6 + $0x28] sm:$0xff]
    %v82 = vld [vmem:[#allocation6 + $0x30] sm:$0xff]
    %v83 = vld [vmem:[#allocation6 + $0x38] sm:$0xff]
    %v84 = vld [vmem:[#allocation6 + $0x40] sm:$0xff]
    %v85 = vld [vmem:[#allocation6 + $0x48] sm:$0xff]
    %v86 = vld [vmem:[#allocation6 + $0x50] sm:$0xff]
    %v87 = vld [vmem:[#allocation6 + $0x58] sm:$0xff]
    %v88 = vld [vmem:[#allocation6 + $0x60] sm:$0xff]
    %v89 = vld [vmem:[#allocation6 + $0x68] sm:$0xff]
    %v90 = vld [vmem:[#allocation6 + $0x70] sm:$0xff]
    %v91 = vld [vmem:[#allocation6 + $0x78] sm:$0xff]
    %v92 = vpack.c.bf16 %v77, %v76
    %v93 = vpack.c.bf16 %v79, %v78
    %v94 = vpack.c.bf16 %v81, %v80
    %v95 = vpack.c.bf16 %v83, %v82
    %v96 = vpack.c.bf16 %v85, %v84
    %v97 = vpack.c.bf16 %v87, %v86
    %v98 = vpack.c.bf16 %v89, %v88
    %v99 = vpack.c.bf16 %v91, %v90
    %100 = vst [vmem:[#allocation2] sm:$0xff] %v92
    %101 = vst [vmem:[#allocation2 + $0x40] sm:$0xff] %v93
    %102 = vst [vmem:[#allocation2 + $0x80] sm:$0xff] %v94
    %103 = vst [vmem:[#allocation2 + $0xc0] sm:$0xff] %v95
    %104 = vst [vmem:[#allocation2 + $0x100] sm:$0xff] %v96
    %105 = vst [vmem:[#allocation2 + $0x140] sm:$0xff] %v97
    %106 = vst [vmem:[#allocation2 + $0x180] sm:$0xff] %v98
    %107 = vst [vmem:[#allocation2 + $0x1c0] sm:$0xff] %v99
    %v124 = vunpack.c.l.b16 %v60
    %v125 = vunpack.c.l.b16 %v61
    %v126 = vunpack.c.l.b16 %v62
    %v127 = vunpack.c.l.b16 %v63
    %v128 = vunpack.c.l.b16 %v64
    %v129 = vunpack.c.l.b16 %v65
    %v130 = vunpack.c.l.b16 %v66
    %v131 = vunpack.c.l.b16 %v67
    %v132 = vunpack.c.l.b16 %v68
    %v133 = vunpack.c.l.b16 %v69
    %v134 = vunpack.c.l.b16 %v70
    %v135 = vunpack.c.l.b16 %v71
    %v136 = vunpack.c.l.b16 %v72
    %v137 = vunpack.c.l.b16 %v73
    %v138 = vunpack.c.l.b16 %v74
    %v139 = vunpack.c.l.b16 %v75
    %v140 = vpack.c.b16 %v125, %v124
    %v141 = vpack.c.b16 %v127, %v126
    %v142 = vpack.c.b16 %v129, %v128
    %v143 = vpack.c.b16 %v131, %v130
    %v144 = vpack.c.b16 %v133, %v132
    %v145 = vpack.c.b16 %v135, %v134
    %v146 = vpack.c.b16 %v137, %v136
    %v147 = vpack.c.b16 %v139, %v138
    %156 = vmatprep.subr.bf16.mxu0 0
    %157 = vmatpush1.bf16.msra.mxu0 %v92
    %158 = vmatprep.subr.bf16.mxu0 0
    %159 = vmatpush1.bf16.msra.mxu0 %v93
    %160 = vmatprep.subr.bf16.mxu0 0
    %161 = vmatpush1.bf16.msra.mxu0 %v94
    %162 = vmatprep.subr.bf16.mxu0 0
    %163 = vmatpush1.bf16.msra.mxu0 %v95
    %164 = vmatprep.subr.bf16.mxu0 0
    %165 = vmatpush1.bf16.msra.mxu0 %v96
    %166 = vmatprep.subr.bf16.mxu0 0
    %167 = vmatpush1.bf16.msra.mxu0 %v97
    %168 = vmatprep.subr.bf16.mxu0 0
    %169 = vmatpush1.bf16.msra.mxu0 %v98
    %170 = vmatprep.subr.bf16.mxu0 0
    %171 = vmatpush1.bf16.msra.mxu0 %v99
    %172 = vmatprep.subr.bf16.mxu0 0
    %173 = vmatpush1.bf16.msra.mxu0 0
    %174 = vmatprep.subr.bf16.mxu0 0
    %175 = vmatpush1.bf16.msra.mxu0 0
    %176 = vmatprep.subr.bf16.mxu0 0
    %177 = vmatpush1.bf16.msra.mxu0 0
    %178 = vmatprep.subr.bf16.mxu0 0
    %179 = vmatpush1.bf16.msra.mxu0 0
    %180 = vmatprep.subr.bf16.mxu0 0
    %181 = vmatpush1.bf16.msra.mxu0 0
    %182 = vmatprep.subr.bf16.mxu0 0
    %183 = vmatpush1.bf16.msra.mxu0 0
    %184 = vmatprep.subr.bf16.mxu0 0
    %185 = vmatpush1.bf16.msra.mxu0 0
    %186 = vmatprep.subr.bf16.mxu0 0
    %187 = vmatpush1.bf16.msra.mxu0 0
    %188 = vmatprep.mubr.bf16.mxu0 0
    %189 = vmatmul.mubr.bf16.gmra.mrb[0].mxu0 %v140
    %v190 = vpop.f32.mrb[0].mxu0
    %v191 = vadd.f32 0.0, %v190
    %v192 = vpop.f32.mrb[0].mxu0
    %v193 = vpop.f32.mrb[0].mxu0
    %v194 = vadd.f32 0.0, %v193
    %v195 = vpop.f32.mrb[0].mxu0
    %196 = vmatprep.mubr.bf16.mxu0 0
    %197 = vmatmul.mubr.bf16.gmra.mrb[0].mxu0 %v141
    %v198 = vpop.f32.mrb[0].mxu0
    %v199 = vadd.f32 0.0, %v198
    %v200 = vpop.f32.mrb[0].mxu0
    %v201 = vpop.f32.mrb[0].mxu0
    %v202 = vadd.f32 0.0, %v201
    %v203 = vpop.f32.mrb[0].mxu0
    %204 = vmatprep.mubr.bf16.mxu0 0
    %205 = vmatmul.mubr.bf16.gmra.mrb[0].mxu0 %v142
    %v206 = vpop.f32.mrb[0].mxu0
    %v207 = vadd.f32 0.0, %v206
    %v208 = vpop.f32.mrb[0].mxu0
    %v209 = vpop.f32.mrb[0].mxu0
    %v210 = vadd.f32 0.0, %v209
    %v211 = vpop.f32.mrb[0].mxu0
    %212 = vmatprep.mubr.bf16.mxu0 0
    %213 = vmatmul.mubr.bf16.gmra.mrb[0].mxu0 %v143
    %v214 = vpop.f32.mrb[0].mxu0
    %v215 = vadd.f32 0.0, %v214
    %v216 = vpop.f32.mrb[0].mxu0
    %v217 = vpop.f32.mrb[0].mxu0
    %v218 = vadd.f32 0.0, %v217
    %v219 = vpop.f32.mrb[0].mxu0
    %220 = vmatprep.mubr.bf16.mxu0 0
    %221 = vmatmul.mubr.bf16.gmra.mrb[0].mxu0 %v144
    %v222 = vpop.f32.mrb[0].mxu0
    %v223 = vadd.f32 0.0, %v222
    %v224 = vpop.f32.mrb[0].mxu0
    %v225 = vpop.f32.mrb[0].mxu0
    %v226 = vadd.f32 0.0, %v225
    %v227 = vpop.f32.mrb[0].mxu0
    %228 = vmatprep.mubr.bf16.mxu0 0
    %229 = vmatmul.mubr.bf16.gmra.mrb[0].mxu0 %v145
    %v230 = vpop.f32.mrb[0].mxu0
    %v231 = vadd.f32 0.0, %v230
    %v232 = vpop.f32.mrb[0].mxu0
    %v233 = vpop.f32.mrb[0].mxu0
    %v234 = vadd.f32 0.0, %v233
    %v235 = vpop.f32.mrb[0].mxu0
    %236 = vmatprep.mubr.bf16.mxu0 0
    %237 = vmatmul.mubr.bf16.gmra.mrb[0].mxu0 %v146
    %v238 = vpop.f32.mrb[0].mxu0
    %v239 = vadd.f32 0.0, %v238
    %v240 = vpop.f32.mrb[0].mxu0
    %v241 = vpop.f32.mrb[0].mxu0
    %v242 = vadd.f32 0.0, %v241
    %v243 = vpop.f32.mrb[0].mxu0
    %244 = vmatprep.mubr.bf16.mxu0 0
    %245 = vmatmul.mubr.bf16.gmra.mrb[0].mxu0 %v147
    %v246 = vpop.f32.mrb[0].mxu0
    %v247 = vadd.f32 0.0, %v246
    %v248 = vpop.f32.mrb[0].mxu0
    %v249 = vpop.f32.mrb[0].mxu0
    %v250 = vadd.f32 0.0, %v249
    %v251 = vpop.f32.mrb[0].mxu0
    %252 = vdwg.mxu0
    %v253 = vpack.c.bf16 %v194, %v191
    %v254 = vpack.c.bf16 %v202, %v199
    %v255 = vpack.c.bf16 %v210, %v207
    %v256 = vpack.c.bf16 %v218, %v215
    %v257 = vpack.c.bf16 %v226, %v223
    %v258 = vpack.c.bf16 %v234, %v231
    %v259 = vpack.c.bf16 %v242, %v239
    %v260 = vpack.c.bf16 %v250, %v247
    %261 = vst [vmem:[#allocation2 + $0x8] sm:$0xff] %v253
    %262 = vst [vmem:[#allocation2 + $0x48] sm:$0xff] %v254
    %263 = vst [vmem:[#allocation2 + $0x88] sm:$0xff] %v255
    %264 = vst [vmem:[#allocation2 + $0xc8] sm:$0xff] %v256
    %265 = vst [vmem:[#allocation2 + $0x108] sm:$0xff] %v257
    %266 = vst [vmem:[#allocation2 + $0x148] sm:$0xff] %v258
    %267 = vst [vmem:[#allocation2 + $0x188] sm:$0xff] %v259
    %268 = vst [vmem:[#allocation2 + $0x1c8] sm:$0xff] %v260
    %269 = vmatprep.subr.bf16.mxu0 0
    %270 = vmatpush1.bf16.msra.mxu0 %v253
    %271 = vmatprep.subr.bf16.mxu0 0
    %272 = vmatpush1.bf16.msra.mxu0 %v254
    %273 = vmatprep.subr.bf16.mxu0 0
    %274 = vmatpush1.bf16.msra.mxu0 %v255
    %275 = vmatprep.subr.bf16.mxu0 0
    %276 = vmatpush1.bf16.msra.mxu0 %v256
    %277 = vmatprep.subr.bf16.mxu0 0
    %278 = vmatpush1.bf16.msra.mxu0 %v257
    %279 = vmatprep.subr.bf16.mxu0 0
    %280 = vmatpush1.bf16.msra.mxu0 %v258
    %281 = vmatprep.subr.bf16.mxu0 0
    %282 = vmatpush1.bf16.msra.mxu0 %v259
    %283 = vmatprep.subr.bf16.mxu0 0
    %284 = vmatpush1.bf16.msra.mxu0 %v260
    %285 = vmatprep.subr.bf16.mxu0 0
    %286 = vmatpush1.bf16.msra.mxu0 0
    %287 = vmatprep.subr.bf16.mxu0 0
    %288 = vmatpush1.bf16.msra.mxu0 0
    %289 = vmatprep.subr.bf16.mxu0 0
    %290 = vmatpush1.bf16.msra.mxu0 0
    %291 = vmatprep.subr.bf16.mxu0 0
    %292 = vmatpush1.bf16.msra.mxu0 0
    %293 = vmatprep.subr.bf16.mxu0 0
    %294 = vmatpush1.bf16.msra.mxu0 0
    %295 = vmatprep.subr.bf16.mxu0 0
    %296 = vmatpush1.bf16.msra.mxu0 0
    %297 = vmatprep.subr.bf16.mxu0 0
    %298 = vmatpush1.bf16.msra.mxu0 0
    %299 = vmatprep.subr.bf16.mxu0 0
    %300 = vmatpush1.bf16.msra.mxu0 0
    %301 = vmatprep.mubr.bf16.mxu0 0
    %302 = vmatmul.mubr.bf16.gmra.mrb[0].mxu0 %v140
    %v303 = vpop.f32.mrb[0].mxu0
    %v304 = vadd.f32 0.0, %v303
    %v305 = vpop.f32.mrb[0].mxu0
    %v306 = vpop.f32.mrb[0].mxu0
    %v307 = vadd.f32 0.0, %v306
    %v308 = vpop.f32.mrb[0].mxu0
    %309 = vmatprep.mubr.bf16.mxu0 0
    %310 = vmatmul.mubr.bf16.gmra.mrb[0].mxu0 %v141
    %v311 = vpop.f32.mrb[0].mxu0
    %v312 = vadd.f32 0.0, %v311
    %v313 = vpop.f32.mrb[0].mxu0
    %v314 = vpop.f32.mrb[0].mxu0
    %v315 = vadd.f32 0.0, %v314
    %v316 = vpop.f32.mrb[0].mxu0
    %317 = vmatprep.mubr.bf16.mxu0 0
    %318 = vmatmul.mubr.bf16.gmra.mrb[0].mxu0 %v142
    %v319 = vpop.f32.mrb[0].mxu0
    %v320 = vadd.f32 0.0, %v319
    %v321 = vpop.f32.mrb[0].mxu0
    %v322 = vpop.f32.mrb[0].mxu0
    %v323 = vadd.f32 0.0, %v322
    %v324 = vpop.f32.mrb[0].mxu0
    %325 = vmatprep.mubr.bf16.mxu0 0
    %326 = vmatmul.mubr.bf16.gmra.mrb[0].mxu0 %v143
    %v327 = vpop.f32.mrb[0].mxu0
    %v328 = vadd.f32 0.0, %v327
    %v329 = vpop.f32.mrb[0].mxu0
    %v330 = vpop.f32.mrb[0].mxu0
    %v331 = vadd.f32 0.0, %v330
    %v332 = vpop.f32.mrb[0].mxu0
    %333 = vmatprep.mubr.bf16.mxu0 0
    %334 = vmatmul.mubr.bf16.gmra.mrb[0].mxu0 %v144
    %v335 = vpop.f32.mrb[0].mxu0
    %v336 = vadd.f32 0.0, %v335
    %v337 = vpop.f32.mrb[0].mxu0
    %v338 = vpop.f32.mrb[0].mxu0
    %v339 = vadd.f32 0.0, %v338
    %v340 = vpop.f32.mrb[0].mxu0
    %341 = vmatprep.mubr.bf16.mxu0 0
    %342 = vmatmul.mubr.bf16.gmra.mrb[0].mxu0 %v145
    %v343 = vpop.f32.mrb[0].mxu0
    %v344 = vadd.f32 0.0, %v343
    %v345 = vpop.f32.mrb[0].mxu0
    %v346 = vpop.f32.mrb[0].mxu0
    %v347 = vadd.f32 0.0, %v346
    %v348 = vpop.f32.mrb[0].mxu0
    %349 = vmatprep.mubr.bf16.mxu0 0
    %350 = vmatmul.mubr.bf16.gmra.mrb[0].mxu0 %v146
    %v351 = vpop.f32.mrb[0].mxu0
    %v352 = vadd.f32 0.0, %v351
    %v353 = vpop.f32.mrb[0].mxu0
    %v354 = vpop.f32.mrb[0].mxu0
    %v355 = vadd.f32 0.0, %v354
    %v356 = vpop.f32.mrb[0].mxu0
    %357 = vmatprep.mubr.bf16.mxu0 0
    %358 = vmatmul.mubr.bf16.gmra.mrb[0].mxu0 %v147
    %v359 = vpop.f32.mrb[0].mxu0
    %v360 = vadd.f32 0.0, %v359
    %v361 = vpop.f32.mrb[0].mxu0
    %v362 = vpop.f32.mrb[0].mxu0
    %v363 = vadd.f32 0.0, %v362
    %v364 = vpop.f32.mrb[0].mxu0
    %365 = vdwg.mxu0
    %v366 = vmul.f32 %v304, 2.0
    %v367 = vmul.f32 %v307, 2.0
    %v368 = vmul.f32 %v312, 2.0
    %v369 = vmul.f32 %v315, 2.0
    %v370 = vmul.f32 %v320, 2.0
    %v371 = vmul.f32 %v323, 2.0
    %v372 = vmul.f32 %v328, 2.0
    %v373 = vmul.f32 %v331, 2.0
    %v374 = vmul.f32 %v336, 2.0
    %v375 = vmul.f32 %v339, 2.0
    %v376 = vmul.f32 %v344, 2.0
    %v377 = vmul.f32 %v347, 2.0
    %v378 = vmul.f32 %v352, 2.0
    %v379 = vmul.f32 %v355, 2.0
    %v380 = vmul.f32 %v360, 2.0
    %v381 = vmul.f32 %v363, 2.0
    %v382 = vsub.f32 %v366, %v76
    %v383 = vsub.f32 %v367, %v77
    %v384 = vsub.f32 %v368, %v78
    %v385 = vsub.f32 %v369, %v79
    %v386 = vsub.f32 %v370, %v80
    %v387 = vsub.f32 %v371, %v81
    %v388 = vsub.f32 %v372, %v82
    %v389 = vsub.f32 %v373, %v83
    %v390 = vsub.f32 %v374, %v84
    %v391 = vsub.f32 %v375, %v85
    %v392 = vsub.f32 %v376, %v86
    %v393 = vsub.f32 %v377, %v87
    %v394 = vsub.f32 %v378, %v88
    %v395 = vsub.f32 %v379, %v89
    %v396 = vsub.f32 %v380, %v90
    %v397 = vsub.f32 %v381, %v91
    %v398 = vpack.c.bf16 %v383, %v382
    %v399 = vpack.c.bf16 %v385, %v384
    %v400 = vpack.c.bf16 %v387, %v386
    %v401 = vpack.c.bf16 %v389, %v388
    %v402 = vpack.c.bf16 %v391, %v390
    %v403 = vpack.c.bf16 %v393, %v392
    %v404 = vpack.c.bf16 %v395, %v394
    %v405 = vpack.c.bf16 %v397, %v396
    %406 = vst [vmem:[#allocation2 + $0x10] sm:$0xff] %v398
    %407 = vst [vmem:[#allocation2 + $0x50] sm:$0xff] %v399
    %408 = vst [vmem:[#allocation2 + $0x90] sm:$0xff] %v400
    %409 = vst [vmem:[#allocation2 + $0xd0] sm:$0xff] %v401
    %410 = vst [vmem:[#allocation2 + $0x110] sm:$0xff] %v402
    %411 = vst [vmem:[#allocation2 + $0x150] sm:$0xff] %v403
    %412 = vst [vmem:[#allocation2 + $0x190] sm:$0xff] %v404
    %413 = vst [vmem:[#allocation2 + $0x1d0] sm:$0xff] %v405
    %414 = vmatprep.subr.bf16.mxu0 0
    %415 = vmatpush1.bf16.msra.mxu0 %v398
    %416 = vmatprep.subr.bf16.mxu0 0
    %417 = vmatpush1.bf16.msra.mxu0 %v399
    %418 = vmatprep.subr.bf16.mxu0 0
    %419 = vmatpush1.bf16.msra.mxu0 %v400
    %420 = vmatprep.subr.bf16.mxu0 0
    %421 = vmatpush1.bf16.msra.mxu0 %v401
    %422 = vmatprep.subr.bf16.mxu0 0
    %423 = vmatpush1.bf16.msra.mxu0 %v402
    %424 = vmatprep.subr.bf16.mxu0 0
    %425 = vmatpush1.bf16.msra.mxu0 %v403
    %426 = vmatprep.subr.bf16.mxu0 0
    %427 = vmatpush1.bf16.msra.mxu0 %v404
    %428 = vmatprep.subr.bf16.mxu0 0
    %429 = vmatpush1.bf16.msra.mxu0 %v405
    %430 = vmatprep.subr.bf16.mxu0 0
    %431 = vmatpush1.bf16.msra.mxu0 0
    %432 = vmatprep.subr.bf16.mxu0 0
    %433 = vmatpush1.bf16.msra.mxu0 0
    %434 = vmatprep.subr.bf16.mxu0 0
    %435 = vmatpush1.bf16.msra.mxu0 0
    %436 = vmatprep.subr.bf16.mxu0 0
    %437 = vmatpush1.bf16.msra.mxu0 0
    %438 = vmatprep.subr.bf16.mxu0 0
    %439 = vmatpush1.bf16.msra.mxu0 0
    %440 = vmatprep.subr.bf16.mxu0 0
    %441 = vmatpush1.bf16.msra.mxu0 0
    %442 = vmatprep.subr.bf16.mxu0 0
    %443 = vmatpush1.bf16.msra.mxu0 0
    %444 = vmatprep.subr.bf16.mxu0 0
    %445 = vmatpush1.bf16.msra.mxu0 0
    %446 = vmatprep.mubr.bf16.mxu0 0
    %447 = vmatmul.mubr.bf16.gmra.mrb[0].mxu0 %v140
    %v448 = vpop.f32.mrb[0].mxu0
    %v449 = vadd.f32 0.0, %v448
    %v450 = vpop.f32.mrb[0].mxu0
    %v451 = vpop.f32.mrb[0].mxu0
    %v452 = vadd.f32 0.0, %v451
    %v453 = vpop.f32.mrb[0].mxu0
    %454 = vmatprep.mubr.bf16.mxu0 0
    %455 = vmatmul.mubr.bf16.gmra.mrb[0].mxu0 %v141
    %v456 = vpop.f32.mrb[0].mxu0
    %v457 = vadd.f32 0.0, %v456
    %v458 = vpop.f32.mrb[0].mxu0
    %v459 = vpop.f32.mrb[0].mxu0
    %v460 = vadd.f32 0.0, %v459
    %v461 = vpop.f32.mrb[0].mxu0
    %462 = vmatprep.mubr.bf16.mxu0 0
    %463 = vmatmul.mubr.bf16.gmra.mrb[0].mxu0 %v142
    %v464 = vpop.f32.mrb[0].mxu0
    %v465 = vadd.f32 0.0, %v464
    %v466 = vpop.f32.mrb[0].mxu0
    %v467 = vpop.f32.mrb[0].mxu0
    %v468 = vadd.f32 0.0, %v467
    %v469 = vpop.f32.mrb[0].mxu0
    %470 = vmatprep.mubr.bf16.mxu0 0
    %471 = vmatmul.mubr.bf16.gmra.mrb[0].mxu0 %v143
    %v472 = vpop.f32.mrb[0].mxu0
    %v473 = vadd.f32 0.0, %v472
    %v474 = vpop.f32.mrb[0].mxu0
    %v475 = vpop.f32.mrb[0].mxu0
    %v476 = vadd.f32 0.0, %v475
    %v477 = vpop.f32.mrb[0].mxu0
    %478 = vmatprep.mubr.bf16.mxu0 0
    %479 = vmatmul.mubr.bf16.gmra.mrb[0].mxu0 %v144
    %v480 = vpop.f32.mrb[0].mxu0
    %v481 = vadd.f32 0.0, %v480
    %v482 = vpop.f32.mrb[0].mxu0
    %v483 = vpop.f32.mrb[0].mxu0
    %v484 = vadd.f32 0.0, %v483
    %v485 = vpop.f32.mrb[0].mxu0
    %486 = vmatprep.mubr.bf16.mxu0 0
    %487 = vmatmul.mubr.bf16.gmra.mrb[0].mxu0 %v145
    %v488 = vpop.f32.mrb[0].mxu0
    %v489 = vadd.f32 0.0, %v488
    %v490 = vpop.f32.mrb[0].mxu0
    %v491 = vpop.f32.mrb[0].mxu0
    %v492 = vadd.f32 0.0, %v491
    %v493 = vpop.f32.mrb[0].mxu0
    %494 = vmatprep.mubr.bf16.mxu0 0
    %495 = vmatmul.mubr.bf16.gmra.mrb[0].mxu0 %v146
    %v496 = vpop.f32.mrb[0].mxu0
    %v497 = vadd.f32 0.0, %v496
    %v498 = vpop.f32.mrb[0].mxu0
    %v499 = vpop.f32.mrb[0].mxu0
    %v500 = vadd.f32 0.0, %v499
    %v501 = vpop.f32.mrb[0].mxu0
    %502 = vmatprep.mubr.bf16.mxu0 0
    %503 = vmatmul.mubr.bf16.gmra.mrb[0].mxu0 %v147
    %v504 = vpop.f32.mrb[0].mxu0
    %v505 = vadd.f32 0.0, %v504
    %v506 = vpop.f32.mrb[0].mxu0
    %v507 = vpop.f32.mrb[0].mxu0
    %v508 = vadd.f32 0.0, %v507
    %v509 = vpop.f32.mrb[0].mxu0
    %510 = vdwg.mxu0
    %v511 = vmul.f32 %v449, 2.0
    %v512 = vmul.f32 %v452, 2.0
    %v513 = vmul.f32 %v457, 2.0
    %v514 = vmul.f32 %v460, 2.0
    %v515 = vmul.f32 %v465, 2.0
    %v516 = vmul.f32 %v468, 2.0
    %v517 = vmul.f32 %v473, 2.0
    %v518 = vmul.f32 %v476, 2.0
    %v519 = vmul.f32 %v481, 2.0
    %v520 = vmul.f32 %v484, 2.0
    %v521 = vmul.f32 %v489, 2.0
    %v522 = vmul.f32 %v492, 2.0
    %v523 = vmul.f32 %v497, 2.0
    %v524 = vmul.f32 %v500, 2.0
    %v525 = vmul.f32 %v505, 2.0
    %v526 = vmul.f32 %v508, 2.0
    %v527 = vsub.f32 %v511, %v191
    %v528 = vsub.f32 %v512, %v194
    %v529 = vsub.f32 %v513, %v199
    %v530 = vsub.f32 %v514, %v202
    %v531 = vsub.f32 %v515, %v207
    %v532 = vsub.f32 %v516, %v210
    %v533 = vsub.f32 %v517, %v215
    %v534 = vsub.f32 %v518, %v218
    %v535 = vsub.f32 %v519, %v223
    %v536 = vsub.f32 %v520, %v226
    %v537 = vsub.f32 %v521, %v231
    %v538 = vsub.f32 %v522, %v234
    %v539 = vsub.f32 %v523, %v239
    %v540 = vsub.f32 %v524, %v242
    %v541 = vsub.f32 %v525, %v247
    %v542 = vsub.f32 %v526, %v250
    %v543 = vpack.c.bf16 %v528, %v527
    %v544 = vpack.c.bf16 %v530, %v529
    %v545 = vpack.c.bf16 %v532, %v531
    %v546 = vpack.c.bf16 %v534, %v533
    %v547 = vpack.c.bf16 %v536, %v535
    %v548 = vpack.c.bf16 %v538, %v537
    %v549 = vpack.c.bf16 %v540, %v539
    %v550 = vpack.c.bf16 %v542, %v541
    %551 = vst [vmem:[#allocation2 + $0x18] sm:$0xff] %v543
    %552 = vst [vmem:[#allocation2 + $0x58] sm:$0xff] %v544
    %553 = vst [vmem:[#allocation2 + $0x98] sm:$0xff] %v545
    %554 = vst [vmem:[#allocation2 + $0xd8] sm:$0xff] %v546
    %555 = vst [vmem:[#allocation2 + $0x118] sm:$0xff] %v547
    %556 = vst [vmem:[#allocation2 + $0x158] sm:$0xff] %v548
    %557 = vst [vmem:[#allocation2 + $0x198] sm:$0xff] %v549
    %558 = vst [vmem:[#allocation2 + $0x1d8] sm:$0xff] %v550
    %559 = vmatprep.subr.bf16.mxu0 0
    %560 = vmatpush1.bf16.msra.mxu0 %v543
    %561 = vmatprep.subr.bf16.mxu0 0
    %562 = vmatpush1.bf16.msra.mxu0 %v544
    %563 = vmatprep.subr.bf16.mxu0 0
    %564 = vmatpush1.bf16.msra.mxu0 %v545
    %565 = vmatprep.subr.bf16.mxu0 0
    %566 = vmatpush1.bf16.msra.mxu0 %v546
    %567 = vmatprep.subr.bf16.mxu0 0
    %568 = vmatpush1.bf16.msra.mxu0 %v547
    %569 = vmatprep.subr.bf16.mxu0 0
    %570 = vmatpush1.bf16.msra.mxu0 %v548
    %571 = vmatprep.subr.bf16.mxu0 0
    %572 = vmatpush1.bf16.msra.mxu0 %v549
    %573 = vmatprep.subr.bf16.mxu0 0
    %574 = vmatpush1.bf16.msra.mxu0 %v550
    %575 = vmatprep.subr.bf16.mxu0 0
    %576 = vmatpush1.bf16.msra.mxu0 0
    %577 = vmatprep.subr.bf16.mxu0 0
    %578 = vmatpush1.bf16.msra.mxu0 0
    %579 = vmatprep.subr.bf16.mxu0 0
    %580 = vmatpush1.bf16.msra.mxu0 0
    %581 = vmatprep.subr.bf16.mxu0 0
    %582 = vmatpush1.bf16.msra.mxu0 0
    %583 = vmatprep.subr.bf16.mxu0 0
    %584 = vmatpush1.bf16.msra.mxu0 0
    %585 = vmatprep.subr.bf16.mxu0 0
    %586 = vmatpush1.bf16.msra.mxu0 0
    %587 = vmatprep.subr.bf16.mxu0 0
    %588 = vmatpush1.bf16.msra.mxu0 0
    %589 = vmatprep.subr.bf16.mxu0 0
    %590 = vmatpush1.bf16.msra.mxu0 0
    %591 = vmatprep.mubr.bf16.mxu0 0
    %592 = vmatmul.mubr.bf16.gmra.mrb[0].mxu0 %v140
    %v593 = vpop.f32.mrb[0].mxu0
    %v594 = vadd.f32 0.0, %v593
    %v595 = vpop.f32.mrb[0].mxu0
    %v596 = vpop.f32.mrb[0].mxu0
    %v597 = vadd.f32 0.0, %v596
    %v598 = vpop.f32.mrb[0].mxu0
    %599 = vmatprep.mubr.bf16.mxu0 0
    %600 = vmatmul.mubr.bf16.gmra.mrb[0].mxu0 %v141
    %v601 = vpop.f32.mrb[0].mxu0
    %v602 = vadd.f32 0.0, %v601
    %v603 = vpop.f32.mrb[0].mxu0
    %v604 = vpop.f32.mrb[0].mxu0
    %v605 = vadd.f32 0.0, %v604
    %v606 = vpop.f32.mrb[0].mxu0
    %607 = vmatprep.mubr.bf16.mxu0 0
    %608 = vmatmul.mubr.bf16.gmra.mrb[0].mxu0 %v142
    %v609 = vpop.f32.mrb[0].mxu0
    %v610 = vadd.f32 0.0, %v609
    %v611 = vpop.f32.mrb[0].mxu0
    %v612 = vpop.f32.mrb[0].mxu0
    %v613 = vadd.f32 0.0, %v612
    %v614 = vpop.f32.mrb[0].mxu0
    %615 = vmatprep.mubr.bf16.mxu0 0
    %616 = vmatmul.mubr.bf16.gmra.mrb[0].mxu0 %v143
    %v617 = vpop.f32.mrb[0].mxu0
    %v618 = vadd.f32 0.0, %v617
    %v619 = vpop.f32.mrb[0].mxu0
    %v620 = vpop.f32.mrb[0].mxu0
    %v621 = vadd.f32 0.0, %v620
    %v622 = vpop.f32.mrb[0].mxu0
    %623 = vmatprep.mubr.bf16.mxu0 0
    %624 = vmatmul.mubr.bf16.gmra.mrb[0].mxu0 %v144
    %v625 = vpop.f32.mrb[0].mxu0
    %v626 = vadd.f32 0.0, %v625
    %v627 = vpop.f32.mrb[0].mxu0
    %v628 = vpop.f32.mrb[0].mxu0
    %v629 = vadd.f32 0.0, %v628
    %v630 = vpop.f32.mrb[0].mxu0
    %631 = vmatprep.mubr.bf16.mxu0 0
    %632 = vmatmul.mubr.bf16.gmra.mrb[0].mxu0 %v145
    %v633 = vpop.f32.mrb[0].mxu0
    %v634 = vadd.f32 0.0, %v633
    %v635 = vpop.f32.mrb[0].mxu0
    %v636 = vpop.f32.mrb[0].mxu0
    %v637 = vadd.f32 0.0, %v636
    %v638 = vpop.f32.mrb[0].mxu0
    %639 = vmatprep.mubr.bf16.mxu0 0
    %640 = vmatmul.mubr.bf16.gmra.mrb[0].mxu0 %v146
    %v641 = vpop.f32.mrb[0].mxu0
    %v642 = vadd.f32 0.0, %v641
    %v643 = vpop.f32.mrb[0].mxu0
    %v644 = vpop.f32.mrb[0].mxu0
    %v645 = vadd.f32 0.0, %v644
    %v646 = vpop.f32.mrb[0].mxu0
    %647 = vmatprep.mubr.bf16.mxu0 0
    %648 = vmatmul.mubr.bf16.gmra.mrb[0].mxu0 %v147
    %v649 = vpop.f32.mrb[0].mxu0
    %v650 = vadd.f32 0.0, %v649
    %v651 = vpop.f32.mrb[0].mxu0
    %v652 = vpop.f32.mrb[0].mxu0
    %v653 = vadd.f32 0.0, %v652
    %v654 = vpop.f32.mrb[0].mxu0
    %655 = vdwg.mxu0
    %v656 = vmul.f32 %v594, 2.0
    %v657 = vmul.f32 %v597, 2.0
    %v658 = vmul.f32 %v602, 2.0
    %v659 = vmul.f32 %v605, 2.0
    %v660 = vmul.f32 %v610, 2.0
    %v661 = vmul.f32 %v613, 2.0
    %v662 = vmul.f32 %v618, 2.0
    %v663 = vmul.f32 %v621, 2.0
    %v664 = vmul.f32 %v626, 2.0
    %v665 = vmul.f32 %v629, 2.0
    %v666 = vmul.f32 %v634, 2.0
    %v667 = vmul.f32 %v637, 2.0
    %v668 = vmul.f32 %v642, 2.0
    %v669 = vmul.f32 %v645, 2.0
    %v670 = vmul.f32 %v650, 2.0
    %v671 = vmul.f32 %v653, 2.0
    %v672 = vsub.f32 %v656, %v382
    %v673 = vsub.f32 %v657, %v383
    %v674 = vsub.f32 %v658, %v384
    %v675 = vsub.f32 %v659, %v385
    %v676 = vsub.f32 %v660, %v386
    %v677 = vsub.f32 %v661, %v387
    %v678 = vsub.f32 %v662, %v388
    %v679 = vsub.f32 %v663, %v389
    %v680 = vsub.f32 %v664, %v390
    %v681 = vsub.f32 %v665, %v391
    %v682 = vsub.f32 %v666, %v392
    %v683 = vsub.f32 %v667, %v393
    %v684 = vsub.f32 %v668, %v394
    %v685 = vsub.f32 %v669, %v395
    %v686 = vsub.f32 %v670, %v396
    %v687 = vsub.f32 %v671, %v397
    %v688 = vpack.c.bf16 %v673, %v672
    %v689 = vpack.c.bf16 %v675, %v674
    %v690 = vpack.c.bf16 %v677, %v676
    %v691 = vpack.c.bf16 %v679, %v678
    %v692 = vpack.c.bf16 %v681, %v680
    %v693 = vpack.c.bf16 %v683, %v682
    %v694 = vpack.c.bf16 %v685, %v684
    %v695 = vpack.c.bf16 %v687, %v686
    %696 = vst [vmem:[#allocation2 + $0x20] sm:$0xff] %v688
    %697 = vst [vmem:[#allocation2 + $0x60] sm:$0xff] %v689
    %698 = vst [vmem:[#allocation2 + $0xa0] sm:$0xff] %v690
    %699 = vst [vmem:[#allocation2 + $0xe0] sm:$0xff] %v691
    %700 = vst [vmem:[#allocation2 + $0x120] sm:$0xff] %v692
    %701 = vst [vmem:[#allocation2 + $0x160] sm:$0xff] %v693
    %702 = vst [vmem:[#allocation2 + $0x1a0] sm:$0xff] %v694
    %703 = vst [vmem:[#allocation2 + $0x1e0] sm:$0xff] %v695
    %704 = vmatprep.subr.bf16.mxu0 0
    %705 = vmatpush1.bf16.msra.mxu0 %v688
    %706 = vmatprep.subr.bf16.mxu0 0
    %707 = vmatpush1.bf16.msra.mxu0 %v689
    %708 = vmatprep.subr.bf16.mxu0 0
    %709 = vmatpush1.bf16.msra.mxu0 %v690
    %710 = vmatprep.subr.bf16.mxu0 0
    %711 = vmatpush1.bf16.msra.mxu0 %v691
    %712 = vmatprep.subr.bf16.mxu0 0
    %713 = vmatpush1.bf16.msra.mxu0 %v692
    %714 = vmatprep.subr.bf16.mxu0 0
    %715 = vmatpush1.bf16.msra.mxu0 %v693
    %716 = vmatprep.subr.bf16.mxu0 0
    %717 = vmatpush1.bf16.msra.mxu0 %v694
    %718 = vmatprep.subr.bf16.mxu0 0
    %719 = vmatpush1.bf16.msra.mxu0 %v695
    %720 = vmatprep.subr.bf16.mxu0 0
    %721 = vmatpush1.bf16.msra.mxu0 0
    %722 = vmatprep.subr.bf16.mxu0 0
    %723 = vmatpush1.bf16.msra.mxu0 0
    %724 = vmatprep.subr.bf16.mxu0 0
    %725 = vmatpush1.bf16.msra.mxu0 0
    %726 = vmatprep.subr.bf16.mxu0 0
    %727 = vmatpush1.bf16.msra.mxu0 0
    %728 = vmatprep.subr.bf16.mxu0 0
    %729 = vmatpush1.bf16.msra.mxu0 0
    %730 = vmatprep.subr.bf16.mxu0 0
    %731 = vmatpush1.bf16.msra.mxu0 0
    %732 = vmatprep.subr.bf16.mxu0 0
    %733 = vmatpush1.bf16.msra.mxu0 0
    %734 = vmatprep.subr.bf16.mxu0 0
    %735 = vmatpush1.bf16.msra.mxu0 0
    %736 = vmatprep.mubr.bf16.mxu0 0
    %737 = vmatmul.mubr.bf16.gmra.mrb[0].mxu0 %v140
    %v738 = vpop.f32.mrb[0].mxu0
    %v739 = vadd.f32 0.0, %v738
    %v740 = vpop.f32.mrb[0].mxu0
    %v741 = vpop.f32.mrb[0].mxu0
    %v742 = vadd.f32 0.0, %v741
    %v743 = vpop.f32.mrb[0].mxu0
    %744 = vmatprep.mubr.bf16.mxu0 0
    %745 = vmatmul.mubr.bf16.gmra.mrb[0].mxu0 %v141
    %v746 = vpop.f32.mrb[0].mxu0
    %v747 = vadd.f32 0.0, %v746
    %v748 = vpop.f32.mrb[0].mxu0
    %v749 = vpop.f32.mrb[0].mxu0
    %v750 = vadd.f32 0.0, %v749
    %v751 = vpop.f32.mrb[0].mxu0
    %752 = vmatprep.mubr.bf16.mxu0 0
    %753 = vmatmul.mubr.bf16.gmra.mrb[0].mxu0 %v142
    %v754 = vpop.f32.mrb[0].mxu0
    %v755 = vadd.f32 0.0, %v754
    %v756 = vpop.f32.mrb[0].mxu0
    %v757 = vpop.f32.mrb[0].mxu0
    %v758 = vadd.f32 0.0, %v757
    %v759 = vpop.f32.mrb[0].mxu0
    %760 = vmatprep.mubr.bf16.mxu0 0
    %761 = vmatmul.mubr.bf16.gmra.mrb[0].mxu0 %v143
    %v762 = vpop.f32.mrb[0].mxu0
    %v763 = vadd.f32 0.0, %v762
    %v764 = vpop.f32.mrb[0].mxu0
    %v765 = vpop.f32.mrb[0].mxu0
    %v766 = vadd.f32 0.0, %v765
    %v767 = vpop.f32.mrb[0].mxu0
    %768 = vmatprep.mubr.bf16.mxu0 0
    %769 = vmatmul.mubr.bf16.gmra.mrb[0].mxu0 %v144
    %v770 = vpop.f32.mrb[0].mxu0
    %v771 = vadd.f32 0.0, %v770
    %v772 = vpop.f32.mrb[0].mxu0
    %v773 = vpop.f32.mrb[0].mxu0
    %v774 = vadd.f32 0.0, %v773
    %v775 = vpop.f32.mrb[0].mxu0
    %776 = vmatprep.mubr.bf16.mxu0 0
    %777 = vmatmul.mubr.bf16.gmra.mrb[0].mxu0 %v145
    %v778 = vpop.f32.mrb[0].mxu0
    %v779 = vadd.f32 0.0, %v778
    %v780 = vpop.f32.mrb[0].mxu0
    %v781 = vpop.f32.mrb[0].mxu0
    %v782 = vadd.f32 0.0, %v781
    %v783 = vpop.f32.mrb[0].mxu0
    %784 = vmatprep.mubr.bf16.mxu0 0
    %785 = vmatmul.mubr.bf16.gmra.mrb[0].mxu0 %v146
    %v786 = vpop.f32.mrb[0].mxu0
    %v787 = vadd.f32 0.0, %v786
    %v788 = vpop.f32.mrb[0].mxu0
    %v789 = vpop.f32.mrb[0].mxu0
    %v790 = vadd.f32 0.0, %v789
    %v791 = vpop.f32.mrb[0].mxu0
    %792 = vmatprep.mubr.bf16.mxu0 0
    %793 = vmatmul.mubr.bf16.gmra.mrb[0].mxu0 %v147
    %v794 = vpop.f32.mrb[0].mxu0
    %v795 = vadd.f32 0.0, %v794
    %v796 = vpop.f32.mrb[0].mxu0
    %v797 = vpop.f32.mrb[0].mxu0
    %v798 = vadd.f32 0.0, %v797
    %v799 = vpop.f32.mrb[0].mxu0
    %800 = vdwg.mxu0
    %v801 = vmul.f32 %v739, 2.0
    %v802 = vmul.f32 %v742, 2.0
    %v803 = vmul.f32 %v747, 2.0
    %v804 = vmul.f32 %v750, 2.0
    %v805 = vmul.f32 %v755, 2.0
    %v806 = vmul.f32 %v758, 2.0
    %v807 = vmul.f32 %v763, 2.0
    %v808 = vmul.f32 %v766, 2.0
    %v809 = vmul.f32 %v771, 2.0
    %v810 = vmul.f32 %v774, 2.0
    %v811 = vmul.f32 %v779, 2.0
    %v812 = vmul.f32 %v782, 2.0
    %v813 = vmul.f32 %v787, 2.0
    %v814 = vmul.f32 %v790, 2.0
    %v815 = vmul.f32 %v795, 2.0
    %v816 = vmul.f32 %v798, 2.0
    %v817 = vsub.f32 %v801, %v527
    %v818 = vsub.f32 %v802, %v528
    %v819 = vsub.f32 %v803, %v529
    %v820 = vsub.f32 %v804, %v530
    %v821 = vsub.f32 %v805, %v531
    %v822 = vsub.f32 %v806, %v532
    %v823 = vsub.f32 %v807, %v533
    %v824 = vsub.f32 %v808, %v534
    %v825 = vsub.f32 %v809, %v535
    %v826 = vsub.f32 %v810, %v536
    %v827 = vsub.f32 %v811, %v537
    %v828 = vsub.f32 %v812, %v538
    %v829 = vsub.f32 %v813, %v539
    %v830 = vsub.f32 %v814, %v540
    %v831 = vsub.f32 %v815, %v541
    %v832 = vsub.f32 %v816, %v542
    %v833 = vpack.c.bf16 %v818, %v817
    %v834 = vpack.c.bf16 %v820, %v819
    %v835 = vpack.c.bf16 %v822, %v821
    %v836 = vpack.c.bf16 %v824, %v823
    %v837 = vpack.c.bf16 %v826, %v825
    %v838 = vpack.c.bf16 %v828, %v827
    %v839 = vpack.c.bf16 %v830, %v829
    %v840 = vpack.c.bf16 %v832, %v831
    %841 = vst [vmem:[#allocation2 + $0x28] sm:$0xff] %v833
    %842 = vst [vmem:[#allocation2 + $0x68] sm:$0xff] %v834
    %843 = vst [vmem:[#allocation2 + $0xa8] sm:$0xff] %v835
    %844 = vst [vmem:[#allocation2 + $0xe8] sm:$0xff] %v836
    %845 = vst [vmem:[#allocation2 + $0x128] sm:$0xff] %v837
    %846 = vst [vmem:[#allocation2 + $0x168] sm:$0xff] %v838
    %847 = vst [vmem:[#allocation2 + $0x1a8] sm:$0xff] %v839
    %848 = vst [vmem:[#allocation2 + $0x1e8] sm:$0xff] %v840
    %849 = vmatprep.subr.bf16.mxu0 0
    %850 = vmatpush1.bf16.msra.mxu0 %v833
    %851 = vmatprep.subr.bf16.mxu0 0
    %852 = vmatpush1.bf16.msra.mxu0 %v834
    %853 = vmatprep.subr.bf16.mxu0 0
    %854 = vmatpush1.bf16.msra.mxu0 %v835
    %855 = vmatprep.subr.bf16.mxu0 0
    %856 = vmatpush1.bf16.msra.mxu0 %v836
    %857 = vmatprep.subr.bf16.mxu0 0
    %858 = vmatpush1.bf16.msra.mxu0 %v837
    %859 = vmatprep.subr.bf16.mxu0 0
    %860 = vmatpush1.bf16.msra.mxu0 %v838
    %861 = vmatprep.subr.bf16.mxu0 0
    %862 = vmatpush1.bf16.msra.mxu0 %v839
    %863 = vmatprep.subr.bf16.mxu0 0
    %864 = vmatpush1.bf16.msra.mxu0 %v840
    %865 = vmatprep.subr.bf16.mxu0 0
    %866 = vmatpush1.bf16.msra.mxu0 0
    %867 = vmatprep.subr.bf16.mxu0 0
    %868 = vmatpush1.bf16.msra.mxu0 0
    %869 = vmatprep.subr.bf16.mxu0 0
    %870 = vmatpush1.bf16.msra.mxu0 0
    %871 = vmatprep.subr.bf16.mxu0 0
    %872 = vmatpush1.bf16.msra.mxu0 0
    %873 = vmatprep.subr.bf16.mxu0 0
    %874 = vmatpush1.bf16.msra.mxu0 0
    %875 = vmatprep.subr.bf16.mxu0 0
    %876 = vmatpush1.bf16.msra.mxu0 0
    %877 = vmatprep.subr.bf16.mxu0 0
    %878 = vmatpush1.bf16.msra.mxu0 0
    %879 = vmatprep.subr.bf16.mxu0 0
    %880 = vmatpush1.bf16.msra.mxu0 0
    %881 = vmatprep.mubr.bf16.mxu0 0
    %882 = vmatmul.mubr.bf16.gmra.mrb[0].mxu0 %v140
    %v883 = vpop.f32.mrb[0].mxu0
    %v884 = vadd.f32 0.0, %v883
    %v885 = vpop.f32.mrb[0].mxu0
    %v886 = vpop.f32.mrb[0].mxu0
    %v887 = vadd.f32 0.0, %v886
    %v888 = vpop.f32.mrb[0].mxu0
    %889 = vmatprep.mubr.bf16.mxu0 0
    %890 = vmatmul.mubr.bf16.gmra.mrb[0].mxu0 %v141
    %v891 = vpop.f32.mrb[0].mxu0
    %v892 = vadd.f32 0.0, %v891
    %v893 = vpop.f32.mrb[0].mxu0
    %v894 = vpop.f32.mrb[0].mxu0
    %v895 = vadd.f32 0.0, %v894
    %v896 = vpop.f32.mrb[0].mxu0
    %897 = vmatprep.mubr.bf16.mxu0 0
    %898 = vmatmul.mubr.bf16.gmra.mrb[0].mxu0 %v142
    %v899 = vpop.f32.mrb[0].mxu0
    %v900 = vadd.f32 0.0, %v899
    %v901 = vpop.f32.mrb[0].mxu0
    %v902 = vpop.f32.mrb[0].mxu0
    %v903 = vadd.f32 0.0, %v902
    %v904 = vpop.f32.mrb[0].mxu0
    %905 = vmatprep.mubr.bf16.mxu0 0
    %906 = vmatmul.mubr.bf16.gmra.mrb[0].mxu0 %v143
    %v907 = vpop.f32.mrb[0].mxu0
    %v908 = vadd.f32 0.0, %v907
    %v909 = vpop.f32.mrb[0].mxu0
    %v910 = vpop.f32.mrb[0].mxu0
    %v911 = vadd.f32 0.0, %v910
    %v912 = vpop.f32.mrb[0].mxu0
    %913 = vmatprep.mubr.bf16.mxu0 0
    %914 = vmatmul.mubr.bf16.gmra.mrb[0].mxu0 %v144
    %v915 = vpop.f32.mrb[0].mxu0
    %v916 = vadd.f32 0.0, %v915
    %v917 = vpop.f32.mrb[0].mxu0
    %v918 = vpop.f32.mrb[0].mxu0
    %v919 = vadd.f32 0.0, %v918
    %v920 = vpop.f32.mrb[0].mxu0
    %921 = vmatprep.mubr.bf16.mxu0 0
    %922 = vmatmul.mubr.bf16.gmra.mrb[0].mxu0 %v145
    %v923 = vpop.f32.mrb[0].mxu0
    %v924 = vadd.f32 0.0, %v923
    %v925 = vpop.f32.mrb[0].mxu0
    %v926 = vpop.f32.mrb[0].mxu0
    %v927 = vadd.f32 0.0, %v926
    %v928 = vpop.f32.mrb[0].mxu0
    %929 = vmatprep.mubr.bf16.mxu0 0
    %930 = vmatmul.mubr.bf16.gmra.mrb[0].mxu0 %v146
    %v931 = vpop.f32.mrb[0].mxu0
    %v932 = vadd.f32 0.0, %v931
    %v933 = vpop.f32.mrb[0].mxu0
    %v934 = vpop.f32.mrb[0].mxu0
    %v935 = vadd.f32 0.0, %v934
    %v936 = vpop.f32.mrb[0].mxu0
    %937 = vmatprep.mubr.bf16.mxu0 0
    %938 = vmatmul.mubr.bf16.gmra.mrb[0].mxu0 %v147
    %v939 = vpop.f32.mrb[0].mxu0
    %v940 = vadd.f32 0.0, %v939
    %v941 = vpop.f32.mrb[0].mxu0
    %v942 = vpop.f32.mrb[0].mxu0
    %v943 = vadd.f32 0.0, %v942
    %v944 = vpop.f32.mrb[0].mxu0
    %945 = vdwg.mxu0
    %v946 = vmul.f32 %v884, 2.0
    %v947 = vmul.f32 %v887, 2.0
    %v948 = vmul.f32 %v892, 2.0
    %v949 = vmul.f32 %v895, 2.0
    %v950 = vmul.f32 %v900, 2.0
    %v951 = vmul.f32 %v903, 2.0
    %v952 = vmul.f32 %v908, 2.0
    %v953 = vmul.f32 %v911, 2.0
    %v954 = vmul.f32 %v916, 2.0
    %v955 = vmul.f32 %v919, 2.0
    %v956 = vmul.f32 %v924, 2.0
    %v957 = vmul.f32 %v927, 2.0
    %v958 = vmul.f32 %v932, 2.0
    %v959 = vmul.f32 %v935, 2.0
    %v960 = vmul.f32 %v940, 2.0
    %v961 = vmul.f32 %v943, 2.0
    %v962 = vsub.f32 %v946, %v672
    %v963 = vsub.f32 %v947, %v673
    %v964 = vsub.f32 %v948, %v674
    %v965 = vsub.f32 %v949, %v675
    %v966 = vsub.f32 %v950, %v676
    %v967 = vsub.f32 %v951, %v677
    %v968 = vsub.f32 %v952, %v678
    %v969 = vsub.f32 %v953, %v679
    %v970 = vsub.f32 %v954, %v680
    %v971 = vsub.f32 %v955, %v681
    %v972 = vsub.f32 %v956, %v682
    %v973 = vsub.f32 %v957, %v683
    %v974 = vsub.f32 %v958, %v684
    %v975 = vsub.f32 %v959, %v685
    %v976 = vsub.f32 %v960, %v686
    %v977 = vsub.f32 %v961, %v687
    %v978 = vpack.c.bf16 %v963, %v962
    %v979 = vpack.c.bf16 %v965, %v964
    %v980 = vpack.c.bf16 %v967, %v966
    %v981 = vpack.c.bf16 %v969, %v968
    %v982 = vpack.c.bf16 %v971, %v970
    %v983 = vpack.c.bf16 %v973, %v972
    %v984 = vpack.c.bf16 %v975, %v974
    %v985 = vpack.c.bf16 %v977, %v976
    %986 = vst [vmem:[#allocation2 + $0x30] sm:$0xff] %v978
    %987 = vst [vmem:[#allocation2 + $0x70] sm:$0xff] %v979
    %988 = vst [vmem:[#allocation2 + $0xb0] sm:$0xff] %v980
    %989 = vst [vmem:[#allocation2 + $0xf0] sm:$0xff] %v981
    %990 = vst [vmem:[#allocation2 + $0x130] sm:$0xff] %v982
    %991 = vst [vmem:[#allocation2 + $0x170] sm:$0xff] %v983
    %992 = vst [vmem:[#allocation2 + $0x1b0] sm:$0xff] %v984
    %993 = vst [vmem:[#allocation2 + $0x1f0] sm:$0xff] %v985
    %994 = vmatprep.subr.bf16.mxu0 0
    %995 = vmatpush1.bf16.msra.mxu0 %v978
    %996 = vmatprep.subr.bf16.mxu0 0
    %997 = vmatpush1.bf16.msra.mxu0 %v979
    %998 = vmatprep.subr.bf16.mxu0 0
    %999 = vmatpush1.bf16.msra.mxu0 %v980
    %1000 = vmatprep.subr.bf16.mxu0 0
    %1001 = vmatpush1.bf16.msra.mxu0 %v981
    %1002 = vmatprep.subr.bf16.mxu0 0
    %1003 = vmatpush1.bf16.msra.mxu0 %v982
    %1004 = vmatprep.subr.bf16.mxu0 0
    %1005 = vmatpush1.bf16.msra.mxu0 %v983
    %1006 = vmatprep.subr.bf16.mxu0 0
    %1007 = vmatpush1.bf16.msra.mxu0 %v984
    %1008 = vmatprep.subr.bf16.mxu0 0
    %1009 = vmatpush1.bf16.msra.mxu0 %v985
    %1010 = vmatprep.subr.bf16.mxu0 0
    %1011 = vmatpush1.bf16.msra.mxu0 0
    %1012 = vmatprep.subr.bf16.mxu0 0
    %1013 = vmatpush1.bf16.msra.mxu0 0
    %1014 = vmatprep.subr.bf16.mxu0 0
    %1015 = vmatpush1.bf16.msra.mxu0 0
    %1016 = vmatprep.subr.bf16.mxu0 0
    %1017 = vmatpush1.bf16.msra.mxu0 0
    %1018 = vmatprep.subr.bf16.mxu0 0
    %1019 = vmatpush1.bf16.msra.mxu0 0
    %1020 = vmatprep.subr.bf16.mxu0 0
    %1021 = vmatpush1.bf16.msra.mxu0 0
    %1022 = vmatprep.subr.bf16.mxu0 0
    %1023 = vmatpush1.bf16.msra.mxu0 0
    %1024 = vmatprep.subr.bf16.mxu0 0
    %1025 = vmatpush1.bf16.msra.mxu0 0
    %1026 = vmatprep.mubr.bf16.mxu0 0
    %1027 = vmatmul.mubr.bf16.gmra.mrb[0].mxu0 %v140
    %v1028 = vpop.f32.mrb[0].mxu0
    %v1029 = vadd.f32 0.0, %v1028
    %v1030 = vpop.f32.mrb[0].mxu0
    %v1031 = vpop.f32.mrb[0].mxu0
    %v1032 = vadd.f32 0.0, %v1031
    %v1033 = vpop.f32.mrb[0].mxu0
    %1034 = vmatprep.mubr.bf16.mxu0 0
    %1035 = vmatmul.mubr.bf16.gmra.mrb[0].mxu0 %v141
    %v1036 = vpop.f32.mrb[0].mxu0
    %v1037 = vadd.f32 0.0, %v1036
    %v1038 = vpop.f32.mrb[0].mxu0
    %v1039 = vpop.f32.mrb[0].mxu0
    %v1040 = vadd.f32 0.0, %v1039
    %v1041 = vpop.f32.mrb[0].mxu0
    %1042 = vmatprep.mubr.bf16.mxu0 0
    %1043 = vmatmul.mubr.bf16.gmra.mrb[0].mxu0 %v142
    %v1044 = vpop.f32.mrb[0].mxu0
    %v1045 = vadd.f32 0.0, %v1044
    %v1046 = vpop.f32.mrb[0].mxu0
    %v1047 = vpop.f32.mrb[0].mxu0
    %v1048 = vadd.f32 0.0, %v1047
    %v1049 = vpop.f32.mrb[0].mxu0
    %1050 = vmatprep.mubr.bf16.mxu0 0
    %1051 = vmatmul.mubr.bf16.gmra.mrb[0].mxu0 %v143
    %v1052 = vpop.f32.mrb[0].mxu0
    %v1053 = vadd.f32 0.0, %v1052
    %v1054 = vpop.f32.mrb[0].mxu0
    %v1055 = vpop.f32.mrb[0].mxu0
    %v1056 = vadd.f32 0.0, %v1055
    %v1057 = vpop.f32.mrb[0].mxu0
    %1058 = vmatprep.mubr.bf16.mxu0 0
    %1059 = vmatmul.mubr.bf16.gmra.mrb[0].mxu0 %v144
    %v1060 = vpop.f32.mrb[0].mxu0
    %v1061 = vadd.f32 0.0, %v1060
    %v1062 = vpop.f32.mrb[0].mxu0
    %v1063 = vpop.f32.mrb[0].mxu0
    %v1064 = vadd.f32 0.0, %v1063
    %v1065 = vpop.f32.mrb[0].mxu0
    %1066 = vmatprep.mubr.bf16.mxu0 0
    %1067 = vmatmul.mubr.bf16.gmra.mrb[0].mxu0 %v145
    %v1068 = vpop.f32.mrb[0].mxu0
    %v1069 = vadd.f32 0.0, %v1068
    %v1070 = vpop.f32.mrb[0].mxu0
    %v1071 = vpop.f32.mrb[0].mxu0
    %v1072 = vadd.f32 0.0, %v1071
    %v1073 = vpop.f32.mrb[0].mxu0
    %1074 = vmatprep.mubr.bf16.mxu0 0
    %1075 = vmatmul.mubr.bf16.gmra.mrb[0].mxu0 %v146
    %v1076 = vpop.f32.mrb[0].mxu0
    %v1077 = vadd.f32 0.0, %v1076
    %v1078 = vpop.f32.mrb[0].mxu0
    %v1079 = vpop.f32.mrb[0].mxu0
    %v1080 = vadd.f32 0.0, %v1079
    %v1081 = vpop.f32.mrb[0].mxu0
    %1082 = vmatprep.mubr.bf16.mxu0 0
    %1083 = vmatmul.mubr.bf16.gmra.mrb[0].mxu0 %v147
    %v1084 = vpop.f32.mrb[0].mxu0
    %v1085 = vadd.f32 0.0, %v1084
    %v1086 = vpop.f32.mrb[0].mxu0
    %v1087 = vpop.f32.mrb[0].mxu0
    %v1088 = vadd.f32 0.0, %v1087
    %v1089 = vpop.f32.mrb[0].mxu0
    %1090 = vdwg.mxu0
    %v1091 = vmul.f32 %v1029, 2.0
    %v1092 = vmul.f32 %v1032, 2.0
    %v1093 = vmul.f32 %v1037, 2.0
    %v1094 = vmul.f32 %v1040, 2.0
    %v1095 = vmul.f32 %v1045, 2.0
    %v1096 = vmul.f32 %v1048, 2.0
    %v1097 = vmul.f32 %v1053, 2.0
    %v1098 = vmul.f32 %v1056, 2.0
    %v1099 = vmul.f32 %v1061, 2.0
    %v1100 = vmul.f32 %v1064, 2.0
    %v1101 = vmul.f32 %v1069, 2.0
    %v1102 = vmul.f32 %v1072, 2.0
    %v1103 = vmul.f32 %v1077, 2.0
    %v1104 = vmul.f32 %v1080, 2.0
    %v1105 = vmul.f32 %v1085, 2.0
    %v1106 = vmul.f32 %v1088, 2.0
    %v1107 = vsub.f32 %v1091, %v817
    %v1108 = vsub.f32 %v1092, %v818
    %v1109 = vsub.f32 %v1093, %v819
    %v1110 = vsub.f32 %v1094, %v820
    %v1111 = vsub.f32 %v1095, %v821
    %v1112 = vsub.f32 %v1096, %v822
    %v1113 = vsub.f32 %v1097, %v823
    %v1114 = vsub.f32 %v1098, %v824
    %v1115 = vsub.f32 %v1099, %v825
    %v1116 = vsub.f32 %v1100, %v826
    %v1117 = vsub.f32 %v1101, %v827
    %v1118 = vsub.f32 %v1102, %v828
    %v1119 = vsub.f32 %v1103, %v829
    %v1120 = vsub.f32 %v1104, %v830
    %v1121 = vsub.f32 %v1105, %v831
    %v1122 = vsub.f32 %v1106, %v832
    %v1123 = vpack.c.bf16 %v1108, %v1107
    %v1124 = vpack.c.bf16 %v1110, %v1109
    %v1125 = vpack.c.bf16 %v1112, %v1111
    %v1126 = vpack.c.bf16 %v1114, %v1113
    %v1127 = vpack.c.bf16 %v1116, %v1115
    %v1128 = vpack.c.bf16 %v1118, %v1117
    %v1129 = vpack.c.bf16 %v1120, %v1119
    %v1130 = vpack.c.bf16 %v1122, %v1121
    %1131 = vst [vmem:[#allocation2 + $0x38] sm:$0xff] %v1123
    %1132 = vst [vmem:[#allocation2 + $0x78] sm:$0xff] %v1124
    %1133 = vst [vmem:[#allocation2 + $0xb8] sm:$0xff] %v1125
    %1134 = vst [vmem:[#allocation2 + $0xf8] sm:$0xff] %v1126
    %1135 = vst [vmem:[#allocation2 + $0x138] sm:$0xff] %v1127
    %1136 = vst [vmem:[#allocation2 + $0x178] sm:$0xff] %v1128
    %1137 = vst [vmem:[#allocation2 + $0x1b8] sm:$0xff] %v1129
    %1138 = vst [vmem:[#allocation2 + $0x1f8] sm:$0xff] %v1130
    %v1139 = vld [vmem:[#allocation2] sm:$0xff]
    %v1140 = vld [vmem:[#allocation2 + $0x8] sm:$0xff]
    %v1141 = vld [vmem:[#allocation2 + $0x10] sm:$0xff]
    %v1142 = vld [vmem:[#allocation2 + $0x18] sm:$0xff]
    %v1143 = vld [vmem:[#allocation2 + $0x20] sm:$0xff]
    %v1144 = vld [vmem:[#allocation2 + $0x28] sm:$0xff]
    %v1145 = vld [vmem:[#allocation2 + $0x30] sm:$0xff]
    %v1146 = vld [vmem:[#allocation2 + $0x38] sm:$0xff]
    %v1147 = vld [vmem:[#allocation2 + $0x40] sm:$0xff]
    %v1148 = vld [vmem:[#allocation2 + $0x48] sm:$0xff]
    %v1149 = vld [vmem:[#allocation2 + $0x50] sm:$0xff]
    %v1150 = vld [vmem:[#allocation2 + $0x58] sm:$0xff]
    %v1151 = vld [vmem:[#allocation2 + $0x60] sm:$0xff]
    %v1152 = vld [vmem:[#allocation2 + $0x68] sm:$0xff]
    %v1153 = vld [vmem:[#allocation2 + $0x70] sm:$0xff]
    %v1154 = vld [vmem:[#allocation2 + $0x78] sm:$0xff]
    %v1155 = vld [vmem:[#allocation2 + $0x80] sm:$0xff]
    %v1156 = vld [vmem:[#allocation2 + $0x88] sm:$0xff]
    %v1157 = vld [vmem:[#allocation2 + $0x90] sm:$0xff]
    %v1158 = vld [vmem:[#allocation2 + $0x98] sm:$0xff]
    %v1159 = vld [vmem:[#allocation2 + $0xa0] sm:$0xff]
    %v1160 = vld [vmem:[#allocation2 + $0xa8] sm:$0xff]
    %v1161 = vld [vmem:[#allocation2 + $0xb0] sm:$0xff]
    %v1162 = vld [vmem:[#allocation2 + $0xb8] sm:$0xff]
    %v1163 = vld [vmem:[#allocation2 + $0xc0] sm:$0xff]
    %v1164 = vld [vmem:[#allocation2 + $0xc8] sm:$0xff]
    %v1165 = vld [vmem:[#allocation2 + $0xd0] sm:$0xff]
    %v1166 = vld [vmem:[#allocation2 + $0xd8] sm:$0xff]
    %v1167 = vld [vmem:[#allocation2 + $0xe0] sm:$0xff]
    %v1168 = vld [vmem:[#allocation2 + $0xe8] sm:$0xff]
    %v1169 = vld [vmem:[#allocation2 + $0xf0] sm:$0xff]
    %v1170 = vld [vmem:[#allocation2 + $0xf8] sm:$0xff]
    %v1171 = vld [vmem:[#allocation2 + $0x100] sm:$0xff]
    %v1172 = vld [vmem:[#allocation2 + $0x108] sm:$0xff]
    %v1173 = vld [vmem:[#allocation2 + $0x110] sm:$0xff]
    %v1174 = vld [vmem:[#allocation2 + $0x118] sm:$0xff]
    %v1175 = vld [vmem:[#allocation2 + $0x120] sm:$0xff]
    %v1176 = vld [vmem:[#allocation2 + $0x128] sm:$0xff]
    %v1177 = vld [vmem:[#allocation2 + $0x130] sm:$0xff]
    %v1178 = vld [vmem:[#allocation2 + $0x138] sm:$0xff]
    %v1179 = vld [vmem:[#allocation2 + $0x140] sm:$0xff]
    %v1180 = vld [vmem:[#allocation2 + $0x148] sm:$0xff]
    %v1181 = vld [vmem:[#allocation2 + $0x150] sm:$0xff]
    %v1182 = vld [vmem:[#allocation2 + $0x158] sm:$0xff]
    %v1183 = vld [vmem:[#allocation2 + $0x160] sm:$0xff]
    %v1184 = vld [vmem:[#allocation2 + $0x168] sm:$0xff]
    %v1185 = vld [vmem:[#allocation2 + $0x170] sm:$0xff]
    %v1186 = vld [vmem:[#allocation2 + $0x178] sm:$0xff]
    %v1187 = vld [vmem:[#allocation2 + $0x180] sm:$0xff]
    %v1188 = vld [vmem:[#allocation2 + $0x188] sm:$0xff]
    %v1189 = vld [vmem:[#allocation2 + $0x190] sm:$0xff]
    %v1190 = vld [vmem:[#allocation2 + $0x198] sm:$0xff]
    %v1191 = vld [vmem:[#allocation2 + $0x1a0] sm:$0xff]
    %v1192 = vld [vmem:[#allocation2 + $0x1a8] sm:$0xff]
    %v1193 = vld [vmem:[#allocation2 + $0x1b0] sm:$0xff]
    %v1194 = vld [vmem:[#allocation2 + $0x1b8] sm:$0xff]
    %v1195 = vld [vmem:[#allocation2 + $0x1c0] sm:$0xff]
    %v1196 = vld [vmem:[#allocation2 + $0x1c8] sm:$0xff]
    %v1197 = vld [vmem:[#allocation2 + $0x1d0] sm:$0xff]
    %v1198 = vld [vmem:[#allocation2 + $0x1d8] sm:$0xff]
    %v1199 = vld [vmem:[#allocation2 + $0x1e0] sm:$0xff]
    %v1200 = vld [vmem:[#allocation2 + $0x1e8] sm:$0xff]
    %v1201 = vld [vmem:[#allocation2 + $0x1f0] sm:$0xff]
    %v1202 = vld [vmem:[#allocation2 + $0x1f8] sm:$0xff]
    %v1203 = vld [vmem:[#allocation8] sm:$0xf]
    %v1204 = vld [vmem:[#allocation8 + $0x4] sm:$0xf]
    %v1205 = vld [vmem:[#allocation8 + $0x8] sm:$0xf]
    %v1206 = vld [vmem:[#allocation8 + $0xc] sm:$0xf]
    %v1207 = vld [vmem:[#allocation8 + $0x10] sm:$0xf]
    %v1208 = vld [vmem:[#allocation8 + $0x14] sm:$0xf]
    %v1209 = vld [vmem:[#allocation8 + $0x18] sm:$0xf]
    %v1210 = vld [vmem:[#allocation8 + $0x1c] sm:$0xf]
    %v1211 = vld [vmem:[#allocation8 + $0x20] sm:$0xf]
    %v1212 = vld [vmem:[#allocation8 + $0x24] sm:$0xf]
    %v1213 = vld [vmem:[#allocation8 + $0x28] sm:$0xf]
    %v1214 = vld [vmem:[#allocation8 + $0x2c] sm:$0xf]
    %v1215 = vld [vmem:[#allocation8 + $0x30] sm:$0xf]
    %v1216 = vld [vmem:[#allocation8 + $0x34] sm:$0xf]
    %v1217 = vld [vmem:[#allocation8 + $0x38] sm:$0xf]
    %v1218 = vld [vmem:[#allocation8 + $0x3c] sm:$0xf]
    %v1219 = vld [vmem:[#allocation8 + $0x40] sm:$0xf]
    %v1220 = vld [vmem:[#allocation8 + $0x44] sm:$0xf]
    %v1221 = vld [vmem:[#allocation8 + $0x48] sm:$0xf]
    %v1222 = vld [vmem:[#allocation8 + $0x4c] sm:$0xf]
    %v1223 = vld [vmem:[#allocation8 + $0x50] sm:$0xf]
    %v1224 = vld [vmem:[#allocation8 + $0x54] sm:$0xf]
    %v1225 = vld [vmem:[#allocation8 + $0x58] sm:$0xf]
    %v1226 = vld [vmem:[#allocation8 + $0x5c] sm:$0xf]
    %v1227 = vld [vmem:[#allocation8 + $0x60] sm:$0xf]
    %v1228 = vld [vmem:[#allocation8 + $0x64] sm:$0xf]
    %v1229 = vld [vmem:[#allocation8 + $0x68] sm:$0xf]
    %v1230 = vld [vmem:[#allocation8 + $0x6c] sm:$0xf]
    %v1231 = vld [vmem:[#allocation8 + $0x70] sm:$0xf]
    %v1232 = vld [vmem:[#allocation8 + $0x74] sm:$0xf]
    %v1233 = vld [vmem:[#allocation8 + $0x78] sm:$0xf]
    %v1234 = vld [vmem:[#allocation8 + $0x7c] sm:$0xf]
    %v1235 = vld [vmem:[#allocation8 + $0x80] sm:$0xf]
    %v1236 = vld [vmem:[#allocation8 + $0x84] sm:$0xf]
    %v1237 = vld [vmem:[#allocation8 + $0x88] sm:$0xf]
    %v1238 = vld [vmem:[#allocation8 + $0x8c] sm:$0xf]
    %v1239 = vld [vmem:[#allocation8 + $0x90] sm:$0xf]
    %v1240 = vld [vmem:[#allocation8 + $0x94] sm:$0xf]
    %v1241 = vld [vmem:[#allocation8 + $0x98] sm:$0xf]
    %v1242 = vld [vmem:[#allocation8 + $0x9c] sm:$0xf]
    %v1243 = vld [vmem:[#allocation8 + $0xa0] sm:$0xf]
    %v1244 = vld [vmem:[#allocation8 + $0xa4] sm:$0xf]
    %v1245 = vld [vmem:[#allocation8 + $0xa8] sm:$0xf]
    %v1246 = vld [vmem:[#allocation8 + $0xac] sm:$0xf]
    %v1247 = vld [vmem:[#allocation8 + $0xb0] sm:$0xf]
    %v1248 = vld [vmem:[#allocation8 + $0xb4] sm:$0xf]
    %v1249 = vld [vmem:[#allocation8 + $0xb8] sm:$0xf]
    %v1250 = vld [vmem:[#allocation8 + $0xbc] sm:$0xf]
    %v1251 = vld [vmem:[#allocation8 + $0xc0] sm:$0xf]
    %v1252 = vld [vmem:[#allocation8 + $0xc4] sm:$0xf]
    %v1253 = vld [vmem:[#allocation8 + $0xc8] sm:$0xf]
    %v1254 = vld [vmem:[#allocation8 + $0xcc] sm:$0xf]
    %v1255 = vld [vmem:[#allocation8 + $0xd0] sm:$0xf]
    %v1256 = vld [vmem:[#allocation8 + $0xd4] sm:$0xf]
    %v1257 = vld [vmem:[#allocation8 + $0xd8] sm:$0xf]
    %v1258 = vld [vmem:[#allocation8 + $0xdc] sm:$0xf]
    %v1259 = vld [vmem:[#allocation8 + $0xe0] sm:$0xf]
    %v1260 = vld [vmem:[#allocation8 + $0xe4] sm:$0xf]
    %v1261 = vld [vmem:[#allocation8 + $0xe8] sm:$0xf]
    %v1262 = vld [vmem:[#allocation8 + $0xec] sm:$0xf]
    %v1263 = vld [vmem:[#allocation8 + $0xf0] sm:$0xf]
    %v1264 = vld [vmem:[#allocation8 + $0xf4] sm:$0xf]
    %v1265 = vld [vmem:[#allocation8 + $0xf8] sm:$0xf]
    %v1266 = vld [vmem:[#allocation8 + $0xfc] sm:$0xf]
    %v1267 = vld [vmem:[#allocation8 + $0x100] sm:$0xf]
    %v1268 = vld [vmem:[#allocation8 + $0x104] sm:$0xf]
    %v1269 = vld [vmem:[#allocation8 + $0x108] sm:$0xf]
    %v1270 = vld [vmem:[#allocation8 + $0x10c] sm:$0xf]
    %v1271 = vld [vmem:[#allocation8 + $0x110] sm:$0xf]
    %v1272 = vld [vmem:[#allocation8 + $0x114] sm:$0xf]
    %v1273 = vld [vmem:[#allocation8 + $0x118] sm:$0xf]
    %v1274 = vld [vmem:[#allocation8 + $0x11c] sm:$0xf]
    %v1275 = vld [vmem:[#allocation8 + $0x120] sm:$0xf]
    %v1276 = vld [vmem:[#allocation8 + $0x124] sm:$0xf]
    %v1277 = vld [vmem:[#allocation8 + $0x128] sm:$0xf]
    %v1278 = vld [vmem:[#allocation8 + $0x12c] sm:$0xf]
    %v1279 = vld [vmem:[#allocation8 + $0x130] sm:$0xf]
    %v1280 = vld [vmem:[#allocation8 + $0x134] sm:$0xf]
    %v1281 = vld [vmem:[#allocation8 + $0x138] sm:$0xf]
    %v1282 = vld [vmem:[#allocation8 + $0x13c] sm:$0xf]
    %v1283 = vld [vmem:[#allocation8 + $0x140] sm:$0xf]
    %v1284 = vld [vmem:[#allocation8 + $0x144] sm:$0xf]
    %v1285 = vld [vmem:[#allocation8 + $0x148] sm:$0xf]
    %v1286 = vld [vmem:[#allocation8 + $0x14c] sm:$0xf]
    %v1287 = vld [vmem:[#allocation8 + $0x150] sm:$0xf]
    %v1288 = vld [vmem:[#allocation8 + $0x154] sm:$0xf]
    %v1289 = vld [vmem:[#allocation8 + $0x158] sm:$0xf]
    %v1290 = vld [vmem:[#allocation8 + $0x15c] sm:$0xf]
    %v1291 = vld [vmem:[#allocation8 + $0x160] sm:$0xf]
    %v1292 = vld [vmem:[#allocation8 + $0x164] sm:$0xf]
    %v1293 = vld [vmem:[#allocation8 + $0x168] sm:$0xf]
    %v1294 = vld [vmem:[#allocation8 + $0x16c] sm:$0xf]
    %v1295 = vld [vmem:[#allocation8 + $0x170] sm:$0xf]
    %v1296 = vld [vmem:[#allocation8 + $0x174] sm:$0xf]
    %v1297 = vld [vmem:[#allocation8 + $0x178] sm:$0xf]
    %v1298 = vld [vmem:[#allocation8 + $0x17c] sm:$0xf]
    %v1299 = vld [vmem:[#allocation8 + $0x180] sm:$0xf]
    %v1300 = vld [vmem:[#allocation8 + $0x184] sm:$0xf]
    %v1301 = vld [vmem:[#allocation8 + $0x188] sm:$0xf]
    %v1302 = vld [vmem:[#allocation8 + $0x18c] sm:$0xf]
    %v1303 = vld [vmem:[#allocation8 + $0x190] sm:$0xf]
    %v1304 = vld [vmem:[#allocation8 + $0x194] sm:$0xf]
    %v1305 = vld [vmem:[#allocation8 + $0x198] sm:$0xf]
    %v1306 = vld [vmem:[#allocation8 + $0x19c] sm:$0xf]
    %v1307 = vld [vmem:[#allocation8 + $0x1a0] sm:$0xf]
    %v1308 = vld [vmem:[#allocation8 + $0x1a4] sm:$0xf]
    %v1309 = vld [vmem:[#allocation8 + $0x1a8] sm:$0xf]
    %v1310 = vld [vmem:[#allocation8 + $0x1ac] sm:$0xf]
    %v1311 = vld [vmem:[#allocation8 + $0x1b0] sm:$0xf]
    %v1312 = vld [vmem:[#allocation8 + $0x1b4] sm:$0xf]
    %v1313 = vld [vmem:[#allocation8 + $0x1b8] sm:$0xf]
    %v1314 = vld [vmem:[#allocation8 + $0x1bc] sm:$0xf]
    %v1315 = vld [vmem:[#allocation8 + $0x1c0] sm:$0xf]
    %v1316 = vld [vmem:[#allocation8 + $0x1c4] sm:$0xf]
    %v1317 = vld [vmem:[#allocation8 + $0x1c8] sm:$0xf]
    %v1318 = vld [vmem:[#allocation8 + $0x1cc] sm:$0xf]
    %v1319 = vld [vmem:[#allocation8 + $0x1d0] sm:$0xf]
    %v1320 = vld [vmem:[#allocation8 + $0x1d4] sm:$0xf]
    %v1321 = vld [vmem:[#allocation8 + $0x1d8] sm:$0xf]
    %v1322 = vld [vmem:[#allocation8 + $0x1dc] sm:$0xf]
    %v1323 = vld [vmem:[#allocation8 + $0x1e0] sm:$0xf]
    %v1324 = vld [vmem:[#allocation8 + $0x1e4] sm:$0xf]
    %v1325 = vld [vmem:[#allocation8 + $0x1e8] sm:$0xf]
    %v1326 = vld [vmem:[#allocation8 + $0x1ec] sm:$0xf]
    %v1327 = vld [vmem:[#allocation8 + $0x1f0] sm:$0xf]
    %v1328 = vld [vmem:[#allocation8 + $0x1f4] sm:$0xf]
    %v1329 = vld [vmem:[#allocation8 + $0x1f8] sm:$0xf]
    %v1330 = vld [vmem:[#allocation8 + $0x1fc] sm:$0xf]
    %v1331 = vld [vmem:[%s3] sm:$0x1]
    %v1333 = vlaneseq
    %v1334 = vshrl.u32 %v1333, 7
    %v1335 = vsub.s32 0, %v1334
    %v1336 = vrot.slane %v1331, %v1335
    %v1466 = vunpack.c.l.b16 %v1203
    %v1467 = vunpack.c.l.b16 %v1204
    %v1468 = vunpack.c.l.b16 %v1205
    %v1469 = vunpack.c.l.b16 %v1206
    %v1470 = vunpack.c.l.b16 %v1207
    %v1471 = vunpack.c.l.b16 %v1208
    %v1472 = vunpack.c.l.b16 %v1209
    %v1473 = vunpack.c.l.b16 %v1210
    %v1474 = vunpack.c.l.b16 %v1211
    %v1475 = vunpack.c.l.b16 %v1212
    %v1476 = vunpack.c.l.b16 %v1213
    %v1477 = vunpack.c.l.b16 %v1214
    %v1478 = vunpack.c.l.b16 %v1215
    %v1479 = vunpack.c.l.b16 %v1216
    %v1480 = vunpack.c.l.b16 %v1217
    %v1481 = vunpack.c.l.b16 %v1218
    %v1482 = vunpack.c.l.b16 %v1219
    %v1483 = vunpack.c.l.b16 %v1220
    %v1484 = vunpack.c.l.b16 %v1221
    %v1485 = vunpack.c.l.b16 %v1222
    %v1486 = vunpack.c.l.b16 %v1223
    %v1487 = vunpack.c.l.b16 %v1224
    %v1488 = vunpack.c.l.b16 %v1225
    %v1489 = vunpack.c.l.b16 %v1226
    %v1490 = vunpack.c.l.b16 %v1227
    %v1491 = vunpack.c.l.b16 %v1228
    %v1492 = vunpack.c.l.b16 %v1229
    %v1493 = vunpack.c.l.b16 %v1230
    %v1494 = vunpack.c.l.b16 %v1231
    %v1495 = vunpack.c.l.b16 %v1232
    %v1496 = vunpack.c.l.b16 %v1233
    %v1497 = vunpack.c.l.b16 %v1234
    %v1498 = vunpack.c.l.b16 %v1235
    %v1499 = vunpack.c.l.b16 %v1236
    %v1500 = vunpack.c.l.b16 %v1237
    %v1501 = vunpack.c.l.b16 %v1238
    %v1502 = vunpack.c.l.b16 %v1239
    %v1503 = vunpack.c.l.b16 %v1240
    %v1504 = vunpack.c.l.b16 %v1241
    %v1505 = vunpack.c.l.b16 %v1242
    %v1506 = vunpack.c.l.b16 %v1243
    %v1507 = vunpack.c.l.b16 %v1244
    %v1508 = vunpack.c.l.b16 %v1245
    %v1509 = vunpack.c.l.b16 %v1246
    %v1510 = vunpack.c.l.b16 %v1247
    %v1511 = vunpack.c.l.b16 %v1248
    %v1512 = vunpack.c.l.b16 %v1249
    %v1513 = vunpack.c.l.b16 %v1250
    %v1514 = vunpack.c.l.b16 %v1251
    %v1515 = vunpack.c.l.b16 %v1252
    %v1516 = vunpack.c.l.b16 %v1253
    %v1517 = vunpack.c.l.b16 %v1254
    %v1518 = vunpack.c.l.b16 %v1255
    %v1519 = vunpack.c.l.b16 %v1256
    %v1520 = vunpack.c.l.b16 %v1257
    %v1521 = vunpack.c.l.b16 %v1258
    %v1522 = vunpack.c.l.b16 %v1259
    %v1523 = vunpack.c.l.b16 %v1260
    %v1524 = vunpack.c.l.b16 %v1261
    %v1525 = vunpack.c.l.b16 %v1262
    %v1526 = vunpack.c.l.b16 %v1263
    %v1527 = vunpack.c.l.b16 %v1264
    %v1528 = vunpack.c.l.b16 %v1265
    %v1529 = vunpack.c.l.b16 %v1266
    %v1530 = vunpack.c.l.b16 %v1267
    %v1531 = vunpack.c.l.b16 %v1268
    %v1532 = vunpack.c.l.b16 %v1269
    %v1533 = vunpack.c.l.b16 %v1270
    %v1534 = vunpack.c.l.b16 %v1271
    %v1535 = vunpack.c.l.b16 %v1272
    %v1536 = vunpack.c.l.b16 %v1273
    %v1537 = vunpack.c.l.b16 %v1274
    %v1538 = vunpack.c.l.b16 %v1275
    %v1539 = vunpack.c.l.b16 %v1276
    %v1540 = vunpack.c.l.b16 %v1277
    %v1541 = vunpack.c.l.b16 %v1278
    %v1542 = vunpack.c.l.b16 %v1279
    %v1543 = vunpack.c.l.b16 %v1280
    %v1544 = vunpack.c.l.b16 %v1281
    %v1545 = vunpack.c.l.b16 %v1282
    %v1546 = vunpack.c.l.b16 %v1283
    %v1547 = vunpack.c.l.b16 %v1284
    %v1548 = vunpack.c.l.b16 %v1285
    %v1549 = vunpack.c.l.b16 %v1286
    %v1550 = vunpack.c.l.b16 %v1287
    %v1551 = vunpack.c.l.b16 %v1288
    %v1552 = vunpack.c.l.b16 %v1289
    %v1553 = vunpack.c.l.b16 %v1290
    %v1554 = vunpack.c.l.b16 %v1291
    %v1555 = vunpack.c.l.b16 %v1292
    %v1556 = vunpack.c.l.b16 %v1293
    %v1557 = vunpack.c.l.b16 %v1294
    %v1558 = vunpack.c.l.b16 %v1295
    %v1559 = vunpack.c.l.b16 %v1296
    %v1560 = vunpack.c.l.b16 %v1297
    %v1561 = vunpack.c.l.b16 %v1298
    %v1562 = vunpack.c.l.b16 %v1299
    %v1563 = vunpack.c.l.b16 %v1300
    %v1564 = vunpack.c.l.b16 %v1301
    %v1565 = vunpack.c.l.b16 %v1302
    %v1566 = vunpack.c.l.b16 %v1303
    %v1567 = vunpack.c.l.b16 %v1304
    %v1568 = vunpack.c.l.b16 %v1305
    %v1569 = vunpack.c.l.b16 %v1306
    %v1570 = vunpack.c.l.b16 %v1307
    %v1571 = vunpack.c.l.b16 %v1308
    %v1572 = vunpack.c.l.b16 %v1309
    %v1573 = vunpack.c.l.b16 %v1310
    %v1574 = vunpack.c.l.b16 %v1311
    %v1575 = vunpack.c.l.b16 %v1312
    %v1576 = vunpack.c.l.b16 %v1313
    %v1577 = vunpack.c.l.b16 %v1314
    %v1578 = vunpack.c.l.b16 %v1315
    %v1579 = vunpack.c.l.b16 %v1316
    %v1580 = vunpack.c.l.b16 %v1317
    %v1581 = vunpack.c.l.b16 %v1318
    %v1582 = vunpack.c.l.b16 %v1319
    %v1583 = vunpack.c.l.b16 %v1320
    %v1584 = vunpack.c.l.b16 %v1321
    %v1585 = vunpack.c.l.b16 %v1322
    %v1586 = vunpack.c.l.b16 %v1323
    %v1587 = vunpack.c.l.b16 %v1324
    %v1588 = vunpack.c.l.b16 %v1325
    %v1589 = vunpack.c.l.b16 %v1326
    %v1590 = vunpack.c.l.b16 %v1327
    %v1591 = vunpack.c.l.b16 %v1328
    %v1592 = vunpack.c.l.b16 %v1329
    %v1593 = vunpack.c.l.b16 %v1330
    %v1594 = vpack.c.b16 %v1467, %v1466
    %v1595 = vpack.c.b16 %v1469, %v1468
    %v1596 = vpack.c.b16 %v1471, %v1470
    %v1597 = vpack.c.b16 %v1473, %v1472
    %v1598 = vpack.c.b16 %v1475, %v1474
    %v1599 = vpack.c.b16 %v1477, %v1476
    %v1600 = vpack.c.b16 %v1479, %v1478
    %v1601 = vpack.c.b16 %v1481, %v1480
    %v1602 = vpack.c.b16 %v1483, %v1482
    %v1603 = vpack.c.b16 %v1485, %v1484
    %v1604 = vpack.c.b16 %v1487, %v1486
    %v1605 = vpack.c.b16 %v1489, %v1488
    %v1606 = vpack.c.b16 %v1491, %v1490
    %v1607 = vpack.c.b16 %v1493, %v1492
    %v1608 = vpack.c.b16 %v1495, %v1494
    %v1609 = vpack.c.b16 %v1497, %v1496
    %v1610 = vpack.c.b16 %v1499, %v1498
    %v1611 = vpack.c.b16 %v1501, %v1500
    %v1612 = vpack.c.b16 %v1503, %v1502
    %v1613 = vpack.c.b16 %v1505, %v1504
    %v1614 = vpack.c.b16 %v1507, %v1506
    %v1615 = vpack.c.b16 %v1509, %v1508
    %v1616 = vpack.c.b16 %v1511, %v1510
    %v1617 = vpack.c.b16 %v1513, %v1512
    %v1618 = vpack.c.b16 %v1515, %v1514
    %v1619 = vpack.c.b16 %v1517, %v1516
    %v1620 = vpack.c.b16 %v1519, %v1518
    %v1621 = vpack.c.b16 %v1521, %v1520
    %v1622 = vpack.c.b16 %v1523, %v1522
    %v1623 = vpack.c.b16 %v1525, %v1524
    %v1624 = vpack.c.b16 %v1527, %v1526
    %v1625 = vpack.c.b16 %v1529, %v1528
    %v1626 = vpack.c.b16 %v1531, %v1530
    %v1627 = vpack.c.b16 %v1533, %v1532
    %v1628 = vpack.c.b16 %v1535, %v1534
    %v1629 = vpack.c.b16 %v1537, %v1536
    %v1630 = vpack.c.b16 %v1539, %v1538
    %v1631 = vpack.c.b16 %v1541, %v1540
    %v1632 = vpack.c.b16 %v1543, %v1542
    %v1633 = vpack.c.b16 %v1545, %v1544
    %v1634 = vpack.c.b16 %v1547, %v1546
    %v1635 = vpack.c.b16 %v1549, %v1548
    %v1636 = vpack.c.b16 %v1551, %v1550
    %v1637 = vpack.c.b16 %v1553, %v1552
    %v1638 = vpack.c.b16 %v1555, %v1554
    %v1639 = vpack.c.b16 %v1557, %v1556
    %v1640 = vpack.c.b16 %v1559, %v1558
    %v1641 = vpack.c.b16 %v1561, %v1560
    %v1642 = vpack.c.b16 %v1563, %v1562
    %v1643 = vpack.c.b16 %v1565, %v1564
    %v1644 = vpack.c.b16 %v1567, %v1566
    %v1645 = vpack.c.b16 %v1569, %v1568
    %v1646 = vpack.c.b16 %v1571, %v1570
    %v1647 = vpack.c.b16 %v1573, %v1572
    %v1648 = vpack.c.b16 %v1575, %v1574
    %v1649 = vpack.c.b16 %v1577, %v1576
    %v1650 = vpack.c.b16 %v1579, %v1578
    %v1651 = vpack.c.b16 %v1581, %v1580
    %v1652 = vpack.c.b16 %v1583, %v1582
    %v1653 = vpack.c.b16 %v1585, %v1584
    %v1654 = vpack.c.b16 %v1587, %v1586
    %v1655 = vpack.c.b16 %v1589, %v1588
    %v1656 = vpack.c.b16 %v1591, %v1590
    %v1657 = vpack.c.b16 %v1593, %v1592
    %1722 = vmatprep.subr.bf16.mxu0 0
    %1723 = vmatpush1.bf16.msra.mxu0 %v1594
    %1724 = vmatprep.subr.bf16.mxu0 0
    %1725 = vmatpush1.bf16.msra.mxu0 %v1595
    %1726 = vmatprep.subr.bf16.mxu0 0
    %1727 = vmatpush1.bf16.msra.mxu0 %v1596
    %1728 = vmatprep.subr.bf16.mxu0 0
    %1729 = vmatpush1.bf16.msra.mxu0 %v1597
    %1730 = vmatprep.subr.bf16.mxu0 0
    %1731 = vmatpush1.bf16.msra.mxu0 %v1598
    %1732 = vmatprep.subr.bf16.mxu0 0
    %1733 = vmatpush1.bf16.msra.mxu0 %v1599
    %1734 = vmatprep.subr.bf16.mxu0 0
    %1735 = vmatpush1.bf16.msra.mxu0 %v1600
    %1736 = vmatprep.subr.bf16.mxu0 0
    %1737 = vmatpush1.bf16.msra.mxu0 %v1601
    %1738 = vmatprep.subr.bf16.mxu0 0
    %1739 = vmatpush1.bf16.msra.mxu0 %v1602
    %1740 = vmatprep.subr.bf16.mxu0 0
    %1741 = vmatpush1.bf16.msra.mxu0 %v1603
    %1742 = vmatprep.subr.bf16.mxu0 0
    %1743 = vmatpush1.bf16.msra.mxu0 %v1604
    %1744 = vmatprep.subr.bf16.mxu0 0
    %1745 = vmatpush1.bf16.msra.mxu0 %v1605
    %1746 = vmatprep.subr.bf16.mxu0 0
    %1747 = vmatpush1.bf16.msra.mxu0 %v1606
    %1748 = vmatprep.subr.bf16.mxu0 0
    %1749 = vmatpush1.bf16.msra.mxu0 %v1607
    %1750 = vmatprep.subr.bf16.mxu0 0
    %1751 = vmatpush1.bf16.msra.mxu0 %v1608
    %1752 = vmatprep.subr.bf16.mxu0 0
    %1753 = vmatpush1.bf16.msra.mxu0 %v1609
    %1754 = vmatprep.mubr.bf16.mxu0 %v1140
    %1755 = vmatmul.mubr.bf16.gmra.mrb[0].mxu0 %v1139
    %v1756 = vpop.f32.mrb[0].mxu0
    %v1757 = vadd.f32 %v1336, %v1756
    %v1758 = vpop.f32.mrb[0].mxu0
    %v1759 = vpop.f32.mrb[0].mxu0
    %v1760 = vadd.f32 %v1336, %v1759
    %v1761 = vpop.f32.mrb[0].mxu0
    %1762 = vmatprep.mubr.bf16.mxu0 %v1148
    %1763 = vmatmul.mubr.bf16.gmra.mrb[0].mxu0 %v1147
    %v1764 = vpop.f32.mrb[0].mxu0
    %v1765 = vadd.f32 %v1336, %v1764
    %v1766 = vpop.f32.mrb[0].mxu0
    %v1767 = vpop.f32.mrb[0].mxu0
    %v1768 = vadd.f32 %v1336, %v1767
    %v1769 = vpop.f32.mrb[0].mxu0
    %1770 = vmatprep.mubr.bf16.mxu0 %v1156
    %1771 = vmatmul.mubr.bf16.gmra.mrb[0].mxu0 %v1155
    %v1772 = vpop.f32.mrb[0].mxu0
    %v1773 = vadd.f32 %v1336, %v1772
    %v1774 = vpop.f32.mrb[0].mxu0
    %v1775 = vpop.f32.mrb[0].mxu0
    %v1776 = vadd.f32 %v1336, %v1775
    %v1777 = vpop.f32.mrb[0].mxu0
    %1778 = vmatprep.mubr.bf16.mxu0 %v1164
    %1779 = vmatmul.mubr.bf16.gmra.mrb[0].mxu0 %v1163
    %v1780 = vpop.f32.mrb[0].mxu0
    %v1781 = vadd.f32 %v1336, %v1780
    %v1782 = vpop.f32.mrb[0].mxu0
    %v1783 = vpop.f32.mrb[0].mxu0
    %v1784 = vadd.f32 %v1336, %v1783
    %v1785 = vpop.f32.mrb[0].mxu0
    %1786 = vmatprep.mubr.bf16.mxu0 %v1172
    %1787 = vmatmul.mubr.bf16.gmra.mrb[0].mxu0 %v1171
    %v1788 = vpop.f32.mrb[0].mxu0
    %v1789 = vadd.f32 %v1336, %v1788
    %v1790 = vpop.f32.mrb[0].mxu0
    %v1791 = vpop.f32.mrb[0].mxu0
    %v1792 = vadd.f32 %v1336, %v1791
    %v1793 = vpop.f32.mrb[0].mxu0
    %1794 = vmatprep.mubr.bf16.mxu0 %v1180
    %1795 = vmatmul.mubr.bf16.gmra.mrb[0].mxu0 %v1179
    %v1796 = vpop.f32.mrb[0].mxu0
    %v1797 = vadd.f32 %v1336, %v1796
    %v1798 = vpop.f32.mrb[0].mxu0
    %v1799 = vpop.f32.mrb[0].mxu0
    %v1800 = vadd.f32 %v1336, %v1799
    %v1801 = vpop.f32.mrb[0].mxu0
    %1802 = vmatprep.mubr.bf16.mxu0 %v1188
    %1803 = vmatmul.mubr.bf16.gmra.mrb[0].mxu0 %v1187
    %v1804 = vpop.f32.mrb[0].mxu0
    %v1805 = vadd.f32 %v1336, %v1804
    %v1806 = vpop.f32.mrb[0].mxu0
    %v1807 = vpop.f32.mrb[0].mxu0
    %v1808 = vadd.f32 %v1336, %v1807
    %v1809 = vpop.f32.mrb[0].mxu0
    %1810 = vmatprep.mubr.bf16.mxu0 %v1196
    %1811 = vmatmul.mubr.bf16.gmra.mrb[0].mxu0 %v1195
    %v1812 = vpop.f32.mrb[0].mxu0
    %v1813 = vadd.f32 %v1336, %v1812
    %v1814 = vpop.f32.mrb[0].mxu0
    %v1815 = vpop.f32.mrb[0].mxu0
    %v1816 = vadd.f32 %v1336, %v1815
    %v1817 = vpop.f32.mrb[0].mxu0
    %1818 = vdwg.mxu0
    %1819 = vmatprep.subr.bf16.mxu0 0
    %1820 = vmatpush1.bf16.msra.mxu0 %v1610
    %1821 = vmatprep.subr.bf16.mxu0 0
    %1822 = vmatpush1.bf16.msra.mxu0 %v1611
    %1823 = vmatprep.subr.bf16.mxu0 0
    %1824 = vmatpush1.bf16.msra.mxu0 %v1612
    %1825 = vmatprep.subr.bf16.mxu0 0
    %1826 = vmatpush1.bf16.msra.mxu0 %v1613
    %1827 = vmatprep.subr.bf16.mxu0 0
    %1828 = vmatpush1.bf16.msra.mxu0 %v1614
    %1829 = vmatprep.subr.bf16.mxu0 0
    %1830 = vmatpush1.bf16.msra.mxu0 %v1615
    %1831 = vmatprep.subr.bf16.mxu0 0
    %1832 = vmatpush1.bf16.msra.mxu0 %v1616
    %1833 = vmatprep.subr.bf16.mxu0 0
    %1834 = vmatpush1.bf16.msra.mxu0 %v1617
    %1835 = vmatprep.subr.bf16.mxu0 0
    %1836 = vmatpush1.bf16.msra.mxu0 %v1618
    %1837 = vmatprep.subr.bf16.mxu0 0
    %1838 = vmatpush1.bf16.msra.mxu0 %v1619
    %1839 = vmatprep.subr.bf16.mxu0 0
    %1840 = vmatpush1.bf16.msra.mxu0 %v1620
    %1841 = vmatprep.subr.bf16.mxu0 0
    %1842 = vmatpush1.bf16.msra.mxu0 %v1621
    %1843 = vmatprep.subr.bf16.mxu0 0
    %1844 = vmatpush1.bf16.msra.mxu0 %v1622
    %1845 = vmatprep.subr.bf16.mxu0 0
    %1846 = vmatpush1.bf16.msra.mxu0 %v1623
    %1847 = vmatprep.subr.bf16.mxu0 0
    %1848 = vmatpush1.bf16.msra.mxu0 %v1624
    %1849 = vmatprep.subr.bf16.mxu0 0
    %1850 = vmatpush1.bf16.msra.mxu0 %v1625
    %1851 = vmatprep.mubr.bf16.mxu0 %v1142
    %1852 = vmatmul.mubr.bf16.gmra.mrb[0].mxu0 %v1141
    %v1853 = vpop.f32.mrb[0].mxu0
    %v1854 = vadd.f32 %v1757, %v1853
    %v1855 = vpop.f32.mrb[0].mxu0
    %v1856 = vpop.f32.mrb[0].mxu0
    %v1857 = vadd.f32 %v1760, %v1856
    %v1858 = vpop.f32.mrb[0].mxu0
    %1859 = vmatprep.mubr.bf16.mxu0 %v1150
    %1860 = vmatmul.mubr.bf16.gmra.mrb[0].mxu0 %v1149
    %v1861 = vpop.f32.mrb[0].mxu0
    %v1862 = vadd.f32 %v1765, %v1861
    %v1863 = vpop.f32.mrb[0].mxu0
    %v1864 = vpop.f32.mrb[0].mxu0
    %v1865 = vadd.f32 %v1768, %v1864
    %v1866 = vpop.f32.mrb[0].mxu0
    %1867 = vmatprep.mubr.bf16.mxu0 %v1158
    %1868 = vmatmul.mubr.bf16.gmra.mrb[0].mxu0 %v1157
    %v1869 = vpop.f32.mrb[0].mxu0
    %v1870 = vadd.f32 %v1773, %v1869
    %v1871 = vpop.f32.mrb[0].mxu0
    %v1872 = vpop.f32.mrb[0].mxu0
    %v1873 = vadd.f32 %v1776, %v1872
    %v1874 = vpop.f32.mrb[0].mxu0
    %1875 = vmatprep.mubr.bf16.mxu0 %v1166
    %1876 = vmatmul.mubr.bf16.gmra.mrb[0].mxu0 %v1165
    %v1877 = vpop.f32.mrb[0].mxu0
    %v1878 = vadd.f32 %v1781, %v1877
    %v1879 = vpop.f32.mrb[0].mxu0
    %v1880 = vpop.f32.mrb[0].mxu0
    %v1881 = vadd.f32 %v1784, %v1880
    %v1882 = vpop.f32.mrb[0].mxu0
    %1883 = vmatprep.mubr.bf16.mxu0 %v1174
    %1884 = vmatmul.mubr.bf16.gmra.mrb[0].mxu0 %v1173
    %v1885 = vpop.f32.mrb[0].mxu0
    %v1886 = vadd.f32 %v1789, %v1885
    %v1887 = vpop.f32.mrb[0].mxu0
    %v1888 = vpop.f32.mrb[0].mxu0
    %v1889 = vadd.f32 %v1792, %v1888
    %v1890 = vpop.f32.mrb[0].mxu0
    %1891 = vmatprep.mubr.bf16.mxu0 %v1182
    %1892 = vmatmul.mubr.bf16.gmra.mrb[0].mxu0 %v1181
    %v1893 = vpop.f32.mrb[0].mxu0
    %v1894 = vadd.f32 %v1797, %v1893
    %v1895 = vpop.f32.mrb[0].mxu0
    %v1896 = vpop.f32.mrb[0].mxu0
    %v1897 = vadd.f32 %v1800, %v1896
    %v1898 = vpop.f32.mrb[0].mxu0
    %1899 = vmatprep.mubr.bf16.mxu0 %v1190
    %1900 = vmatmul.mubr.bf16.gmra.mrb[0].mxu0 %v1189
    %v1901 = vpop.f32.mrb[0].mxu0
    %v1902 = vadd.f32 %v1805, %v1901
    %v1903 = vpop.f32.mrb[0].mxu0
    %v1904 = vpop.f32.mrb[0].mxu0
    %v1905 = vadd.f32 %v1808, %v1904
    %v1906 = vpop.f32.mrb[0].mxu0
    %1907 = vmatprep.mubr.bf16.mxu0 %v1198
    %1908 = vmatmul.mubr.bf16.gmra.mrb[0].mxu0 %v1197
    %v1909 = vpop.f32.mrb[0].mxu0
    %v1910 = vadd.f32 %v1813, %v1909
    %v1911 = vpop.f32.mrb[0].mxu0
    %v1912 = vpop.f32.mrb[0].mxu0
    %v1913 = vadd.f32 %v1816, %v1912
    %v1914 = vpop.f32.mrb[0].mxu0
    %1915 = vdwg.mxu0
    %1916 = vmatprep.subr.bf16.mxu0 0
    %1917 = vmatpush1.bf16.msra.mxu0 %v1626
    %1918 = vmatprep.subr.bf16.mxu0 0
    %1919 = vmatpush1.bf16.msra.mxu0 %v1627
    %1920 = vmatprep.subr.bf16.mxu0 0
    %1921 = vmatpush1.bf16.msra.mxu0 %v1628
    %1922 = vmatprep.subr.bf16.mxu0 0
    %1923 = vmatpush1.bf16.msra.mxu0 %v1629
    %1924 = vmatprep.subr.bf16.mxu0 0
    %1925 = vmatpush1.bf16.msra.mxu0 %v1630
    %1926 = vmatprep.subr.bf16.mxu0 0
    %1927 = vmatpush1.bf16.msra.mxu0 %v1631
    %1928 = vmatprep.subr.bf16.mxu0 0
    %1929 = vmatpush1.bf16.msra.mxu0 %v1632
    %1930 = vmatprep.subr.bf16.mxu0 0
    %1931 = vmatpush1.bf16.msra.mxu0 %v1633
    %1932 = vmatprep.subr.bf16.mxu0 0
    %1933 = vmatpush1.bf16.msra.mxu0 %v1634
    %1934 = vmatprep.subr.bf16.mxu0 0
    %1935 = vmatpush1.bf16.msra.mxu0 %v1635
    %1936 = vmatprep.subr.bf16.mxu0 0
    %1937 = vmatpush1.bf16.msra.mxu0 %v1636
    %1938 = vmatprep.subr.bf16.mxu0 0
    %1939 = vmatpush1.bf16.msra.mxu0 %v1637
    %1940 = vmatprep.subr.bf16.mxu0 0
    %1941 = vmatpush1.bf16.msra.mxu0 %v1638
    %1942 = vmatprep.subr.bf16.mxu0 0
    %1943 = vmatpush1.bf16.msra.mxu0 %v1639
    %1944 = vmatprep.subr.bf16.mxu0 0
    %1945 = vmatpush1.bf16.msra.mxu0 %v1640
    %1946 = vmatprep.subr.bf16.mxu0 0
    %1947 = vmatpush1.bf16.msra.mxu0 %v1641
    %1948 = vmatprep.mubr.bf16.mxu0 %v1144
    %1949 = vmatmul.mubr.bf16.gmra.mrb[0].mxu0 %v1143
    %v1950 = vpop.f32.mrb[0].mxu0
    %v1951 = vadd.f32 %v1854, %v1950
    %v1952 = vpop.f32.mrb[0].mxu0
    %v1953 = vpop.f32.mrb[0].mxu0
    %v1954 = vadd.f32 %v1857, %v1953
    %v1955 = vpop.f32.mrb[0].mxu0
    %1956 = vmatprep.mubr.bf16.mxu0 %v1152
    %1957 = vmatmul.mubr.bf16.gmra.mrb[0].mxu0 %v1151
    %v1958 = vpop.f32.mrb[0].mxu0
    %v1959 = vadd.f32 %v1862, %v1958
    %v1960 = vpop.f32.mrb[0].mxu0
    %v1961 = vpop.f32.mrb[0].mxu0
    %v1962 = vadd.f32 %v1865, %v1961
    %v1963 = vpop.f32.mrb[0].mxu0
    %1964 = vmatprep.mubr.bf16.mxu0 %v1160
    %1965 = vmatmul.mubr.bf16.gmra.mrb[0].mxu0 %v1159
    %v1966 = vpop.f32.mrb[0].mxu0
    %v1967 = vadd.f32 %v1870, %v1966
    %v1968 = vpop.f32.mrb[0].mxu0
    %v1969 = vpop.f32.mrb[0].mxu0
    %v1970 = vadd.f32 %v1873, %v1969
    %v1971 = vpop.f32.mrb[0].mxu0
    %1972 = vmatprep.mubr.bf16.mxu0 %v1168
    %1973 = vmatmul.mubr.bf16.gmra.mrb[0].mxu0 %v1167
    %v1974 = vpop.f32.mrb[0].mxu0
    %v1975 = vadd.f32 %v1878, %v1974
    %v1976 = vpop.f32.mrb[0].mxu0
    %v1977 = vpop.f32.mrb[0].mxu0
    %v1978 = vadd.f32 %v1881, %v1977
    %v1979 = vpop.f32.mrb[0].mxu0
    %1980 = vmatprep.mubr.bf16.mxu0 %v1176
    %1981 = vmatmul.mubr.bf16.gmra.mrb[0].mxu0 %v1175
    %v1982 = vpop.f32.mrb[0].mxu0
    %v1983 = vadd.f32 %v1886, %v1982
    %v1984 = vpop.f32.mrb[0].mxu0
    %v1985 = vpop.f32.mrb[0].mxu0
    %v1986 = vadd.f32 %v1889, %v1985
    %v1987 = vpop.f32.mrb[0].mxu0
    %1988 = vmatprep.mubr.bf16.mxu0 %v1184
    %1989 = vmatmul.mubr.bf16.gmra.mrb[0].mxu0 %v1183
    %v1990 = vpop.f32.mrb[0].mxu0
    %v1991 = vadd.f32 %v1894, %v1990
    %v1992 = vpop.f32.mrb[0].mxu0
    %v1993 = vpop.f32.mrb[0].mxu0
    %v1994 = vadd.f32 %v1897, %v1993
    %v1995 = vpop.f32.mrb[0].mxu0
    %1996 = vmatprep.mubr.bf16.mxu0 %v1192
    %1997 = vmatmul.mubr.bf16.gmra.mrb[0].mxu0 %v1191
    %v1998 = vpop.f32.mrb[0].mxu0
    %v1999 = vadd.f32 %v1902, %v1998
    %v2000 = vpop.f32.mrb[0].mxu0
    %v2001 = vpop.f32.mrb[0].mxu0
    %v2002 = vadd.f32 %v1905, %v2001
    %v2003 = vpop.f32.mrb[0].mxu0
    %2004 = vmatprep.mubr.bf16.mxu0 %v1200
    %2005 = vmatmul.mubr.bf16.gmra.mrb[0].mxu0 %v1199
    %v2006 = vpop.f32.mrb[0].mxu0
    %v2007 = vadd.f32 %v1910, %v2006
    %v2008 = vpop.f32.mrb[0].mxu0
    %v2009 = vpop.f32.mrb[0].mxu0
    %v2010 = vadd.f32 %v1913, %v2009
    %v2011 = vpop.f32.mrb[0].mxu0
    %2012 = vdwg.mxu0
    %2013 = vmatprep.subr.bf16.mxu0 0
    %2014 = vmatpush1.bf16.msra.mxu0 %v1642
    %2015 = vmatprep.subr.bf16.mxu0 0
    %2016 = vmatpush1.bf16.msra.mxu0 %v1643
    %2017 = vmatprep.subr.bf16.mxu0 0
    %2018 = vmatpush1.bf16.msra.mxu0 %v1644
    %2019 = vmatprep.subr.bf16.mxu0 0
    %2020 = vmatpush1.bf16.msra.mxu0 %v1645
    %2021 = vmatprep.subr.bf16.mxu0 0
    %2022 = vmatpush1.bf16.msra.mxu0 %v1646
    %2023 = vmatprep.subr.bf16.mxu0 0
    %2024 = vmatpush1.bf16.msra.mxu0 %v1647
    %2025 = vmatprep.subr.bf16.mxu0 0
    %2026 = vmatpush1.bf16.msra.mxu0 %v1648
    %2027 = vmatprep.subr.bf16.mxu0 0
    %2028 = vmatpush1.bf16.msra.mxu0 %v1649
    %2029 = vmatprep.subr.bf16.mxu0 0
    %2030 = vmatpush1.bf16.msra.mxu0 %v1650
    %2031 = vmatprep.subr.bf16.mxu0 0
    %2032 = vmatpush1.bf16.msra.mxu0 %v1651
    %2033 = vmatprep.subr.bf16.mxu0 0
    %2034 = vmatpush1.bf16.msra.mxu0 %v1652
    %2035 = vmatprep.subr.bf16.mxu0 0
    %2036 = vmatpush1.bf16.msra.mxu0 %v1653
    %2037 = vmatprep.subr.bf16.mxu0 0
    %2038 = vmatpush1.bf16.msra.mxu0 %v1654
    %2039 = vmatprep.subr.bf16.mxu0 0
    %2040 = vmatpush1.bf16.msra.mxu0 %v1655
    %2041 = vmatprep.subr.bf16.mxu0 0
    %2042 = vmatpush1.bf16.msra.mxu0 %v1656
    %2043 = vmatprep.subr.bf16.mxu0 0
    %2044 = vmatpush1.bf16.msra.mxu0 %v1657
    %2045 = vmatprep.mubr.bf16.mxu0 %v1146
    %2046 = vmatmul.mubr.bf16.gmra.mrb[0].mxu0 %v1145
    %v2047 = vpop.f32.mrb[0].mxu0
    %v2048 = vadd.f32 %v1951, %v2047
    %v2049 = vpop.f32.mrb[0].mxu0
    %v2050 = vpop.f32.mrb[0].mxu0
    %v2051 = vadd.f32 %v1954, %v2050
    %v2052 = vpop.f32.mrb[0].mxu0
    %2053 = vmatprep.mubr.bf16.mxu0 %v1154
    %2054 = vmatmul.mubr.bf16.gmra.mrb[0].mxu0 %v1153
    %v2055 = vpop.f32.mrb[0].mxu0
    %v2056 = vadd.f32 %v1959, %v2055
    %v2057 = vpop.f32.mrb[0].mxu0
    %v2058 = vpop.f32.mrb[0].mxu0
    %v2059 = vadd.f32 %v1962, %v2058
    %v2060 = vpop.f32.mrb[0].mxu0
    %2061 = vmatprep.mubr.bf16.mxu0 %v1162
    %2062 = vmatmul.mubr.bf16.gmra.mrb[0].mxu0 %v1161
    %v2063 = vpop.f32.mrb[0].mxu0
    %v2064 = vadd.f32 %v1967, %v2063
    %v2065 = vpop.f32.mrb[0].mxu0
    %v2066 = vpop.f32.mrb[0].mxu0
    %v2067 = vadd.f32 %v1970, %v2066
    %v2068 = vpop.f32.mrb[0].mxu0
    %2069 = vmatprep.mubr.bf16.mxu0 %v1170
    %2070 = vmatmul.mubr.bf16.gmra.mrb[0].mxu0 %v1169
    %v2071 = vpop.f32.mrb[0].mxu0
    %v2072 = vadd.f32 %v1975, %v2071
    %v2073 = vpop.f32.mrb[0].mxu0
    %v2074 = vpop.f32.mrb[0].mxu0
    %v2075 = vadd.f32 %v1978, %v2074
    %v2076 = vpop.f32.mrb[0].mxu0
    %2077 = vmatprep.mubr.bf16.mxu0 %v1178
    %2078 = vmatmul.mubr.bf16.gmra.mrb[0].mxu0 %v1177
    %v2079 = vpop.f32.mrb[0].mxu0
    %v2080 = vadd.f32 %v1983, %v2079
    %v2081 = vpop.f32.mrb[0].mxu0
    %v2082 = vpop.f32.mrb[0].mxu0
    %v2083 = vadd.f32 %v1986, %v2082
    %v2084 = vpop.f32.mrb[0].mxu0
    %2085 = vmatprep.mubr.bf16.mxu0 %v1186
    %2086 = vmatmul.mubr.bf16.gmra.mrb[0].mxu0 %v1185
    %v2087 = vpop.f32.mrb[0].mxu0
    %v2088 = vadd.f32 %v1991, %v2087
    %v2089 = vpop.f32.mrb[0].mxu0
    %v2090 = vpop.f32.mrb[0].mxu0
    %v2091 = vadd.f32 %v1994, %v2090
    %v2092 = vpop.f32.mrb[0].mxu0
    %2093 = vmatprep.mubr.bf16.mxu0 %v1194
    %2094 = vmatmul.mubr.bf16.gmra.mrb[0].mxu0 %v1193
    %v2095 = vpop.f32.mrb[0].mxu0
    %v2096 = vadd.f32 %v1999, %v2095
    %v2097 = vpop.f32.mrb[0].mxu0
    %v2098 = vpop.f32.mrb[0].mxu0
    %v2099 = vadd.f32 %v2002, %v2098
    %v2100 = vpop.f32.mrb[0].mxu0
    %2101 = vmatprep.mubr.bf16.mxu0 %v1202
    %2102 = vmatmul.mubr.bf16.gmra.mrb[0].mxu0 %v1201
    %v2103 = vpop.f32.mrb[0].mxu0
    %v2104 = vadd.f32 %v2007, %v2103
    %v2105 = vpop.f32.mrb[0].mxu0
    %v2106 = vpop.f32.mrb[0].mxu0
    %v2107 = vadd.f32 %v2010, %v2106
    %v2108 = vpop.f32.mrb[0].mxu0
    %2109 = vdwg.mxu0
    %v2110 = vmax.f32 %v2048, 0.0
    %v2111 = vmax.f32 %v2051, 0.0
    %v2112 = vmax.f32 %v2056, 0.0
    %v2113 = vmax.f32 %v2059, 0.0
    %v2114 = vmax.f32 %v2064, 0.0
    %v2115 = vmax.f32 %v2067, 0.0
    %v2116 = vmax.f32 %v2072, 0.0
    %v2117 = vmax.f32 %v2075, 0.0
    %v2118 = vmax.f32 %v2080, 0.0
    %v2119 = vmax.f32 %v2083, 0.0
    %v2120 = vmax.f32 %v2088, 0.0
    %v2121 = vmax.f32 %v2091, 0.0
    %v2122 = vmax.f32 %v2096, 0.0
    %v2123 = vmax.f32 %v2099, 0.0
    %v2124 = vmax.f32 %v2104, 0.0
    %v2125 = vmax.f32 %v2107, 0.0
    %v2126 = vpack.c.bf16 %v2111, %v2110
    %v2127 = vpack.c.bf16 %v2113, %v2112
    %v2128 = vpack.c.bf16 %v2115, %v2114
    %v2129 = vpack.c.bf16 %v2117, %v2116
    %v2130 = vpack.c.bf16 %v2119, %v2118
    %v2131 = vpack.c.bf16 %v2121, %v2120
    %v2132 = vpack.c.bf16 %v2123, %v2122
    %v2133 = vpack.c.bf16 %v2125, %v2124
    %2134 = vst [vmem:[#allocation2] sm:$0xff] %v2126
    %2135 = vst [vmem:[#allocation2 + $0x40] sm:$0xff] %v2127
    %2136 = vst [vmem:[#allocation2 + $0x80] sm:$0xff] %v2128
    %2137 = vst [vmem:[#allocation2 + $0xc0] sm:$0xff] %v2129
    %2138 = vst [vmem:[#allocation2 + $0x100] sm:$0xff] %v2130
    %2139 = vst [vmem:[#allocation2 + $0x140] sm:$0xff] %v2131
    %2140 = vst [vmem:[#allocation2 + $0x180] sm:$0xff] %v2132
    %2141 = vst [vmem:[#allocation2 + $0x1c0] sm:$0xff] %v2133
    %2142 = vmatprep.subr.bf16.mxu0 0
    %2143 = vmatpush1.bf16.msra.mxu0 %v2126
    %2144 = vmatprep.subr.bf16.mxu0 0
    %2145 = vmatpush1.bf16.msra.mxu0 %v2127
    %2146 = vmatprep.subr.bf16.mxu0 0
    %2147 = vmatpush1.bf16.msra.mxu0 %v2128
    %2148 = vmatprep.subr.bf16.mxu0 0
    %2149 = vmatpush1.bf16.msra.mxu0 %v2129
    %2150 = vmatprep.subr.bf16.mxu0 0
    %2151 = vmatpush1.bf16.msra.mxu0 %v2130
    %2152 = vmatprep.subr.bf16.mxu0 0
    %2153 = vmatpush1.bf16.msra.mxu0 %v2131
    %2154 = vmatprep.subr.bf16.mxu0 0
    %2155 = vmatpush1.bf16.msra.mxu0 %v2132
    %2156 = vmatprep.subr.bf16.mxu0 0
    %2157 = vmatpush1.bf16.msra.mxu0 %v2133
    %2158 = vmatprep.subr.bf16.mxu0 0
    %2159 = vmatpush1.bf16.msra.mxu0 0
    %2160 = vmatprep.subr.bf16.mxu0 0
    %2161 = vmatpush1.bf16.msra.mxu0 0
    %2162 = vmatprep.subr.bf16.mxu0 0
    %2163 = vmatpush1.bf16.msra.mxu0 0
    %2164 = vmatprep.subr.bf16.mxu0 0
    %2165 = vmatpush1.bf16.msra.mxu0 0
    %2166 = vmatprep.subr.bf16.mxu0 0
    %2167 = vmatpush1.bf16.msra.mxu0 0
    %2168 = vmatprep.subr.bf16.mxu0 0
    %2169 = vmatpush1.bf16.msra.mxu0 0
    %2170 = vmatprep.subr.bf16.mxu0 0
    %2171 = vmatpush1.bf16.msra.mxu0 0
    %2172 = vmatprep.subr.bf16.mxu0 0
    %2173 = vmatpush1.bf16.msra.mxu0 0
    %2174 = vmatprep.mubr.bf16.mxu0 0
    %2175 = vmatmul.mubr.bf16.gmra.mrb[0].mxu0 %v140
    %v2176 = vpop.f32.mrb[0].mxu0
    %v2177 = vadd.f32 0.0, %v2176
    %v2178 = vpop.f32.mrb[0].mxu0
    %v2179 = vpop.f32.mrb[0].mxu0
    %v2180 = vadd.f32 0.0, %v2179
    %v2181 = vpop.f32.mrb[0].mxu0
    %2182 = vmatprep.mubr.bf16.mxu0 0
    %2183 = vmatmul.mubr.bf16.gmra.mrb[0].mxu0 %v141
    %v2184 = vpop.f32.mrb[0].mxu0
    %v2185 = vadd.f32 0.0, %v2184
    %v2186 = vpop.f32.mrb[0].mxu0
    %v2187 = vpop.f32.mrb[0].mxu0
    %v2188 = vadd.f32 0.0, %v2187
    %v2189 = vpop.f32.mrb[0].mxu0
    %2190 = vmatprep.mubr.bf16.mxu0 0
    %2191 = vmatmul.mubr.bf16.gmra.mrb[0].mxu0 %v142
    %v2192 = vpop.f32.mrb[0].mxu0
    %v2193 = vadd.f32 0.0, %v2192
    %v2194 = vpop.f32.mrb[0].mxu0
    %v2195 = vpop.f32.mrb[0].mxu0
    %v2196 = vadd.f32 0.0, %v2195
    %v2197 = vpop.f32.mrb[0].mxu0
    %2198 = vmatprep.mubr.bf16.mxu0 0
    %2199 = vmatmul.mubr.bf16.gmra.mrb[0].mxu0 %v143
    %v2200 = vpop.f32.mrb[0].mxu0
    %v2201 = vadd.f32 0.0, %v2200
    %v2202 = vpop.f32.mrb[0].mxu0
    %v2203 = vpop.f32.mrb[0].mxu0
    %v2204 = vadd.f32 0.0, %v2203
    %v2205 = vpop.f32.mrb[0].mxu0
    %2206 = vmatprep.mubr.bf16.mxu0 0
    %2207 = vmatmul.mubr.bf16.gmra.mrb[0].mxu0 %v144
    %v2208 = vpop.f32.mrb[0].mxu0
    %v2209 = vadd.f32 0.0, %v2208
    %v2210 = vpop.f32.mrb[0].mxu0
    %v2211 = vpop.f32.mrb[0].mxu0
    %v2212 = vadd.f32 0.0, %v2211
    %v2213 = vpop.f32.mrb[0].mxu0
    %2214 = vmatprep.mubr.bf16.mxu0 0
    %2215 = vmatmul.mubr.bf16.gmra.mrb[0].mxu0 %v145
    %v2216 = vpop.f32.mrb[0].mxu0
    %v2217 = vadd.f32 0.0, %v2216
    %v2218 = vpop.f32.mrb[0].mxu0
    %v2219 = vpop.f32.mrb[0].mxu0
    %v2220 = vadd.f32 0.0, %v2219
    %v2221 = vpop.f32.mrb[0].mxu0
    %2222 = vmatprep.mubr.bf16.mxu0 0
    %2223 = vmatmul.mubr.bf16.gmra.mrb[0].mxu0 %v146
    %v2224 = vpop.f32.mrb[0].mxu0
    %v2225 = vadd.f32 0.0, %v2224
    %v2226 = vpop.f32.mrb[0].mxu0
    %v2227 = vpop.f32.mrb[0].mxu0
    %v2228 = vadd.f32 0.0, %v2227
    %v2229 = vpop.f32.mrb[0].mxu0
    %2230 = vmatprep.mubr.bf16.mxu0 0
    %2231 = vmatmul.mubr.bf16.gmra.mrb[0].mxu0 %v147
    %v2232 = vpop.f32.mrb[0].mxu0
    %v2233 = vadd.f32 0.0, %v2232
    %v2234 = vpop.f32.mrb[0].mxu0
    %v2235 = vpop.f32.mrb[0].mxu0
    %v2236 = vadd.f32 0.0, %v2235
    %v2237 = vpop.f32.mrb[0].mxu0
    %2238 = vdwg.mxu0
    %v2239 = vpack.c.bf16 %v2180, %v2177
    %v2240 = vpack.c.bf16 %v2188, %v2185
    %v2241 = vpack.c.bf16 %v2196, %v2193
    %v2242 = vpack.c.bf16 %v2204, %v2201
    %v2243 = vpack.c.bf16 %v2212, %v2209
    %v2244 = vpack.c.bf16 %v2220, %v2217
    %v2245 = vpack.c.bf16 %v2228, %v2225
    %v2246 = vpack.c.bf16 %v2236, %v2233
    %2247 = vst [vmem:[#allocation2 + $0x8] sm:$0xff] %v2239
    %2248 = vst [vmem:[#allocation2 + $0x48] sm:$0xff] %v2240
    %2249 = vst [vmem:[#allocation2 + $0x88] sm:$0xff] %v2241
    %2250 = vst [vmem:[#allocation2 + $0xc8] sm:$0xff] %v2242
    %2251 = vst [vmem:[#allocation2 + $0x108] sm:$0xff] %v2243
    %2252 = vst [vmem:[#allocation2 + $0x148] sm:$0xff] %v2244
    %2253 = vst [vmem:[#allocation2 + $0x188] sm:$0xff] %v2245
    %2254 = vst [vmem:[#allocation2 + $0x1c8] sm:$0xff] %v2246
    %2255 = vmatprep.subr.bf16.mxu0 0
    %2256 = vmatpush1.bf16.msra.mxu0 %v2239
    %2257 = vmatprep.subr.bf16.mxu0 0
    %2258 = vmatpush1.bf16.msra.mxu0 %v2240
    %2259 = vmatprep.subr.bf16.mxu0 0
    %2260 = vmatpush1.bf16.msra.mxu0 %v2241
    %2261 = vmatprep.subr.bf16.mxu0 0
    %2262 = vmatpush1.bf16.msra.mxu0 %v2242
    %2263 = vmatprep.subr.bf16.mxu0 0
    %2264 = vmatpush1.bf16.msra.mxu0 %v2243
    %2265 = vmatprep.subr.bf16.mxu0 0
    %2266 = vmatpush1.bf16.msra.mxu0 %v2244
    %2267 = vmatprep.subr.bf16.mxu0 0
    %2268 = vmatpush1.bf16.msra.mxu0 %v2245
    %2269 = vmatprep.subr.bf16.mxu0 0
    %2270 = vmatpush1.bf16.msra.mxu0 %v2246
    %2271 = vmatprep.subr.bf16.mxu0 0
    %2272 = vmatpush1.bf16.msra.mxu0 0
    %2273 = vmatprep.subr.bf16.mxu0 0
    %2274 = vmatpush1.bf16.msra.mxu0 0
    %2275 = vmatprep.subr.bf16.mxu0 0
    %2276 = vmatpush1.bf16.msra.mxu0 0
    %2277 = vmatprep.subr.bf16.mxu0 0
    %2278 = vmatpush1.bf16.msra.mxu0 0
    %2279 = vmatprep.subr.bf16.mxu0 0
    %2280 = vmatpush1.bf16.msra.mxu0 0
    %2281 = vmatprep.subr.bf16.mxu0 0
    %2282 = vmatpush1.bf16.msra.mxu0 0
    %2283 = vmatprep.subr.bf16.mxu0 0
    %2284 = vmatpush1.bf16.msra.mxu0 0
    %2285 = vmatprep.subr.bf16.mxu0 0
    %2286 = vmatpush1.bf16.msra.mxu0 0
    %2287 = vmatprep.mubr.bf16.mxu0 0
    %2288 = vmatmul.mubr.bf16.gmra.mrb[0].mxu0 %v140
    %v2289 = vpop.f32.mrb[0].mxu0
    %v2290 = vadd.f32 0.0, %v2289
    %v2291 = vpop.f32.mrb[0].mxu0
    %v2292 = vpop.f32.mrb[0].mxu0
    %v2293 = vadd.f32 0.0, %v2292
    %v2294 = vpop.f32.mrb[0].mxu0
    %2295 = vmatprep.mubr.bf16.mxu0 0
    %2296 = vmatmul.mubr.bf16.gmra.mrb[0].mxu0 %v141
    %v2297 = vpop.f32.mrb[0].mxu0
    %v2298 = vadd.f32 0.0, %v2297
    %v2299 = vpop.f32.mrb[0].mxu0
    %v2300 = vpop.f32.mrb[0].mxu0
    %v2301 = vadd.f32 0.0, %v2300
    %v2302 = vpop.f32.mrb[0].mxu0
    %2303 = vmatprep.mubr.bf16.mxu0 0
    %2304 = vmatmul.mubr.bf16.gmra.mrb[0].mxu0 %v142
    %v2305 = vpop.f32.mrb[0].mxu0
    %v2306 = vadd.f32 0.0, %v2305
    %v2307 = vpop.f32.mrb[0].mxu0
    %v2308 = vpop.f32.mrb[0].mxu0
    %v2309 = vadd.f32 0.0, %v2308
    %v2310 = vpop.f32.mrb[0].mxu0
    %2311 = vmatprep.mubr.bf16.mxu0 0
    %2312 = vmatmul.mubr.bf16.gmra.mrb[0].mxu0 %v143
    %v2313 = vpop.f32.mrb[0].mxu0
    %v2314 = vadd.f32 0.0, %v2313
    %v2315 = vpop.f32.mrb[0].mxu0
    %v2316 = vpop.f32.mrb[0].mxu0
    %v2317 = vadd.f32 0.0, %v2316
    %v2318 = vpop.f32.mrb[0].mxu0
    %2319 = vmatprep.mubr.bf16.mxu0 0
    %2320 = vmatmul.mubr.bf16.gmra.mrb[0].mxu0 %v144
    %v2321 = vpop.f32.mrb[0].mxu0
    %v2322 = vadd.f32 0.0, %v2321
    %v2323 = vpop.f32.mrb[0].mxu0
    %v2324 = vpop.f32.mrb[0].mxu0
    %v2325 = vadd.f32 0.0, %v2324
    %v2326 = vpop.f32.mrb[0].mxu0
    %2327 = vmatprep.mubr.bf16.mxu0 0
    %2328 = vmatmul.mubr.bf16.gmra.mrb[0].mxu0 %v145
    %v2329 = vpop.f32.mrb[0].mxu0
    %v2330 = vadd.f32 0.0, %v2329
    %v2331 = vpop.f32.mrb[0].mxu0
    %v2332 = vpop.f32.mrb[0].mxu0
    %v2333 = vadd.f32 0.0, %v2332
    %v2334 = vpop.f32.mrb[0].mxu0
    %2335 = vmatprep.mubr.bf16.mxu0 0
    %2336 = vmatmul.mubr.bf16.gmra.mrb[0].mxu0 %v146
    %v2337 = vpop.f32.mrb[0].mxu0
    %v2338 = vadd.f32 0.0, %v2337
    %v2339 = vpop.f32.mrb[0].mxu0
    %v2340 = vpop.f32.mrb[0].mxu0
    %v2341 = vadd.f32 0.0, %v2340
    %v2342 = vpop.f32.mrb[0].mxu0
    %2343 = vmatprep.mubr.bf16.mxu0 0
    %2344 = vmatmul.mubr.bf16.gmra.mrb[0].mxu0 %v147
    %v2345 = vpop.f32.mrb[0].mxu0
    %v2346 = vadd.f32 0.0, %v2345
    %v2347 = vpop.f32.mrb[0].mxu0
    %v2348 = vpop.f32.mrb[0].mxu0
    %v2349 = vadd.f32 0.0, %v2348
    %v2350 = vpop.f32.mrb[0].mxu0
    %2351 = vdwg.mxu0
    %v2352 = vmul.f32 %v2290, 2.0
    %v2353 = vmul.f32 %v2293, 2.0
    %v2354 = vmul.f32 %v2298, 2.0
    %v2355 = vmul.f32 %v2301, 2.0
    %v2356 = vmul.f32 %v2306, 2.0
    %v2357 = vmul.f32 %v2309, 2.0
    %v2358 = vmul.f32 %v2314, 2.0
    %v2359 = vmul.f32 %v2317, 2.0
    %v2360 = vmul.f32 %v2322, 2.0
    %v2361 = vmul.f32 %v2325, 2.0
    %v2362 = vmul.f32 %v2330, 2.0
    %v2363 = vmul.f32 %v2333, 2.0
    %v2364 = vmul.f32 %v2338, 2.0
    %v2365 = vmul.f32 %v2341, 2.0
    %v2366 = vmul.f32 %v2346, 2.0
    %v2367 = vmul.f32 %v2349, 2.0
    %v2368 = vsub.f32 %v2352, %v2110
    %v2369 = vsub.f32 %v2353, %v2111
    %v2370 = vsub.f32 %v2354, %v2112
    %v2371 = vsub.f32 %v2355, %v2113
    %v2372 = vsub.f32 %v2356, %v2114
    %v2373 = vsub.f32 %v2357, %v2115
    %v2374 = vsub.f32 %v2358, %v2116
    %v2375 = vsub.f32 %v2359, %v2117
    %v2376 = vsub.f32 %v2360, %v2118
    %v2377 = vsub.f32 %v2361, %v2119
    %v2378 = vsub.f32 %v2362, %v2120
    %v2379 = vsub.f32 %v2363, %v2121
    %v2380 = vsub.f32 %v2364, %v2122
    %v2381 = vsub.f32 %v2365, %v2123
    %v2382 = vsub.f32 %v2366, %v2124
    %v2383 = vsub.f32 %v2367, %v2125
    %v2384 = vpack.c.bf16 %v2369, %v2368
    %v2385 = vpack.c.bf16 %v2371, %v2370
    %v2386 = vpack.c.bf16 %v2373, %v2372
    %v2387 = vpack.c.bf16 %v2375, %v2374
    %v2388 = vpack.c.bf16 %v2377, %v2376
    %v2389 = vpack.c.bf16 %v2379, %v2378
    %v2390 = vpack.c.bf16 %v2381, %v2380
    %v2391 = vpack.c.bf16 %v2383, %v2382
    %2392 = vst [vmem:[#allocation2 + $0x10] sm:$0xff] %v2384
    %2393 = vst [vmem:[#allocation2 + $0x50] sm:$0xff] %v2385
    %2394 = vst [vmem:[#allocation2 + $0x90] sm:$0xff] %v2386
    %2395 = vst [vmem:[#allocation2 + $0xd0] sm:$0xff] %v2387
    %2396 = vst [vmem:[#allocation2 + $0x110] sm:$0xff] %v2388
    %2397 = vst [vmem:[#allocation2 + $0x150] sm:$0xff] %v2389
    %2398 = vst [vmem:[#allocation2 + $0x190] sm:$0xff] %v2390
    %2399 = vst [vmem:[#allocation2 + $0x1d0] sm:$0xff] %v2391
    %2400 = vmatprep.subr.bf16.mxu0 0
    %2401 = vmatpush1.bf16.msra.mxu0 %v2384
    %2402 = vmatprep.subr.bf16.mxu0 0
    %2403 = vmatpush1.bf16.msra.mxu0 %v2385
    %2404 = vmatprep.subr.bf16.mxu0 0
    %2405 = vmatpush1.bf16.msra.mxu0 %v2386
    %2406 = vmatprep.subr.bf16.mxu0 0
    %2407 = vmatpush1.bf16.msra.mxu0 %v2387
    %2408 = vmatprep.subr.bf16.mxu0 0
    %2409 = vmatpush1.bf16.msra.mxu0 %v2388
    %2410 = vmatprep.subr.bf16.mxu0 0
    %2411 = vmatpush1.bf16.msra.mxu0 %v2389
    %2412 = vmatprep.subr.bf16.mxu0 0
    %2413 = vmatpush1.bf16.msra.mxu0 %v2390
    %2414 = vmatprep.subr.bf16.mxu0 0
    %2415 = vmatpush1.bf16.msra.mxu0 %v2391
    %2416 = vmatprep.subr.bf16.mxu0 0
    %2417 = vmatpush1.bf16.msra.mxu0 0
    %2418 = vmatprep.subr.bf16.mxu0 0
    %2419 = vmatpush1.bf16.msra.mxu0 0
    %2420 = vmatprep.subr.bf16.mxu0 0
    %2421 = vmatpush1.bf16.msra.mxu0 0
    %2422 = vmatprep.subr.bf16.mxu0 0
    %2423 = vmatpush1.bf16.msra.mxu0 0
    %2424 = vmatprep.subr.bf16.mxu0 0
    %2425 = vmatpush1.bf16.msra.mxu0 0
    %2426 = vmatprep.subr.bf16.mxu0 0
    %2427 = vmatpush1.bf16.msra.mxu0 0
    %2428 = vmatprep.subr.bf16.mxu0 0
    %2429 = vmatpush1.bf16.msra.mxu0 0
    %2430 = vmatprep.subr.bf16.mxu0 0
    %2431 = vmatpush1.bf16.msra.mxu0 0
    %2432 = vmatprep.mubr.bf16.mxu0 0
    %2433 = vmatmul.mubr.bf16.gmra.mrb[0].mxu0 %v140
    %v2434 = vpop.f32.mrb[0].mxu0
    %v2435 = vadd.f32 0.0, %v2434
    %v2436 = vpop.f32.mrb[0].mxu0
    %v2437 = vpop.f32.mrb[0].mxu0
    %v2438 = vadd.f32 0.0, %v2437
    %v2439 = vpop.f32.mrb[0].mxu0
    %2440 = vmatprep.mubr.bf16.mxu0 0
    %2441 = vmatmul.mubr.bf16.gmra.mrb[0].mxu0 %v141
    %v2442 = vpop.f32.mrb[0].mxu0
    %v2443 = vadd.f32 0.0, %v2442
    %v2444 = vpop.f32.mrb[0].mxu0
    %v2445 = vpop.f32.mrb[0].mxu0
    %v2446 = vadd.f32 0.0, %v2445
    %v2447 = vpop.f32.mrb[0].mxu0
    %2448 = vmatprep.mubr.bf16.mxu0 0
    %2449 = vmatmul.mubr.bf16.gmra.mrb[0].mxu0 %v142
    %v2450 = vpop.f32.mrb[0].mxu0
    %v2451 = vadd.f32 0.0, %v2450
    %v2452 = vpop.f32.mrb[0].mxu0
    %v2453 = vpop.f32.mrb[0].mxu0
    %v2454 = vadd.f32 0.0, %v2453
    %v2455 = vpop.f32.mrb[0].mxu0
    %2456 = vmatprep.mubr.bf16.mxu0 0
    %2457 = vmatmul.mubr.bf16.gmra.mrb[0].mxu0 %v143
    %v2458 = vpop.f32.mrb[0].mxu0
    %v2459 = vadd.f32 0.0, %v2458
    %v2460 = vpop.f32.mrb[0].mxu0
    %v2461 = vpop.f32.mrb[0].mxu0
    %v2462 = vadd.f32 0.0, %v2461
    %v2463 = vpop.f32.mrb[0].mxu0
    %2464 = vmatprep.mubr.bf16.mxu0 0
    %2465 = vmatmul.mubr.bf16.gmra.mrb[0].mxu0 %v144
    %v2466 = vpop.f32.mrb[0].mxu0
    %v2467 = vadd.f32 0.0, %v2466
    %v2468 = vpop.f32.mrb[0].mxu0
    %v2469 = vpop.f32.mrb[0].mxu0
    %v2470 = vadd.f32 0.0, %v2469
    %v2471 = vpop.f32.mrb[0].mxu0
    %2472 = vmatprep.mubr.bf16.mxu0 0
    %2473 = vmatmul.mubr.bf16.gmra.mrb[0].mxu0 %v145
    %v2474 = vpop.f32.mrb[0].mxu0
    %v2475 = vadd.f32 0.0, %v2474
    %v2476 = vpop.f32.mrb[0].mxu0
    %v2477 = vpop.f32.mrb[0].mxu0
    %v2478 = vadd.f32 0.0, %v2477
    %v2479 = vpop.f32.mrb[0].mxu0
    %2480 = vmatprep.mubr.bf16.mxu0 0
    %2481 = vmatmul.mubr.bf16.gmra.mrb[0].mxu0 %v146
    %v2482 = vpop.f32.mrb[0].mxu0
    %v2483 = vadd.f32 0.0, %v2482
    %v2484 = vpop.f32.mrb[0].mxu0
    %v2485 = vpop.f32.mrb[0].mxu0
    %v2486 = vadd.f32 0.0, %v2485
    %v2487 = vpop.f32.mrb[0].mxu0
    %2488 = vmatprep.mubr.bf16.mxu0 0
    %2489 = vmatmul.mubr.bf16.gmra.mrb[0].mxu0 %v147
    %v2490 = vpop.f32.mrb[0].mxu0
    %v2491 = vadd.f32 0.0, %v2490
    %v2492 = vpop.f32.mrb[0].mxu0
    %v2493 = vpop.f32.mrb[0].mxu0
    %v2494 = vadd.f32 0.0, %v2493
    %v2495 = vpop.f32.mrb[0].mxu0
    %2496 = vdwg.mxu0
    %v2497 = vmul.f32 %v2435, 2.0
    %v2498 = vmul.f32 %v2438, 2.0
    %v2499 = vmul.f32 %v2443, 2.0
    %v2500 = vmul.f32 %v2446, 2.0
    %v2501 = vmul.f32 %v2451, 2.0
    %v2502 = vmul.f32 %v2454, 2.0
    %v2503 = vmul.f32 %v2459, 2.0
    %v2504 = vmul.f32 %v2462, 2.0
    %v2505 = vmul.f32 %v2467, 2.0
    %v2506 = vmul.f32 %v2470, 2.0
    %v2507 = vmul.f32 %v2475, 2.0
    %v2508 = vmul.f32 %v2478, 2.0
    %v2509 = vmul.f32 %v2483, 2.0
    %v2510 = vmul.f32 %v2486, 2.0
    %v2511 = vmul.f32 %v2491, 2.0
    %v2512 = vmul.f32 %v2494, 2.0
    %v2513 = vsub.f32 %v2497, %v2177
    %v2514 = vsub.f32 %v2498, %v2180
    %v2515 = vsub.f32 %v2499, %v2185
    %v2516 = vsub.f32 %v2500, %v2188
    %v2517 = vsub.f32 %v2501, %v2193
    %v2518 = vsub.f32 %v2502, %v2196
    %v2519 = vsub.f32 %v2503, %v2201
    %v2520 = vsub.f32 %v2504, %v2204
    %v2521 = vsub.f32 %v2505, %v2209
    %v2522 = vsub.f32 %v2506, %v2212
    %v2523 = vsub.f32 %v2507, %v2217
    %v2524 = vsub.f32 %v2508, %v2220
    %v2525 = vsub.f32 %v2509, %v2225
    %v2526 = vsub.f32 %v2510, %v2228
    %v2527 = vsub.f32 %v2511, %v2233
    %v2528 = vsub.f32 %v2512, %v2236
    %v2529 = vpack.c.bf16 %v2514, %v2513
    %v2530 = vpack.c.bf16 %v2516, %v2515
    %v2531 = vpack.c.bf16 %v2518, %v2517
    %v2532 = vpack.c.bf16 %v2520, %v2519
    %v2533 = vpack.c.bf16 %v2522, %v2521
    %v2534 = vpack.c.bf16 %v2524, %v2523
    %v2535 = vpack.c.bf16 %v2526, %v2525
    %v2536 = vpack.c.bf16 %v2528, %v2527
    %2537 = vst [vmem:[#allocation2 + $0x18] sm:$0xff] %v2529
    %2538 = vst [vmem:[#allocation2 + $0x58] sm:$0xff] %v2530
    %2539 = vst [vmem:[#allocation2 + $0x98] sm:$0xff] %v2531
    %2540 = vst [vmem:[#allocation2 + $0xd8] sm:$0xff] %v2532
    %2541 = vst [vmem:[#allocation2 + $0x118] sm:$0xff] %v2533
    %2542 = vst [vmem:[#allocation2 + $0x158] sm:$0xff] %v2534
    %2543 = vst [vmem:[#allocation2 + $0x198] sm:$0xff] %v2535
    %2544 = vst [vmem:[#allocation2 + $0x1d8] sm:$0xff] %v2536
    %2545 = vmatprep.subr.bf16.mxu0 0
    %2546 = vmatpush1.bf16.msra.mxu0 %v2529
    %2547 = vmatprep.subr.bf16.mxu0 0
    %2548 = vmatpush1.bf16.msra.mxu0 %v2530
    %2549 = vmatprep.subr.bf16.mxu0 0
    %2550 = vmatpush1.bf16.msra.mxu0 %v2531
    %2551 = vmatprep.subr.bf16.mxu0 0
    %2552 = vmatpush1.bf16.msra.mxu0 %v2532
    %2553 = vmatprep.subr.bf16.mxu0 0
    %2554 = vmatpush1.bf16.msra.mxu0 %v2533
    %2555 = vmatprep.subr.bf16.mxu0 0
    %2556 = vmatpush1.bf16.msra.mxu0 %v2534
    %2557 = vmatprep.subr.bf16.mxu0 0
    %2558 = vmatpush1.bf16.msra.mxu0 %v2535
    %2559 = vmatprep.subr.bf16.mxu0 0
    %2560 = vmatpush1.bf16.msra.mxu0 %v2536
    %2561 = vmatprep.subr.bf16.mxu0 0
    %2562 = vmatpush1.bf16.msra.mxu0 0
    %2563 = vmatprep.subr.bf16.mxu0 0
    %2564 = vmatpush1.bf16.msra.mxu0 0
    %2565 = vmatprep.subr.bf16.mxu0 0
    %2566 = vmatpush1.bf16.msra.mxu0 0
    %2567 = vmatprep.subr.bf16.mxu0 0
    %2568 = vmatpush1.bf16.msra.mxu0 0
    %2569 = vmatprep.subr.bf16.mxu0 0
    %2570 = vmatpush1.bf16.msra.mxu0 0
    %2571 = vmatprep.subr.bf16.mxu0 0
    %2572 = vmatpush1.bf16.msra.mxu0 0
    %2573 = vmatprep.subr.bf16.mxu0 0
    %2574 = vmatpush1.bf16.msra.mxu0 0
    %2575 = vmatprep.subr.bf16.mxu0 0
    %2576 = vmatpush1.bf16.msra.mxu0 0
    %2577 = vmatprep.mubr.bf16.mxu0 0
    %2578 = vmatmul.mubr.bf16.gmra.mrb[0].mxu0 %v140
    %v2579 = vpop.f32.mrb[0].mxu0
    %v2580 = vadd.f32 0.0, %v2579
    %v2581 = vpop.f32.mrb[0].mxu0
    %v2582 = vpop.f32.mrb[0].mxu0
    %v2583 = vadd.f32 0.0, %v2582
    %v2584 = vpop.f32.mrb[0].mxu0
    %2585 = vmatprep.mubr.bf16.mxu0 0
    %2586 = vmatmul.mubr.bf16.gmra.mrb[0].mxu0 %v141
    %v2587 = vpop.f32.mrb[0].mxu0
    %v2588 = vadd.f32 0.0, %v2587
    %v2589 = vpop.f32.mrb[0].mxu0
    %v2590 = vpop.f32.mrb[0].mxu0
    %v2591 = vadd.f32 0.0, %v2590
    %v2592 = vpop.f32.mrb[0].mxu0
    %2593 = vmatprep.mubr.bf16.mxu0 0
    %2594 = vmatmul.mubr.bf16.gmra.mrb[0].mxu0 %v142
    %v2595 = vpop.f32.mrb[0].mxu0
    %v2596 = vadd.f32 0.0, %v2595
    %v2597 = vpop.f32.mrb[0].mxu0
    %v2598 = vpop.f32.mrb[0].mxu0
    %v2599 = vadd.f32 0.0, %v2598
    %v2600 = vpop.f32.mrb[0].mxu0
    %2601 = vmatprep.mubr.bf16.mxu0 0
    %2602 = vmatmul.mubr.bf16.gmra.mrb[0].mxu0 %v143
    %v2603 = vpop.f32.mrb[0].mxu0
    %v2604 = vadd.f32 0.0, %v2603
    %v2605 = vpop.f32.mrb[0].mxu0
    %v2606 = vpop.f32.mrb[0].mxu0
    %v2607 = vadd.f32 0.0, %v2606
    %v2608 = vpop.f32.mrb[0].mxu0
    %2609 = vmatprep.mubr.bf16.mxu0 0
    %2610 = vmatmul.mubr.bf16.gmra.mrb[0].mxu0 %v144
    %v2611 = vpop.f32.mrb[0].mxu0
    %v2612 = vadd.f32 0.0, %v2611
    %v2613 = vpop.f32.mrb[0].mxu0
    %v2614 = vpop.f32.mrb[0].mxu0
    %v2615 = vadd.f32 0.0, %v2614
    %v2616 = vpop.f32.mrb[0].mxu0
    %2617 = vmatprep.mubr.bf16.mxu0 0
    %2618 = vmatmul.mubr.bf16.gmra.mrb[0].mxu0 %v145
    %v2619 = vpop.f32.mrb[0].mxu0
    %v2620 = vadd.f32 0.0, %v2619
    %v2621 = vpop.f32.mrb[0].mxu0
    %v2622 = vpop.f32.mrb[0].mxu0
    %v2623 = vadd.f32 0.0, %v2622
    %v2624 = vpop.f32.mrb[0].mxu0
    %2625 = vmatprep.mubr.bf16.mxu0 0
    %2626 = vmatmul.mubr.bf16.gmra.mrb[0].mxu0 %v146
    %v2627 = vpop.f32.mrb[0].mxu0
    %v2628 = vadd.f32 0.0, %v2627
    %v2629 = vpop.f32.mrb[0].mxu0
    %v2630 = vpop.f32.mrb[0].mxu0
    %v2631 = vadd.f32 0.0, %v2630
    %v2632 = vpop.f32.mrb[0].mxu0
    %2633 = vmatprep.mubr.bf16.mxu0 0
    %2634 = vmatmul.mubr.bf16.gmra.mrb[0].mxu0 %v147
    %v2635 = vpop.f32.mrb[0].mxu0
    %v2636 = vadd.f32 0.0, %v2635
    %v2637 = vpop.f32.mrb[0].mxu0
    %v2638 = vpop.f32.mrb[0].mxu0
    %v2639 = vadd.f32 0.0, %v2638
    %v2640 = vpop.f32.mrb[0].mxu0
    %2641 = vdwg.mxu0
    %v2642 = vmul.f32 %v2580, 2.0
    %v2643 = vmul.f32 %v2583, 2.0
    %v2644 = vmul.f32 %v2588, 2.0
    %v2645 = vmul.f32 %v2591, 2.0
    %v2646 = vmul.f32 %v2596, 2.0
    %v2647 = vmul.f32 %v2599, 2.0
    %v2648 = vmul.f32 %v2604, 2.0
    %v2649 = vmul.f32 %v2607, 2.0
    %v2650 = vmul.f32 %v2612, 2.0
    %v2651 = vmul.f32 %v2615, 2.0
    %v2652 = vmul.f32 %v2620, 2.0
    %v2653 = vmul.f32 %v2623, 2.0
    %v2654 = vmul.f32 %v2628, 2.0
    %v2655 = vmul.f32 %v2631, 2.0
    %v2656 = vmul.f32 %v2636, 2.0
    %v2657 = vmul.f32 %v2639, 2.0
    %v2658 = vsub.f32 %v2642, %v2368
    %v2659 = vsub.f32 %v2643, %v2369
    %v2660 = vsub.f32 %v2644, %v2370
    %v2661 = vsub.f32 %v2645, %v2371
    %v2662 = vsub.f32 %v2646, %v2372
    %v2663 = vsub.f32 %v2647, %v2373
    %v2664 = vsub.f32 %v2648, %v2374
    %v2665 = vsub.f32 %v2649, %v2375
    %v2666 = vsub.f32 %v2650, %v2376
    %v2667 = vsub.f32 %v2651, %v2377
    %v2668 = vsub.f32 %v2652, %v2378
    %v2669 = vsub.f32 %v2653, %v2379
    %v2670 = vsub.f32 %v2654, %v2380
    %v2671 = vsub.f32 %v2655, %v2381
    %v2672 = vsub.f32 %v2656, %v2382
    %v2673 = vsub.f32 %v2657, %v2383
    %v2674 = vpack.c.bf16 %v2659, %v2658
    %v2675 = vpack.c.bf16 %v2661, %v2660
    %v2676 = vpack.c.bf16 %v2663, %v2662
    %v2677 = vpack.c.bf16 %v2665, %v2664
    %v2678 = vpack.c.bf16 %v2667, %v2666
    %v2679 = vpack.c.bf16 %v2669, %v2668
    %v2680 = vpack.c.bf16 %v2671, %v2670
    %v2681 = vpack.c.bf16 %v2673, %v2672
    %2682 = vst [vmem:[#allocation2 + $0x20] sm:$0xff] %v2674
    %2683 = vst [vmem:[#allocation2 + $0x60] sm:$0xff] %v2675
    %2684 = vst [vmem:[#allocation2 + $0xa0] sm:$0xff] %v2676
    %2685 = vst [vmem:[#allocation2 + $0xe0] sm:$0xff] %v2677
    %2686 = vst [vmem:[#allocation2 + $0x120] sm:$0xff] %v2678
    %2687 = vst [vmem:[#allocation2 + $0x160] sm:$0xff] %v2679
    %2688 = vst [vmem:[#allocation2 + $0x1a0] sm:$0xff] %v2680
    %2689 = vst [vmem:[#allocation2 + $0x1e0] sm:$0xff] %v2681
    %2690 = vmatprep.subr.bf16.mxu0 0
    %2691 = vmatpush1.bf16.msra.mxu0 %v2674
    %2692 = vmatprep.subr.bf16.mxu0 0
    %2693 = vmatpush1.bf16.msra.mxu0 %v2675
    %2694 = vmatprep.subr.bf16.mxu0 0
    %2695 = vmatpush1.bf16.msra.mxu0 %v2676
    %2696 = vmatprep.subr.bf16.mxu0 0
    %2697 = vmatpush1.bf16.msra.mxu0 %v2677
    %2698 = vmatprep.subr.bf16.mxu0 0
    %2699 = vmatpush1.bf16.msra.mxu0 %v2678
    %2700 = vmatprep.subr.bf16.mxu0 0
    %2701 = vmatpush1.bf16.msra.mxu0 %v2679
    %2702 = vmatprep.subr.bf16.mxu0 0
    %2703 = vmatpush1.bf16.msra.mxu0 %v2680
    %2704 = vmatprep.subr.bf16.mxu0 0
    %2705 = vmatpush1.bf16.msra.mxu0 %v2681
    %2706 = vmatprep.subr.bf16.mxu0 0
    %2707 = vmatpush1.bf16.msra.mxu0 0
    %2708 = vmatprep.subr.bf16.mxu0 0
    %2709 = vmatpush1.bf16.msra.mxu0 0
    %2710 = vmatprep.subr.bf16.mxu0 0
    %2711 = vmatpush1.bf16.msra.mxu0 0
    %2712 = vmatprep.subr.bf16.mxu0 0
    %2713 = vmatpush1.bf16.msra.mxu0 0
    %2714 = vmatprep.subr.bf16.mxu0 0
    %2715 = vmatpush1.bf16.msra.mxu0 0
    %2716 = vmatprep.subr.bf16.mxu0 0
    %2717 = vmatpush1.bf16.msra.mxu0 0
    %2718 = vmatprep.subr.bf16.mxu0 0
    %2719 = vmatpush1.bf16.msra.mxu0 0
    %2720 = vmatprep.subr.bf16.mxu0 0
    %2721 = vmatpush1.bf16.msra.mxu0 0
    %2722 = vmatprep.mubr.bf16.mxu0 0
    %2723 = vmatmul.mubr.bf16.gmra.mrb[0].mxu0 %v140
    %v2724 = vpop.f32.mrb[0].mxu0
    %v2725 = vadd.f32 0.0, %v2724
    %v2726 = vpop.f32.mrb[0].mxu0
    %v2727 = vpop.f32.mrb[0].mxu0
    %v2728 = vadd.f32 0.0, %v2727
    %v2729 = vpop.f32.mrb[0].mxu0
    %2730 = vmatprep.mubr.bf16.mxu0 0
    %2731 = vmatmul.mubr.bf16.gmra.mrb[0].mxu0 %v141
    %v2732 = vpop.f32.mrb[0].mxu0
    %v2733 = vadd.f32 0.0, %v2732
    %v2734 = vpop.f32.mrb[0].mxu0
    %v2735 = vpop.f32.mrb[0].mxu0
    %v2736 = vadd.f32 0.0, %v2735
    %v2737 = vpop.f32.mrb[0].mxu0
    %2738 = vmatprep.mubr.bf16.mxu0 0
    %2739 = vmatmul.mubr.bf16.gmra.mrb[0].mxu0 %v142
    %v2740 = vpop.f32.mrb[0].mxu0
    %v2741 = vadd.f32 0.0, %v2740
    %v2742 = vpop.f32.mrb[0].mxu0
    %v2743 = vpop.f32.mrb[0].mxu0
    %v2744 = vadd.f32 0.0, %v2743
    %v2745 = vpop.f32.mrb[0].mxu0
    %2746 = vmatprep.mubr.bf16.mxu0 0
    %2747 = vmatmul.mubr.bf16.gmra.mrb[0].mxu0 %v143
    %v2748 = vpop.f32.mrb[0].mxu0
    %v2749 = vadd.f32 0.0, %v2748
    %v2750 = vpop.f32.mrb[0].mxu0
    %v2751 = vpop.f32.mrb[0].mxu0
    %v2752 = vadd.f32 0.0, %v2751
    %v2753 = vpop.f32.mrb[0].mxu0
    %2754 = vmatprep.mubr.bf16.mxu0 0
    %2755 = vmatmul.mubr.bf16.gmra.mrb[0].mxu0 %v144
    %v2756 = vpop.f32.mrb[0].mxu0
    %v2757 = vadd.f32 0.0, %v2756
    %v2758 = vpop.f32.mrb[0].mxu0
    %v2759 = vpop.f32.mrb[0].mxu0
    %v2760 = vadd.f32 0.0, %v2759
    %v2761 = vpop.f32.mrb[0].mxu0
    %2762 = vmatprep.mubr.bf16.mxu0 0
    %2763 = vmatmul.mubr.bf16.gmra.mrb[0].mxu0 %v145
    %v2764 = vpop.f32.mrb[0].mxu0
    %v2765 = vadd.f32 0.0, %v2764
    %v2766 = vpop.f32.mrb[0].mxu0
    %v2767 = vpop.f32.mrb[0].mxu0
    %v2768 = vadd.f32 0.0, %v2767
    %v2769 = vpop.f32.mrb[0].mxu0
    %2770 = vmatprep.mubr.bf16.mxu0 0
    %2771 = vmatmul.mubr.bf16.gmra.mrb[0].mxu0 %v146
    %v2772 = vpop.f32.mrb[0].mxu0
    %v2773 = vadd.f32 0.0, %v2772
    %v2774 = vpop.f32.mrb[0].mxu0
    %v2775 = vpop.f32.mrb[0].mxu0
    %v2776 = vadd.f32 0.0, %v2775
    %v2777 = vpop.f32.mrb[0].mxu0
    %2778 = vmatprep.mubr.bf16.mxu0 0
    %2779 = vmatmul.mubr.bf16.gmra.mrb[0].mxu0 %v147
    %v2780 = vpop.f32.mrb[0].mxu0
    %v2781 = vadd.f32 0.0, %v2780
    %v2782 = vpop.f32.mrb[0].mxu0
    %v2783 = vpop.f32.mrb[0].mxu0
    %v2784 = vadd.f32 0.0, %v2783
    %v2785 = vpop.f32.mrb[0].mxu0
    %2786 = vdwg.mxu0
    %v2787 = vmul.f32 %v2725, 2.0
    %v2788 = vmul.f32 %v2728, 2.0
    %v2789 = vmul.f32 %v2733, 2.0
    %v2790 = vmul.f32 %v2736, 2.0
    %v2791 = vmul.f32 %v2741, 2.0
    %v2792 = vmul.f32 %v2744, 2.0
    %v2793 = vmul.f32 %v2749, 2.0
    %v2794 = vmul.f32 %v2752, 2.0
    %v2795 = vmul.f32 %v2757, 2.0
    %v2796 = vmul.f32 %v2760, 2.0
    %v2797 = vmul.f32 %v2765, 2.0
    %v2798 = vmul.f32 %v2768, 2.0
    %v2799 = vmul.f32 %v2773, 2.0
    %v2800 = vmul.f32 %v2776, 2.0
    %v2801 = vmul.f32 %v2781, 2.0
    %v2802 = vmul.f32 %v2784, 2.0
    %v2803 = vsub.f32 %v2787, %v2513
    %v2804 = vsub.f32 %v2788, %v2514
    %v2805 = vsub.f32 %v2789, %v2515
    %v2806 = vsub.f32 %v2790, %v2516
    %v2807 = vsub.f32 %v2791, %v2517
    %v2808 = vsub.f32 %v2792, %v2518
    %v2809 = vsub.f32 %v2793, %v2519
    %v2810 = vsub.f32 %v2794, %v2520
    %v2811 = vsub.f32 %v2795, %v2521
    %v2812 = vsub.f32 %v2796, %v2522
    %v2813 = vsub.f32 %v2797, %v2523
    %v2814 = vsub.f32 %v2798, %v2524
    %v2815 = vsub.f32 %v2799, %v2525
    %v2816 = vsub.f32 %v2800, %v2526
    %v2817 = vsub.f32 %v2801, %v2527
    %v2818 = vsub.f32 %v2802, %v2528
    %v2819 = vpack.c.bf16 %v2804, %v2803
    %v2820 = vpack.c.bf16 %v2806, %v2805
    %v2821 = vpack.c.bf16 %v2808, %v2807
    %v2822 = vpack.c.bf16 %v2810, %v2809
    %v2823 = vpack.c.bf16 %v2812, %v2811
    %v2824 = vpack.c.bf16 %v2814, %v2813
    %v2825 = vpack.c.bf16 %v2816, %v2815
    %v2826 = vpack.c.bf16 %v2818, %v2817
    %2827 = vst [vmem:[#allocation2 + $0x28] sm:$0xff] %v2819
    %2828 = vst [vmem:[#allocation2 + $0x68] sm:$0xff] %v2820
    %2829 = vst [vmem:[#allocation2 + $0xa8] sm:$0xff] %v2821
    %2830 = vst [vmem:[#allocation2 + $0xe8] sm:$0xff] %v2822
    %2831 = vst [vmem:[#allocation2 + $0x128] sm:$0xff] %v2823
    %2832 = vst [vmem:[#allocation2 + $0x168] sm:$0xff] %v2824
    %2833 = vst [vmem:[#allocation2 + $0x1a8] sm:$0xff] %v2825
    %2834 = vst [vmem:[#allocation2 + $0x1e8] sm:$0xff] %v2826
    %2835 = vmatprep.subr.bf16.mxu0 0
    %2836 = vmatpush1.bf16.msra.mxu0 %v2819
    %2837 = vmatprep.subr.bf16.mxu0 0
    %2838 = vmatpush1.bf16.msra.mxu0 %v2820
    %2839 = vmatprep.subr.bf16.mxu0 0
    %2840 = vmatpush1.bf16.msra.mxu0 %v2821
    %2841 = vmatprep.subr.bf16.mxu0 0
    %2842 = vmatpush1.bf16.msra.mxu0 %v2822
    %2843 = vmatprep.subr.bf16.mxu0 0
    %2844 = vmatpush1.bf16.msra.mxu0 %v2823
    %2845 = vmatprep.subr.bf16.mxu0 0
    %2846 = vmatpush1.bf16.msra.mxu0 %v2824
    %2847 = vmatprep.subr.bf16.mxu0 0
    %2848 = vmatpush1.bf16.msra.mxu0 %v2825
    %2849 = vmatprep.subr.bf16.mxu0 0
    %2850 = vmatpush1.bf16.msra.mxu0 %v2826
    %2851 = vmatprep.subr.bf16.mxu0 0
    %2852 = vmatpush1.bf16.msra.mxu0 0
    %2853 = vmatprep.subr.bf16.mxu0 0
    %2854 = vmatpush1.bf16.msra.mxu0 0
    %2855 = vmatprep.subr.bf16.mxu0 0
    %2856 = vmatpush1.bf16.msra.mxu0 0
    %2857 = vmatprep.subr.bf16.mxu0 0
    %2858 = vmatpush1.bf16.msra.mxu0 0
    %2859 = vmatprep.subr.bf16.mxu0 0
    %2860 = vmatpush1.bf16.msra.mxu0 0
    %2861 = vmatprep.subr.bf16.mxu0 0
    %2862 = vmatpush1.bf16.msra.mxu0 0
    %2863 = vmatprep.subr.bf16.mxu0 0
    %2864 = vmatpush1.bf16.msra.mxu0 0
    %2865 = vmatprep.subr.bf16.mxu0 0
    %2866 = vmatpush1.bf16.msra.mxu0 0
    %2867 = vmatprep.mubr.bf16.mxu0 0
    %2868 = vmatmul.mubr.bf16.gmra.mrb[0].mxu0 %v140
    %v2869 = vpop.f32.mrb[0].mxu0
    %v2870 = vadd.f32 0.0, %v2869
    %v2871 = vpop.f32.mrb[0].mxu0
    %v2872 = vpop.f32.mrb[0].mxu0
    %v2873 = vadd.f32 0.0, %v2872
    %v2874 = vpop.f32.mrb[0].mxu0
    %2875 = vmatprep.mubr.bf16.mxu0 0
    %2876 = vmatmul.mubr.bf16.gmra.mrb[0].mxu0 %v141
    %v2877 = vpop.f32.mrb[0].mxu0
    %v2878 = vadd.f32 0.0, %v2877
    %v2879 = vpop.f32.mrb[0].mxu0
    %v2880 = vpop.f32.mrb[0].mxu0
    %v2881 = vadd.f32 0.0, %v2880
    %v2882 = vpop.f32.mrb[0].mxu0
    %2883 = vmatprep.mubr.bf16.mxu0 0
    %2884 = vmatmul.mubr.bf16.gmra.mrb[0].mxu0 %v142
    %v2885 = vpop.f32.mrb[0].mxu0
    %v2886 = vadd.f32 0.0, %v2885
    %v2887 = vpop.f32.mrb[0].mxu0
    %v2888 = vpop.f32.mrb[0].mxu0
    %v2889 = vadd.f32 0.0, %v2888
    %v2890 = vpop.f32.mrb[0].mxu0
    %2891 = vmatprep.mubr.bf16.mxu0 0
    %2892 = vmatmul.mubr.bf16.gmra.mrb[0].mxu0 %v143
    %v2893 = vpop.f32.mrb[0].mxu0
    %v2894 = vadd.f32 0.0, %v2893
    %v2895 = vpop.f32.mrb[0].mxu0
    %v2896 = vpop.f32.mrb[0].mxu0
    %v2897 = vadd.f32 0.0, %v2896
    %v2898 = vpop.f32.mrb[0].mxu0
    %2899 = vmatprep.mubr.bf16.mxu0 0
    %2900 = vmatmul.mubr.bf16.gmra.mrb[0].mxu0 %v144
    %v2901 = vpop.f32.mrb[0].mxu0
    %v2902 = vadd.f32 0.0, %v2901
    %v2903 = vpop.f32.mrb[0].mxu0
    %v2904 = vpop.f32.mrb[0].mxu0
    %v2905 = vadd.f32 0.0, %v2904
    %v2906 = vpop.f32.mrb[0].mxu0
    %2907 = vmatprep.mubr.bf16.mxu0 0
    %2908 = vmatmul.mubr.bf16.gmra.mrb[0].mxu0 %v145
    %v2909 = vpop.f32.mrb[0].mxu0
    %v2910 = vadd.f32 0.0, %v2909
    %v2911 = vpop.f32.mrb[0].mxu0
    %v2912 = vpop.f32.mrb[0].mxu0
    %v2913 = vadd.f32 0.0, %v2912
    %v2914 = vpop.f32.mrb[0].mxu0
    %2915 = vmatprep.mubr.bf16.mxu0 0
    %2916 = vmatmul.mubr.bf16.gmra.mrb[0].mxu0 %v146
    %v2917 = vpop.f32.mrb[0].mxu0
    %v2918 = vadd.f32 0.0, %v2917
    %v2919 = vpop.f32.mrb[0].mxu0
    %v2920 = vpop.f32.mrb[0].mxu0
    %v2921 = vadd.f32 0.0, %v2920
    %v2922 = vpop.f32.mrb[0].mxu0
    %2923 = vmatprep.mubr.bf16.mxu0 0
    %2924 = vmatmul.mubr.bf16.gmra.mrb[0].mxu0 %v147
    %v2925 = vpop.f32.mrb[0].mxu0
    %v2926 = vadd.f32 0.0, %v2925
    %v2927 = vpop.f32.mrb[0].mxu0
    %v2928 = vpop.f32.mrb[0].mxu0
    %v2929 = vadd.f32 0.0, %v2928
    %v2930 = vpop.f32.mrb[0].mxu0
    %2931 = vdwg.mxu0
    %v2932 = vmul.f32 %v2870, 2.0
    %v2933 = vmul.f32 %v2873, 2.0
    %v2934 = vmul.f32 %v2878, 2.0
    %v2935 = vmul.f32 %v2881, 2.0
    %v2936 = vmul.f32 %v2886, 2.0
    %v2937 = vmul.f32 %v2889, 2.0
    %v2938 = vmul.f32 %v2894, 2.0
    %v2939 = vmul.f32 %v2897, 2.0
    %v2940 = vmul.f32 %v2902, 2.0
    %v2941 = vmul.f32 %v2905, 2.0
    %v2942 = vmul.f32 %v2910, 2.0
    %v2943 = vmul.f32 %v2913, 2.0
    %v2944 = vmul.f32 %v2918, 2.0
    %v2945 = vmul.f32 %v2921, 2.0
    %v2946 = vmul.f32 %v2926, 2.0
    %v2947 = vmul.f32 %v2929, 2.0
    %v2948 = vsub.f32 %v2932, %v2658
    %v2949 = vsub.f32 %v2933, %v2659
    %v2950 = vsub.f32 %v2934, %v2660
    %v2951 = vsub.f32 %v2935, %v2661
    %v2952 = vsub.f32 %v2936, %v2662
    %v2953 = vsub.f32 %v2937, %v2663
    %v2954 = vsub.f32 %v2938, %v2664
    %v2955 = vsub.f32 %v2939, %v2665
    %v2956 = vsub.f32 %v2940, %v2666
    %v2957 = vsub.f32 %v2941, %v2667
    %v2958 = vsub.f32 %v2942, %v2668
    %v2959 = vsub.f32 %v2943, %v2669
    %v2960 = vsub.f32 %v2944, %v2670
    %v2961 = vsub.f32 %v2945, %v2671
    %v2962 = vsub.f32 %v2946, %v2672
    %v2963 = vsub.f32 %v2947, %v2673
    %v2964 = vpack.c.bf16 %v2949, %v2948
    %v2965 = vpack.c.bf16 %v2951, %v2950
    %v2966 = vpack.c.bf16 %v2953, %v2952
    %v2967 = vpack.c.bf16 %v2955, %v2954
    %v2968 = vpack.c.bf16 %v2957, %v2956
    %v2969 = vpack.c.bf16 %v2959, %v2958
    %v2970 = vpack.c.bf16 %v2961, %v2960
    %v2971 = vpack.c.bf16 %v2963, %v2962
    %2972 = vst [vmem:[#allocation2 + $0x30] sm:$0xff] %v2964
    %2973 = vst [vmem:[#allocation2 + $0x70] sm:$0xff] %v2965
    %2974 = vst [vmem:[#allocation2 + $0xb0] sm:$0xff] %v2966
    %2975 = vst [vmem:[#allocation2 + $0xf0] sm:$0xff] %v2967
    %2976 = vst [vmem:[#allocation2 + $0x130] sm:$0xff] %v2968
    %2977 = vst [vmem:[#allocation2 + $0x170] sm:$0xff] %v2969
    %2978 = vst [vmem:[#allocation2 + $0x1b0] sm:$0xff] %v2970
    %2979 = vst [vmem:[#allocation2 + $0x1f0] sm:$0xff] %v2971
    %2980 = vmatprep.subr.bf16.mxu0 0
    %2981 = vmatpush1.bf16.msra.mxu0 %v2964
    %2982 = vmatprep.subr.bf16.mxu0 0
    %2983 = vmatpush1.bf16.msra.mxu0 %v2965
    %2984 = vmatprep.subr.bf16.mxu0 0
    %2985 = vmatpush1.bf16.msra.mxu0 %v2966
    %2986 = vmatprep.subr.bf16.mxu0 0
    %2987 = vmatpush1.bf16.msra.mxu0 %v2967
    %2988 = vmatprep.subr.bf16.mxu0 0
    %2989 = vmatpush1.bf16.msra.mxu0 %v2968
    %2990 = vmatprep.subr.bf16.mxu0 0
    %2991 = vmatpush1.bf16.msra.mxu0 %v2969
    %2992 = vmatprep.subr.bf16.mxu0 0
    %2993 = vmatpush1.bf16.msra.mxu0 %v2970
    %2994 = vmatprep.subr.bf16.mxu0 0
    %2995 = vmatpush1.bf16.msra.mxu0 %v2971
    %2996 = vmatprep.subr.bf16.mxu0 0
    %2997 = vmatpush1.bf16.msra.mxu0 0
    %2998 = vmatprep.subr.bf16.mxu0 0
    %2999 = vmatpush1.bf16.msra.mxu0 0
    %3000 = vmatprep.subr.bf16.mxu0 0
    %3001 = vmatpush1.bf16.msra.mxu0 0
    %3002 = vmatprep.subr.bf16.mxu0 0
    %3003 = vmatpush1.bf16.msra.mxu0 0
    %3004 = vmatprep.subr.bf16.mxu0 0
    %3005 = vmatpush1.bf16.msra.mxu0 0
    %3006 = vmatprep.subr.bf16.mxu0 0
    %3007 = vmatpush1.bf16.msra.mxu0 0
    %3008 = vmatprep.subr.bf16.mxu0 0
    %3009 = vmatpush1.bf16.msra.mxu0 0
    %3010 = vmatprep.subr.bf16.mxu0 0
    %3011 = vmatpush1.bf16.msra.mxu0 0
    %3012 = vmatprep.mubr.bf16.mxu0 0
    %3013 = vmatmul.mubr.bf16.gmra.mrb[0].mxu0 %v140
    %v3014 = vpop.f32.mrb[0].mxu0
    %v3015 = vadd.f32 0.0, %v3014
    %v3016 = vpop.f32.mrb[0].mxu0
    %v3017 = vpop.f32.mrb[0].mxu0
    %v3018 = vadd.f32 0.0, %v3017
    %v3019 = vpop.f32.mrb[0].mxu0
    %3020 = vmatprep.mubr.bf16.mxu0 0
    %3021 = vmatmul.mubr.bf16.gmra.mrb[0].mxu0 %v141
    %v3022 = vpop.f32.mrb[0].mxu0
    %v3023 = vadd.f32 0.0, %v3022
    %v3024 = vpop.f32.mrb[0].mxu0
    %v3025 = vpop.f32.mrb[0].mxu0
    %v3026 = vadd.f32 0.0, %v3025
    %v3027 = vpop.f32.mrb[0].mxu0
    %3028 = vmatprep.mubr.bf16.mxu0 0
    %3029 = vmatmul.mubr.bf16.gmra.mrb[0].mxu0 %v142
    %v3030 = vpop.f32.mrb[0].mxu0
    %v3031 = vadd.f32 0.0, %v3030
    %v3032 = vpop.f32.mrb[0].mxu0
    %v3033 = vpop.f32.mrb[0].mxu0
    %v3034 = vadd.f32 0.0, %v3033
    %v3035 = vpop.f32.mrb[0].mxu0
    %3036 = vmatprep.mubr.bf16.mxu0 0
    %3037 = vmatmul.mubr.bf16.gmra.mrb[0].mxu0 %v143
    %v3038 = vpop.f32.mrb[0].mxu0
    %v3039 = vadd.f32 0.0, %v3038
    %v3040 = vpop.f32.mrb[0].mxu0
    %v3041 = vpop.f32.mrb[0].mxu0
    %v3042 = vadd.f32 0.0, %v3041
    %v3043 = vpop.f32.mrb[0].mxu0
    %3044 = vmatprep.mubr.bf16.mxu0 0
    %3045 = vmatmul.mubr.bf16.gmra.mrb[0].mxu0 %v144
    %v3046 = vpop.f32.mrb[0].mxu0
    %v3047 = vadd.f32 0.0, %v3046
    %v3048 = vpop.f32.mrb[0].mxu0
    %v3049 = vpop.f32.mrb[0].mxu0
    %v3050 = vadd.f32 0.0, %v3049
    %v3051 = vpop.f32.mrb[0].mxu0
    %3052 = vmatprep.mubr.bf16.mxu0 0
    %3053 = vmatmul.mubr.bf16.gmra.mrb[0].mxu0 %v145
    %v3054 = vpop.f32.mrb[0].mxu0
    %v3055 = vadd.f32 0.0, %v3054
    %v3056 = vpop.f32.mrb[0].mxu0
    %v3057 = vpop.f32.mrb[0].mxu0
    %v3058 = vadd.f32 0.0, %v3057
    %v3059 = vpop.f32.mrb[0].mxu0
    %3060 = vmatprep.mubr.bf16.mxu0 0
    %3061 = vmatmul.mubr.bf16.gmra.mrb[0].mxu0 %v146
    %v3062 = vpop.f32.mrb[0].mxu0
    %v3063 = vadd.f32 0.0, %v3062
    %v3064 = vpop.f32.mrb[0].mxu0
    %v3065 = vpop.f32.mrb[0].mxu0
    %v3066 = vadd.f32 0.0, %v3065
    %v3067 = vpop.f32.mrb[0].mxu0
    %3068 = vmatprep.mubr.bf16.mxu0 0
    %3069 = vmatmul.mubr.bf16.gmra.mrb[0].mxu0 %v147
    %v3070 = vpop.f32.mrb[0].mxu0
    %v3071 = vadd.f32 0.0, %v3070
    %v3072 = vpop.f32.mrb[0].mxu0
    %v3073 = vpop.f32.mrb[0].mxu0
    %v3074 = vadd.f32 0.0, %v3073
    %v3075 = vpop.f32.mrb[0].mxu0
    %3076 = vdwg.mxu0
    %v3077 = vmul.f32 %v3015, 2.0
    %v3078 = vmul.f32 %v3018, 2.0
    %v3079 = vmul.f32 %v3023, 2.0
    %v3080 = vmul.f32 %v3026, 2.0
    %v3081 = vmul.f32 %v3031, 2.0
    %v3082 = vmul.f32 %v3034, 2.0
    %v3083 = vmul.f32 %v3039, 2.0
    %v3084 = vmul.f32 %v3042, 2.0
    %v3085 = vmul.f32 %v3047, 2.0
    %v3086 = vmul.f32 %v3050, 2.0
    %v3087 = vmul.f32 %v3055, 2.0
    %v3088 = vmul.f32 %v3058, 2.0
    %v3089 = vmul.f32 %v3063, 2.0
    %v3090 = vmul.f32 %v3066, 2.0
    %v3091 = vmul.f32 %v3071, 2.0
    %v3092 = vmul.f32 %v3074, 2.0
    %v3093 = vsub.f32 %v3077, %v2803
    %v3094 = vsub.f32 %v3078, %v2804
    %v3095 = vsub.f32 %v3079, %v2805
    %v3096 = vsub.f32 %v3080, %v2806
    %v3097 = vsub.f32 %v3081, %v2807
    %v3098 = vsub.f32 %v3082, %v2808
    %v3099 = vsub.f32 %v3083, %v2809
    %v3100 = vsub.f32 %v3084, %v2810
    %v3101 = vsub.f32 %v3085, %v2811
    %v3102 = vsub.f32 %v3086, %v2812
    %v3103 = vsub.f32 %v3087, %v2813
    %v3104 = vsub.f32 %v3088, %v2814
    %v3105 = vsub.f32 %v3089, %v2815
    %v3106 = vsub.f32 %v3090, %v2816
    %v3107 = vsub.f32 %v3091, %v2817
    %v3108 = vsub.f32 %v3092, %v2818
    %v3109 = vpack.c.bf16 %v3094, %v3093
    %v3110 = vpack.c.bf16 %v3096, %v3095
    %v3111 = vpack.c.bf16 %v3098, %v3097
    %v3112 = vpack.c.bf16 %v3100, %v3099
    %v3113 = vpack.c.bf16 %v3102, %v3101
    %v3114 = vpack.c.bf16 %v3104, %v3103
    %v3115 = vpack.c.bf16 %v3106, %v3105
    %v3116 = vpack.c.bf16 %v3108, %v3107
    %3117 = vst [vmem:[#allocation2 + $0x38] sm:$0xff] %v3109
    %3118 = vst [vmem:[#allocation2 + $0x78] sm:$0xff] %v3110
    %3119 = vst [vmem:[#allocation2 + $0xb8] sm:$0xff] %v3111
    %3120 = vst [vmem:[#allocation2 + $0xf8] sm:$0xff] %v3112
    %3121 = vst [vmem:[#allocation2 + $0x138] sm:$0xff] %v3113
    %3122 = vst [vmem:[#allocation2 + $0x178] sm:$0xff] %v3114
    %3123 = vst [vmem:[#allocation2 + $0x1b8] sm:$0xff] %v3115
    %3124 = vst [vmem:[#allocation2 + $0x1f8] sm:$0xff] %v3116
    %v3125 = vld [vmem:[#allocation2] sm:$0xff]
    %v3126 = vld [vmem:[#allocation2 + $0x8] sm:$0xff]
    %v3127 = vld [vmem:[#allocation2 + $0x10] sm:$0xff]
    %v3128 = vld [vmem:[#allocation2 + $0x18] sm:$0xff]
    %v3129 = vld [vmem:[#allocation2 + $0x20] sm:$0xff]
    %v3130 = vld [vmem:[#allocation2 + $0x28] sm:$0xff]
    %v3131 = vld [vmem:[#allocation2 + $0x30] sm:$0xff]
    %v3132 = vld [vmem:[#allocation2 + $0x38] sm:$0xff]
    %v3133 = vld [vmem:[#allocation2 + $0x40] sm:$0xff]
    %v3134 = vld [vmem:[#allocation2 + $0x48] sm:$0xff]
    %v3135 = vld [vmem:[#allocation2 + $0x50] sm:$0xff]
    %v3136 = vld [vmem:[#allocation2 + $0x58] sm:$0xff]
    %v3137 = vld [vmem:[#allocation2 + $0x60] sm:$0xff]
    %v3138 = vld [vmem:[#allocation2 + $0x68] sm:$0xff]
    %v3139 = vld [vmem:[#allocation2 + $0x70] sm:$0xff]
    %v3140 = vld [vmem:[#allocation2 + $0x78] sm:$0xff]
    %v3141 = vld [vmem:[#allocation2 + $0x80] sm:$0xff]
    %v3142 = vld [vmem:[#allocation2 + $0x88] sm:$0xff]
    %v3143 = vld [vmem:[#allocation2 + $0x90] sm:$0xff]
    %v3144 = vld [vmem:[#allocation2 + $0x98] sm:$0xff]
    %v3145 = vld [vmem:[#allocation2 + $0xa0] sm:$0xff]
    %v3146 = vld [vmem:[#allocation2 + $0xa8] sm:$0xff]
    %v3147 = vld [vmem:[#allocation2 + $0xb0] sm:$0xff]
    %v3148 = vld [vmem:[#allocation2 + $0xb8] sm:$0xff]
    %v3149 = vld [vmem:[#allocation2 + $0xc0] sm:$0xff]
    %v3150 = vld [vmem:[#allocation2 + $0xc8] sm:$0xff]
    %v3151 = vld [vmem:[#allocation2 + $0xd0] sm:$0xff]
    %v3152 = vld [vmem:[#allocation2 + $0xd8] sm:$0xff]
    %v3153 = vld [vmem:[#allocation2 + $0xe0] sm:$0xff]
    %v3154 = vld [vmem:[#allocation2 + $0xe8] sm:$0xff]
    %v3155 = vld [vmem:[#allocation2 + $0xf0] sm:$0xff]
    %v3156 = vld [vmem:[#allocation2 + $0xf8] sm:$0xff]
    %v3157 = vld [vmem:[#allocation2 + $0x100] sm:$0xff]
    %v3158 = vld [vmem:[#allocation2 + $0x108] sm:$0xff]
    %v3159 = vld [vmem:[#allocation2 + $0x110] sm:$0xff]
    %v3160 = vld [vmem:[#allocation2 + $0x118] sm:$0xff]
    %v3161 = vld [vmem:[#allocation2 + $0x120] sm:$0xff]
    %v3162 = vld [vmem:[#allocation2 + $0x128] sm:$0xff]
    %v3163 = vld [vmem:[#allocation2 + $0x130] sm:$0xff]
    %v3164 = vld [vmem:[#allocation2 + $0x138] sm:$0xff]
    %v3165 = vld [vmem:[#allocation2 + $0x140] sm:$0xff]
    %v3166 = vld [vmem:[#allocation2 + $0x148] sm:$0xff]
    %v3167 = vld [vmem:[#allocation2 + $0x150] sm:$0xff]
    %v3168 = vld [vmem:[#allocation2 + $0x158] sm:$0xff]
    %v3169 = vld [vmem:[#allocation2 + $0x160] sm:$0xff]
    %v3170 = vld [vmem:[#allocation2 + $0x168] sm:$0xff]
    %v3171 = vld [vmem:[#allocation2 + $0x170] sm:$0xff]
    %v3172 = vld [vmem:[#allocation2 + $0x178] sm:$0xff]
    %v3173 = vld [vmem:[#allocation2 + $0x180] sm:$0xff]
    %v3174 = vld [vmem:[#allocation2 + $0x188] sm:$0xff]
    %v3175 = vld [vmem:[#allocation2 + $0x190] sm:$0xff]
    %v3176 = vld [vmem:[#allocation2 + $0x198] sm:$0xff]
    %v3177 = vld [vmem:[#allocation2 + $0x1a0] sm:$0xff]
    %v3178 = vld [vmem:[#allocation2 + $0x1a8] sm:$0xff]
    %v3179 = vld [vmem:[#allocation2 + $0x1b0] sm:$0xff]
    %v3180 = vld [vmem:[#allocation2 + $0x1b8] sm:$0xff]
    %v3181 = vld [vmem:[#allocation2 + $0x1c0] sm:$0xff]
    %v3182 = vld [vmem:[#allocation2 + $0x1c8] sm:$0xff]
    %v3183 = vld [vmem:[#allocation2 + $0x1d0] sm:$0xff]
    %v3184 = vld [vmem:[#allocation2 + $0x1d8] sm:$0xff]
    %v3185 = vld [vmem:[#allocation2 + $0x1e0] sm:$0xff]
    %v3186 = vld [vmem:[#allocation2 + $0x1e8] sm:$0xff]
    %v3187 = vld [vmem:[#allocation2 + $0x1f0] sm:$0xff]
    %v3188 = vld [vmem:[#allocation2 + $0x1f8] sm:$0xff]
    %s3189 = scalar_lea.vmem [#allocation8], 512
    %v3190 = vld [vmem:[%s3189] sm:$0xf]
    %v3191 = vld [vmem:[%s3189 + $0x4] sm:$0xf]
    %v3192 = vld [vmem:[%s3189 + $0x8] sm:$0xf]
    %v3193 = vld [vmem:[%s3189 + $0xc] sm:$0xf]
    %v3194 = vld [vmem:[%s3189 + $0x10] sm:$0xf]
    %v3195 = vld [vmem:[%s3189 + $0x14] sm:$0xf]
    %v3196 = vld [vmem:[%s3189 + $0x18] sm:$0xf]
    %v3197 = vld [vmem:[%s3189 + $0x1c] sm:$0xf]
    %v3198 = vld [vmem:[%s3189 + $0x20] sm:$0xf]
    %v3199 = vld [vmem:[%s3189 + $0x24] sm:$0xf]
    %v3200 = vld [vmem:[%s3189 + $0x28] sm:$0xf]
    %v3201 = vld [vmem:[%s3189 + $0x2c] sm:$0xf]
    %v3202 = vld [vmem:[%s3189 + $0x30] sm:$0xf]
    %v3203 = vld [vmem:[%s3189 + $0x34] sm:$0xf]
    %v3204 = vld [vmem:[%s3189 + $0x38] sm:$0xf]
    %v3205 = vld [vmem:[%s3189 + $0x3c] sm:$0xf]
    %v3206 = vld [vmem:[%s3189 + $0x40] sm:$0xf]
    %v3207 = vld [vmem:[%s3189 + $0x44] sm:$0xf]
    %v3208 = vld [vmem:[%s3189 + $0x48] sm:$0xf]
    %v3209 = vld [vmem:[%s3189 + $0x4c] sm:$0xf]
    %v3210 = vld [vmem:[%s3189 + $0x50] sm:$0xf]
    %v3211 = vld [vmem:[%s3189 + $0x54] sm:$0xf]
    %v3212 = vld [vmem:[%s3189 + $0x58] sm:$0xf]
    %v3213 = vld [vmem:[%s3189 + $0x5c] sm:$0xf]
    %v3214 = vld [vmem:[%s3189 + $0x60] sm:$0xf]
    %v3215 = vld [vmem:[%s3189 + $0x64] sm:$0xf]
    %v3216 = vld [vmem:[%s3189 + $0x68] sm:$0xf]
    %v3217 = vld [vmem:[%s3189 + $0x6c] sm:$0xf]
    %v3218 = vld [vmem:[%s3189 + $0x70] sm:$0xf]
    %v3219 = vld [vmem:[%s3189 + $0x74] sm:$0xf]
    %v3220 = vld [vmem:[%s3189 + $0x78] sm:$0xf]
    %v3221 = vld [vmem:[%s3189 + $0x7c] sm:$0xf]
    %v3222 = vld [vmem:[%s3189 + $0x80] sm:$0xf]
    %v3223 = vld [vmem:[%s3189 + $0x84] sm:$0xf]
    %v3224 = vld [vmem:[%s3189 + $0x88] sm:$0xf]
    %v3225 = vld [vmem:[%s3189 + $0x8c] sm:$0xf]
    %v3226 = vld [vmem:[%s3189 + $0x90] sm:$0xf]
    %v3227 = vld [vmem:[%s3189 + $0x94] sm:$0xf]
    %v3228 = vld [vmem:[%s3189 + $0x98] sm:$0xf]
    %v3229 = vld [vmem:[%s3189 + $0x9c] sm:$0xf]
    %v3230 = vld [vmem:[%s3189 + $0xa0] sm:$0xf]
    %v3231 = vld [vmem:[%s3189 + $0xa4] sm:$0xf]
    %v3232 = vld [vmem:[%s3189 + $0xa8] sm:$0xf]
    %v3233 = vld [vmem:[%s3189 + $0xac] sm:$0xf]
    %v3234 = vld [vmem:[%s3189 + $0xb0] sm:$0xf]
    %v3235 = vld [vmem:[%s3189 + $0xb4] sm:$0xf]
    %v3236 = vld [vmem:[%s3189 + $0xb8] sm:$0xf]
    %v3237 = vld [vmem:[%s3189 + $0xbc] sm:$0xf]
    %v3238 = vld [vmem:[%s3189 + $0xc0] sm:$0xf]
    %v3239 = vld [vmem:[%s3189 + $0xc4] sm:$0xf]
    %v3240 = vld [vmem:[%s3189 + $0xc8] sm:$0xf]
    %v3241 = vld [vmem:[%s3189 + $0xcc] sm:$0xf]
    %v3242 = vld [vmem:[%s3189 + $0xd0] sm:$0xf]
    %v3243 = vld [vmem:[%s3189 + $0xd4] sm:$0xf]
    %v3244 = vld [vmem:[%s3189 + $0xd8] sm:$0xf]
    %v3245 = vld [vmem:[%s3189 + $0xdc] sm:$0xf]
    %v3246 = vld [vmem:[%s3189 + $0xe0] sm:$0xf]
    %v3247 = vld [vmem:[%s3189 + $0xe4] sm:$0xf]
    %v3248 = vld [vmem:[%s3189 + $0xe8] sm:$0xf]
    %v3249 = vld [vmem:[%s3189 + $0xec] sm:$0xf]
    %v3250 = vld [vmem:[%s3189 + $0xf0] sm:$0xf]
    %v3251 = vld [vmem:[%s3189 + $0xf4] sm:$0xf]
    %v3252 = vld [vmem:[%s3189 + $0xf8] sm:$0xf]
    %v3253 = vld [vmem:[%s3189 + $0xfc] sm:$0xf]
    %v3254 = vld [vmem:[%s3189 + $0x100] sm:$0xf]
    %v3255 = vld [vmem:[%s3189 + $0x104] sm:$0xf]
    %v3256 = vld [vmem:[%s3189 + $0x108] sm:$0xf]
    %v3257 = vld [vmem:[%s3189 + $0x10c] sm:$0xf]
    %v3258 = vld [vmem:[%s3189 + $0x110] sm:$0xf]
    %v3259 = vld [vmem:[%s3189 + $0x114] sm:$0xf]
    %v3260 = vld [vmem:[%s3189 + $0x118] sm:$0xf]
    %v3261 = vld [vmem:[%s3189 + $0x11c] sm:$0xf]
    %v3262 = vld [vmem:[%s3189 + $0x120] sm:$0xf]
    %v3263 = vld [vmem:[%s3189 + $0x124] sm:$0xf]
    %v3264 = vld [vmem:[%s3189 + $0x128] sm:$0xf]
    %v3265 = vld [vmem:[%s3189 + $0x12c] sm:$0xf]
    %v3266 = vld [vmem:[%s3189 + $0x130] sm:$0xf]
    %v3267 = vld [vmem:[%s3189 + $0x134] sm:$0xf]
    %v3268 = vld [vmem:[%s3189 + $0x138] sm:$0xf]
    %v3269 = vld [vmem:[%s3189 + $0x13c] sm:$0xf]
    %v3270 = vld [vmem:[%s3189 + $0x140] sm:$0xf]
    %v3271 = vld [vmem:[%s3189 + $0x144] sm:$0xf]
    %v3272 = vld [vmem:[%s3189 + $0x148] sm:$0xf]
    %v3273 = vld [vmem:[%s3189 + $0x14c] sm:$0xf]
    %v3274 = vld [vmem:[%s3189 + $0x150] sm:$0xf]
    %v3275 = vld [vmem:[%s3189 + $0x154] sm:$0xf]
    %v3276 = vld [vmem:[%s3189 + $0x158] sm:$0xf]
    %v3277 = vld [vmem:[%s3189 + $0x15c] sm:$0xf]
    %v3278 = vld [vmem:[%s3189 + $0x160] sm:$0xf]
    %v3279 = vld [vmem:[%s3189 + $0x164] sm:$0xf]
    %v3280 = vld [vmem:[%s3189 + $0x168] sm:$0xf]
    %v3281 = vld [vmem:[%s3189 + $0x16c] sm:$0xf]
    %v3282 = vld [vmem:[%s3189 + $0x170] sm:$0xf]
    %v3283 = vld [vmem:[%s3189 + $0x174] sm:$0xf]
    %v3284 = vld [vmem:[%s3189 + $0x178] sm:$0xf]
    %v3285 = vld [vmem:[%s3189 + $0x17c] sm:$0xf]
    %v3286 = vld [vmem:[%s3189 + $0x180] sm:$0xf]
    %v3287 = vld [vmem:[%s3189 + $0x184] sm:$0xf]
    %v3288 = vld [vmem:[%s3189 + $0x188] sm:$0xf]
    %v3289 = vld [vmem:[%s3189 + $0x18c] sm:$0xf]
    %v3290 = vld [vmem:[%s3189 + $0x190] sm:$0xf]
    %v3291 = vld [vmem:[%s3189 + $0x194] sm:$0xf]
    %v3292 = vld [vmem:[%s3189 + $0x198] sm:$0xf]
    %v3293 = vld [vmem:[%s3189 + $0x19c] sm:$0xf]
    %v3294 = vld [vmem:[%s3189 + $0x1a0] sm:$0xf]
    %v3295 = vld [vmem:[%s3189 + $0x1a4] sm:$0xf]
    %v3296 = vld [vmem:[%s3189 + $0x1a8] sm:$0xf]
    %v3297 = vld [vmem:[%s3189 + $0x1ac] sm:$0xf]
    %v3298 = vld [vmem:[%s3189 + $0x1b0] sm:$0xf]
    %v3299 = vld [vmem:[%s3189 + $0x1b4] sm:$0xf]
    %v3300 = vld [vmem:[%s3189 + $0x1b8] sm:$0xf]
    %v3301 = vld [vmem:[%s3189 + $0x1bc] sm:$0xf]
    %v3302 = vld [vmem:[%s3189 + $0x1c0] sm:$0xf]
    %v3303 = vld [vmem:[%s3189 + $0x1c4] sm:$0xf]
    %v3304 = vld [vmem:[%s3189 + $0x1c8] sm:$0xf]
    %v3305 = vld [vmem:[%s3189 + $0x1cc] sm:$0xf]
    %v3306 = vld [vmem:[%s3189 + $0x1d0] sm:$0xf]
    %v3307 = vld [vmem:[%s3189 + $0x1d4] sm:$0xf]
    %v3308 = vld [vmem:[%s3189 + $0x1d8] sm:$0xf]
    %v3309 = vld [vmem:[%s3189 + $0x1dc] sm:$0xf]
    %v3310 = vld [vmem:[%s3189 + $0x1e0] sm:$0xf]
    %v3311 = vld [vmem:[%s3189 + $0x1e4] sm:$0xf]
    %v3312 = vld [vmem:[%s3189 + $0x1e8] sm:$0xf]
    %v3313 = vld [vmem:[%s3189 + $0x1ec] sm:$0xf]
    %v3314 = vld [vmem:[%s3189 + $0x1f0] sm:$0xf]
    %v3315 = vld [vmem:[%s3189 + $0x1f4] sm:$0xf]
    %v3316 = vld [vmem:[%s3189 + $0x1f8] sm:$0xf]
    %v3317 = vld [vmem:[%s3189 + $0x1fc] sm:$0xf]
    %s3318 = scalar_lea.vmem %s3, 1
    %v3319 = vld [vmem:[%s3318] sm:$0x1]
    %v3321 = vlaneseq
    %v3322 = vshrl.u32 %v3321, 7
    %v3323 = vsub.s32 0, %v3322
    %v3324 = vrot.slane %v3319, %v3323
    %v3454 = vunpack.c.l.b16 %v3190
    %v3455 = vunpack.c.l.b16 %v3191
    %v3456 = vunpack.c.l.b16 %v3192
    %v3457 = vunpack.c.l.b16 %v3193
    %v3458 = vunpack.c.l.b16 %v3194
    %v3459 = vunpack.c.l.b16 %v3195
    %v3460 = vunpack.c.l.b16 %v3196
    %v3461 = vunpack.c.l.b16 %v3197
    %v3462 = vunpack.c.l.b16 %v3198
    %v3463 = vunpack.c.l.b16 %v3199
    %v3464 = vunpack.c.l.b16 %v3200
    %v3465 = vunpack.c.l.b16 %v3201
    %v3466 = vunpack.c.l.b16 %v3202
    %v3467 = vunpack.c.l.b16 %v3203
    %v3468 = vunpack.c.l.b16 %v3204
    %v3469 = vunpack.c.l.b16 %v3205
    %v3470 = vunpack.c.l.b16 %v3206
    %v3471 = vunpack.c.l.b16 %v3207
    %v3472 = vunpack.c.l.b16 %v3208
    %v3473 = vunpack.c.l.b16 %v3209
    %v3474 = vunpack.c.l.b16 %v3210
    %v3475 = vunpack.c.l.b16 %v3211
    %v3476 = vunpack.c.l.b16 %v3212
    %v3477 = vunpack.c.l.b16 %v3213
    %v3478 = vunpack.c.l.b16 %v3214
    %v3479 = vunpack.c.l.b16 %v3215
    %v3480 = vunpack.c.l.b16 %v3216
    %v3481 = vunpack.c.l.b16 %v3217
    %v3482 = vunpack.c.l.b16 %v3218
    %v3483 = vunpack.c.l.b16 %v3219
    %v3484 = vunpack.c.l.b16 %v3220
    %v3485 = vunpack.c.l.b16 %v3221
    %v3486 = vunpack.c.l.b16 %v3222
    %v3487 = vunpack.c.l.b16 %v3223
    %v3488 = vunpack.c.l.b16 %v3224
    %v3489 = vunpack.c.l.b16 %v3225
    %v3490 = vunpack.c.l.b16 %v3226
    %v3491 = vunpack.c.l.b16 %v3227
    %v3492 = vunpack.c.l.b16 %v3228
    %v3493 = vunpack.c.l.b16 %v3229
    %v3494 = vunpack.c.l.b16 %v3230
    %v3495 = vunpack.c.l.b16 %v3231
    %v3496 = vunpack.c.l.b16 %v3232
    %v3497 = vunpack.c.l.b16 %v3233
    %v3498 = vunpack.c.l.b16 %v3234
    %v3499 = vunpack.c.l.b16 %v3235
    %v3500 = vunpack.c.l.b16 %v3236
    %v3501 = vunpack.c.l.b16 %v3237
    %v3502 = vunpack.c.l.b16 %v3238
    %v3503 = vunpack.c.l.b16 %v3239
    %v3504 = vunpack.c.l.b16 %v3240
    %v3505 = vunpack.c.l.b16 %v3241
    %v3506 = vunpack.c.l.b16 %v3242
    %v3507 = vunpack.c.l.b16 %v3243
    %v3508 = vunpack.c.l.b16 %v3244
    %v3509 = vunpack.c.l.b16 %v3245
    %v3510 = vunpack.c.l.b16 %v3246
    %v3511 = vunpack.c.l.b16 %v3247
    %v3512 = vunpack.c.l.b16 %v3248
    %v3513 = vunpack.c.l.b16 %v3249
    %v3514 = vunpack.c.l.b16 %v3250
    %v3515 = vunpack.c.l.b16 %v3251
    %v3516 = vunpack.c.l.b16 %v3252
    %v3517 = vunpack.c.l.b16 %v3253
    %v3518 = vunpack.c.l.b16 %v3254
    %v3519 = vunpack.c.l.b16 %v3255
    %v3520 = vunpack.c.l.b16 %v3256
    %v3521 = vunpack.c.l.b16 %v3257
    %v3522 = vunpack.c.l.b16 %v3258
    %v3523 = vunpack.c.l.b16 %v3259
    %v3524 = vunpack.c.l.b16 %v3260
    %v3525 = vunpack.c.l.b16 %v3261
    %v3526 = vunpack.c.l.b16 %v3262
    %v3527 = vunpack.c.l.b16 %v3263
    %v3528 = vunpack.c.l.b16 %v3264
    %v3529 = vunpack.c.l.b16 %v3265
    %v3530 = vunpack.c.l.b16 %v3266
    %v3531 = vunpack.c.l.b16 %v3267
    %v3532 = vunpack.c.l.b16 %v3268
    %v3533 = vunpack.c.l.b16 %v3269
    %v3534 = vunpack.c.l.b16 %v3270
    %v3535 = vunpack.c.l.b16 %v3271
    %v3536 = vunpack.c.l.b16 %v3272
    %v3537 = vunpack.c.l.b16 %v3273
    %v3538 = vunpack.c.l.b16 %v3274
    %v3539 = vunpack.c.l.b16 %v3275
    %v3540 = vunpack.c.l.b16 %v3276
    %v3541 = vunpack.c.l.b16 %v3277
    %v3542 = vunpack.c.l.b16 %v3278
    %v3543 = vunpack.c.l.b16 %v3279
    %v3544 = vunpack.c.l.b16 %v3280
    %v3545 = vunpack.c.l.b16 %v3281
    %v3546 = vunpack.c.l.b16 %v3282
    %v3547 = vunpack.c.l.b16 %v3283
    %v3548 = vunpack.c.l.b16 %v3284
    %v3549 = vunpack.c.l.b16 %v3285
    %v3550 = vunpack.c.l.b16 %v3286
    %v3551 = vunpack.c.l.b16 %v3287
    %v3552 = vunpack.c.l.b16 %v3288
    %v3553 = vunpack.c.l.b16 %v3289
    %v3554 = vunpack.c.l.b16 %v3290
    %v3555 = vunpack.c.l.b16 %v3291
    %v3556 = vunpack.c.l.b16 %v3292
    %v3557 = vunpack.c.l.b16 %v3293
    %v3558 = vunpack.c.l.b16 %v3294
    %v3559 = vunpack.c.l.b16 %v3295
    %v3560 = vunpack.c.l.b16 %v3296
    %v3561 = vunpack.c.l.b16 %v3297
    %v3562 = vunpack.c.l.b16 %v3298
    %v3563 = vunpack.c.l.b16 %v3299
    %v3564 = vunpack.c.l.b16 %v3300
    %v3565 = vunpack.c.l.b16 %v3301
    %v3566 = vunpack.c.l.b16 %v3302
    %v3567 = vunpack.c.l.b16 %v3303
    %v3568 = vunpack.c.l.b16 %v3304
    %v3569 = vunpack.c.l.b16 %v3305
    %v3570 = vunpack.c.l.b16 %v3306
    %v3571 = vunpack.c.l.b16 %v3307
    %v3572 = vunpack.c.l.b16 %v3308
    %v3573 = vunpack.c.l.b16 %v3309
    %v3574 = vunpack.c.l.b16 %v3310
    %v3575 = vunpack.c.l.b16 %v3311
    %v3576 = vunpack.c.l.b16 %v3312
    %v3577 = vunpack.c.l.b16 %v3313
    %v3578 = vunpack.c.l.b16 %v3314
    %v3579 = vunpack.c.l.b16 %v3315
    %v3580 = vunpack.c.l.b16 %v3316
    %v3581 = vunpack.c.l.b16 %v3317
    %v3582 = vpack.c.b16 %v3455, %v3454
    %v3583 = vpack.c.b16 %v3457, %v3456
    %v3584 = vpack.c.b16 %v3459, %v3458
    %v3585 = vpack.c.b16 %v3461, %v3460
    %v3586 = vpack.c.b16 %v3463, %v3462
    %v3587 = vpack.c.b16 %v3465, %v3464
    %v3588 = vpack.c.b16 %v3467, %v3466
    %v3589 = vpack.c.b16 %v3469, %v3468
    %v3590 = vpack.c.b16 %v3471, %v3470
    %v3591 = vpack.c.b16 %v3473, %v3472
    %v3592 = vpack.c.b16 %v3475, %v3474
    %v3593 = vpack.c.b16 %v3477, %v3476
    %v3594 = vpack.c.b16 %v3479, %v3478
    %v3595 = vpack.c.b16 %v3481, %v3480
    %v3596 = vpack.c.b16 %v3483, %v3482
    %v3597 = vpack.c.b16 %v3485, %v3484
    %v3598 = vpack.c.b16 %v3487, %v3486
    %v3599 = vpack.c.b16 %v3489, %v3488
    %v3600 = vpack.c.b16 %v3491, %v3490
    %v3601 = vpack.c.b16 %v3493, %v3492
    %v3602 = vpack.c.b16 %v3495, %v3494
    %v3603 = vpack.c.b16 %v3497, %v3496
    %v3604 = vpack.c.b16 %v3499, %v3498
    %v3605 = vpack.c.b16 %v3501, %v3500
    %v3606 = vpack.c.b16 %v3503, %v3502
    %v3607 = vpack.c.b16 %v3505, %v3504
    %v3608 = vpack.c.b16 %v3507, %v3506
    %v3609 = vpack.c.b16 %v3509, %v3508
    %v3610 = vpack.c.b16 %v3511, %v3510
    %v3611 = vpack.c.b16 %v3513, %v3512
    %v3612 = vpack.c.b16 %v3515, %v3514
    %v3613 = vpack.c.b16 %v3517, %v3516
    %v3614 = vpack.c.b16 %v3519, %v3518
    %v3615 = vpack.c.b16 %v3521, %v3520
    %v3616 = vpack.c.b16 %v3523, %v3522
    %v3617 = vpack.c.b16 %v3525, %v3524
    %v3618 = vpack.c.b16 %v3527, %v3526
    %v3619 = vpack.c.b16 %v3529, %v3528
    %v3620 = vpack.c.b16 %v3531, %v3530
    %v3621 = vpack.c.b16 %v3533, %v3532
    %v3622 = vpack.c.b16 %v3535, %v3534
    %v3623 = vpack.c.b16 %v3537, %v3536
    %v3624 = vpack.c.b16 %v3539, %v3538
    %v3625 = vpack.c.b16 %v3541, %v3540
    %v3626 = vpack.c.b16 %v3543, %v3542
    %v3627 = vpack.c.b16 %v3545, %v3544
    %v3628 = vpack.c.b16 %v3547, %v3546
    %v3629 = vpack.c.b16 %v3549, %v3548
    %v3630 = vpack.c.b16 %v3551, %v3550
    %v3631 = vpack.c.b16 %v3553, %v3552
    %v3632 = vpack.c.b16 %v3555, %v3554
    %v3633 = vpack.c.b16 %v3557, %v3556
    %v3634 = vpack.c.b16 %v3559, %v3558
    %v3635 = vpack.c.b16 %v3561, %v3560
    %v3636 = vpack.c.b16 %v3563, %v3562
    %v3637 = vpack.c.b16 %v3565, %v3564
    %v3638 = vpack.c.b16 %v3567, %v3566
    %v3639 = vpack.c.b16 %v3569, %v3568
    %v3640 = vpack.c.b16 %v3571, %v3570
    %v3641 = vpack.c.b16 %v3573, %v3572
    %v3642 = vpack.c.b16 %v3575, %v3574
    %v3643 = vpack.c.b16 %v3577, %v3576
    %v3644 = vpack.c.b16 %v3579, %v3578
    %v3645 = vpack.c.b16 %v3581, %v3580
    %3710 = vmatprep.subr.bf16.mxu0 0
    %3711 = vmatpush1.bf16.msra.mxu0 %v3582
    %3712 = vmatprep.subr.bf16.mxu0 0
    %3713 = vmatpush1.bf16.msra.mxu0 %v3583
    %3714 = vmatprep.subr.bf16.mxu0 0
    %3715 = vmatpush1.bf16.msra.mxu0 %v3584
    %3716 = vmatprep.subr.bf16.mxu0 0
    %3717 = vmatpush1.bf16.msra.mxu0 %v3585
    %3718 = vmatprep.subr.bf16.mxu0 0
    %3719 = vmatpush1.bf16.msra.mxu0 %v3586
    %3720 = vmatprep.subr.bf16.mxu0 0
    %3721 = vmatpush1.bf16.msra.mxu0 %v3587
    %3722 = vmatprep.subr.bf16.mxu0 0
    %3723 = vmatpush1.bf16.msra.mxu0 %v3588
    %3724 = vmatprep.subr.bf16.mxu0 0
    %3725 = vmatpush1.bf16.msra.mxu0 %v3589
    %3726 = vmatprep.subr.bf16.mxu0 0
    %3727 = vmatpush1.bf16.msra.mxu0 %v3590
    %3728 = vmatprep.subr.bf16.mxu0 0
    %3729 = vmatpush1.bf16.msra.mxu0 %v3591
    %3730 = vmatprep.subr.bf16.mxu0 0
    %3731 = vmatpush1.bf16.msra.mxu0 %v3592
    %3732 = vmatprep.subr.bf16.mxu0 0
    %3733 = vmatpush1.bf16.msra.mxu0 %v3593
    %3734 = vmatprep.subr.bf16.mxu0 0
    %3735 = vmatpush1.bf16.msra.mxu0 %v3594
    %3736 = vmatprep.subr.bf16.mxu0 0
    %3737 = vmatpush1.bf16.msra.mxu0 %v3595
    %3738 = vmatprep.subr.bf16.mxu0 0
    %3739 = vmatpush1.bf16.msra.mxu0 %v3596
    %3740 = vmatprep.subr.bf16.mxu0 0
    %3741 = vmatpush1.bf16.msra.mxu0 %v3597
    %3742 = vmatprep.mubr.bf16.mxu0 %v3126
    %3743 = vmatmul.mubr.bf16.gmra.mrb[0].mxu0 %v3125
    %v3744 = vpop.f32.mrb[0].mxu0
    %v3745 = vadd.f32 %v3324, %v3744
    %v3746 = vpop.f32.mrb[0].mxu0
    %v3747 = vpop.f32.mrb[0].mxu0
    %v3748 = vadd.f32 %v3324, %v3747
    %v3749 = vpop.f32.mrb[0].mxu0
    %3750 = vmatprep.mubr.bf16.mxu0 %v3134
    %3751 = vmatmul.mubr.bf16.gmra.mrb[0].mxu0 %v3133
    %v3752 = vpop.f32.mrb[0].mxu0
    %v3753 = vadd.f32 %v3324, %v3752
    %v3754 = vpop.f32.mrb[0].mxu0
    %v3755 = vpop.f32.mrb[0].mxu0
    %v3756 = vadd.f32 %v3324, %v3755
    %v3757 = vpop.f32.mrb[0].mxu0
    %3758 = vmatprep.mubr.bf16.mxu0 %v3142
    %3759 = vmatmul.mubr.bf16.gmra.mrb[0].mxu0 %v3141
    %v3760 = vpop.f32.mrb[0].mxu0
    %v3761 = vadd.f32 %v3324, %v3760
    %v3762 = vpop.f32.mrb[0].mxu0
    %v3763 = vpop.f32.mrb[0].mxu0
    %v3764 = vadd.f32 %v3324, %v3763
    %v3765 = vpop.f32.mrb[0].mxu0
    %3766 = vmatprep.mubr.bf16.mxu0 %v3150
    %3767 = vmatmul.mubr.bf16.gmra.mrb[0].mxu0 %v3149
    %v3768 = vpop.f32.mrb[0].mxu0
    %v3769 = vadd.f32 %v3324, %v3768
    %v3770 = vpop.f32.mrb[0].mxu0
    %v3771 = vpop.f32.mrb[0].mxu0
    %v3772 = vadd.f32 %v3324, %v3771
    %v3773 = vpop.f32.mrb[0].mxu0
    %3774 = vmatprep.mubr.bf16.mxu0 %v3158
    %3775 = vmatmul.mubr.bf16.gmra.mrb[0].mxu0 %v3157
    %v3776 = vpop.f32.mrb[0].mxu0
    %v3777 = vadd.f32 %v3324, %v3776
    %v3778 = vpop.f32.mrb[0].mxu0
    %v3779 = vpop.f32.mrb[0].mxu0
    %v3780 = vadd.f32 %v3324, %v3779
    %v3781 = vpop.f32.mrb[0].mxu0
    %3782 = vmatprep.mubr.bf16.mxu0 %v3166
    %3783 = vmatmul.mubr.bf16.gmra.mrb[0].mxu0 %v3165
    %v3784 = vpop.f32.mrb[0].mxu0
    %v3785 = vadd.f32 %v3324, %v3784
    %v3786 = vpop.f32.mrb[0].mxu0
    %v3787 = vpop.f32.mrb[0].mxu0
    %v3788 = vadd.f32 %v3324, %v3787
    %v3789 = vpop.f32.mrb[0].mxu0
    %3790 = vmatprep.mubr.bf16.mxu0 %v3174
    %3791 = vmatmul.mubr.bf16.gmra.mrb[0].mxu0 %v3173
    %v3792 = vpop.f32.mrb[0].mxu0
    %v3793 = vadd.f32 %v3324, %v3792
    %v3794 = vpop.f32.mrb[0].mxu0
    %v3795 = vpop.f32.mrb[0].mxu0
    %v3796 = vadd.f32 %v3324, %v3795
    %v3797 = vpop.f32.mrb[0].mxu0
    %3798 = vmatprep.mubr.bf16.mxu0 %v3182
    %3799 = vmatmul.mubr.bf16.gmra.mrb[0].mxu0 %v3181
    %v3800 = vpop.f32.mrb[0].mxu0
    %v3801 = vadd.f32 %v3324, %v3800
    %v3802 = vpop.f32.mrb[0].mxu0
    %v3803 = vpop.f32.mrb[0].mxu0
    %v3804 = vadd.f32 %v3324, %v3803
    %v3805 = vpop.f32.mrb[0].mxu0
    %3806 = vdwg.mxu0
    %3807 = vmatprep.subr.bf16.mxu0 0
    %3808 = vmatpush1.bf16.msra.mxu0 %v3598
    %3809 = vmatprep.subr.bf16.mxu0 0
    %3810 = vmatpush1.bf16.msra.mxu0 %v3599
    %3811 = vmatprep.subr.bf16.mxu0 0
    %3812 = vmatpush1.bf16.msra.mxu0 %v3600
    %3813 = vmatprep.subr.bf16.mxu0 0
    %3814 = vmatpush1.bf16.msra.mxu0 %v3601
    %3815 = vmatprep.subr.bf16.mxu0 0
    %3816 = vmatpush1.bf16.msra.mxu0 %v3602
    %3817 = vmatprep.subr.bf16.mxu0 0
    %3818 = vmatpush1.bf16.msra.mxu0 %v3603
    %3819 = vmatprep.subr.bf16.mxu0 0
    %3820 = vmatpush1.bf16.msra.mxu0 %v3604
    %3821 = vmatprep.subr.bf16.mxu0 0
    %3822 = vmatpush1.bf16.msra.mxu0 %v3605
    %3823 = vmatprep.subr.bf16.mxu0 0
    %3824 = vmatpush1.bf16.msra.mxu0 %v3606
    %3825 = vmatprep.subr.bf16.mxu0 0
    %3826 = vmatpush1.bf16.msra.mxu0 %v3607
    %3827 = vmatprep.subr.bf16.mxu0 0
    %3828 = vmatpush1.bf16.msra.mxu0 %v3608
    %3829 = vmatprep.subr.bf16.mxu0 0
    %3830 = vmatpush1.bf16.msra.mxu0 %v3609
    %3831 = vmatprep.subr.bf16.mxu0 0
    %3832 = vmatpush1.bf16.msra.mxu0 %v3610
    %3833 = vmatprep.subr.bf16.mxu0 0
    %3834 = vmatpush1.bf16.msra.mxu0 %v3611
    %3835 = vmatprep.subr.bf16.mxu0 0
    %3836 = vmatpush1.bf16.msra.mxu0 %v3612
    %3837 = vmatprep.subr.bf16.mxu0 0
    %3838 = vmatpush1.bf16.msra.mxu0 %v3613
    %3839 = vmatprep.mubr.bf16.mxu0 %v3128
    %3840 = vmatmul.mubr.bf16.gmra.mrb[0].mxu0 %v3127
    %v3841 = vpop.f32.mrb[0].mxu0
    %v3842 = vadd.f32 %v3745, %v3841
    %v3843 = vpop.f32.mrb[0].mxu0
    %v3844 = vpop.f32.mrb[0].mxu0
    %v3845 = vadd.f32 %v3748, %v3844
    %v3846 = vpop.f32.mrb[0].mxu0
    %3847 = vmatprep.mubr.bf16.mxu0 %v3136
    %3848 = vmatmul.mubr.bf16.gmra.mrb[0].mxu0 %v3135
    %v3849 = vpop.f32.mrb[0].mxu0
    %v3850 = vadd.f32 %v3753, %v3849
    %v3851 = vpop.f32.mrb[0].mxu0
    %v3852 = vpop.f32.mrb[0].mxu0
    %v3853 = vadd.f32 %v3756, %v3852
    %v3854 = vpop.f32.mrb[0].mxu0
    %3855 = vmatprep.mubr.bf16.mxu0 %v3144
    %3856 = vmatmul.mubr.bf16.gmra.mrb[0].mxu0 %v3143
    %v3857 = vpop.f32.mrb[0].mxu0
    %v3858 = vadd.f32 %v3761, %v3857
    %v3859 = vpop.f32.mrb[0].mxu0
    %v3860 = vpop.f32.mrb[0].mxu0
    %v3861 = vadd.f32 %v3764, %v3860
    %v3862 = vpop.f32.mrb[0].mxu0
    %3863 = vmatprep.mubr.bf16.mxu0 %v3152
    %3864 = vmatmul.mubr.bf16.gmra.mrb[0].mxu0 %v3151
    %v3865 = vpop.f32.mrb[0].mxu0
    %v3866 = vadd.f32 %v3769, %v3865
    %v3867 = vpop.f32.mrb[0].mxu0
    %v3868 = vpop.f32.mrb[0].mxu0
    %v3869 = vadd.f32 %v3772, %v3868
    %v3870 = vpop.f32.mrb[0].mxu0
    %3871 = vmatprep.mubr.bf16.mxu0 %v3160
    %3872 = vmatmul.mubr.bf16.gmra.mrb[0].mxu0 %v3159
    %v3873 = vpop.f32.mrb[0].mxu0
    %v3874 = vadd.f32 %v3777, %v3873
    %v3875 = vpop.f32.mrb[0].mxu0
    %v3876 = vpop.f32.mrb[0].mxu0
    %v3877 = vadd.f32 %v3780, %v3876
    %v3878 = vpop.f32.mrb[0].mxu0
    %3879 = vmatprep.mubr.bf16.mxu0 %v3168
    %3880 = vmatmul.mubr.bf16.gmra.mrb[0].mxu0 %v3167
    %v3881 = vpop.f32.mrb[0].mxu0
    %v3882 = vadd.f32 %v3785, %v3881
    %v3883 = vpop.f32.mrb[0].mxu0
    %v3884 = vpop.f32.mrb[0].mxu0
    %v3885 = vadd.f32 %v3788, %v3884
    %v3886 = vpop.f32.mrb[0].mxu0
    %3887 = vmatprep.mubr.bf16.mxu0 %v3176
    %3888 = vmatmul.mubr.bf16.gmra.mrb[0].mxu0 %v3175
    %v3889 = vpop.f32.mrb[0].mxu0
    %v3890 = vadd.f32 %v3793, %v3889
    %v3891 = vpop.f32.mrb[0].mxu0
    %v3892 = vpop.f32.mrb[0].mxu0
    %v3893 = vadd.f32 %v3796, %v3892
    %v3894 = vpop.f32.mrb[0].mxu0
    %3895 = vmatprep.mubr.bf16.mxu0 %v3184
    %3896 = vmatmul.mubr.bf16.gmra.mrb[0].mxu0 %v3183
    %v3897 = vpop.f32.mrb[0].mxu0
    %v3898 = vadd.f32 %v3801, %v3897
    %v3899 = vpop.f32.mrb[0].mxu0
    %v3900 = vpop.f32.mrb[0].mxu0
    %v3901 = vadd.f32 %v3804, %v3900
    %v3902 = vpop.f32.mrb[0].mxu0
    %3903 = vdwg.mxu0
    %3904 = vmatprep.subr.bf16.mxu0 0
    %3905 = vmatpush1.bf16.msra.mxu0 %v3614
    %3906 = vmatprep.subr.bf16.mxu0 0
    %3907 = vmatpush1.bf16.msra.mxu0 %v3615
    %3908 = vmatprep.subr.bf16.mxu0 0
    %3909 = vmatpush1.bf16.msra.mxu0 %v3616
    %3910 = vmatprep.subr.bf16.mxu0 0
    %3911 = vmatpush1.bf16.msra.mxu0 %v3617
    %3912 = vmatprep.subr.bf16.mxu0 0
    %3913 = vmatpush1.bf16.msra.mxu0 %v3618
    %3914 = vmatprep.subr.bf16.mxu0 0
    %3915 = vmatpush1.bf16.msra.mxu0 %v3619
    %3916 = vmatprep.subr.bf16.mxu0 0
    %3917 = vmatpush1.bf16.msra.mxu0 %v3620
    %3918 = vmatprep.subr.bf16.mxu0 0
    %3919 = vmatpush1.bf16.msra.mxu0 %v3621
    %3920 = vmatprep.subr.bf16.mxu0 0
    %3921 = vmatpush1.bf16.msra.mxu0 %v3622
    %3922 = vmatprep.subr.bf16.mxu0 0
    %3923 = vmatpush1.bf16.msra.mxu0 %v3623
    %3924 = vmatprep.subr.bf16.mxu0 0
    %3925 = vmatpush1.bf16.msra.mxu0 %v3624
    %3926 = vmatprep.subr.bf16.mxu0 0
    %3927 = vmatpush1.bf16.msra.mxu0 %v3625
    %3928 = vmatprep.subr.bf16.mxu0 0
    %3929 = vmatpush1.bf16.msra.mxu0 %v3626
    %3930 = vmatprep.subr.bf16.mxu0 0
    %3931 = vmatpush1.bf16.msra.mxu0 %v3627
    %3932 = vmatprep.subr.bf16.mxu0 0
    %3933 = vmatpush1.bf16.msra.mxu0 %v3628
    %3934 = vmatprep.subr.bf16.mxu0 0
    %3935 = vmatpush1.bf16.msra.mxu0 %v3629
    %3936 = vmatprep.mubr.bf16.mxu0 %v3130
    %3937 = vmatmul.mubr.bf16.gmra.mrb[0].mxu0 %v3129
    %v3938 = vpop.f32.mrb[0].mxu0
    %v3939 = vadd.f32 %v3842, %v3938
    %v3940 = vpop.f32.mrb[0].mxu0
    %v3941 = vpop.f32.mrb[0].mxu0
    %v3942 = vadd.f32 %v3845, %v3941
    %v3943 = vpop.f32.mrb[0].mxu0
    %3944 = vmatprep.mubr.bf16.mxu0 %v3138
    %3945 = vmatmul.mubr.bf16.gmra.mrb[0].mxu0 %v3137
    %v3946 = vpop.f32.mrb[0].mxu0
    %v3947 = vadd.f32 %v3850, %v3946
    %v3948 = vpop.f32.mrb[0].mxu0
    %v3949 = vpop.f32.mrb[0].mxu0
    %v3950 = vadd.f32 %v3853, %v3949
    %v3951 = vpop.f32.mrb[0].mxu0
    %3952 = vmatprep.mubr.bf16.mxu0 %v3146
    %3953 = vmatmul.mubr.bf16.gmra.mrb[0].mxu0 %v3145
    %v3954 = vpop.f32.mrb[0].mxu0
    %v3955 = vadd.f32 %v3858, %v3954
    %v3956 = vpop.f32.mrb[0].mxu0
    %v3957 = vpop.f32.mrb[0].mxu0
    %v3958 = vadd.f32 %v3861, %v3957
    %v3959 = vpop.f32.mrb[0].mxu0
    %3960 = vmatprep.mubr.bf16.mxu0 %v3154
    %3961 = vmatmul.mubr.bf16.gmra.mrb[0].mxu0 %v3153
    %v3962 = vpop.f32.mrb[0].mxu0
    %v3963 = vadd.f32 %v3866, %v3962
    %v3964 = vpop.f32.mrb[0].mxu0
    %v3965 = vpop.f32.mrb[0].mxu0
    %v3966 = vadd.f32 %v3869, %v3965
    %v3967 = vpop.f32.mrb[0].mxu0
    %3968 = vmatprep.mubr.bf16.mxu0 %v3162
    %3969 = vmatmul.mubr.bf16.gmra.mrb[0].mxu0 %v3161
    %v3970 = vpop.f32.mrb[0].mxu0
    %v3971 = vadd.f32 %v3874, %v3970
    %v3972 = vpop.f32.mrb[0].mxu0
    %v3973 = vpop.f32.mrb[0].mxu0
    %v3974 = vadd.f32 %v3877, %v3973
    %v3975 = vpop.f32.mrb[0].mxu0
    %3976 = vmatprep.mubr.bf16.mxu0 %v3170
    %3977 = vmatmul.mubr.bf16.gmra.mrb[0].mxu0 %v3169
    %v3978 = vpop.f32.mrb[0].mxu0
    %v3979 = vadd.f32 %v3882, %v3978
    %v3980 = vpop.f32.mrb[0].mxu0
    %v3981 = vpop.f32.mrb[0].mxu0
    %v3982 = vadd.f32 %v3885, %v3981
    %v3983 = vpop.f32.mrb[0].mxu0
    %3984 = vmatprep.mubr.bf16.mxu0 %v3178
    %3985 = vmatmul.mubr.bf16.gmra.mrb[0].mxu0 %v3177
    %v3986 = vpop.f32.mrb[0].mxu0
    %v3987 = vadd.f32 %v3890, %v3986
    %v3988 = vpop.f32.mrb[0].mxu0
    %v3989 = vpop.f32.mrb[0].mxu0
    %v3990 = vadd.f32 %v3893, %v3989
    %v3991 = vpop.f32.mrb[0].mxu0
    %3992 = vmatprep.mubr.bf16.mxu0 %v3186
    %3993 = vmatmul.mubr.bf16.gmra.mrb[0].mxu0 %v3185
    %v3994 = vpop.f32.mrb[0].mxu0
    %v3995 = vadd.f32 %v3898, %v3994
    %v3996 = vpop.f32.mrb[0].mxu0
    %v3997 = vpop.f32.mrb[0].mxu0
    %v3998 = vadd.f32 %v3901, %v3997
    %v3999 = vpop.f32.mrb[0].mxu0
    %4000 = vdwg.mxu0
    %4001 = vmatprep.subr.bf16.mxu0 0
    %4002 = vmatpush1.bf16.msra.mxu0 %v3630
    %4003 = vmatprep.subr.bf16.mxu0 0
    %4004 = vmatpush1.bf16.msra.mxu0 %v3631
    %4005 = vmatprep.subr.bf16.mxu0 0
    %4006 = vmatpush1.bf16.msra.mxu0 %v3632
    %4007 = vmatprep.subr.bf16.mxu0 0
    %4008 = vmatpush1.bf16.msra.mxu0 %v3633
    %4009 = vmatprep.subr.bf16.mxu0 0
    %4010 = vmatpush1.bf16.msra.mxu0 %v3634
    %4011 = vmatprep.subr.bf16.mxu0 0
    %4012 = vmatpush1.bf16.msra.mxu0 %v3635
    %4013 = vmatprep.subr.bf16.mxu0 0
    %4014 = vmatpush1.bf16.msra.mxu0 %v3636
    %4015 = vmatprep.subr.bf16.mxu0 0
    %4016 = vmatpush1.bf16.msra.mxu0 %v3637
    %4017 = vmatprep.subr.bf16.mxu0 0
    %4018 = vmatpush1.bf16.msra.mxu0 %v3638
    %4019 = vmatprep.subr.bf16.mxu0 0
    %4020 = vmatpush1.bf16.msra.mxu0 %v3639
    %4021 = vmatprep.subr.bf16.mxu0 0
    %4022 = vmatpush1.bf16.msra.mxu0 %v3640
    %4023 = vmatprep.subr.bf16.mxu0 0
    %4024 = vmatpush1.bf16.msra.mxu0 %v3641
    %4025 = vmatprep.subr.bf16.mxu0 0
    %4026 = vmatpush1.bf16.msra.mxu0 %v3642
    %4027 = vmatprep.subr.bf16.mxu0 0
    %4028 = vmatpush1.bf16.msra.mxu0 %v3643
    %4029 = vmatprep.subr.bf16.mxu0 0
    %4030 = vmatpush1.bf16.msra.mxu0 %v3644
    %4031 = vmatprep.subr.bf16.mxu0 0
    %4032 = vmatpush1.bf16.msra.mxu0 %v3645
    %4033 = vmatprep.mubr.bf16.mxu0 %v3132
    %4034 = vmatmul.mubr.bf16.gmra.mrb[0].mxu0 %v3131
    %v4035 = vpop.f32.mrb[0].mxu0
    %v4036 = vadd.f32 %v3939, %v4035
    %v4037 = vpop.f32.mrb[0].mxu0
    %v4038 = vpop.f32.mrb[0].mxu0
    %v4039 = vadd.f32 %v3942, %v4038
    %v4040 = vpop.f32.mrb[0].mxu0
    %4041 = vmatprep.mubr.bf16.mxu0 %v3140
    %4042 = vmatmul.mubr.bf16.gmra.mrb[0].mxu0 %v3139
    %v4043 = vpop.f32.mrb[0].mxu0
    %v4044 = vadd.f32 %v3947, %v4043
    %v4045 = vpop.f32.mrb[0].mxu0
    %v4046 = vpop.f32.mrb[0].mxu0
    %v4047 = vadd.f32 %v3950, %v4046
    %v4048 = vpop.f32.mrb[0].mxu0
    %4049 = vmatprep.mubr.bf16.mxu0 %v3148
    %4050 = vmatmul.mubr.bf16.gmra.mrb[0].mxu0 %v3147
    %v4051 = vpop.f32.mrb[0].mxu0
    %v4052 = vadd.f32 %v3955, %v4051
    %v4053 = vpop.f32.mrb[0].mxu0
    %v4054 = vpop.f32.mrb[0].mxu0
    %v4055 = vadd.f32 %v3958, %v4054
    %v4056 = vpop.f32.mrb[0].mxu0
    %4057 = vmatprep.mubr.bf16.mxu0 %v3156
    %4058 = vmatmul.mubr.bf16.gmra.mrb[0].mxu0 %v3155
    %v4059 = vpop.f32.mrb[0].mxu0
    %v4060 = vadd.f32 %v3963, %v4059
    %v4061 = vpop.f32.mrb[0].mxu0
    %v4062 = vpop.f32.mrb[0].mxu0
    %v4063 = vadd.f32 %v3966, %v4062
    %v4064 = vpop.f32.mrb[0].mxu0
    %4065 = vmatprep.mubr.bf16.mxu0 %v3164
    %4066 = vmatmul.mubr.bf16.gmra.mrb[0].mxu0 %v3163
    %v4067 = vpop.f32.mrb[0].mxu0
    %v4068 = vadd.f32 %v3971, %v4067
    %v4069 = vpop.f32.mrb[0].mxu0
    %v4070 = vpop.f32.mrb[0].mxu0
    %v4071 = vadd.f32 %v3974, %v4070
    %v4072 = vpop.f32.mrb[0].mxu0
    %4073 = vmatprep.mubr.bf16.mxu0 %v3172
    %4074 = vmatmul.mubr.bf16.gmra.mrb[0].mxu0 %v3171
    %v4075 = vpop.f32.mrb[0].mxu0
    %v4076 = vadd.f32 %v3979, %v4075
    %v4077 = vpop.f32.mrb[0].mxu0
    %v4078 = vpop.f32.mrb[0].mxu0
    %v4079 = vadd.f32 %v3982, %v4078
    %v4080 = vpop.f32.mrb[0].mxu0
    %4081 = vmatprep.mubr.bf16.mxu0 %v3180
    %4082 = vmatmul.mubr.bf16.gmra.mrb[0].mxu0 %v3179
    %v4083 = vpop.f32.mrb[0].mxu0
    %v4084 = vadd.f32 %v3987, %v4083
    %v4085 = vpop.f32.mrb[0].mxu0
    %v4086 = vpop.f32.mrb[0].mxu0
    %v4087 = vadd.f32 %v3990, %v4086
    %v4088 = vpop.f32.mrb[0].mxu0
    %4089 = vmatprep.mubr.bf16.mxu0 %v3188
    %4090 = vmatmul.mubr.bf16.gmra.mrb[0].mxu0 %v3187
    %v4091 = vpop.f32.mrb[0].mxu0
    %v4092 = vadd.f32 %v3995, %v4091
    %v4093 = vpop.f32.mrb[0].mxu0
    %v4094 = vpop.f32.mrb[0].mxu0
    %v4095 = vadd.f32 %v3998, %v4094
    %v4096 = vpop.f32.mrb[0].mxu0
    %4097 = vdwg.mxu0
    %v4098 = vmax.f32 %v4036, 0.0
    %v4099 = vmax.f32 %v4039, 0.0
    %v4100 = vmax.f32 %v4044, 0.0
    %v4101 = vmax.f32 %v4047, 0.0
    %v4102 = vmax.f32 %v4052, 0.0
    %v4103 = vmax.f32 %v4055, 0.0
    %v4104 = vmax.f32 %v4060, 0.0
    %v4105 = vmax.f32 %v4063, 0.0
    %v4106 = vmax.f32 %v4068, 0.0
    %v4107 = vmax.f32 %v4071, 0.0
    %v4108 = vmax.f32 %v4076, 0.0
    %v4109 = vmax.f32 %v4079, 0.0
    %v4110 = vmax.f32 %v4084, 0.0
    %v4111 = vmax.f32 %v4087, 0.0
    %v4112 = vmax.f32 %v4092, 0.0
    %v4113 = vmax.f32 %v4095, 0.0
    %v4114 = vpack.c.bf16 %v4099, %v4098
    %v4115 = vpack.c.bf16 %v4101, %v4100
    %v4116 = vpack.c.bf16 %v4103, %v4102
    %v4117 = vpack.c.bf16 %v4105, %v4104
    %v4118 = vpack.c.bf16 %v4107, %v4106
    %v4119 = vpack.c.bf16 %v4109, %v4108
    %v4120 = vpack.c.bf16 %v4111, %v4110
    %v4121 = vpack.c.bf16 %v4113, %v4112
    %4122 = vst [vmem:[#allocation2] sm:$0xff] %v4114
    %4123 = vst [vmem:[#allocation2 + $0x40] sm:$0xff] %v4115
    %4124 = vst [vmem:[#allocation2 + $0x80] sm:$0xff] %v4116
    %4125 = vst [vmem:[#allocation2 + $0xc0] sm:$0xff] %v4117
    %4126 = vst [vmem:[#allocation2 + $0x100] sm:$0xff] %v4118
    %4127 = vst [vmem:[#allocation2 + $0x140] sm:$0xff] %v4119
    %4128 = vst [vmem:[#allocation2 + $0x180] sm:$0xff] %v4120
    %4129 = vst [vmem:[#allocation2 + $0x1c0] sm:$0xff] %v4121
    %4130 = vmatprep.subr.bf16.mxu0 0
    %4131 = vmatpush1.bf16.msra.mxu0 %v4114
    %4132 = vmatprep.subr.bf16.mxu0 0
    %4133 = vmatpush1.bf16.msra.mxu0 %v4115
    %4134 = vmatprep.subr.bf16.mxu0 0
    %4135 = vmatpush1.bf16.msra.mxu0 %v4116
    %4136 = vmatprep.subr.bf16.mxu0 0
    %4137 = vmatpush1.bf16.msra.mxu0 %v4117
    %4138 = vmatprep.subr.bf16.mxu0 0
    %4139 = vmatpush1.bf16.msra.mxu0 %v4118
    %4140 = vmatprep.subr.bf16.mxu0 0
    %4141 = vmatpush1.bf16.msra.mxu0 %v4119
    %4142 = vmatprep.subr.bf16.mxu0 0
    %4143 = vmatpush1.bf16.msra.mxu0 %v4120
    %4144 = vmatprep.subr.bf16.mxu0 0
    %4145 = vmatpush1.bf16.msra.mxu0 %v4121
    %4146 = vmatprep.subr.bf16.mxu0 0
    %4147 = vmatpush1.bf16.msra.mxu0 0
    %4148 = vmatprep.subr.bf16.mxu0 0
    %4149 = vmatpush1.bf16.msra.mxu0 0
    %4150 = vmatprep.subr.bf16.mxu0 0
    %4151 = vmatpush1.bf16.msra.mxu0 0
    %4152 = vmatprep.subr.bf16.mxu0 0
    %4153 = vmatpush1.bf16.msra.mxu0 0
    %4154 = vmatprep.subr.bf16.mxu0 0
    %4155 = vmatpush1.bf16.msra.mxu0 0
    %4156 = vmatprep.subr.bf16.mxu0 0
    %4157 = vmatpush1.bf16.msra.mxu0 0
    %4158 = vmatprep.subr.bf16.mxu0 0
    %4159 = vmatpush1.bf16.msra.mxu0 0
    %4160 = vmatprep.subr.bf16.mxu0 0
    %4161 = vmatpush1.bf16.msra.mxu0 0
    %4162 = vmatprep.mubr.bf16.mxu0 0
    %4163 = vmatmul.mubr.bf16.gmra.mrb[0].mxu0 %v140
    %v4164 = vpop.f32.mrb[0].mxu0
    %v4165 = vadd.f32 0.0, %v4164
    %v4166 = vpop.f32.mrb[0].mxu0
    %v4167 = vpop.f32.mrb[0].mxu0
    %v4168 = vadd.f32 0.0, %v4167
    %v4169 = vpop.f32.mrb[0].mxu0
    %4170 = vmatprep.mubr.bf16.mxu0 0
    %4171 = vmatmul.mubr.bf16.gmra.mrb[0].mxu0 %v141
    %v4172 = vpop.f32.mrb[0].mxu0
    %v4173 = vadd.f32 0.0, %v4172
    %v4174 = vpop.f32.mrb[0].mxu0
    %v4175 = vpop.f32.mrb[0].mxu0
    %v4176 = vadd.f32 0.0, %v4175
    %v4177 = vpop.f32.mrb[0].mxu0
    %4178 = vmatprep.mubr.bf16.mxu0 0
    %4179 = vmatmul.mubr.bf16.gmra.mrb[0].mxu0 %v142
    %v4180 = vpop.f32.mrb[0].mxu0
    %v4181 = vadd.f32 0.0, %v4180
    %v4182 = vpop.f32.mrb[0].mxu0
    %v4183 = vpop.f32.mrb[0].mxu0
    %v4184 = vadd.f32 0.0, %v4183
    %v4185 = vpop.f32.mrb[0].mxu0
    %4186 = vmatprep.mubr.bf16.mxu0 0
    %4187 = vmatmul.mubr.bf16.gmra.mrb[0].mxu0 %v143
    %v4188 = vpop.f32.mrb[0].mxu0
    %v4189 = vadd.f32 0.0, %v4188
    %v4190 = vpop.f32.mrb[0].mxu0
    %v4191 = vpop.f32.mrb[0].mxu0
    %v4192 = vadd.f32 0.0, %v4191
    %v4193 = vpop.f32.mrb[0].mxu0
    %4194 = vmatprep.mubr.bf16.mxu0 0
    %4195 = vmatmul.mubr.bf16.gmra.mrb[0].mxu0 %v144
    %v4196 = vpop.f32.mrb[0].mxu0
    %v4197 = vadd.f32 0.0, %v4196
    %v4198 = vpop.f32.mrb[0].mxu0
    %v4199 = vpop.f32.mrb[0].mxu0
    %v4200 = vadd.f32 0.0, %v4199
    %v4201 = vpop.f32.mrb[0].mxu0
    %4202 = vmatprep.mubr.bf16.mxu0 0
    %4203 = vmatmul.mubr.bf16.gmra.mrb[0].mxu0 %v145
    %v4204 = vpop.f32.mrb[0].mxu0
    %v4205 = vadd.f32 0.0, %v4204
    %v4206 = vpop.f32.mrb[0].mxu0
    %v4207 = vpop.f32.mrb[0].mxu0
    %v4208 = vadd.f32 0.0, %v4207
    %v4209 = vpop.f32.mrb[0].mxu0
    %4210 = vmatprep.mubr.bf16.mxu0 0
    %4211 = vmatmul.mubr.bf16.gmra.mrb[0].mxu0 %v146
    %v4212 = vpop.f32.mrb[0].mxu0
    %v4213 = vadd.f32 0.0, %v4212
    %v4214 = vpop.f32.mrb[0].mxu0
    %v4215 = vpop.f32.mrb[0].mxu0
    %v4216 = vadd.f32 0.0, %v4215
    %v4217 = vpop.f32.mrb[0].mxu0
    %4218 = vmatprep.mubr.bf16.mxu0 0
    %4219 = vmatmul.mubr.bf16.gmra.mrb[0].mxu0 %v147
    %v4220 = vpop.f32.mrb[0].mxu0
    %v4221 = vadd.f32 0.0, %v4220
    %v4222 = vpop.f32.mrb[0].mxu0
    %v4223 = vpop.f32.mrb[0].mxu0
    %v4224 = vadd.f32 0.0, %v4223
    %v4225 = vpop.f32.mrb[0].mxu0
    %4226 = vdwg.mxu0
    %v4227 = vpack.c.bf16 %v4168, %v4165
    %v4228 = vpack.c.bf16 %v4176, %v4173
    %v4229 = vpack.c.bf16 %v4184, %v4181
    %v4230 = vpack.c.bf16 %v4192, %v4189
    %v4231 = vpack.c.bf16 %v4200, %v4197
    %v4232 = vpack.c.bf16 %v4208, %v4205
    %v4233 = vpack.c.bf16 %v4216, %v4213
    %v4234 = vpack.c.bf16 %v4224, %v4221
    %4235 = vst [vmem:[#allocation2 + $0x8] sm:$0xff] %v4227
    %4236 = vst [vmem:[#allocation2 + $0x48] sm:$0xff] %v4228
    %4237 = vst [vmem:[#allocation2 + $0x88] sm:$0xff] %v4229
    %4238 = vst [vmem:[#allocation2 + $0xc8] sm:$0xff] %v4230
    %4239 = vst [vmem:[#allocation2 + $0x108] sm:$0xff] %v4231
    %4240 = vst [vmem:[#allocation2 + $0x148] sm:$0xff] %v4232
    %4241 = vst [vmem:[#allocation2 + $0x188] sm:$0xff] %v4233
    %4242 = vst [vmem:[#allocation2 + $0x1c8] sm:$0xff] %v4234
    %4243 = vmatprep.subr.bf16.mxu0 0
    %4244 = vmatpush1.bf16.msra.mxu0 %v4227
    %4245 = vmatprep.subr.bf16.mxu0 0
    %4246 = vmatpush1.bf16.msra.mxu0 %v4228
    %4247 = vmatprep.subr.bf16.mxu0 0
    %4248 = vmatpush1.bf16.msra.mxu0 %v4229
    %4249 = vmatprep.subr.bf16.mxu0 0
    %4250 = vmatpush1.bf16.msra.mxu0 %v4230
    %4251 = vmatprep.subr.bf16.mxu0 0
    %4252 = vmatpush1.bf16.msra.mxu0 %v4231
    %4253 = vmatprep.subr.bf16.mxu0 0
    %4254 = vmatpush1.bf16.msra.mxu0 %v4232
    %4255 = vmatprep.subr.bf16.mxu0 0
    %4256 = vmatpush1.bf16.msra.mxu0 %v4233
    %4257 = vmatprep.subr.bf16.mxu0 0
    %4258 = vmatpush1.bf16.msra.mxu0 %v4234
    %4259 = vmatprep.subr.bf16.mxu0 0
    %4260 = vmatpush1.bf16.msra.mxu0 0
    %4261 = vmatprep.subr.bf16.mxu0 0
    %4262 = vmatpush1.bf16.msra.mxu0 0
    %4263 = vmatprep.subr.bf16.mxu0 0
    %4264 = vmatpush1.bf16.msra.mxu0 0
    %4265 = vmatprep.subr.bf16.mxu0 0
    %4266 = vmatpush1.bf16.msra.mxu0 0
    %4267 = vmatprep.subr.bf16.mxu0 0
    %4268 = vmatpush1.bf16.msra.mxu0 0
    %4269 = vmatprep.subr.bf16.mxu0 0
    %4270 = vmatpush1.bf16.msra.mxu0 0
    %4271 = vmatprep.subr.bf16.mxu0 0
    %4272 = vmatpush1.bf16.msra.mxu0 0
    %4273 = vmatprep.subr.bf16.mxu0 0
    %4274 = vmatpush1.bf16.msra.mxu0 0
    %4275 = vmatprep.mubr.bf16.mxu0 0
    %4276 = vmatmul.mubr.bf16.gmra.mrb[0].mxu0 %v140
    %v4277 = vpop.f32.mrb[0].mxu0
    %v4278 = vadd.f32 0.0, %v4277
    %v4279 = vpop.f32.mrb[0].mxu0
    %v4280 = vpop.f32.mrb[0].mxu0
    %v4281 = vadd.f32 0.0, %v4280
    %v4282 = vpop.f32.mrb[0].mxu0
    %4283 = vmatprep.mubr.bf16.mxu0 0
    %4284 = vmatmul.mubr.bf16.gmra.mrb[0].mxu0 %v141
    %v4285 = vpop.f32.mrb[0].mxu0
    %v4286 = vadd.f32 0.0, %v4285
    %v4287 = vpop.f32.mrb[0].mxu0
    %v4288 = vpop.f32.mrb[0].mxu0
    %v4289 = vadd.f32 0.0, %v4288
    %v4290 = vpop.f32.mrb[0].mxu0
    %4291 = vmatprep.mubr.bf16.mxu0 0
    %4292 = vmatmul.mubr.bf16.gmra.mrb[0].mxu0 %v142
    %v4293 = vpop.f32.mrb[0].mxu0
    %v4294 = vadd.f32 0.0, %v4293
    %v4295 = vpop.f32.mrb[0].mxu0
    %v4296 = vpop.f32.mrb[0].mxu0
    %v4297 = vadd.f32 0.0, %v4296
    %v4298 = vpop.f32.mrb[0].mxu0
    %4299 = vmatprep.mubr.bf16.mxu0 0
    %4300 = vmatmul.mubr.bf16.gmra.mrb[0].mxu0 %v143
    %v4301 = vpop.f32.mrb[0].mxu0
    %v4302 = vadd.f32 0.0, %v4301
    %v4303 = vpop.f32.mrb[0].mxu0
    %v4304 = vpop.f32.mrb[0].mxu0
    %v4305 = vadd.f32 0.0, %v4304
    %v4306 = vpop.f32.mrb[0].mxu0
    %4307 = vmatprep.mubr.bf16.mxu0 0
    %4308 = vmatmul.mubr.bf16.gmra.mrb[0].mxu0 %v144
    %v4309 = vpop.f32.mrb[0].mxu0
    %v4310 = vadd.f32 0.0, %v4309
    %v4311 = vpop.f32.mrb[0].mxu0
    %v4312 = vpop.f32.mrb[0].mxu0
    %v4313 = vadd.f32 0.0, %v4312
    %v4314 = vpop.f32.mrb[0].mxu0
    %4315 = vmatprep.mubr.bf16.mxu0 0
    %4316 = vmatmul.mubr.bf16.gmra.mrb[0].mxu0 %v145
    %v4317 = vpop.f32.mrb[0].mxu0
    %v4318 = vadd.f32 0.0, %v4317
    %v4319 = vpop.f32.mrb[0].mxu0
    %v4320 = vpop.f32.mrb[0].mxu0
    %v4321 = vadd.f32 0.0, %v4320
    %v4322 = vpop.f32.mrb[0].mxu0
    %4323 = vmatprep.mubr.bf16.mxu0 0
    %4324 = vmatmul.mubr.bf16.gmra.mrb[0].mxu0 %v146
    %v4325 = vpop.f32.mrb[0].mxu0
    %v4326 = vadd.f32 0.0, %v4325
    %v4327 = vpop.f32.mrb[0].mxu0
    %v4328 = vpop.f32.mrb[0].mxu0
    %v4329 = vadd.f32 0.0, %v4328
    %v4330 = vpop.f32.mrb[0].mxu0
    %4331 = vmatprep.mubr.bf16.mxu0 0
    %4332 = vmatmul.mubr.bf16.gmra.mrb[0].mxu0 %v147
    %v4333 = vpop.f32.mrb[0].mxu0
    %v4334 = vadd.f32 0.0, %v4333
    %v4335 = vpop.f32.mrb[0].mxu0
    %v4336 = vpop.f32.mrb[0].mxu0
    %v4337 = vadd.f32 0.0, %v4336
    %v4338 = vpop.f32.mrb[0].mxu0
    %4339 = vdwg.mxu0
    %v4340 = vmul.f32 %v4278, 2.0
    %v4341 = vmul.f32 %v4281, 2.0
    %v4342 = vmul.f32 %v4286, 2.0
    %v4343 = vmul.f32 %v4289, 2.0
    %v4344 = vmul.f32 %v4294, 2.0
    %v4345 = vmul.f32 %v4297, 2.0
    %v4346 = vmul.f32 %v4302, 2.0
    %v4347 = vmul.f32 %v4305, 2.0
    %v4348 = vmul.f32 %v4310, 2.0
    %v4349 = vmul.f32 %v4313, 2.0
    %v4350 = vmul.f32 %v4318, 2.0
    %v4351 = vmul.f32 %v4321, 2.0
    %v4352 = vmul.f32 %v4326, 2.0
    %v4353 = vmul.f32 %v4329, 2.0
    %v4354 = vmul.f32 %v4334, 2.0
    %v4355 = vmul.f32 %v4337, 2.0
    %v4356 = vsub.f32 %v4340, %v4098
    %v4357 = vsub.f32 %v4341, %v4099
    %v4358 = vsub.f32 %v4342, %v4100
    %v4359 = vsub.f32 %v4343, %v4101
    %v4360 = vsub.f32 %v4344, %v4102
    %v4361 = vsub.f32 %v4345, %v4103
    %v4362 = vsub.f32 %v4346, %v4104
    %v4363 = vsub.f32 %v4347, %v4105
    %v4364 = vsub.f32 %v4348, %v4106
    %v4365 = vsub.f32 %v4349, %v4107
    %v4366 = vsub.f32 %v4350, %v4108
    %v4367 = vsub.f32 %v4351, %v4109
    %v4368 = vsub.f32 %v4352, %v4110
    %v4369 = vsub.f32 %v4353, %v4111
    %v4370 = vsub.f32 %v4354, %v4112
    %v4371 = vsub.f32 %v4355, %v4113
    %v4372 = vpack.c.bf16 %v4357, %v4356
    %v4373 = vpack.c.bf16 %v4359, %v4358
    %v4374 = vpack.c.bf16 %v4361, %v4360
    %v4375 = vpack.c.bf16 %v4363, %v4362
    %v4376 = vpack.c.bf16 %v4365, %v4364
    %v4377 = vpack.c.bf16 %v4367, %v4366
    %v4378 = vpack.c.bf16 %v4369, %v4368
    %v4379 = vpack.c.bf16 %v4371, %v4370
    %4380 = vst [vmem:[#allocation2 + $0x10] sm:$0xff] %v4372
    %4381 = vst [vmem:[#allocation2 + $0x50] sm:$0xff] %v4373
    %4382 = vst [vmem:[#allocation2 + $0x90] sm:$0xff] %v4374
    %4383 = vst [vmem:[#allocation2 + $0xd0] sm:$0xff] %v4375
    %4384 = vst [vmem:[#allocation2 + $0x110] sm:$0xff] %v4376
    %4385 = vst [vmem:[#allocation2 + $0x150] sm:$0xff] %v4377
    %4386 = vst [vmem:[#allocation2 + $0x190] sm:$0xff] %v4378
    %4387 = vst [vmem:[#allocation2 + $0x1d0] sm:$0xff] %v4379
    %4388 = vmatprep.subr.bf16.mxu0 0
    %4389 = vmatpush1.bf16.msra.mxu0 %v4372
    %4390 = vmatprep.subr.bf16.mxu0 0
    %4391 = vmatpush1.bf16.msra.mxu0 %v4373
    %4392 = vmatprep.subr.bf16.mxu0 0
    %4393 = vmatpush1.bf16.msra.mxu0 %v4374
    %4394 = vmatprep.subr.bf16.mxu0 0
    %4395 = vmatpush1.bf16.msra.mxu0 %v4375
    %4396 = vmatprep.subr.bf16.mxu0 0
    %4397 = vmatpush1.bf16.msra.mxu0 %v4376
    %4398 = vmatprep.subr.bf16.mxu0 0
    %4399 = vmatpush1.bf16.msra.mxu0 %v4377
    %4400 = vmatprep.subr.bf16.mxu0 0
    %4401 = vmatpush1.bf16.msra.mxu0 %v4378
    %4402 = vmatprep.subr.bf16.mxu0 0
    %4403 = vmatpush1.bf16.msra.mxu0 %v4379
    %4404 = vmatprep.subr.bf16.mxu0 0
    %4405 = vmatpush1.bf16.msra.mxu0 0
    %4406 = vmatprep.subr.bf16.mxu0 0
    %4407 = vmatpush1.bf16.msra.mxu0 0
    %4408 = vmatprep.subr.bf16.mxu0 0
    %4409 = vmatpush1.bf16.msra.mxu0 0
    %4410 = vmatprep.subr.bf16.mxu0 0
    %4411 = vmatpush1.bf16.msra.mxu0 0
    %4412 = vmatprep.subr.bf16.mxu0 0
    %4413 = vmatpush1.bf16.msra.mxu0 0
    %4414 = vmatprep.subr.bf16.mxu0 0
    %4415 = vmatpush1.bf16.msra.mxu0 0
    %4416 = vmatprep.subr.bf16.mxu0 0
    %4417 = vmatpush1.bf16.msra.mxu0 0
    %4418 = vmatprep.subr.bf16.mxu0 0
    %4419 = vmatpush1.bf16.msra.mxu0 0
    %4420 = vmatprep.mubr.bf16.mxu0 0
    %4421 = vmatmul.mubr.bf16.gmra.mrb[0].mxu0 %v140
    %v4422 = vpop.f32.mrb[0].mxu0
    %v4423 = vadd.f32 0.0, %v4422
    %v4424 = vpop.f32.mrb[0].mxu0
    %v4425 = vpop.f32.mrb[0].mxu0
    %v4426 = vadd.f32 0.0, %v4425
    %v4427 = vpop.f32.mrb[0].mxu0
    %4428 = vmatprep.mubr.bf16.mxu0 0
    %4429 = vmatmul.mubr.bf16.gmra.mrb[0].mxu0 %v141
    %v4430 = vpop.f32.mrb[0].mxu0
    %v4431 = vadd.f32 0.0, %v4430
    %v4432 = vpop.f32.mrb[0].mxu0
    %v4433 = vpop.f32.mrb[0].mxu0
    %v4434 = vadd.f32 0.0, %v4433
    %v4435 = vpop.f32.mrb[0].mxu0
    %4436 = vmatprep.mubr.bf16.mxu0 0
    %4437 = vmatmul.mubr.bf16.gmra.mrb[0].mxu0 %v142
    %v4438 = vpop.f32.mrb[0].mxu0
    %v4439 = vadd.f32 0.0, %v4438
    %v4440 = vpop.f32.mrb[0].mxu0
    %v4441 = vpop.f32.mrb[0].mxu0
    %v4442 = vadd.f32 0.0, %v4441
    %v4443 = vpop.f32.mrb[0].mxu0
    %4444 = vmatprep.mubr.bf16.mxu0 0
    %4445 = vmatmul.mubr.bf16.gmra.mrb[0].mxu0 %v143
    %v4446 = vpop.f32.mrb[0].mxu0
    %v4447 = vadd.f32 0.0, %v4446
    %v4448 = vpop.f32.mrb[0].mxu0
    %v4449 = vpop.f32.mrb[0].mxu0
    %v4450 = vadd.f32 0.0, %v4449
    %v4451 = vpop.f32.mrb[0].mxu0
    %4452 = vmatprep.mubr.bf16.mxu0 0
    %4453 = vmatmul.mubr.bf16.gmra.mrb[0].mxu0 %v144
    %v4454 = vpop.f32.mrb[0].mxu0
    %v4455 = vadd.f32 0.0, %v4454
    %v4456 = vpop.f32.mrb[0].mxu0
    %v4457 = vpop.f32.mrb[0].mxu0
    %v4458 = vadd.f32 0.0, %v4457
    %v4459 = vpop.f32.mrb[0].mxu0
    %4460 = vmatprep.mubr.bf16.mxu0 0
    %4461 = vmatmul.mubr.bf16.gmra.mrb[0].mxu0 %v145
    %v4462 = vpop.f32.mrb[0].mxu0
    %v4463 = vadd.f32 0.0, %v4462
    %v4464 = vpop.f32.mrb[0].mxu0
    %v4465 = vpop.f32.mrb[0].mxu0
    %v4466 = vadd.f32 0.0, %v4465
    %v4467 = vpop.f32.mrb[0].mxu0
    %4468 = vmatprep.mubr.bf16.mxu0 0
    %4469 = vmatmul.mubr.bf16.gmra.mrb[0].mxu0 %v146
    %v4470 = vpop.f32.mrb[0].mxu0
    %v4471 = vadd.f32 0.0, %v4470
    %v4472 = vpop.f32.mrb[0].mxu0
    %v4473 = vpop.f32.mrb[0].mxu0
    %v4474 = vadd.f32 0.0, %v4473
    %v4475 = vpop.f32.mrb[0].mxu0
    %4476 = vmatprep.mubr.bf16.mxu0 0
    %4477 = vmatmul.mubr.bf16.gmra.mrb[0].mxu0 %v147
    %v4478 = vpop.f32.mrb[0].mxu0
    %v4479 = vadd.f32 0.0, %v4478
    %v4480 = vpop.f32.mrb[0].mxu0
    %v4481 = vpop.f32.mrb[0].mxu0
    %v4482 = vadd.f32 0.0, %v4481
    %v4483 = vpop.f32.mrb[0].mxu0
    %4484 = vdwg.mxu0
    %v4485 = vmul.f32 %v4423, 2.0
    %v4486 = vmul.f32 %v4426, 2.0
    %v4487 = vmul.f32 %v4431, 2.0
    %v4488 = vmul.f32 %v4434, 2.0
    %v4489 = vmul.f32 %v4439, 2.0
    %v4490 = vmul.f32 %v4442, 2.0
    %v4491 = vmul.f32 %v4447, 2.0
    %v4492 = vmul.f32 %v4450, 2.0
    %v4493 = vmul.f32 %v4455, 2.0
    %v4494 = vmul.f32 %v4458, 2.0
    %v4495 = vmul.f32 %v4463, 2.0
    %v4496 = vmul.f32 %v4466, 2.0
    %v4497 = vmul.f32 %v4471, 2.0
    %v4498 = vmul.f32 %v4474, 2.0
    %v4499 = vmul.f32 %v4479, 2.0
    %v4500 = vmul.f32 %v4482, 2.0
    %v4501 = vsub.f32 %v4485, %v4165
    %v4502 = vsub.f32 %v4486, %v4168
    %v4503 = vsub.f32 %v4487, %v4173
    %v4504 = vsub.f32 %v4488, %v4176
    %v4505 = vsub.f32 %v4489, %v4181
    %v4506 = vsub.f32 %v4490, %v4184
    %v4507 = vsub.f32 %v4491, %v4189
    %v4508 = vsub.f32 %v4492, %v4192
    %v4509 = vsub.f32 %v4493, %v4197
    %v4510 = vsub.f32 %v4494, %v4200
    %v4511 = vsub.f32 %v4495, %v4205
    %v4512 = vsub.f32 %v4496, %v4208
    %v4513 = vsub.f32 %v4497, %v4213
    %v4514 = vsub.f32 %v4498, %v4216
    %v4515 = vsub.f32 %v4499, %v4221
    %v4516 = vsub.f32 %v4500, %v4224
    %v4517 = vpack.c.bf16 %v4502, %v4501
    %v4518 = vpack.c.bf16 %v4504, %v4503
    %v4519 = vpack.c.bf16 %v4506, %v4505
    %v4520 = vpack.c.bf16 %v4508, %v4507
    %v4521 = vpack.c.bf16 %v4510, %v4509
    %v4522 = vpack.c.bf16 %v4512, %v4511
    %v4523 = vpack.c.bf16 %v4514, %v4513
    %v4524 = vpack.c.bf16 %v4516, %v4515
    %4525 = vst [vmem:[#allocation2 + $0x18] sm:$0xff] %v4517
    %4526 = vst [vmem:[#allocation2 + $0x58] sm:$0xff] %v4518
    %4527 = vst [vmem:[#allocation2 + $0x98] sm:$0xff] %v4519
    %4528 = vst [vmem:[#allocation2 + $0xd8] sm:$0xff] %v4520
    %4529 = vst [vmem:[#allocation2 + $0x118] sm:$0xff] %v4521
    %4530 = vst [vmem:[#allocation2 + $0x158] sm:$0xff] %v4522
    %4531 = vst [vmem:[#allocation2 + $0x198] sm:$0xff] %v4523
    %4532 = vst [vmem:[#allocation2 + $0x1d8] sm:$0xff] %v4524
    %4533 = vmatprep.subr.bf16.mxu0 0
    %4534 = vmatpush1.bf16.msra.mxu0 %v4517
    %4535 = vmatprep.subr.bf16.mxu0 0
    %4536 = vmatpush1.bf16.msra.mxu0 %v4518
    %4537 = vmatprep.subr.bf16.mxu0 0
    %4538 = vmatpush1.bf16.msra.mxu0 %v4519
    %4539 = vmatprep.subr.bf16.mxu0 0
    %4540 = vmatpush1.bf16.msra.mxu0 %v4520
    %4541 = vmatprep.subr.bf16.mxu0 0
    %4542 = vmatpush1.bf16.msra.mxu0 %v4521
    %4543 = vmatprep.subr.bf16.mxu0 0
    %4544 = vmatpush1.bf16.msra.mxu0 %v4522
    %4545 = vmatprep.subr.bf16.mxu0 0
    %4546 = vmatpush1.bf16.msra.mxu0 %v4523
    %4547 = vmatprep.subr.bf16.mxu0 0
    %4548 = vmatpush1.bf16.msra.mxu0 %v4524
    %4549 = vmatprep.subr.bf16.mxu0 0
    %4550 = vmatpush1.bf16.msra.mxu0 0
    %4551 = vmatprep.subr.bf16.mxu0 0
    %4552 = vmatpush1.bf16.msra.mxu0 0
    %4553 = vmatprep.subr.bf16.mxu0 0
    %4554 = vmatpush1.bf16.msra.mxu0 0
    %4555 = vmatprep.subr.bf16.mxu0 0
    %4556 = vmatpush1.bf16.msra.mxu0 0
    %4557 = vmatprep.subr.bf16.mxu0 0
    %4558 = vmatpush1.bf16.msra.mxu0 0
    %4559 = vmatprep.subr.bf16.mxu0 0
    %4560 = vmatpush1.bf16.msra.mxu0 0
    %4561 = vmatprep.subr.bf16.mxu0 0
    %4562 = vmatpush1.bf16.msra.mxu0 0
    %4563 = vmatprep.subr.bf16.mxu0 0
    %4564 = vmatpush1.bf16.msra.mxu0 0
    %4565 = vmatprep.mubr.bf16.mxu0 0
    %4566 = vmatmul.mubr.bf16.gmra.mrb[0].mxu0 %v140
    %v4567 = vpop.f32.mrb[0].mxu0
    %v4568 = vadd.f32 0.0, %v4567
    %v4569 = vpop.f32.mrb[0].mxu0
    %v4570 = vpop.f32.mrb[0].mxu0
    %v4571 = vadd.f32 0.0, %v4570
    %v4572 = vpop.f32.mrb[0].mxu0
    %4573 = vmatprep.mubr.bf16.mxu0 0
    %4574 = vmatmul.mubr.bf16.gmra.mrb[0].mxu0 %v141
    %v4575 = vpop.f32.mrb[0].mxu0
    %v4576 = vadd.f32 0.0, %v4575
    %v4577 = vpop.f32.mrb[0].mxu0
    %v4578 = vpop.f32.mrb[0].mxu0
    %v4579 = vadd.f32 0.0, %v4578
    %v4580 = vpop.f32.mrb[0].mxu0
    %4581 = vmatprep.mubr.bf16.mxu0 0
    %4582 = vmatmul.mubr.bf16.gmra.mrb[0].mxu0 %v142
    %v4583 = vpop.f32.mrb[0].mxu0
    %v4584 = vadd.f32 0.0, %v4583
    %v4585 = vpop.f32.mrb[0].mxu0
    %v4586 = vpop.f32.mrb[0].mxu0
    %v4587 = vadd.f32 0.0, %v4586
    %v4588 = vpop.f32.mrb[0].mxu0
    %4589 = vmatprep.mubr.bf16.mxu0 0
    %4590 = vmatmul.mubr.bf16.gmra.mrb[0].mxu0 %v143
    %v4591 = vpop.f32.mrb[0].mxu0
    %v4592 = vadd.f32 0.0, %v4591
    %v4593 = vpop.f32.mrb[0].mxu0
    %v4594 = vpop.f32.mrb[0].mxu0
    %v4595 = vadd.f32 0.0, %v4594
    %v4596 = vpop.f32.mrb[0].mxu0
    %4597 = vmatprep.mubr.bf16.mxu0 0
    %4598 = vmatmul.mubr.bf16.gmra.mrb[0].mxu0 %v144
    %v4599 = vpop.f32.mrb[0].mxu0
    %v4600 = vadd.f32 0.0, %v4599
    %v4601 = vpop.f32.mrb[0].mxu0
    %v4602 = vpop.f32.mrb[0].mxu0
    %v4603 = vadd.f32 0.0, %v4602
    %v4604 = vpop.f32.mrb[0].mxu0
    %4605 = vmatprep.mubr.bf16.mxu0 0
    %4606 = vmatmul.mubr.bf16.gmra.mrb[0].mxu0 %v145
    %v4607 = vpop.f32.mrb[0].mxu0
    %v4608 = vadd.f32 0.0, %v4607
    %v4609 = vpop.f32.mrb[0].mxu0
    %v4610 = vpop.f32.mrb[0].mxu0
    %v4611 = vadd.f32 0.0, %v4610
    %v4612 = vpop.f32.mrb[0].mxu0
    %4613 = vmatprep.mubr.bf16.mxu0 0
    %4614 = vmatmul.mubr.bf16.gmra.mrb[0].mxu0 %v146
    %v4615 = vpop.f32.mrb[0].mxu0
    %v4616 = vadd.f32 0.0, %v4615
    %v4617 = vpop.f32.mrb[0].mxu0
    %v4618 = vpop.f32.mrb[0].mxu0
    %v4619 = vadd.f32 0.0, %v4618
    %v4620 = vpop.f32.mrb[0].mxu0
    %4621 = vmatprep.mubr.bf16.mxu0 0
    %4622 = vmatmul.mubr.bf16.gmra.mrb[0].mxu0 %v147
    %v4623 = vpop.f32.mrb[0].mxu0
    %v4624 = vadd.f32 0.0, %v4623
    %v4625 = vpop.f32.mrb[0].mxu0
    %v4626 = vpop.f32.mrb[0].mxu0
    %v4627 = vadd.f32 0.0, %v4626
    %v4628 = vpop.f32.mrb[0].mxu0
    %4629 = vdwg.mxu0
    %v4630 = vmul.f32 %v4568, 2.0
    %v4631 = vmul.f32 %v4571, 2.0
    %v4632 = vmul.f32 %v4576, 2.0
    %v4633 = vmul.f32 %v4579, 2.0
    %v4634 = vmul.f32 %v4584, 2.0
    %v4635 = vmul.f32 %v4587, 2.0
    %v4636 = vmul.f32 %v4592, 2.0
    %v4637 = vmul.f32 %v4595, 2.0
    %v4638 = vmul.f32 %v4600, 2.0
    %v4639 = vmul.f32 %v4603, 2.0
    %v4640 = vmul.f32 %v4608, 2.0
    %v4641 = vmul.f32 %v4611, 2.0
    %v4642 = vmul.f32 %v4616, 2.0
    %v4643 = vmul.f32 %v4619, 2.0
    %v4644 = vmul.f32 %v4624, 2.0
    %v4645 = vmul.f32 %v4627, 2.0
    %v4646 = vsub.f32 %v4630, %v4356
    %v4647 = vsub.f32 %v4631, %v4357
    %v4648 = vsub.f32 %v4632, %v4358
    %v4649 = vsub.f32 %v4633, %v4359
    %v4650 = vsub.f32 %v4634, %v4360
    %v4651 = vsub.f32 %v4635, %v4361
    %v4652 = vsub.f32 %v4636, %v4362
    %v4653 = vsub.f32 %v4637, %v4363
    %v4654 = vsub.f32 %v4638, %v4364
    %v4655 = vsub.f32 %v4639, %v4365
    %v4656 = vsub.f32 %v4640, %v4366
    %v4657 = vsub.f32 %v4641, %v4367
    %v4658 = vsub.f32 %v4642, %v4368
    %v4659 = vsub.f32 %v4643, %v4369
    %v4660 = vsub.f32 %v4644, %v4370
    %v4661 = vsub.f32 %v4645, %v4371
    %v4662 = vpack.c.bf16 %v4647, %v4646
    %v4663 = vpack.c.bf16 %v4649, %v4648
    %v4664 = vpack.c.bf16 %v4651, %v4650
    %v4665 = vpack.c.bf16 %v4653, %v4652
    %v4666 = vpack.c.bf16 %v4655, %v4654
    %v4667 = vpack.c.bf16 %v4657, %v4656
    %v4668 = vpack.c.bf16 %v4659, %v4658
    %v4669 = vpack.c.bf16 %v4661, %v4660
    %4670 = vst [vmem:[#allocation2 + $0x20] sm:$0xff] %v4662
    %4671 = vst [vmem:[#allocation2 + $0x60] sm:$0xff] %v4663
    %4672 = vst [vmem:[#allocation2 + $0xa0] sm:$0xff] %v4664
    %4673 = vst [vmem:[#allocation2 + $0xe0] sm:$0xff] %v4665
    %4674 = vst [vmem:[#allocation2 + $0x120] sm:$0xff] %v4666
    %4675 = vst [vmem:[#allocation2 + $0x160] sm:$0xff] %v4667
    %4676 = vst [vmem:[#allocation2 + $0x1a0] sm:$0xff] %v4668
    %4677 = vst [vmem:[#allocation2 + $0x1e0] sm:$0xff] %v4669
    %4678 = vmatprep.subr.bf16.mxu0 0
    %4679 = vmatpush1.bf16.msra.mxu0 %v4662
    %4680 = vmatprep.subr.bf16.mxu0 0
    %4681 = vmatpush1.bf16.msra.mxu0 %v4663
    %4682 = vmatprep.subr.bf16.mxu0 0
    %4683 = vmatpush1.bf16.msra.mxu0 %v4664
    %4684 = vmatprep.subr.bf16.mxu0 0
    %4685 = vmatpush1.bf16.msra.mxu0 %v4665
    %4686 = vmatprep.subr.bf16.mxu0 0
    %4687 = vmatpush1.bf16.msra.mxu0 %v4666
    %4688 = vmatprep.subr.bf16.mxu0 0
    %4689 = vmatpush1.bf16.msra.mxu0 %v4667
    %4690 = vmatprep.subr.bf16.mxu0 0
    %4691 = vmatpush1.bf16.msra.mxu0 %v4668
    %4692 = vmatprep.subr.bf16.mxu0 0
    %4693 = vmatpush1.bf16.msra.mxu0 %v4669
    %4694 = vmatprep.subr.bf16.mxu0 0
    %4695 = vmatpush1.bf16.msra.mxu0 0
    %4696 = vmatprep.subr.bf16.mxu0 0
    %4697 = vmatpush1.bf16.msra.mxu0 0
    %4698 = vmatprep.subr.bf16.mxu0 0
    %4699 = vmatpush1.bf16.msra.mxu0 0
    %4700 = vmatprep.subr.bf16.mxu0 0
    %4701 = vmatpush1.bf16.msra.mxu0 0
    %4702 = vmatprep.subr.bf16.mxu0 0
    %4703 = vmatpush1.bf16.msra.mxu0 0
    %4704 = vmatprep.subr.bf16.mxu0 0
    %4705 = vmatpush1.bf16.msra.mxu0 0
    %4706 = vmatprep.subr.bf16.mxu0 0
    %4707 = vmatpush1.bf16.msra.mxu0 0
    %4708 = vmatprep.subr.bf16.mxu0 0
    %4709 = vmatpush1.bf16.msra.mxu0 0
    %4710 = vmatprep.mubr.bf16.mxu0 0
    %4711 = vmatmul.mubr.bf16.gmra.mrb[0].mxu0 %v140
    %v4712 = vpop.f32.mrb[0].mxu0
    %v4713 = vadd.f32 0.0, %v4712
    %v4714 = vpop.f32.mrb[0].mxu0
    %v4715 = vpop.f32.mrb[0].mxu0
    %v4716 = vadd.f32 0.0, %v4715
    %v4717 = vpop.f32.mrb[0].mxu0
    %4718 = vmatprep.mubr.bf16.mxu0 0
    %4719 = vmatmul.mubr.bf16.gmra.mrb[0].mxu0 %v141
    %v4720 = vpop.f32.mrb[0].mxu0
    %v4721 = vadd.f32 0.0, %v4720
    %v4722 = vpop.f32.mrb[0].mxu0
    %v4723 = vpop.f32.mrb[0].mxu0
    %v4724 = vadd.f32 0.0, %v4723
    %v4725 = vpop.f32.mrb[0].mxu0
    %4726 = vmatprep.mubr.bf16.mxu0 0
    %4727 = vmatmul.mubr.bf16.gmra.mrb[0].mxu0 %v142
    %v4728 = vpop.f32.mrb[0].mxu0
    %v4729 = vadd.f32 0.0, %v4728
    %v4730 = vpop.f32.mrb[0].mxu0
    %v4731 = vpop.f32.mrb[0].mxu0
    %v4732 = vadd.f32 0.0, %v4731
    %v4733 = vpop.f32.mrb[0].mxu0
    %4734 = vmatprep.mubr.bf16.mxu0 0
    %4735 = vmatmul.mubr.bf16.gmra.mrb[0].mxu0 %v143
    %v4736 = vpop.f32.mrb[0].mxu0
    %v4737 = vadd.f32 0.0, %v4736
    %v4738 = vpop.f32.mrb[0].mxu0
    %v4739 = vpop.f32.mrb[0].mxu0
    %v4740 = vadd.f32 0.0, %v4739
    %v4741 = vpop.f32.mrb[0].mxu0
    %4742 = vmatprep.mubr.bf16.mxu0 0
    %4743 = vmatmul.mubr.bf16.gmra.mrb[0].mxu0 %v144
    %v4744 = vpop.f32.mrb[0].mxu0
    %v4745 = vadd.f32 0.0, %v4744
    %v4746 = vpop.f32.mrb[0].mxu0
    %v4747 = vpop.f32.mrb[0].mxu0
    %v4748 = vadd.f32 0.0, %v4747
    %v4749 = vpop.f32.mrb[0].mxu0
    %4750 = vmatprep.mubr.bf16.mxu0 0
    %4751 = vmatmul.mubr.bf16.gmra.mrb[0].mxu0 %v145
    %v4752 = vpop.f32.mrb[0].mxu0
    %v4753 = vadd.f32 0.0, %v4752
    %v4754 = vpop.f32.mrb[0].mxu0
    %v4755 = vpop.f32.mrb[0].mxu0
    %v4756 = vadd.f32 0.0, %v4755
    %v4757 = vpop.f32.mrb[0].mxu0
    %4758 = vmatprep.mubr.bf16.mxu0 0
    %4759 = vmatmul.mubr.bf16.gmra.mrb[0].mxu0 %v146
    %v4760 = vpop.f32.mrb[0].mxu0
    %v4761 = vadd.f32 0.0, %v4760
    %v4762 = vpop.f32.mrb[0].mxu0
    %v4763 = vpop.f32.mrb[0].mxu0
    %v4764 = vadd.f32 0.0, %v4763
    %v4765 = vpop.f32.mrb[0].mxu0
    %4766 = vmatprep.mubr.bf16.mxu0 0
    %4767 = vmatmul.mubr.bf16.gmra.mrb[0].mxu0 %v147
    %v4768 = vpop.f32.mrb[0].mxu0
    %v4769 = vadd.f32 0.0, %v4768
    %v4770 = vpop.f32.mrb[0].mxu0
    %v4771 = vpop.f32.mrb[0].mxu0
    %v4772 = vadd.f32 0.0, %v4771
    %v4773 = vpop.f32.mrb[0].mxu0
    %4774 = vdwg.mxu0
    %v4775 = vmul.f32 %v4713, 2.0
    %v4776 = vmul.f32 %v4716, 2.0
    %v4777 = vmul.f32 %v4721, 2.0
    %v4778 = vmul.f32 %v4724, 2.0
    %v4779 = vmul.f32 %v4729, 2.0
    %v4780 = vmul.f32 %v4732, 2.0
    %v4781 = vmul.f32 %v4737, 2.0
    %v4782 = vmul.f32 %v4740, 2.0
    %v4783 = vmul.f32 %v4745, 2.0
    %v4784 = vmul.f32 %v4748, 2.0
    %v4785 = vmul.f32 %v4753, 2.0
    %v4786 = vmul.f32 %v4756, 2.0
    %v4787 = vmul.f32 %v4761, 2.0
    %v4788 = vmul.f32 %v4764, 2.0
    %v4789 = vmul.f32 %v4769, 2.0
    %v4790 = vmul.f32 %v4772, 2.0
    %v4791 = vsub.f32 %v4775, %v4501
    %v4792 = vsub.f32 %v4776, %v4502
    %v4793 = vsub.f32 %v4777, %v4503
    %v4794 = vsub.f32 %v4778, %v4504
    %v4795 = vsub.f32 %v4779, %v4505
    %v4796 = vsub.f32 %v4780, %v4506
    %v4797 = vsub.f32 %v4781, %v4507
    %v4798 = vsub.f32 %v4782, %v4508
    %v4799 = vsub.f32 %v4783, %v4509
    %v4800 = vsub.f32 %v4784, %v4510
    %v4801 = vsub.f32 %v4785, %v4511
    %v4802 = vsub.f32 %v4786, %v4512
    %v4803 = vsub.f32 %v4787, %v4513
    %v4804 = vsub.f32 %v4788, %v4514
    %v4805 = vsub.f32 %v4789, %v4515
    %v4806 = vsub.f32 %v4790, %v4516
    %v4807 = vpack.c.bf16 %v4792, %v4791
    %v4808 = vpack.c.bf16 %v4794, %v4793
    %v4809 = vpack.c.bf16 %v4796, %v4795
    %v4810 = vpack.c.bf16 %v4798, %v4797
    %v4811 = vpack.c.bf16 %v4800, %v4799
    %v4812 = vpack.c.bf16 %v4802, %v4801
    %v4813 = vpack.c.bf16 %v4804, %v4803
    %v4814 = vpack.c.bf16 %v4806, %v4805
    %4815 = vst [vmem:[#allocation2 + $0x28] sm:$0xff] %v4807
    %4816 = vst [vmem:[#allocation2 + $0x68] sm:$0xff] %v4808
    %4817 = vst [vmem:[#allocation2 + $0xa8] sm:$0xff] %v4809
    %4818 = vst [vmem:[#allocation2 + $0xe8] sm:$0xff] %v4810
    %4819 = vst [vmem:[#allocation2 + $0x128] sm:$0xff] %v4811
    %4820 = vst [vmem:[#allocation2 + $0x168] sm:$0xff] %v4812
    %4821 = vst [vmem:[#allocation2 + $0x1a8] sm:$0xff] %v4813
    %4822 = vst [vmem:[#allocation2 + $0x1e8] sm:$0xff] %v4814
    %4823 = vmatprep.subr.bf16.mxu0 0
    %4824 = vmatpush1.bf16.msra.mxu0 %v4807
    %4825 = vmatprep.subr.bf16.mxu0 0
    %4826 = vmatpush1.bf16.msra.mxu0 %v4808
    %4827 = vmatprep.subr.bf16.mxu0 0
    %4828 = vmatpush1.bf16.msra.mxu0 %v4809
    %4829 = vmatprep.subr.bf16.mxu0 0
    %4830 = vmatpush1.bf16.msra.mxu0 %v4810
    %4831 = vmatprep.subr.bf16.mxu0 0
    %4832 = vmatpush1.bf16.msra.mxu0 %v4811
    %4833 = vmatprep.subr.bf16.mxu0 0
    %4834 = vmatpush1.bf16.msra.mxu0 %v4812
    %4835 = vmatprep.subr.bf16.mxu0 0
    %4836 = vmatpush1.bf16.msra.mxu0 %v4813
    %4837 = vmatprep.subr.bf16.mxu0 0
    %4838 = vmatpush1.bf16.msra.mxu0 %v4814
    %4839 = vmatprep.subr.bf16.mxu0 0
    %4840 = vmatpush1.bf16.msra.mxu0 0
    %4841 = vmatprep.subr.bf16.mxu0 0
    %4842 = vmatpush1.bf16.msra.mxu0 0
    %4843 = vmatprep.subr.bf16.mxu0 0
    %4844 = vmatpush1.bf16.msra.mxu0 0
    %4845 = vmatprep.subr.bf16.mxu0 0
    %4846 = vmatpush1.bf16.msra.mxu0 0
    %4847 = vmatprep.subr.bf16.mxu0 0
    %4848 = vmatpush1.bf16.msra.mxu0 0
    %4849 = vmatprep.subr.bf16.mxu0 0
    %4850 = vmatpush1.bf16.msra.mxu0 0
    %4851 = vmatprep.subr.bf16.mxu0 0
    %4852 = vmatpush1.bf16.msra.mxu0 0
    %4853 = vmatprep.subr.bf16.mxu0 0
    %4854 = vmatpush1.bf16.msra.mxu0 0
    %4855 = vmatprep.mubr.bf16.mxu0 0
    %4856 = vmatmul.mubr.bf16.gmra.mrb[0].mxu0 %v140
    %v4857 = vpop.f32.mrb[0].mxu0
    %v4858 = vadd.f32 0.0, %v4857
    %v4859 = vpop.f32.mrb[0].mxu0
    %v4860 = vpop.f32.mrb[0].mxu0
    %v4861 = vadd.f32 0.0, %v4860
    %v4862 = vpop.f32.mrb[0].mxu0
    %4863 = vmatprep.mubr.bf16.mxu0 0
    %4864 = vmatmul.mubr.bf16.gmra.mrb[0].mxu0 %v141
    %v4865 = vpop.f32.mrb[0].mxu0
    %v4866 = vadd.f32 0.0, %v4865
    %v4867 = vpop.f32.mrb[0].mxu0
    %v4868 = vpop.f32.mrb[0].mxu0
    %v4869 = vadd.f32 0.0, %v4868
    %v4870 = vpop.f32.mrb[0].mxu0
    %4871 = vmatprep.mubr.bf16.mxu0 0
    %4872 = vmatmul.mubr.bf16.gmra.mrb[0].mxu0 %v142
    %v4873 = vpop.f32.mrb[0].mxu0
    %v4874 = vadd.f32 0.0, %v4873
    %v4875 = vpop.f32.mrb[0].mxu0
    %v4876 = vpop.f32.mrb[0].mxu0
    %v4877 = vadd.f32 0.0, %v4876
    %v4878 = vpop.f32.mrb[0].mxu0
    %4879 = vmatprep.mubr.bf16.mxu0 0
    %4880 = vmatmul.mubr.bf16.gmra.mrb[0].mxu0 %v143
    %v4881 = vpop.f32.mrb[0].mxu0
    %v4882 = vadd.f32 0.0, %v4881
    %v4883 = vpop.f32.mrb[0].mxu0
    %v4884 = vpop.f32.mrb[0].mxu0
    %v4885 = vadd.f32 0.0, %v4884
    %v4886 = vpop.f32.mrb[0].mxu0
    %4887 = vmatprep.mubr.bf16.mxu0 0
    %4888 = vmatmul.mubr.bf16.gmra.mrb[0].mxu0 %v144
    %v4889 = vpop.f32.mrb[0].mxu0
    %v4890 = vadd.f32 0.0, %v4889
    %v4891 = vpop.f32.mrb[0].mxu0
    %v4892 = vpop.f32.mrb[0].mxu0
    %v4893 = vadd.f32 0.0, %v4892
    %v4894 = vpop.f32.mrb[0].mxu0
    %4895 = vmatprep.mubr.bf16.mxu0 0
    %4896 = vmatmul.mubr.bf16.gmra.mrb[0].mxu0 %v145
    %v4897 = vpop.f32.mrb[0].mxu0
    %v4898 = vadd.f32 0.0, %v4897
    %v4899 = vpop.f32.mrb[0].mxu0
    %v4900 = vpop.f32.mrb[0].mxu0
    %v4901 = vadd.f32 0.0, %v4900
    %v4902 = vpop.f32.mrb[0].mxu0
    %4903 = vmatprep.mubr.bf16.mxu0 0
    %4904 = vmatmul.mubr.bf16.gmra.mrb[0].mxu0 %v146
    %v4905 = vpop.f32.mrb[0].mxu0
    %v4906 = vadd.f32 0.0, %v4905
    %v4907 = vpop.f32.mrb[0].mxu0
    %v4908 = vpop.f32.mrb[0].mxu0
    %v4909 = vadd.f32 0.0, %v4908
    %v4910 = vpop.f32.mrb[0].mxu0
    %4911 = vmatprep.mubr.bf16.mxu0 0
    %4912 = vmatmul.mubr.bf16.gmra.mrb[0].mxu0 %v147
    %v4913 = vpop.f32.mrb[0].mxu0
    %v4914 = vadd.f32 0.0, %v4913
    %v4915 = vpop.f32.mrb[0].mxu0
    %v4916 = vpop.f32.mrb[0].mxu0
    %v4917 = vadd.f32 0.0, %v4916
    %v4918 = vpop.f32.mrb[0].mxu0
    %4919 = vdwg.mxu0
    %v4920 = vmul.f32 %v4858, 2.0
    %v4921 = vmul.f32 %v4861, 2.0
    %v4922 = vmul.f32 %v4866, 2.0
    %v4923 = vmul.f32 %v4869, 2.0
    %v4924 = vmul.f32 %v4874, 2.0
    %v4925 = vmul.f32 %v4877, 2.0
    %v4926 = vmul.f32 %v4882, 2.0
    %v4927 = vmul.f32 %v4885, 2.0
    %v4928 = vmul.f32 %v4890, 2.0
    %v4929 = vmul.f32 %v4893, 2.0
    %v4930 = vmul.f32 %v4898, 2.0
    %v4931 = vmul.f32 %v4901, 2.0
    %v4932 = vmul.f32 %v4906, 2.0
    %v4933 = vmul.f32 %v4909, 2.0
    %v4934 = vmul.f32 %v4914, 2.0
    %v4935 = vmul.f32 %v4917, 2.0
    %v4936 = vsub.f32 %v4920, %v4646
    %v4937 = vsub.f32 %v4921, %v4647
    %v4938 = vsub.f32 %v4922, %v4648
    %v4939 = vsub.f32 %v4923, %v4649
    %v4940 = vsub.f32 %v4924, %v4650
    %v4941 = vsub.f32 %v4925, %v4651
    %v4942 = vsub.f32 %v4926, %v4652
    %v4943 = vsub.f32 %v4927, %v4653
    %v4944 = vsub.f32 %v4928, %v4654
    %v4945 = vsub.f32 %v4929, %v4655
    %v4946 = vsub.f32 %v4930, %v4656
    %v4947 = vsub.f32 %v4931, %v4657
    %v4948 = vsub.f32 %v4932, %v4658
    %v4949 = vsub.f32 %v4933, %v4659
    %v4950 = vsub.f32 %v4934, %v4660
    %v4951 = vsub.f32 %v4935, %v4661
    %v4952 = vpack.c.bf16 %v4937, %v4936
    %v4953 = vpack.c.bf16 %v4939, %v4938
    %v4954 = vpack.c.bf16 %v4941, %v4940
    %v4955 = vpack.c.bf16 %v4943, %v4942
    %v4956 = vpack.c.bf16 %v4945, %v4944
    %v4957 = vpack.c.bf16 %v4947, %v4946
    %v4958 = vpack.c.bf16 %v4949, %v4948
    %v4959 = vpack.c.bf16 %v4951, %v4950
    %4960 = vst [vmem:[#allocation2 + $0x30] sm:$0xff] %v4952
    %4961 = vst [vmem:[#allocation2 + $0x70] sm:$0xff] %v4953
    %4962 = vst [vmem:[#allocation2 + $0xb0] sm:$0xff] %v4954
    %4963 = vst [vmem:[#allocation2 + $0xf0] sm:$0xff] %v4955
    %4964 = vst [vmem:[#allocation2 + $0x130] sm:$0xff] %v4956
    %4965 = vst [vmem:[#allocation2 + $0x170] sm:$0xff] %v4957
    %4966 = vst [vmem:[#allocation2 + $0x1b0] sm:$0xff] %v4958
    %4967 = vst [vmem:[#allocation2 + $0x1f0] sm:$0xff] %v4959
    %4968 = vmatprep.subr.bf16.mxu0 0
    %4969 = vmatpush1.bf16.msra.mxu0 %v4952
    %4970 = vmatprep.subr.bf16.mxu0 0
    %4971 = vmatpush1.bf16.msra.mxu0 %v4953
    %4972 = vmatprep.subr.bf16.mxu0 0
    %4973 = vmatpush1.bf16.msra.mxu0 %v4954
    %4974 = vmatprep.subr.bf16.mxu0 0
    %4975 = vmatpush1.bf16.msra.mxu0 %v4955
    %4976 = vmatprep.subr.bf16.mxu0 0
    %4977 = vmatpush1.bf16.msra.mxu0 %v4956
    %4978 = vmatprep.subr.bf16.mxu0 0
    %4979 = vmatpush1.bf16.msra.mxu0 %v4957
    %4980 = vmatprep.subr.bf16.mxu0 0
    %4981 = vmatpush1.bf16.msra.mxu0 %v4958
    %4982 = vmatprep.subr.bf16.mxu0 0
    %4983 = vmatpush1.bf16.msra.mxu0 %v4959
    %4984 = vmatprep.subr.bf16.mxu0 0
    %4985 = vmatpush1.bf16.msra.mxu0 0
    %4986 = vmatprep.subr.bf16.mxu0 0
    %4987 = vmatpush1.bf16.msra.mxu0 0
    %4988 = vmatprep.subr.bf16.mxu0 0
    %4989 = vmatpush1.bf16.msra.mxu0 0
    %4990 = vmatprep.subr.bf16.mxu0 0
    %4991 = vmatpush1.bf16.msra.mxu0 0
    %4992 = vmatprep.subr.bf16.mxu0 0
    %4993 = vmatpush1.bf16.msra.mxu0 0
    %4994 = vmatprep.subr.bf16.mxu0 0
    %4995 = vmatpush1.bf16.msra.mxu0 0
    %4996 = vmatprep.subr.bf16.mxu0 0
    %4997 = vmatpush1.bf16.msra.mxu0 0
    %4998 = vmatprep.subr.bf16.mxu0 0
    %4999 = vmatpush1.bf16.msra.mxu0 0
    %5000 = vmatprep.mubr.bf16.mxu0 0
    %5001 = vmatmul.mubr.bf16.gmra.mrb[0].mxu0 %v140
    %v5002 = vpop.f32.mrb[0].mxu0
    %v5003 = vadd.f32 0.0, %v5002
    %v5004 = vpop.f32.mrb[0].mxu0
    %v5005 = vpop.f32.mrb[0].mxu0
    %v5006 = vadd.f32 0.0, %v5005
    %v5007 = vpop.f32.mrb[0].mxu0
    %5008 = vmatprep.mubr.bf16.mxu0 0
    %5009 = vmatmul.mubr.bf16.gmra.mrb[0].mxu0 %v141
    %v5010 = vpop.f32.mrb[0].mxu0
    %v5011 = vadd.f32 0.0, %v5010
    %v5012 = vpop.f32.mrb[0].mxu0
    %v5013 = vpop.f32.mrb[0].mxu0
    %v5014 = vadd.f32 0.0, %v5013
    %v5015 = vpop.f32.mrb[0].mxu0
    %5016 = vmatprep.mubr.bf16.mxu0 0
    %5017 = vmatmul.mubr.bf16.gmra.mrb[0].mxu0 %v142
    %v5018 = vpop.f32.mrb[0].mxu0
    %v5019 = vadd.f32 0.0, %v5018
    %v5020 = vpop.f32.mrb[0].mxu0
    %v5021 = vpop.f32.mrb[0].mxu0
    %v5022 = vadd.f32 0.0, %v5021
    %v5023 = vpop.f32.mrb[0].mxu0
    %5024 = vmatprep.mubr.bf16.mxu0 0
    %5025 = vmatmul.mubr.bf16.gmra.mrb[0].mxu0 %v143
    %v5026 = vpop.f32.mrb[0].mxu0
    %v5027 = vadd.f32 0.0, %v5026
    %v5028 = vpop.f32.mrb[0].mxu0
    %v5029 = vpop.f32.mrb[0].mxu0
    %v5030 = vadd.f32 0.0, %v5029
    %v5031 = vpop.f32.mrb[0].mxu0
    %5032 = vmatprep.mubr.bf16.mxu0 0
    %5033 = vmatmul.mubr.bf16.gmra.mrb[0].mxu0 %v144
    %v5034 = vpop.f32.mrb[0].mxu0
    %v5035 = vadd.f32 0.0, %v5034
    %v5036 = vpop.f32.mrb[0].mxu0
    %v5037 = vpop.f32.mrb[0].mxu0
    %v5038 = vadd.f32 0.0, %v5037
    %v5039 = vpop.f32.mrb[0].mxu0
    %5040 = vmatprep.mubr.bf16.mxu0 0
    %5041 = vmatmul.mubr.bf16.gmra.mrb[0].mxu0 %v145
    %v5042 = vpop.f32.mrb[0].mxu0
    %v5043 = vadd.f32 0.0, %v5042
    %v5044 = vpop.f32.mrb[0].mxu0
    %v5045 = vpop.f32.mrb[0].mxu0
    %v5046 = vadd.f32 0.0, %v5045
    %v5047 = vpop.f32.mrb[0].mxu0
    %5048 = vmatprep.mubr.bf16.mxu0 0
    %5049 = vmatmul.mubr.bf16.gmra.mrb[0].mxu0 %v146
    %v5050 = vpop.f32.mrb[0].mxu0
    %v5051 = vadd.f32 0.0, %v5050
    %v5052 = vpop.f32.mrb[0].mxu0
    %v5053 = vpop.f32.mrb[0].mxu0
    %v5054 = vadd.f32 0.0, %v5053
    %v5055 = vpop.f32.mrb[0].mxu0
    %5056 = vmatprep.mubr.bf16.mxu0 0
    %5057 = vmatmul.mubr.bf16.gmra.mrb[0].mxu0 %v147
    %v5058 = vpop.f32.mrb[0].mxu0
    %v5059 = vadd.f32 0.0, %v5058
    %v5060 = vpop.f32.mrb[0].mxu0
    %v5061 = vpop.f32.mrb[0].mxu0
    %v5062 = vadd.f32 0.0, %v5061
    %v5063 = vpop.f32.mrb[0].mxu0
    %5064 = vdwg.mxu0
    %v5065 = vmul.f32 %v5003, 2.0
    %v5066 = vmul.f32 %v5006, 2.0
    %v5067 = vmul.f32 %v5011, 2.0
    %v5068 = vmul.f32 %v5014, 2.0
    %v5069 = vmul.f32 %v5019, 2.0
    %v5070 = vmul.f32 %v5022, 2.0
    %v5071 = vmul.f32 %v5027, 2.0
    %v5072 = vmul.f32 %v5030, 2.0
    %v5073 = vmul.f32 %v5035, 2.0
    %v5074 = vmul.f32 %v5038, 2.0
    %v5075 = vmul.f32 %v5043, 2.0
    %v5076 = vmul.f32 %v5046, 2.0
    %v5077 = vmul.f32 %v5051, 2.0
    %v5078 = vmul.f32 %v5054, 2.0
    %v5079 = vmul.f32 %v5059, 2.0
    %v5080 = vmul.f32 %v5062, 2.0
    %v5081 = vsub.f32 %v5065, %v4791
    %v5082 = vsub.f32 %v5066, %v4792
    %v5083 = vsub.f32 %v5067, %v4793
    %v5084 = vsub.f32 %v5068, %v4794
    %v5085 = vsub.f32 %v5069, %v4795
    %v5086 = vsub.f32 %v5070, %v4796
    %v5087 = vsub.f32 %v5071, %v4797
    %v5088 = vsub.f32 %v5072, %v4798
    %v5089 = vsub.f32 %v5073, %v4799
    %v5090 = vsub.f32 %v5074, %v4800
    %v5091 = vsub.f32 %v5075, %v4801
    %v5092 = vsub.f32 %v5076, %v4802
    %v5093 = vsub.f32 %v5077, %v4803
    %v5094 = vsub.f32 %v5078, %v4804
    %v5095 = vsub.f32 %v5079, %v4805
    %v5096 = vsub.f32 %v5080, %v4806
    %v5097 = vpack.c.bf16 %v5082, %v5081
    %v5098 = vpack.c.bf16 %v5084, %v5083
    %v5099 = vpack.c.bf16 %v5086, %v5085
    %v5100 = vpack.c.bf16 %v5088, %v5087
    %v5101 = vpack.c.bf16 %v5090, %v5089
    %v5102 = vpack.c.bf16 %v5092, %v5091
    %v5103 = vpack.c.bf16 %v5094, %v5093
    %v5104 = vpack.c.bf16 %v5096, %v5095
    %5105 = vst [vmem:[#allocation2 + $0x38] sm:$0xff] %v5097
    %5106 = vst [vmem:[#allocation2 + $0x78] sm:$0xff] %v5098
    %5107 = vst [vmem:[#allocation2 + $0xb8] sm:$0xff] %v5099
    %5108 = vst [vmem:[#allocation2 + $0xf8] sm:$0xff] %v5100
    %5109 = vst [vmem:[#allocation2 + $0x138] sm:$0xff] %v5101
    %5110 = vst [vmem:[#allocation2 + $0x178] sm:$0xff] %v5102
    %5111 = vst [vmem:[#allocation2 + $0x1b8] sm:$0xff] %v5103
    %5112 = vst [vmem:[#allocation2 + $0x1f8] sm:$0xff] %v5104
    %v5113 = vld [vmem:[#allocation2] sm:$0xff]
    %v5114 = vld [vmem:[#allocation2 + $0x8] sm:$0xff]
    %v5115 = vld [vmem:[#allocation2 + $0x10] sm:$0xff]
    %v5116 = vld [vmem:[#allocation2 + $0x18] sm:$0xff]
    %v5117 = vld [vmem:[#allocation2 + $0x20] sm:$0xff]
    %v5118 = vld [vmem:[#allocation2 + $0x28] sm:$0xff]
    %v5119 = vld [vmem:[#allocation2 + $0x30] sm:$0xff]
    %v5120 = vld [vmem:[#allocation2 + $0x38] sm:$0xff]
    %v5121 = vld [vmem:[#allocation2 + $0x40] sm:$0xff]
    %v5122 = vld [vmem:[#allocation2 + $0x48] sm:$0xff]
    %v5123 = vld [vmem:[#allocation2 + $0x50] sm:$0xff]
    %v5124 = vld [vmem:[#allocation2 + $0x58] sm:$0xff]
    %v5125 = vld [vmem:[#allocation2 + $0x60] sm:$0xff]
    %v5126 = vld [vmem:[#allocation2 + $0x68] sm:$0xff]
    %v5127 = vld [vmem:[#allocation2 + $0x70] sm:$0xff]
    %v5128 = vld [vmem:[#allocation2 + $0x78] sm:$0xff]
    %v5129 = vld [vmem:[#allocation2 + $0x80] sm:$0xff]
    %v5130 = vld [vmem:[#allocation2 + $0x88] sm:$0xff]
    %v5131 = vld [vmem:[#allocation2 + $0x90] sm:$0xff]
    %v5132 = vld [vmem:[#allocation2 + $0x98] sm:$0xff]
    %v5133 = vld [vmem:[#allocation2 + $0xa0] sm:$0xff]
    %v5134 = vld [vmem:[#allocation2 + $0xa8] sm:$0xff]
    %v5135 = vld [vmem:[#allocation2 + $0xb0] sm:$0xff]
    %v5136 = vld [vmem:[#allocation2 + $0xb8] sm:$0xff]
    %v5137 = vld [vmem:[#allocation2 + $0xc0] sm:$0xff]
    %v5138 = vld [vmem:[#allocation2 + $0xc8] sm:$0xff]
    %v5139 = vld [vmem:[#allocation2 + $0xd0] sm:$0xff]
    %v5140 = vld [vmem:[#allocation2 + $0xd8] sm:$0xff]
    %v5141 = vld [vmem:[#allocation2 + $0xe0] sm:$0xff]
    %v5142 = vld [vmem:[#allocation2 + $0xe8] sm:$0xff]
    %v5143 = vld [vmem:[#allocation2 + $0xf0] sm:$0xff]
    %v5144 = vld [vmem:[#allocation2 + $0xf8] sm:$0xff]
    %v5145 = vld [vmem:[#allocation2 + $0x100] sm:$0xff]
    %v5146 = vld [vmem:[#allocation2 + $0x108] sm:$0xff]
    %v5147 = vld [vmem:[#allocation2 + $0x110] sm:$0xff]
    %v5148 = vld [vmem:[#allocation2 + $0x118] sm:$0xff]
    %v5149 = vld [vmem:[#allocation2 + $0x120] sm:$0xff]
    %v5150 = vld [vmem:[#allocation2 + $0x128] sm:$0xff]
    %v5151 = vld [vmem:[#allocation2 + $0x130] sm:$0xff]
    %v5152 = vld [vmem:[#allocation2 + $0x138] sm:$0xff]
    %v5153 = vld [vmem:[#allocation2 + $0x140] sm:$0xff]
    %v5154 = vld [vmem:[#allocation2 + $0x148] sm:$0xff]
    %v5155 = vld [vmem:[#allocation2 + $0x150] sm:$0xff]
    %v5156 = vld [vmem:[#allocation2 + $0x158] sm:$0xff]
    %v5157 = vld [vmem:[#allocation2 + $0x160] sm:$0xff]
    %v5158 = vld [vmem:[#allocation2 + $0x168] sm:$0xff]
    %v5159 = vld [vmem:[#allocation2 + $0x170] sm:$0xff]
    %v5160 = vld [vmem:[#allocation2 + $0x178] sm:$0xff]
    %v5161 = vld [vmem:[#allocation2 + $0x180] sm:$0xff]
    %v5162 = vld [vmem:[#allocation2 + $0x188] sm:$0xff]
    %v5163 = vld [vmem:[#allocation2 + $0x190] sm:$0xff]
    %v5164 = vld [vmem:[#allocation2 + $0x198] sm:$0xff]
    %v5165 = vld [vmem:[#allocation2 + $0x1a0] sm:$0xff]
    %v5166 = vld [vmem:[#allocation2 + $0x1a8] sm:$0xff]
    %v5167 = vld [vmem:[#allocation2 + $0x1b0] sm:$0xff]
    %v5168 = vld [vmem:[#allocation2 + $0x1b8] sm:$0xff]
    %v5169 = vld [vmem:[#allocation2 + $0x1c0] sm:$0xff]
    %v5170 = vld [vmem:[#allocation2 + $0x1c8] sm:$0xff]
    %v5171 = vld [vmem:[#allocation2 + $0x1d0] sm:$0xff]
    %v5172 = vld [vmem:[#allocation2 + $0x1d8] sm:$0xff]
    %v5173 = vld [vmem:[#allocation2 + $0x1e0] sm:$0xff]
    %v5174 = vld [vmem:[#allocation2 + $0x1e8] sm:$0xff]
    %v5175 = vld [vmem:[#allocation2 + $0x1f0] sm:$0xff]
    %v5176 = vld [vmem:[#allocation2 + $0x1f8] sm:$0xff]
    %s5177 = scalar_lea.vmem [#allocation8], 1024
    %v5178 = vld [vmem:[%s5177] sm:$0xf]
    %v5179 = vld [vmem:[%s5177 + $0x4] sm:$0xf]
    %v5180 = vld [vmem:[%s5177 + $0x8] sm:$0xf]
    %v5181 = vld [vmem:[%s5177 + $0xc] sm:$0xf]
    %v5182 = vld [vmem:[%s5177 + $0x10] sm:$0xf]
    %v5183 = vld [vmem:[%s5177 + $0x14] sm:$0xf]
    %v5184 = vld [vmem:[%s5177 + $0x18] sm:$0xf]
    %v5185 = vld [vmem:[%s5177 + $0x1c] sm:$0xf]
    %v5186 = vld [vmem:[%s5177 + $0x20] sm:$0xf]
    %v5187 = vld [vmem:[%s5177 + $0x24] sm:$0xf]
    %v5188 = vld [vmem:[%s5177 + $0x28] sm:$0xf]
    %v5189 = vld [vmem:[%s5177 + $0x2c] sm:$0xf]
    %v5190 = vld [vmem:[%s5177 + $0x30] sm:$0xf]
    %v5191 = vld [vmem:[%s5177 + $0x34] sm:$0xf]
    %v5192 = vld [vmem:[%s5177 + $0x38] sm:$0xf]
    %v5193 = vld [vmem:[%s5177 + $0x3c] sm:$0xf]
    %v5194 = vld [vmem:[%s5177 + $0x40] sm:$0xf]
    %v5195 = vld [vmem:[%s5177 + $0x44] sm:$0xf]
    %v5196 = vld [vmem:[%s5177 + $0x48] sm:$0xf]
    %v5197 = vld [vmem:[%s5177 + $0x4c] sm:$0xf]
    %v5198 = vld [vmem:[%s5177 + $0x50] sm:$0xf]
    %v5199 = vld [vmem:[%s5177 + $0x54] sm:$0xf]
    %v5200 = vld [vmem:[%s5177 + $0x58] sm:$0xf]
    %v5201 = vld [vmem:[%s5177 + $0x5c] sm:$0xf]
    %v5202 = vld [vmem:[%s5177 + $0x60] sm:$0xf]
    %v5203 = vld [vmem:[%s5177 + $0x64] sm:$0xf]
    %v5204 = vld [vmem:[%s5177 + $0x68] sm:$0xf]
    %v5205 = vld [vmem:[%s5177 + $0x6c] sm:$0xf]
    %v5206 = vld [vmem:[%s5177 + $0x70] sm:$0xf]
    %v5207 = vld [vmem:[%s5177 + $0x74] sm:$0xf]
    %v5208 = vld [vmem:[%s5177 + $0x78] sm:$0xf]
    %v5209 = vld [vmem:[%s5177 + $0x7c] sm:$0xf]
    %v5210 = vld [vmem:[%s5177 + $0x80] sm:$0xf]
    %v5211 = vld [vmem:[%s5177 + $0x84] sm:$0xf]
    %v5212 = vld [vmem:[%s5177 + $0x88] sm:$0xf]
    %v5213 = vld [vmem:[%s5177 + $0x8c] sm:$0xf]
    %v5214 = vld [vmem:[%s5177 + $0x90] sm:$0xf]
    %v5215 = vld [vmem:[%s5177 + $0x94] sm:$0xf]
    %v5216 = vld [vmem:[%s5177 + $0x98] sm:$0xf]
    %v5217 = vld [vmem:[%s5177 + $0x9c] sm:$0xf]
    %v5218 = vld [vmem:[%s5177 + $0xa0] sm:$0xf]
    %v5219 = vld [vmem:[%s5177 + $0xa4] sm:$0xf]
    %v5220 = vld [vmem:[%s5177 + $0xa8] sm:$0xf]
    %v5221 = vld [vmem:[%s5177 + $0xac] sm:$0xf]
    %v5222 = vld [vmem:[%s5177 + $0xb0] sm:$0xf]
    %v5223 = vld [vmem:[%s5177 + $0xb4] sm:$0xf]
    %v5224 = vld [vmem:[%s5177 + $0xb8] sm:$0xf]
    %v5225 = vld [vmem:[%s5177 + $0xbc] sm:$0xf]
    %v5226 = vld [vmem:[%s5177 + $0xc0] sm:$0xf]
    %v5227 = vld [vmem:[%s5177 + $0xc4] sm:$0xf]
    %v5228 = vld [vmem:[%s5177 + $0xc8] sm:$0xf]
    %v5229 = vld [vmem:[%s5177 + $0xcc] sm:$0xf]
    %v5230 = vld [vmem:[%s5177 + $0xd0] sm:$0xf]
    %v5231 = vld [vmem:[%s5177 + $0xd4] sm:$0xf]
    %v5232 = vld [vmem:[%s5177 + $0xd8] sm:$0xf]
    %v5233 = vld [vmem:[%s5177 + $0xdc] sm:$0xf]
    %v5234 = vld [vmem:[%s5177 + $0xe0] sm:$0xf]
    %v5235 = vld [vmem:[%s5177 + $0xe4] sm:$0xf]
    %v5236 = vld [vmem:[%s5177 + $0xe8] sm:$0xf]
    %v5237 = vld [vmem:[%s5177 + $0xec] sm:$0xf]
    %v5238 = vld [vmem:[%s5177 + $0xf0] sm:$0xf]
    %v5239 = vld [vmem:[%s5177 + $0xf4] sm:$0xf]
    %v5240 = vld [vmem:[%s5177 + $0xf8] sm:$0xf]
    %v5241 = vld [vmem:[%s5177 + $0xfc] sm:$0xf]
    %v5242 = vld [vmem:[%s5177 + $0x100] sm:$0xf]
    %v5243 = vld [vmem:[%s5177 + $0x104] sm:$0xf]
    %v5244 = vld [vmem:[%s5177 + $0x108] sm:$0xf]
    %v5245 = vld [vmem:[%s5177 + $0x10c] sm:$0xf]
    %v5246 = vld [vmem:[%s5177 + $0x110] sm:$0xf]
    %v5247 = vld [vmem:[%s5177 + $0x114] sm:$0xf]
    %v5248 = vld [vmem:[%s5177 + $0x118] sm:$0xf]
    %v5249 = vld [vmem:[%s5177 + $0x11c] sm:$0xf]
    %v5250 = vld [vmem:[%s5177 + $0x120] sm:$0xf]
    %v5251 = vld [vmem:[%s5177 + $0x124] sm:$0xf]
    %v5252 = vld [vmem:[%s5177 + $0x128] sm:$0xf]
    %v5253 = vld [vmem:[%s5177 + $0x12c] sm:$0xf]
    %v5254 = vld [vmem:[%s5177 + $0x130] sm:$0xf]
    %v5255 = vld [vmem:[%s5177 + $0x134] sm:$0xf]
    %v5256 = vld [vmem:[%s5177 + $0x138] sm:$0xf]
    %v5257 = vld [vmem:[%s5177 + $0x13c] sm:$0xf]
    %v5258 = vld [vmem:[%s5177 + $0x140] sm:$0xf]
    %v5259 = vld [vmem:[%s5177 + $0x144] sm:$0xf]
    %v5260 = vld [vmem:[%s5177 + $0x148] sm:$0xf]
    %v5261 = vld [vmem:[%s5177 + $0x14c] sm:$0xf]
    %v5262 = vld [vmem:[%s5177 + $0x150] sm:$0xf]
    %v5263 = vld [vmem:[%s5177 + $0x154] sm:$0xf]
    %v5264 = vld [vmem:[%s5177 + $0x158] sm:$0xf]
    %v5265 = vld [vmem:[%s5177 + $0x15c] sm:$0xf]
    %v5266 = vld [vmem:[%s5177 + $0x160] sm:$0xf]
    %v5267 = vld [vmem:[%s5177 + $0x164] sm:$0xf]
    %v5268 = vld [vmem:[%s5177 + $0x168] sm:$0xf]
    %v5269 = vld [vmem:[%s5177 + $0x16c] sm:$0xf]
    %v5270 = vld [vmem:[%s5177 + $0x170] sm:$0xf]
    %v5271 = vld [vmem:[%s5177 + $0x174] sm:$0xf]
    %v5272 = vld [vmem:[%s5177 + $0x178] sm:$0xf]
    %v5273 = vld [vmem:[%s5177 + $0x17c] sm:$0xf]
    %v5274 = vld [vmem:[%s5177 + $0x180] sm:$0xf]
    %v5275 = vld [vmem:[%s5177 + $0x184] sm:$0xf]
    %v5276 = vld [vmem:[%s5177 + $0x188] sm:$0xf]
    %v5277 = vld [vmem:[%s5177 + $0x18c] sm:$0xf]
    %v5278 = vld [vmem:[%s5177 + $0x190] sm:$0xf]
    %v5279 = vld [vmem:[%s5177 + $0x194] sm:$0xf]
    %v5280 = vld [vmem:[%s5177 + $0x198] sm:$0xf]
    %v5281 = vld [vmem:[%s5177 + $0x19c] sm:$0xf]
    %v5282 = vld [vmem:[%s5177 + $0x1a0] sm:$0xf]
    %v5283 = vld [vmem:[%s5177 + $0x1a4] sm:$0xf]
    %v5284 = vld [vmem:[%s5177 + $0x1a8] sm:$0xf]
    %v5285 = vld [vmem:[%s5177 + $0x1ac] sm:$0xf]
    %v5286 = vld [vmem:[%s5177 + $0x1b0] sm:$0xf]
    %v5287 = vld [vmem:[%s5177 + $0x1b4] sm:$0xf]
    %v5288 = vld [vmem:[%s5177 + $0x1b8] sm:$0xf]
    %v5289 = vld [vmem:[%s5177 + $0x1bc] sm:$0xf]
    %v5290 = vld [vmem:[%s5177 + $0x1c0] sm:$0xf]
    %v5291 = vld [vmem:[%s5177 + $0x1c4] sm:$0xf]
    %v5292 = vld [vmem:[%s5177 + $0x1c8] sm:$0xf]
    %v5293 = vld [vmem:[%s5177 + $0x1cc] sm:$0xf]
    %v5294 = vld [vmem:[%s5177 + $0x1d0] sm:$0xf]
    %v5295 = vld [vmem:[%s5177 + $0x1d4] sm:$0xf]
    %v5296 = vld [vmem:[%s5177 + $0x1d8] sm:$0xf]
    %v5297 = vld [vmem:[%s5177 + $0x1dc] sm:$0xf]
    %v5298 = vld [vmem:[%s5177 + $0x1e0] sm:$0xf]
    %v5299 = vld [vmem:[%s5177 + $0x1e4] sm:$0xf]
    %v5300 = vld [vmem:[%s5177 + $0x1e8] sm:$0xf]
    %v5301 = vld [vmem:[%s5177 + $0x1ec] sm:$0xf]
    %v5302 = vld [vmem:[%s5177 + $0x1f0] sm:$0xf]
    %v5303 = vld [vmem:[%s5177 + $0x1f4] sm:$0xf]
    %v5304 = vld [vmem:[%s5177 + $0x1f8] sm:$0xf]
    %v5305 = vld [vmem:[%s5177 + $0x1fc] sm:$0xf]
    %s5306 = scalar_lea.vmem %s3, 2
    %v5307 = vld [vmem:[%s5306] sm:$0x1]
    %v5309 = vlaneseq
    %v5310 = vshrl.u32 %v5309, 7
    %v5311 = vsub.s32 0, %v5310
    %v5312 = vrot.slane %v5307, %v5311
    %v5442 = vunpack.c.l.b16 %v5178
    %v5443 = vunpack.c.l.b16 %v5179
    %v5444 = vunpack.c.l.b16 %v5180
    %v5445 = vunpack.c.l.b16 %v5181
    %v5446 = vunpack.c.l.b16 %v5182
    %v5447 = vunpack.c.l.b16 %v5183
    %v5448 = vunpack.c.l.b16 %v5184
    %v5449 = vunpack.c.l.b16 %v5185
    %v5450 = vunpack.c.l.b16 %v5186
    %v5451 = vunpack.c.l.b16 %v5187
    %v5452 = vunpack.c.l.b16 %v5188
    %v5453 = vunpack.c.l.b16 %v5189
    %v5454 = vunpack.c.l.b16 %v5190
    %v5455 = vunpack.c.l.b16 %v5191
    %v5456 = vunpack.c.l.b16 %v5192
    %v5457 = vunpack.c.l.b16 %v5193
    %v5458 = vunpack.c.l.b16 %v5194
    %v5459 = vunpack.c.l.b16 %v5195
    %v5460 = vunpack.c.l.b16 %v5196
    %v5461 = vunpack.c.l.b16 %v5197
    %v5462 = vunpack.c.l.b16 %v5198
    %v5463 = vunpack.c.l.b16 %v5199
    %v5464 = vunpack.c.l.b16 %v5200
    %v5465 = vunpack.c.l.b16 %v5201
    %v5466 = vunpack.c.l.b16 %v5202
    %v5467 = vunpack.c.l.b16 %v5203
    %v5468 = vunpack.c.l.b16 %v5204
    %v5469 = vunpack.c.l.b16 %v5205
    %v5470 = vunpack.c.l.b16 %v5206
    %v5471 = vunpack.c.l.b16 %v5207
    %v5472 = vunpack.c.l.b16 %v5208
    %v5473 = vunpack.c.l.b16 %v5209
    %v5474 = vunpack.c.l.b16 %v5210
    %v5475 = vunpack.c.l.b16 %v5211
    %v5476 = vunpack.c.l.b16 %v5212
    %v5477 = vunpack.c.l.b16 %v5213
    %v5478 = vunpack.c.l.b16 %v5214
    %v5479 = vunpack.c.l.b16 %v5215
    %v5480 = vunpack.c.l.b16 %v5216
    %v5481 = vunpack.c.l.b16 %v5217
    %v5482 = vunpack.c.l.b16 %v5218
    %v5483 = vunpack.c.l.b16 %v5219
    %v5484 = vunpack.c.l.b16 %v5220
    %v5485 = vunpack.c.l.b16 %v5221
    %v5486 = vunpack.c.l.b16 %v5222
    %v5487 = vunpack.c.l.b16 %v5223
    %v5488 = vunpack.c.l.b16 %v5224
    %v5489 = vunpack.c.l.b16 %v5225
    %v5490 = vunpack.c.l.b16 %v5226
    %v5491 = vunpack.c.l.b16 %v5227
    %v5492 = vunpack.c.l.b16 %v5228
    %v5493 = vunpack.c.l.b16 %v5229
    %v5494 = vunpack.c.l.b16 %v5230
    %v5495 = vunpack.c.l.b16 %v5231
    %v5496 = vunpack.c.l.b16 %v5232
    %v5497 = vunpack.c.l.b16 %v5233
    %v5498 = vunpack.c.l.b16 %v5234
    %v5499 = vunpack.c.l.b16 %v5235
    %v5500 = vunpack.c.l.b16 %v5236
    %v5501 = vunpack.c.l.b16 %v5237
    %v5502 = vunpack.c.l.b16 %v5238
    %v5503 = vunpack.c.l.b16 %v5239
    %v5504 = vunpack.c.l.b16 %v5240
    %v5505 = vunpack.c.l.b16 %v5241
    %v5506 = vunpack.c.l.b16 %v5242
    %v5507 = vunpack.c.l.b16 %v5243
    %v5508 = vunpack.c.l.b16 %v5244
    %v5509 = vunpack.c.l.b16 %v5245
    %v5510 = vunpack.c.l.b16 %v5246
    %v5511 = vunpack.c.l.b16 %v5247
    %v5512 = vunpack.c.l.b16 %v5248
    %v5513 = vunpack.c.l.b16 %v5249
    %v5514 = vunpack.c.l.b16 %v5250
    %v5515 = vunpack.c.l.b16 %v5251
    %v5516 = vunpack.c.l.b16 %v5252
    %v5517 = vunpack.c.l.b16 %v5253
    %v5518 = vunpack.c.l.b16 %v5254
    %v5519 = vunpack.c.l.b16 %v5255
    %v5520 = vunpack.c.l.b16 %v5256
    %v5521 = vunpack.c.l.b16 %v5257
    %v5522 = vunpack.c.l.b16 %v5258
    %v5523 = vunpack.c.l.b16 %v5259
    %v5524 = vunpack.c.l.b16 %v5260
    %v5525 = vunpack.c.l.b16 %v5261
    %v5526 = vunpack.c.l.b16 %v5262
    %v5527 = vunpack.c.l.b16 %v5263
    %v5528 = vunpack.c.l.b16 %v5264
    %v5529 = vunpack.c.l.b16 %v5265
    %v5530 = vunpack.c.l.b16 %v5266
    %v5531 = vunpack.c.l.b16 %v5267
    %v5532 = vunpack.c.l.b16 %v5268
    %v5533 = vunpack.c.l.b16 %v5269
    %v5534 = vunpack.c.l.b16 %v5270
    %v5535 = vunpack.c.l.b16 %v5271
    %v5536 = vunpack.c.l.b16 %v5272
    %v5537 = vunpack.c.l.b16 %v5273
    %v5538 = vunpack.c.l.b16 %v5274
    %v5539 = vunpack.c.l.b16 %v5275
    %v5540 = vunpack.c.l.b16 %v5276
    %v5541 = vunpack.c.l.b16 %v5277
    %v5542 = vunpack.c.l.b16 %v5278
    %v5543 = vunpack.c.l.b16 %v5279
    %v5544 = vunpack.c.l.b16 %v5280
    %v5545 = vunpack.c.l.b16 %v5281
    %v5546 = vunpack.c.l.b16 %v5282
    %v5547 = vunpack.c.l.b16 %v5283
    %v5548 = vunpack.c.l.b16 %v5284
    %v5549 = vunpack.c.l.b16 %v5285
    %v5550 = vunpack.c.l.b16 %v5286
    %v5551 = vunpack.c.l.b16 %v5287
    %v5552 = vunpack.c.l.b16 %v5288
    %v5553 = vunpack.c.l.b16 %v5289
    %v5554 = vunpack.c.l.b16 %v5290
    %v5555 = vunpack.c.l.b16 %v5291
    %v5556 = vunpack.c.l.b16 %v5292
    %v5557 = vunpack.c.l.b16 %v5293
    %v5558 = vunpack.c.l.b16 %v5294
    %v5559 = vunpack.c.l.b16 %v5295
    %v5560 = vunpack.c.l.b16 %v5296
    %v5561 = vunpack.c.l.b16 %v5297
    %v5562 = vunpack.c.l.b16 %v5298
    %v5563 = vunpack.c.l.b16 %v5299
    %v5564 = vunpack.c.l.b16 %v5300
    %v5565 = vunpack.c.l.b16 %v5301
    %v5566 = vunpack.c.l.b16 %v5302
    %v5567 = vunpack.c.l.b16 %v5303
    %v5568 = vunpack.c.l.b16 %v5304
    %v5569 = vunpack.c.l.b16 %v5305
    %v5570 = vpack.c.b16 %v5443, %v5442
    %v5571 = vpack.c.b16 %v5445, %v5444
    %v5572 = vpack.c.b16 %v5447, %v5446
    %v5573 = vpack.c.b16 %v5449, %v5448
    %v5574 = vpack.c.b16 %v5451, %v5450
    %v5575 = vpack.c.b16 %v5453, %v5452
    %v5576 = vpack.c.b16 %v5455, %v5454
    %v5577 = vpack.c.b16 %v5457, %v5456
    %v5578 = vpack.c.b16 %v5459, %v5458
    %v5579 = vpack.c.b16 %v5461, %v5460
    %v5580 = vpack.c.b16 %v5463, %v5462
    %v5581 = vpack.c.b16 %v5465, %v5464
    %v5582 = vpack.c.b16 %v5467, %v5466
    %v5583 = vpack.c.b16 %v5469, %v5468
    %v5584 = vpack.c.b16 %v5471, %v5470
    %v5585 = vpack.c.b16 %v5473, %v5472
    %v5586 = vpack.c.b16 %v5475, %v5474
    %v5587 = vpack.c.b16 %v5477, %v5476
    %v5588 = vpack.c.b16 %v5479, %v5478
    %v5589 = vpack.c.b16 %v5481, %v5480
    %v5590 = vpack.c.b16 %v5483, %v5482
    %v5591 = vpack.c.b16 %v5485, %v5484
    %v5592 = vpack.c.b16 %v5487, %v5486
    %v5593 = vpack.c.b16 %v5489, %v5488
    %v5594 = vpack.c.b16 %v5491, %v5490
    %v5595 = vpack.c.b16 %v5493, %v5492
    %v5596 = vpack.c.b16 %v5495, %v5494
    %v5597 = vpack.c.b16 %v5497, %v5496
    %v5598 = vpack.c.b16 %v5499, %v5498
    %v5599 = vpack.c.b16 %v5501, %v5500
    %v5600 = vpack.c.b16 %v5503, %v5502
    %v5601 = vpack.c.b16 %v5505, %v5504
    %v5602 = vpack.c.b16 %v5507, %v5506
    %v5603 = vpack.c.b16 %v5509, %v5508
    %v5604 = vpack.c.b16 %v5511, %v5510
    %v5605 = vpack.c.b16 %v5513, %v5512
    %v5606 = vpack.c.b16 %v5515, %v5514
    %v5607 = vpack.c.b16 %v5517, %v5516
    %v5608 = vpack.c.b16 %v5519, %v5518
    %v5609 = vpack.c.b16 %v5521, %v5520
    %v5610 = vpack.c.b16 %v5523, %v5522
    %v5611 = vpack.c.b16 %v5525, %v5524
    %v5612 = vpack.c.b16 %v5527, %v5526
    %v5613 = vpack.c.b16 %v5529, %v5528
    %v5614 = vpack.c.b16 %v5531, %v5530
    %v5615 = vpack.c.b16 %v5533, %v5532
    %v5616 = vpack.c.b16 %v5535, %v5534
    %v5617 = vpack.c.b16 %v5537, %v5536
    %v5618 = vpack.c.b16 %v5539, %v5538
    %v5619 = vpack.c.b16 %v5541, %v5540
    %v5620 = vpack.c.b16 %v5543, %v5542
    %v5621 = vpack.c.b16 %v5545, %v5544
    %v5622 = vpack.c.b16 %v5547, %v5546
    %v5623 = vpack.c.b16 %v5549, %v5548
    %v5624 = vpack.c.b16 %v5551, %v5550
    %v5625 = vpack.c.b16 %v5553, %v5552
    %v5626 = vpack.c.b16 %v5555, %v5554
    %v5627 = vpack.c.b16 %v5557, %v5556
    %v5628 = vpack.c.b16 %v5559, %v5558
    %v5629 = vpack.c.b16 %v5561, %v5560
    %v5630 = vpack.c.b16 %v5563, %v5562
    %v5631 = vpack.c.b16 %v5565, %v5564
    %v5632 = vpack.c.b16 %v5567, %v5566
    %v5633 = vpack.c.b16 %v5569, %v5568
    %5698 = vmatprep.subr.bf16.mxu0 0
    %5699 = vmatpush1.bf16.msra.mxu0 %v5570
    %5700 = vmatprep.subr.bf16.mxu0 0
    %5701 = vmatpush1.bf16.msra.mxu0 %v5571
    %5702 = vmatprep.subr.bf16.mxu0 0
    %5703 = vmatpush1.bf16.msra.mxu0 %v5572
    %5704 = vmatprep.subr.bf16.mxu0 0
    %5705 = vmatpush1.bf16.msra.mxu0 %v5573
    %5706 = vmatprep.subr.bf16.mxu0 0
    %5707 = vmatpush1.bf16.msra.mxu0 %v5574
    %5708 = vmatprep.subr.bf16.mxu0 0
    %5709 = vmatpush1.bf16.msra.mxu0 %v5575
    %5710 = vmatprep.subr.bf16.mxu0 0
    %5711 = vmatpush1.bf16.msra.mxu0 %v5576
    %5712 = vmatprep.subr.bf16.mxu0 0
    %5713 = vmatpush1.bf16.msra.mxu0 %v5577
    %5714 = vmatprep.subr.bf16.mxu0 0
    %5715 = vmatpush1.bf16.msra.mxu0 %v5578
    %5716 = vmatprep.subr.bf16.mxu0 0
    %5717 = vmatpush1.bf16.msra.mxu0 %v5579
    %5718 = vmatprep.subr.bf16.mxu0 0
    %5719 = vmatpush1.bf16.msra.mxu0 %v5580
    %5720 = vmatprep.subr.bf16.mxu0 0
    %5721 = vmatpush1.bf16.msra.mxu0 %v5581
    %5722 = vmatprep.subr.bf16.mxu0 0
    %5723 = vmatpush1.bf16.msra.mxu0 %v5582
    %5724 = vmatprep.subr.bf16.mxu0 0
    %5725 = vmatpush1.bf16.msra.mxu0 %v5583
    %5726 = vmatprep.subr.bf16.mxu0 0
    %5727 = vmatpush1.bf16.msra.mxu0 %v5584
    %5728 = vmatprep.subr.bf16.mxu0 0
    %5729 = vmatpush1.bf16.msra.mxu0 %v5585
    %5730 = vmatprep.mubr.bf16.mxu0 %v5114
    %5731 = vmatmul.mubr.bf16.gmra.mrb[0].mxu0 %v5113
    %v5732 = vpop.f32.mrb[0].mxu0
    %v5733 = vadd.f32 %v5312, %v5732
    %v5734 = vpop.f32.mrb[0].mxu0
    %v5735 = vpop.f32.mrb[0].mxu0
    %v5736 = vadd.f32 %v5312, %v5735
    %v5737 = vpop.f32.mrb[0].mxu0
    %5738 = vmatprep.mubr.bf16.mxu0 %v5122
    %5739 = vmatmul.mubr.bf16.gmra.mrb[0].mxu0 %v5121
    %v5740 = vpop.f32.mrb[0].mxu0
    %v5741 = vadd.f32 %v5312, %v5740
    %v5742 = vpop.f32.mrb[0].mxu0
    %v5743 = vpop.f32.mrb[0].mxu0
    %v5744 = vadd.f32 %v5312, %v5743
    %v5745 = vpop.f32.mrb[0].mxu0
    %5746 = vmatprep.mubr.bf16.mxu0 %v5130
    %5747 = vmatmul.mubr.bf16.gmra.mrb[0].mxu0 %v5129
    %v5748 = vpop.f32.mrb[0].mxu0
    %v5749 = vadd.f32 %v5312, %v5748
    %v5750 = vpop.f32.mrb[0].mxu0
    %v5751 = vpop.f32.mrb[0].mxu0
    %v5752 = vadd.f32 %v5312, %v5751
    %v5753 = vpop.f32.mrb[0].mxu0
    %5754 = vmatprep.mubr.bf16.mxu0 %v5138
    %5755 = vmatmul.mubr.bf16.gmra.mrb[0].mxu0 %v5137
    %v5756 = vpop.f32.mrb[0].mxu0
    %v5757 = vadd.f32 %v5312, %v5756
    %v5758 = vpop.f32.mrb[0].mxu0
    %v5759 = vpop.f32.mrb[0].mxu0
    %v5760 = vadd.f32 %v5312, %v5759
    %v5761 = vpop.f32.mrb[0].mxu0
    %5762 = vmatprep.mubr.bf16.mxu0 %v5146
    %5763 = vmatmul.mubr.bf16.gmra.mrb[0].mxu0 %v5145
    %v5764 = vpop.f32.mrb[0].mxu0
    %v5765 = vadd.f32 %v5312, %v5764
    %v5766 = vpop.f32.mrb[0].mxu0
    %v5767 = vpop.f32.mrb[0].mxu0
    %v5768 = vadd.f32 %v5312, %v5767
    %v5769 = vpop.f32.mrb[0].mxu0
    %5770 = vmatprep.mubr.bf16.mxu0 %v5154
    %5771 = vmatmul.mubr.bf16.gmra.mrb[0].mxu0 %v5153
    %v5772 = vpop.f32.mrb[0].mxu0
    %v5773 = vadd.f32 %v5312, %v5772
    %v5774 = vpop.f32.mrb[0].mxu0
    %v5775 = vpop.f32.mrb[0].mxu0
    %v5776 = vadd.f32 %v5312, %v5775
    %v5777 = vpop.f32.mrb[0].mxu0
    %5778 = vmatprep.mubr.bf16.mxu0 %v5162
    %5779 = vmatmul.mubr.bf16.gmra.mrb[0].mxu0 %v5161
    %v5780 = vpop.f32.mrb[0].mxu0
    %v5781 = vadd.f32 %v5312, %v5780
    %v5782 = vpop.f32.mrb[0].mxu0
    %v5783 = vpop.f32.mrb[0].mxu0
    %v5784 = vadd.f32 %v5312, %v5783
    %v5785 = vpop.f32.mrb[0].mxu0
    %5786 = vmatprep.mubr.bf16.mxu0 %v5170
    %5787 = vmatmul.mubr.bf16.gmra.mrb[0].mxu0 %v5169
    %v5788 = vpop.f32.mrb[0].mxu0
    %v5789 = vadd.f32 %v5312, %v5788
    %v5790 = vpop.f32.mrb[0].mxu0
    %v5791 = vpop.f32.mrb[0].mxu0
    %v5792 = vadd.f32 %v5312, %v5791
    %v5793 = vpop.f32.mrb[0].mxu0
    %5794 = vdwg.mxu0
    %5795 = vmatprep.subr.bf16.mxu0 0
    %5796 = vmatpush1.bf16.msra.mxu0 %v5586
    %5797 = vmatprep.subr.bf16.mxu0 0
    %5798 = vmatpush1.bf16.msra.mxu0 %v5587
    %5799 = vmatprep.subr.bf16.mxu0 0
    %5800 = vmatpush1.bf16.msra.mxu0 %v5588
    %5801 = vmatprep.subr.bf16.mxu0 0
    %5802 = vmatpush1.bf16.msra.mxu0 %v5589
    %5803 = vmatprep.subr.bf16.mxu0 0
    %5804 = vmatpush1.bf16.msra.mxu0 %v5590
    %5805 = vmatprep.subr.bf16.mxu0 0
    %5806 = vmatpush1.bf16.msra.mxu0 %v5591
    %5807 = vmatprep.subr.bf16.mxu0 0
    %5808 = vmatpush1.bf16.msra.mxu0 %v5592
    %5809 = vmatprep.subr.bf16.mxu0 0
    %5810 = vmatpush1.bf16.msra.mxu0 %v5593
    %5811 = vmatprep.subr.bf16.mxu0 0
    %5812 = vmatpush1.bf16.msra.mxu0 %v5594
    %5813 = vmatprep.subr.bf16.mxu0 0
    %5814 = vmatpush1.bf16.msra.mxu0 %v5595
    %5815 = vmatprep.subr.bf16.mxu0 0
    %5816 = vmatpush1.bf16.msra.mxu0 %v5596
    %5817 = vmatprep.subr.bf16.mxu0 0
    %5818 = vmatpush1.bf16.msra.mxu0 %v5597
    %5819 = vmatprep.subr.bf16.mxu0 0
    %5820 = vmatpush1.bf16.msra.mxu0 %v5598
    %5821 = vmatprep.subr.bf16.mxu0 0
    %5822 = vmatpush1.bf16.msra.mxu0 %v5599
    %5823 = vmatprep.subr.bf16.mxu0 0
    %5824 = vmatpush1.bf16.msra.mxu0 %v5600
    %5825 = vmatprep.subr.bf16.mxu0 0
    %5826 = vmatpush1.bf16.msra.mxu0 %v5601
    %5827 = vmatprep.mubr.bf16.mxu0 %v5116
    %5828 = vmatmul.mubr.bf16.gmra.mrb[0].mxu0 %v5115
    %v5829 = vpop.f32.mrb[0].mxu0
    %v5830 = vadd.f32 %v5733, %v5829
    %v5831 = vpop.f32.mrb[0].mxu0
    %v5832 = vpop.f32.mrb[0].mxu0
    %v5833 = vadd.f32 %v5736, %v5832
    %v5834 = vpop.f32.mrb[0].mxu0
    %5835 = vmatprep.mubr.bf16.mxu0 %v5124
    %5836 = vmatmul.mubr.bf16.gmra.mrb[0].mxu0 %v5123
    %v5837 = vpop.f32.mrb[0].mxu0
    %v5838 = vadd.f32 %v5741, %v5837
    %v5839 = vpop.f32.mrb[0].mxu0
    %v5840 = vpop.f32.mrb[0].mxu0
    %v5841 = vadd.f32 %v5744, %v5840
    %v5842 = vpop.f32.mrb[0].mxu0
    %5843 = vmatprep.mubr.bf16.mxu0 %v5132
    %5844 = vmatmul.mubr.bf16.gmra.mrb[0].mxu0 %v5131
    %v5845 = vpop.f32.mrb[0].mxu0
    %v5846 = vadd.f32 %v5749, %v5845
    %v5847 = vpop.f32.mrb[0].mxu0
    %v5848 = vpop.f32.mrb[0].mxu0
    %v5849 = vadd.f32 %v5752, %v5848
    %v5850 = vpop.f32.mrb[0].mxu0
    %5851 = vmatprep.mubr.bf16.mxu0 %v5140
    %5852 = vmatmul.mubr.bf16.gmra.mrb[0].mxu0 %v5139
    %v5853 = vpop.f32.mrb[0].mxu0
    %v5854 = vadd.f32 %v5757, %v5853
    %v5855 = vpop.f32.mrb[0].mxu0
    %v5856 = vpop.f32.mrb[0].mxu0
    %v5857 = vadd.f32 %v5760, %v5856
    %v5858 = vpop.f32.mrb[0].mxu0
    %5859 = vmatprep.mubr.bf16.mxu0 %v5148
    %5860 = vmatmul.mubr.bf16.gmra.mrb[0].mxu0 %v5147
    %v5861 = vpop.f32.mrb[0].mxu0
    %v5862 = vadd.f32 %v5765, %v5861
    %v5863 = vpop.f32.mrb[0].mxu0
    %v5864 = vpop.f32.mrb[0].mxu0
    %v5865 = vadd.f32 %v5768, %v5864
    %v5866 = vpop.f32.mrb[0].mxu0
    %5867 = vmatprep.mubr.bf16.mxu0 %v5156
    %5868 = vmatmul.mubr.bf16.gmra.mrb[0].mxu0 %v5155
    %v5869 = vpop.f32.mrb[0].mxu0
    %v5870 = vadd.f32 %v5773, %v5869
    %v5871 = vpop.f32.mrb[0].mxu0
    %v5872 = vpop.f32.mrb[0].mxu0
    %v5873 = vadd.f32 %v5776, %v5872
    %v5874 = vpop.f32.mrb[0].mxu0
    %5875 = vmatprep.mubr.bf16.mxu0 %v5164
    %5876 = vmatmul.mubr.bf16.gmra.mrb[0].mxu0 %v5163
    %v5877 = vpop.f32.mrb[0].mxu0
    %v5878 = vadd.f32 %v5781, %v5877
    %v5879 = vpop.f32.mrb[0].mxu0
    %v5880 = vpop.f32.mrb[0].mxu0
    %v5881 = vadd.f32 %v5784, %v5880
    %v5882 = vpop.f32.mrb[0].mxu0
    %5883 = vmatprep.mubr.bf16.mxu0 %v5172
    %5884 = vmatmul.mubr.bf16.gmra.mrb[0].mxu0 %v5171
    %v5885 = vpop.f32.mrb[0].mxu0
    %v5886 = vadd.f32 %v5789, %v5885
    %v5887 = vpop.f32.mrb[0].mxu0
    %v5888 = vpop.f32.mrb[0].mxu0
    %v5889 = vadd.f32 %v5792, %v5888
    %v5890 = vpop.f32.mrb[0].mxu0
    %5891 = vdwg.mxu0
    %5892 = vmatprep.subr.bf16.mxu0 0
    %5893 = vmatpush1.bf16.msra.mxu0 %v5602
    %5894 = vmatprep.subr.bf16.mxu0 0
    %5895 = vmatpush1.bf16.msra.mxu0 %v5603
    %5896 = vmatprep.subr.bf16.mxu0 0
    %5897 = vmatpush1.bf16.msra.mxu0 %v5604
    %5898 = vmatprep.subr.bf16.mxu0 0
    %5899 = vmatpush1.bf16.msra.mxu0 %v5605
    %5900 = vmatprep.subr.bf16.mxu0 0
    %5901 = vmatpush1.bf16.msra.mxu0 %v5606
    %5902 = vmatprep.subr.bf16.mxu0 0
    %5903 = vmatpush1.bf16.msra.mxu0 %v5607
    %5904 = vmatprep.subr.bf16.mxu0 0
    %5905 = vmatpush1.bf16.msra.mxu0 %v5608
    %5906 = vmatprep.subr.bf16.mxu0 0
    %5907 = vmatpush1.bf16.msra.mxu0 %v5609
    %5908 = vmatprep.subr.bf16.mxu0 0
    %5909 = vmatpush1.bf16.msra.mxu0 %v5610
    %5910 = vmatprep.subr.bf16.mxu0 0
    %5911 = vmatpush1.bf16.msra.mxu0 %v5611
    %5912 = vmatprep.subr.bf16.mxu0 0
    %5913 = vmatpush1.bf16.msra.mxu0 %v5612
    %5914 = vmatprep.subr.bf16.mxu0 0
    %5915 = vmatpush1.bf16.msra.mxu0 %v5613
    %5916 = vmatprep.subr.bf16.mxu0 0
    %5917 = vmatpush1.bf16.msra.mxu0 %v5614
    %5918 = vmatprep.subr.bf16.mxu0 0
    %5919 = vmatpush1.bf16.msra.mxu0 %v5615
    %5920 = vmatprep.subr.bf16.mxu0 0
    %5921 = vmatpush1.bf16.msra.mxu0 %v5616
    %5922 = vmatprep.subr.bf16.mxu0 0
    %5923 = vmatpush1.bf16.msra.mxu0 %v5617
    %5924 = vmatprep.mubr.bf16.mxu0 %v5118
    %5925 = vmatmul.mubr.bf16.gmra.mrb[0].mxu0 %v5117
    %v5926 = vpop.f32.mrb[0].mxu0
    %v5927 = vadd.f32 %v5830, %v5926
    %v5928 = vpop.f32.mrb[0].mxu0
    %v5929 = vpop.f32.mrb[0].mxu0
    %v5930 = vadd.f32 %v5833, %v5929
    %v5931 = vpop.f32.mrb[0].mxu0
    %5932 = vmatprep.mubr.bf16.mxu0 %v5126
    %5933 = vmatmul.mubr.bf16.gmra.mrb[0].mxu0 %v5125
    %v5934 = vpop.f32.mrb[0].mxu0
    %v5935 = vadd.f32 %v5838, %v5934
    %v5936 = vpop.f32.mrb[0].mxu0
    %v5937 = vpop.f32.mrb[0].mxu0
    %v5938 = vadd.f32 %v5841, %v5937
    %v5939 = vpop.f32.mrb[0].mxu0
    %5940 = vmatprep.mubr.bf16.mxu0 %v5134
    %5941 = vmatmul.mubr.bf16.gmra.mrb[0].mxu0 %v5133
    %v5942 = vpop.f32.mrb[0].mxu0
    %v5943 = vadd.f32 %v5846, %v5942
    %v5944 = vpop.f32.mrb[0].mxu0
    %v5945 = vpop.f32.mrb[0].mxu0
    %v5946 = vadd.f32 %v5849, %v5945
    %v5947 = vpop.f32.mrb[0].mxu0
    %5948 = vmatprep.mubr.bf16.mxu0 %v5142
    %5949 = vmatmul.mubr.bf16.gmra.mrb[0].mxu0 %v5141
    %v5950 = vpop.f32.mrb[0].mxu0
    %v5951 = vadd.f32 %v5854, %v5950
    %v5952 = vpop.f32.mrb[0].mxu0
    %v5953 = vpop.f32.mrb[0].mxu0
    %v5954 = vadd.f32 %v5857, %v5953
    %v5955 = vpop.f32.mrb[0].mxu0
    %5956 = vmatprep.mubr.bf16.mxu0 %v5150
    %5957 = vmatmul.mubr.bf16.gmra.mrb[0].mxu0 %v5149
    %v5958 = vpop.f32.mrb[0].mxu0
    %v5959 = vadd.f32 %v5862, %v5958
    %v5960 = vpop.f32.mrb[0].mxu0
    %v5961 = vpop.f32.mrb[0].mxu0
    %v5962 = vadd.f32 %v5865, %v5961
    %v5963 = vpop.f32.mrb[0].mxu0
    %5964 = vmatprep.mubr.bf16.mxu0 %v5158
    %5965 = vmatmul.mubr.bf16.gmra.mrb[0].mxu0 %v5157
    %v5966 = vpop.f32.mrb[0].mxu0
    %v5967 = vadd.f32 %v5870, %v5966
    %v5968 = vpop.f32.mrb[0].mxu0
    %v5969 = vpop.f32.mrb[0].mxu0
    %v5970 = vadd.f32 %v5873, %v5969
    %v5971 = vpop.f32.mrb[0].mxu0
    %5972 = vmatprep.mubr.bf16.mxu0 %v5166
    %5973 = vmatmul.mubr.bf16.gmra.mrb[0].mxu0 %v5165
    %v5974 = vpop.f32.mrb[0].mxu0
    %v5975 = vadd.f32 %v5878, %v5974
    %v5976 = vpop.f32.mrb[0].mxu0
    %v5977 = vpop.f32.mrb[0].mxu0
    %v5978 = vadd.f32 %v5881, %v5977
    %v5979 = vpop.f32.mrb[0].mxu0
    %5980 = vmatprep.mubr.bf16.mxu0 %v5174
    %5981 = vmatmul.mubr.bf16.gmra.mrb[0].mxu0 %v5173
    %v5982 = vpop.f32.mrb[0].mxu0
    %v5983 = vadd.f32 %v5886, %v5982
    %v5984 = vpop.f32.mrb[0].mxu0
    %v5985 = vpop.f32.mrb[0].mxu0
    %v5986 = vadd.f32 %v5889, %v5985
    %v5987 = vpop.f32.mrb[0].mxu0
    %5988 = vdwg.mxu0
    %5989 = vmatprep.subr.bf16.mxu0 0
    %5990 = vmatpush1.bf16.msra.mxu0 %v5618
    %5991 = vmatprep.subr.bf16.mxu0 0
    %5992 = vmatpush1.bf16.msra.mxu0 %v5619
    %5993 = vmatprep.subr.bf16.mxu0 0
    %5994 = vmatpush1.bf16.msra.mxu0 %v5620
    %5995 = vmatprep.subr.bf16.mxu0 0
    %5996 = vmatpush1.bf16.msra.mxu0 %v5621
    %5997 = vmatprep.subr.bf16.mxu0 0
    %5998 = vmatpush1.bf16.msra.mxu0 %v5622
    %5999 = vmatprep.subr.bf16.mxu0 0
    %6000 = vmatpush1.bf16.msra.mxu0 %v5623
    %6001 = vmatprep.subr.bf16.mxu0 0
    %6002 = vmatpush1.bf16.msra.mxu0 %v5624
    %6003 = vmatprep.subr.bf16.mxu0 0
    %6004 = vmatpush1.bf16.msra.mxu0 %v5625
    %6005 = vmatprep.subr.bf16.mxu0 0
    %6006 = vmatpush1.bf16.msra.mxu0 %v5626
    %6007 = vmatprep.subr.bf16.mxu0 0
    %6008 = vmatpush1.bf16.msra.mxu0 %v5627
    %6009 = vmatprep.subr.bf16.mxu0 0
    %6010 = vmatpush1.bf16.msra.mxu0 %v5628
    %6011 = vmatprep.subr.bf16.mxu0 0
    %6012 = vmatpush1.bf16.msra.mxu0 %v5629
    %6013 = vmatprep.subr.bf16.mxu0 0
    %6014 = vmatpush1.bf16.msra.mxu0 %v5630
    %6015 = vmatprep.subr.bf16.mxu0 0
    %6016 = vmatpush1.bf16.msra.mxu0 %v5631
    %6017 = vmatprep.subr.bf16.mxu0 0
    %6018 = vmatpush1.bf16.msra.mxu0 %v5632
    %6019 = vmatprep.subr.bf16.mxu0 0
    %6020 = vmatpush1.bf16.msra.mxu0 %v5633
    %6021 = vmatprep.mubr.bf16.mxu0 %v5120
    %6022 = vmatmul.mubr.bf16.gmra.mrb[0].mxu0 %v5119
    %v6023 = vpop.f32.mrb[0].mxu0
    %v6024 = vadd.f32 %v5927, %v6023
    %v6025 = vpop.f32.mrb[0].mxu0
    %v6026 = vpop.f32.mrb[0].mxu0
    %v6027 = vadd.f32 %v5930, %v6026
    %v6028 = vpop.f32.mrb[0].mxu0
    %6029 = vmatprep.mubr.bf16.mxu0 %v5128
    %6030 = vmatmul.mubr.bf16.gmra.mrb[0].mxu0 %v5127
    %v6031 = vpop.f32.mrb[0].mxu0
    %v6032 = vadd.f32 %v5935, %v6031
    %v6033 = vpop.f32.mrb[0].mxu0
    %v6034 = vpop.f32.mrb[0].mxu0
    %v6035 = vadd.f32 %v5938, %v6034
    %v6036 = vpop.f32.mrb[0].mxu0
    %6037 = vmatprep.mubr.bf16.mxu0 %v5136
    %6038 = vmatmul.mubr.bf16.gmra.mrb[0].mxu0 %v5135
    %v6039 = vpop.f32.mrb[0].mxu0
    %v6040 = vadd.f32 %v5943, %v6039
    %v6041 = vpop.f32.mrb[0].mxu0
    %v6042 = vpop.f32.mrb[0].mxu0
    %v6043 = vadd.f32 %v5946, %v6042
    %v6044 = vpop.f32.mrb[0].mxu0
    %6045 = vmatprep.mubr.bf16.mxu0 %v5144
    %6046 = vmatmul.mubr.bf16.gmra.mrb[0].mxu0 %v5143
    %v6047 = vpop.f32.mrb[0].mxu0
    %v6048 = vadd.f32 %v5951, %v6047
    %v6049 = vpop.f32.mrb[0].mxu0
    %v6050 = vpop.f32.mrb[0].mxu0
    %v6051 = vadd.f32 %v5954, %v6050
    %v6052 = vpop.f32.mrb[0].mxu0
    %6053 = vmatprep.mubr.bf16.mxu0 %v5152
    %6054 = vmatmul.mubr.bf16.gmra.mrb[0].mxu0 %v5151
    %v6055 = vpop.f32.mrb[0].mxu0
    %v6056 = vadd.f32 %v5959, %v6055
    %v6057 = vpop.f32.mrb[0].mxu0
    %v6058 = vpop.f32.mrb[0].mxu0
    %v6059 = vadd.f32 %v5962, %v6058
    %v6060 = vpop.f32.mrb[0].mxu0
    %6061 = vmatprep.mubr.bf16.mxu0 %v5160
    %6062 = vmatmul.mubr.bf16.gmra.mrb[0].mxu0 %v5159
    %v6063 = vpop.f32.mrb[0].mxu0
    %v6064 = vadd.f32 %v5967, %v6063
    %v6065 = vpop.f32.mrb[0].mxu0
    %v6066 = vpop.f32.mrb[0].mxu0
    %v6067 = vadd.f32 %v5970, %v6066
    %v6068 = vpop.f32.mrb[0].mxu0
    %6069 = vmatprep.mubr.bf16.mxu0 %v5168
    %6070 = vmatmul.mubr.bf16.gmra.mrb[0].mxu0 %v5167
    %v6071 = vpop.f32.mrb[0].mxu0
    %v6072 = vadd.f32 %v5975, %v6071
    %v6073 = vpop.f32.mrb[0].mxu0
    %v6074 = vpop.f32.mrb[0].mxu0
    %v6075 = vadd.f32 %v5978, %v6074
    %v6076 = vpop.f32.mrb[0].mxu0
    %6077 = vmatprep.mubr.bf16.mxu0 %v5176
    %6078 = vmatmul.mubr.bf16.gmra.mrb[0].mxu0 %v5175
    %v6079 = vpop.f32.mrb[0].mxu0
    %v6080 = vadd.f32 %v5983, %v6079
    %v6081 = vpop.f32.mrb[0].mxu0
    %v6082 = vpop.f32.mrb[0].mxu0
    %v6083 = vadd.f32 %v5986, %v6082
    %v6084 = vpop.f32.mrb[0].mxu0
    %6085 = vdwg.mxu0
    %6086 = vst [vmem:[#allocation9] sm:$0xff] %v6024
    %6087 = vst [vmem:[#allocation9 + $0x8] sm:$0xff] %v6027
    %6088 = vst [vmem:[#allocation9 + $0x10] sm:$0xff] %v6032
    %6089 = vst [vmem:[#allocation9 + $0x18] sm:$0xff] %v6035
    %6090 = vst [vmem:[#allocation9 + $0x20] sm:$0xff] %v6040
    %6091 = vst [vmem:[#allocation9 + $0x28] sm:$0xff] %v6043
    %6092 = vst [vmem:[#allocation9 + $0x30] sm:$0xff] %v6048
    %6093 = vst [vmem:[#allocation9 + $0x38] sm:$0xff] %v6051
    %6094 = vst [vmem:[#allocation9 + $0x40] sm:$0xff] %v6056
    %6095 = vst [vmem:[#allocation9 + $0x48] sm:$0xff] %v6059
    %6096 = vst [vmem:[#allocation9 + $0x50] sm:$0xff] %v6064
    %6097 = vst [vmem:[#allocation9 + $0x58] sm:$0xff] %v6067
    %6098 = vst [vmem:[#allocation9 + $0x60] sm:$0xff] %v6072
    %6099 = vst [vmem:[#allocation9 + $0x68] sm:$0xff] %v6075
    %6100 = vst [vmem:[#allocation9 + $0x70] sm:$0xff] %v6080
    %6101 = vst [vmem:[#allocation9 + $0x78] sm:$0xff] %v6083
    // Predicated region
    $region30: #{tpu_custom_call.1} parent=1 // pred_check
      _
    $region31: #{tpu_custom_call.1} parent=1 // pred_check_branch
      %6103 = sbr.rel (0) target = $region33
    $region32: #{tpu_custom_call.1} parent=1 // pred_region
      %s6105 = ssub.s32 2048, 2048
      %6106 = vsyncadd [#allocation5], %s6105
      %s6107 = sshll.u32 [#allocation9], 4
      %s6108 = int_to_ptr.vmem [resolvable:$true] %s6107
      %6113 = dma.vmem_to_hbm [thread:$0]  %s6108, 2048, %s4, [#allocation5], 128, 128, 8
    $region33: #{tpu_custom_call.1} parent=1 // pred_fallthru
      _
    // Predicated region
    $region34: #{tpu_custom_call.1} parent=1 // pred_check
      _
    $region35: #{tpu_custom_call.1} parent=1 // pred_check_branch
      %6115 = sbr.rel (0) target = $region37
    $region36: #{tpu_custom_call.1} parent=1 // pred_region
      %6116 = dma.done [#allocation5], 2048
    $region37: #{tpu_custom_call.1} parent=1 // pred_fallthru
      _
    %6117 = vsyncpa [#allocation4], 1
    %6118 = vsyncpa [#allocation7], 1
    %6119 = vsyncpa [#allocation5], 1

</llo_original>
